<compile_context>
chip_gen: v5e
topology: v5e:2x2
jax: 0.10.0
libtpu: 0.0.40
codegen_flags: <defaults>
</compile_context>

<pallas_src>
import jax
import jax.numpy as jnp
from jax import lax
from jax.experimental import pallas as pl
from jax.experimental.pallas import tpu as pltpu


VMEM_LIMIT_BYTES = 32 * 1024 * 1024  # safe on v5e/v6e (128 MiB) and v7x (64 MiB)


# ----------------------------------------------------------------------------
# Pallas kernels
# ----------------------------------------------------------------------------

def _conv_pool_relu_kernel(w_ref, p00_ref, p01_ref, p10_ref, p11_ref,
                           b_ref, o_ref):
    """Fused conv-GEMM + bias + MaxPool(2,2) + ReLU.

    Each p??_ref holds the im2col patch matrix of ONE pool corner
    (Kc, tn) where tn spans the pooled spatial grid, so the 2x2 max is a
    purely elementwise max over the four GEMM results."""
    w = w_ref[...]
    y00 = jnp.dot(w, p00_ref[...], preferred_element_type=jnp.float32)
    y01 = jnp.dot(w, p01_ref[...], preferred_element_type=jnp.float32)
    y10 = jnp.dot(w, p10_ref[...], preferred_element_type=jnp.float32)
    y11 = jnp.dot(w, p11_ref[...], preferred_element_type=jnp.float32)
    m = jnp.maximum(jnp.maximum(y00, y01), jnp.maximum(y10, y11))
    o_ref[...] = jnp.maximum(m + b_ref[...], 0.0).astype(o_ref.dtype)


def _mlp_kernel(x_ref, w1_ref, b1_ref, w2_ref, b2_ref, o_ref):
    """Fused fc1 + ReLU + fc2 (dropouts are identity at inference)."""
    h = jnp.dot(x_ref[...], w1_ref[...], preferred_element_type=jnp.float32)
    h = jnp.maximum(h + b1_ref[...], 0.0)                 # f32 epilogue
    y = jnp.dot(h.astype(w2_ref.dtype), w2_ref[...],
                preferred_element_type=jnp.float32)
    o_ref[...] = (y + b2_ref[...]).astype(o_ref.dtype)


# ----------------------------------------------------------------------------
# Tiling helpers
# ----------------------------------------------------------------------------

def _pick_col_tile(m):
    """Largest lane-dense column tile giving >=2 grid steps (megacore),
    else the whole extent (small layers)."""
    for t in (512, 256, 128):
        if m % t == 0 and m // t >= 2:
            return t
    return m


def _pick_row_tile(b):
    """Row tile for the FC kernel: whole batch when small, else a divisor
    that is a multiple of 8 (sublane granularity)."""
    if b <= 256:
        return b
    for t in (256, 128, 64, 32, 16, 8):
        if b % t == 0:
            return t
    return b


# ----------------------------------------------------------------------------
# Pallas wrappers
# ----------------------------------------------------------------------------

def pallas_conv_pool_relu(wf, p_corners, bias, out_dtype=jnp.bfloat16):
    """wf: (Cout, Kc) bf16, p_corners: 4x (Kc, M) bf16 with M = B*Ho*Wo,
    bias: (Cout,) f32  ->  relu(maxpool(conv)) as (Cout, M) out_dtype."""
    cout, kc = wf.shape
    m = p_corners[0].shape[1]
    for p in p_corners:
        assert p.shape == (kc, m)
    tn = _pick_col_tile(m)
    grid = (m // tn,)
    bias2 = bias.reshape(cout, 1).astype(jnp.float32)
    p_spec = pl.BlockSpec((kc, tn), lambda i: (0, i))
    return pl.pallas_call(
        _conv_pool_relu_kernel,
        out_shape=jax.ShapeDtypeStruct((cout, m), out_dtype),
        grid=grid,
        in_specs=[
            pl.BlockSpec((cout, kc), lambda i: (0, 0)),   # full weight (resident)
            p_spec, p_spec, p_spec, p_spec,               # 4 pool-corner tiles
            pl.BlockSpec((cout, 1), lambda i: (0, 0)),    # bias
        ],
        out_specs=pl.BlockSpec((cout, tn), lambda i: (0, i)),
        compiler_params=pltpu.CompilerParams(
            dimension_semantics=("parallel",),
            vmem_limit_bytes=VMEM_LIMIT_BYTES),
    )(wf, *p_corners, bias2)


def pallas_mlp(x, w1, b1, w2, b2):
    """x: (B, K1) bf16, w1: (K1, N1) bf16, w2: (N1, N2) bf16 -> (B, N2) f32."""
    bsz, k1 = x.shape
    k1b, n1 = w1.shape
    n1b, n2 = w2.shape
    assert k1 == k1b and n1 == n1b
    tm = _pick_row_tile(bsz)
    grid = (bsz // tm,)
    return pl.pallas_call(
        _mlp_kernel,
        out_shape=jax.ShapeDtypeStruct((bsz, n2), jnp.float32),
        grid=grid,
        in_specs=[
            pl.BlockSpec((tm, k1), lambda i: (i, 0)),
            pl.BlockSpec((k1, n1), lambda i: (0, 0)),
            pl.BlockSpec((1, n1), lambda i: (0, 0)),
            pl.BlockSpec((n1, n2), lambda i: (0, 0)),
            pl.BlockSpec((1, n2), lambda i: (0, 0)),
        ],
        out_specs=pl.BlockSpec((tm, n2), lambda i: (i, 0)),
        compiler_params=pltpu.CompilerParams(
            dimension_semantics=("parallel",),
            vmem_limit_bytes=VMEM_LIMIT_BYTES),
    )(x, w1, b1.reshape(1, n1).astype(jnp.float32),
      w2, b2.reshape(1, n2).astype(jnp.float32))


# ----------------------------------------------------------------------------
# Plain-JAX glue (data rearrangement only)
# ----------------------------------------------------------------------------

def _im2col_pooled_corners(x_cbhw, k, pad):
    """(Cin, B, H, W) -> 4 transposed patch matrices (Cin*k*k, B*Ho*Wo),
    one per 2x2 pool corner (di, dj).

    Corner (di, dj), pooled position (ho, wo), tap (kh, kw) reads the padded
    input at (2*ho + di + kh, 2*wo + dj + kw).  Row order (c, kh, kw) matches
    a direct reshape of the PyTorch (O, I, kh, kw) weight (no weight transpose
    needed)."""
    cin, b, h, w = x_cbhw.shape
    ho, wo = h // 2, w // 2
    xp = jnp.pad(x_cbhw, ((0, 0), (0, 0), (pad, pad), (pad, pad)))
    corners = []
    for di in (0, 1):
        for dj in (0, 1):
            taps = [xp[:, :,
                       di + kh: di + kh + 2 * ho: 2,
                       dj + kw: dj + kw + 2 * wo: 2]
                    for kh in range(k) for kw in range(k)]
            pt = jnp.stack(taps, axis=1)              # (Cin, k*k, B, Ho, Wo)
            corners.append(pt.reshape(cin * k * k, b * ho * wo))
    return corners


def conv_pool_block(x_cbhw, w, bias):
    """Conv2d(k=5, pad=2) -> MaxPool(2,2) -> ReLU, fused in one Pallas kernel,
    all in channel-major layout.  Returns (Cout, B, H/2, W/2) bf16."""
    cin, b, h, w_ = x_cbhw.shape
    cout, cin2, k, _ = w.shape
    assert cin == cin2
    corners = _im2col_pooled_corners(x_cbhw.astype(jnp.bfloat16), k, k // 2)
    wf = w.reshape(cout, cin * k * k).astype(jnp.bfloat16)   # no transpose needed
    y = pallas_conv_pool_relu(wf, corners, bias)             # (Cout, B*Ho*Wo)
    return y.reshape(cout, b, h // 2, w_ // 2)


def _adapt_axis(a, axis, n_out):
    """One axis of PyTorch AdaptiveAvgPool2d (exact window bookkeeping)."""
    n_in = a.shape[axis]
    if n_in == n_out:
        return a
    if n_out % n_in == 0:                       # each window covers one element
        return jnp.repeat(a, n_out // n_in, axis=axis)
    if n_in % n_out == 0:                       # uniform windows
        r = n_in // n_out
        shp = a.shape[:axis] + (n_out, r) + a.shape[axis + 1:]
        return a.reshape(shp).mean(axis=axis + 1)
    segs = []                                   # general (rare) fallback
    for i in range(n_out):
        s = (i * n_in) // n_out
        e = -(-((i + 1) * n_in) // n_out)
        segs.append(jnp.mean(lax.slice_in_dim(a, s, e, axis=axis),
                             axis=axis, keepdims=True))
    return jnp.concatenate(segs, axis=axis)


def adaptive_avg_pool2d_cbhw(x_cbhw, out_hw):
    """(C, B, H, W) -> (C, B, Ho, Wo) with PyTorch AdaptiveAvgPool2d semantics."""
    x = _adapt_axis(x_cbhw, 2, out_hw[0])
    return _adapt_axis(x, 3, out_hw[1])


# ----------------------------------------------------------------------------
# HKCNN parameters + forward
# ----------------------------------------------------------------------------

def init_params(key):
    ks = jax.random.split(key, 10)

    def nrm(k, shape, scale, dtype=jnp.float32):
        return (scale * jax.random.normal(k, shape)).astype(dtype)

    bf = jnp.bfloat16
    return {
        # conv weights stored bf16 (MXU dtype), biases f32 (epilogue dtype)
        "conv1_w": nrm(ks[0], (16, 3, 5, 5), 0.1, bf),   "conv1_b": nrm(ks[1], (16,), 0.1),
        "conv2_w": nrm(ks[2], (32, 16, 5, 5), 0.05, bf), "conv2_b": nrm(ks[3], (32,), 0.05),
        "conv3_w": nrm(ks[4], (64, 32, 5, 5), 0.05, bf), "conv3_b": nrm(ks[5], (64,), 0.05),
        # FC weights stored PRE-TRANSPOSED to (in, out) so no .T per forward
        "fc1_wT": nrm(ks[6], (64 * 8 * 8, 256), 0.02, bf), "fc1_b": nrm(ks[7], (256,), 0.02),
        "fc2_wT": nrm(ks[8], (256, 10), 0.02, bf),         "fc2_b": nrm(ks[9], (10,), 0.02),
    }


def hkcnn_forward(params, x_nchw):
    """x_nchw: (B, 3, H, W) float32 -> logits (B, 10) float32."""
    b = x_nchw.shape[0]
    # NCHW -> channel-major (C, B, H, W): conv GEMM outputs become lane-dense.
    x = jnp.transpose(x_nchw, (1, 0, 2, 3)).astype(jnp.bfloat16)

    x = conv_pool_block(x, params["conv1_w"], params["conv1_b"])
    x = conv_pool_block(x, params["conv2_w"], params["conv2_b"])
    x = conv_pool_block(x, params["conv3_w"], params["conv3_b"])   # (64, B, H/8, W/8)

    x = adaptive_avg_pool2d_cbhw(x, (8, 8))                        # (64, B, 8, 8)

    # PyTorch's x.view(-1, 64*8*8) flattens NCHW as (c, h, w) per batch row.
    flat = jnp.transpose(x, (1, 0, 2, 3)).reshape(b, 64 * 8 * 8)
    flat = flat.astype(jnp.bfloat16)

    # dropout1 / dropout2 are identity in eval mode (inference semantics).
    return pallas_mlp(flat, params["fc1_wT"], params["fc1_b"],
                      params["fc2_wT"], params["fc2_b"])


# ----------------------------------------------------------------------------
# main
# ----------------------------------------------------------------------------

if __name__ == "__main__":
    key = jax.random.PRNGKey(0)
    k_params, k_input = jax.random.split(key)

    params = init_params(k_params)
    x = jax.random.normal(k_input, (2, 3, 32, 32), dtype=jnp.float32)   # NCHW

    fwd = jax.jit(hkcnn_forward)
    logits = jax.block_until_ready(fwd(params, x))

    assert logits.shape == (2, 10), logits.shape
    assert bool(jnp.all(jnp.isfinite(logits)))
    print("KERNEL_OK")
</pallas_src>

<mosaic_0001>
module attributes {stable_mosaic.version = 11 : i64} {
  func.func @_conv_pool_relu_kernel(%arg0: i32, %arg1: memref<16x75xbf16, #tpu.memory_space<vmem>>, %arg2: memref<75x256xbf16, #tpu.memory_space<vmem>>, %arg3: memref<75x256xbf16, #tpu.memory_space<vmem>>, %arg4: memref<75x256xbf16, #tpu.memory_space<vmem>>, %arg5: memref<75x256xbf16, #tpu.memory_space<vmem>>, %arg6: memref<16x1xf32, #tpu.memory_space<vmem>>, %arg7: memref<16x256xbf16, #tpu.memory_space<vmem>>) attributes {dimension_semantics = [#tpu.dimension_semantics<parallel>], iteration_bounds = array<i64: 2>, scalar_prefetch = 0 : i64, scratch_operands = 0 : i64, tpu.core_type = #tpu.core_type<tc>, window_params = [{pipeline_mode = #tpu.pipeline_mode<synchronous>, transform_indices = @transform_0, window_bounds = array<i64: 16, 75>}, {transform_indices = @transform_1, window_bounds = array<i64: 75, 256>}, {transform_indices = @transform_2, window_bounds = array<i64: 75, 256>}, {transform_indices = @transform_3, window_bounds = array<i64: 75, 256>}, {transform_indices = @transform_4, window_bounds = array<i64: 75, 256>}, {pipeline_mode = #tpu.pipeline_mode<synchronous>, transform_indices = @transform_5, window_bounds = array<i64: 16, 1>}, {transform_indices = @transform_6, window_bounds = array<i64: 16, 256>}]} {
    %c0 = arith.constant 0 : index
    %c0_0 = arith.constant 0 : index
    %0 = vector.load %arg1[%c0, %c0_0] : memref<16x75xbf16, #tpu.memory_space<vmem>>, vector<16x75xbf16>
    %c0_1 = arith.constant 0 : index
    %c0_2 = arith.constant 0 : index
    %1 = vector.load %arg2[%c0_1, %c0_2] : memref<75x256xbf16, #tpu.memory_space<vmem>>, vector<75x256xbf16>
    %cst = arith.constant dense<0.000000e+00> : vector<16x256xf32>
    %2 = tpu.matmul %0, %1, %cst {dimension_numbers = #tpu.dot_dimension_numbers<[1], [0], [0], [1], [0, 0, 1, 1], [], []>} : vector<16x75xbf16>, vector<75x256xbf16>, vector<16x256xf32> -> vector<16x256xf32>
    %c0_3 = arith.constant 0 : index
    %c0_4 = arith.constant 0 : index
    %3 = vector.load %arg3[%c0_3, %c0_4] : memref<75x256xbf16, #tpu.memory_space<vmem>>, vector<75x256xbf16>
    %cst_5 = arith.constant dense<0.000000e+00> : vector<16x256xf32>
    %4 = tpu.matmul %0, %3, %cst_5 {dimension_numbers = #tpu.dot_dimension_numbers<[1], [0], [0], [1], [0, 0, 1, 1], [], []>} : vector<16x75xbf16>, vector<75x256xbf16>, vector<16x256xf32> -> vector<16x256xf32>
    %c0_6 = arith.constant 0 : index
    %c0_7 = arith.constant 0 : index
    %5 = vector.load %arg4[%c0_6, %c0_7] : memref<75x256xbf16, #tpu.memory_space<vmem>>, vector<75x256xbf16>
    %cst_8 = arith.constant dense<0.000000e+00> : vector<16x256xf32>
    %6 = tpu.matmul %0, %5, %cst_8 {dimension_numbers = #tpu.dot_dimension_numbers<[1], [0], [0], [1], [0, 0, 1, 1], [], []>} : vector<16x75xbf16>, vector<75x256xbf16>, vector<16x256xf32> -> vector<16x256xf32>
    %c0_9 = arith.constant 0 : index
    %c0_10 = arith.constant 0 : index
    %7 = vector.load %arg5[%c0_9, %c0_10] : memref<75x256xbf16, #tpu.memory_space<vmem>>, vector<75x256xbf16>
    %cst_11 = arith.constant dense<0.000000e+00> : vector<16x256xf32>
    %8 = tpu.matmul %0, %7, %cst_11 {dimension_numbers = #tpu.dot_dimension_numbers<[1], [0], [0], [1], [0, 0, 1, 1], [], []>} : vector<16x75xbf16>, vector<75x256xbf16>, vector<16x256xf32> -> vector<16x256xf32>
    %9 = arith.maximumf %2, %4 : vector<16x256xf32>
    %10 = arith.maximumf %6, %8 : vector<16x256xf32>
    %11 = arith.maximumf %9, %10 : vector<16x256xf32>
    %c0_12 = arith.constant 0 : index
    %c0_13 = arith.constant 0 : index
    %12 = vector.load %arg6[%c0_12, %c0_13] : memref<16x1xf32, #tpu.memory_space<vmem>>, vector<16x1xf32>
    %13 = vector.broadcast %12 : vector<16x1xf32> to vector<16x256xf32>
    %14 = arith.addf %11, %13 : vector<16x256xf32>
    %cst_14 = arith.constant 0.000000e+00 : f32
    %15 = vector.broadcast %cst_14 : f32 to vector<16x256xf32>
    %16 = arith.maximumf %14, %15 : vector<16x256xf32>
    %17 = arith.truncf %16 : vector<16x256xf32> to vector<16x256xbf16>
    %c0_15 = arith.constant 0 : index
    %c0_16 = arith.constant 0 : index
    %18 = vector.load %arg7[%c0_15, %c0_16] : memref<16x256xbf16, #tpu.memory_space<vmem>>, vector<16x256xbf16>
    tpu.vector_store %arg7[%c0_15, %c0_16], %17 {strides = array<i32>} : memref<16x256xbf16, #tpu.memory_space<vmem>>, vector<16x256xbf16>,
    return
  }
  func.func @transform_0(%arg0: i32) -> (i32, i32) {
    %c0_i32 = arith.constant 0 : i32
    %c0_i32_0 = arith.constant 0 : i32
    %c0_i32_1 = arith.constant 0 : i32
    return %c0_i32, %c0_i32_0 : i32, i32
  }
  func.func @transform_1(%arg0: i32) -> (i32, i32) {
    %c0_i32 = arith.constant 0 : i32
    %c0_i32_0 = arith.constant 0 : i32
    return %c0_i32, %arg0 : i32, i32
  }
  func.func @transform_2(%arg0: i32) -> (i32, i32) {
    %c0_i32 = arith.constant 0 : i32
    %c0_i32_0 = arith.constant 0 : i32
    return %c0_i32, %arg0 : i32, i32
  }
  func.func @transform_3(%arg0: i32) -> (i32, i32) {
    %c0_i32 = arith.constant 0 : i32
    %c0_i32_0 = arith.constant 0 : i32
    return %c0_i32, %arg0 : i32, i32
  }
  func.func @transform_4(%arg0: i32) -> (i32, i32) {
    %c0_i32 = arith.constant 0 : i32
    %c0_i32_0 = arith.constant 0 : i32
    return %c0_i32, %arg0 : i32, i32
  }
  func.func @transform_5(%arg0: i32) -> (i32, i32) {
    %c0_i32 = arith.constant 0 : i32
    %c0_i32_0 = arith.constant 0 : i32
    %c0_i32_1 = arith.constant 0 : i32
    return %c0_i32, %c0_i32_0 : i32, i32
  }
  func.func @transform_6(%arg0: i32) -> (i32, i32) {
    %c0_i32 = arith.constant 0 : i32
    %c0_i32_0 = arith.constant 0 : i32
    return %c0_i32, %arg0 : i32, i32
  }
}

module attributes {stable_mosaic.version = 11 : i64} {
  func.func @_conv_pool_relu_kernel(%arg0: i32, %arg1: memref<32x400xbf16, #tpu.memory_space<vmem>>, %arg2: memref<400x128xbf16, #tpu.memory_space<vmem>>, %arg3: memref<400x128xbf16, #tpu.memory_space<vmem>>, %arg4: memref<400x128xbf16, #tpu.memory_space<vmem>>, %arg5: memref<400x128xbf16, #tpu.memory_space<vmem>>, %arg6: memref<32x1xf32, #tpu.memory_space<vmem>>, %arg7: memref<32x128xbf16, #tpu.memory_space<vmem>>) attributes {dimension_semantics = [#tpu.dimension_semantics<parallel>], iteration_bounds = array<i64: 1>, scalar_prefetch = 0 : i64, scratch_operands = 0 : i64, tpu.core_type = #tpu.core_type<tc>, window_params = [{pipeline_mode = #tpu.pipeline_mode<synchronous>, transform_indices = @transform_0, window_bounds = array<i64: 32, 400>}, {transform_indices = @transform_1, window_bounds = array<i64: 400, 128>}, {transform_indices = @transform_2, window_bounds = array<i64: 400, 128>}, {transform_indices = @transform_3, window_bounds = array<i64: 400, 128>}, {transform_indices = @transform_4, window_bounds = array<i64: 400, 128>}, {pipeline_mode = #tpu.pipeline_mode<synchronous>, transform_indices = @transform_5, window_bounds = array<i64: 32, 1>}, {transform_indices = @transform_6, window_bounds = array<i64: 32, 128>}]} {
    %c0 = arith.constant 0 : index
    %c0_0 = arith.constant 0 : index
    %0 = vector.load %arg1[%c0, %c0_0] : memref<32x400xbf16, #tpu.memory_space<vmem>>, vector<32x400xbf16>
    %c0_1 = arith.constant 0 : index
    %c0_2 = arith.constant 0 : index
    %1 = vector.load %arg2[%c0_1, %c0_2] : memref<400x128xbf16, #tpu.memory_space<vmem>>, vector<400x128xbf16>
    %cst = arith.constant dense<0.000000e+00> : vector<32x128xf32>
    %2 = tpu.matmul %0, %1, %cst {dimension_numbers = #tpu.dot_dimension_numbers<[1], [0], [0], [1], [0, 0, 1, 1], [], []>} : vector<32x400xbf16>, vector<400x128xbf16>, vector<32x128xf32> -> vector<32x128xf32>
    %c0_3 = arith.constant 0 : index
    %c0_4 = arith.constant 0 : index
    %3 = vector.load %arg3[%c0_3, %c0_4] : memref<400x128xbf16, #tpu.memory_space<vmem>>, vector<400x128xbf16>
    %cst_5 = arith.constant dense<0.000000e+00> : vector<32x128xf32>
    %4 = tpu.matmul %0, %3, %cst_5 {dimension_numbers = #tpu.dot_dimension_numbers<[1], [0], [0], [1], [0, 0, 1, 1], [], []>} : vector<32x400xbf16>, vector<400x128xbf16>, vector<32x128xf32> -> vector<32x128xf32>
    %c0_6 = arith.constant 0 : index
    %c0_7 = arith.constant 0 : index
    %5 = vector.load %arg4[%c0_6, %c0_7] : memref<400x128xbf16, #tpu.memory_space<vmem>>, vector<400x128xbf16>
    %cst_8 = arith.constant dense<0.000000e+00> : vector<32x128xf32>
    %6 = tpu.matmul %0, %5, %cst_8 {dimension_numbers = #tpu.dot_dimension_numbers<[1], [0], [0], [1], [0, 0, 1, 1], [], []>} : vector<32x400xbf16>, vector<400x128xbf16>, vector<32x128xf32> -> vector<32x128xf32>
    %c0_9 = arith.constant 0 : index
    %c0_10 = arith.constant 0 : index
    %7 = vector.load %arg5[%c0_9, %c0_10] : memref<400x128xbf16, #tpu.memory_space<vmem>>, vector<400x128xbf16>
    %cst_11 = arith.constant dense<0.000000e+00> : vector<32x128xf32>
    %8 = tpu.matmul %0, %7, %cst_11 {dimension_numbers = #tpu.dot_dimension_numbers<[1], [0], [0], [1], [0, 0, 1, 1], [], []>} : vector<32x400xbf16>, vector<400x128xbf16>, vector<32x128xf32> -> vector<32x128xf32>
    %9 = arith.maximumf %2, %4 : vector<32x128xf32>
    %10 = arith.maximumf %6, %8 : vector<32x128xf32>
    %11 = arith.maximumf %9, %10 : vector<32x128xf32>
    %c0_12 = arith.constant 0 : index
    %c0_13 = arith.constant 0 : index
    %12 = vector.load %arg6[%c0_12, %c0_13] : memref<32x1xf32, #tpu.memory_space<vmem>>, vector<32x1xf32>
    %13 = vector.broadcast %12 : vector<32x1xf32> to vector<32x128xf32>
    %14 = arith.addf %11, %13 : vector<32x128xf32>
    %cst_14 = arith.constant 0.000000e+00 : f32
    %15 = vector.broadcast %cst_14 : f32 to vector<32x128xf32>
    %16 = arith.maximumf %14, %15 : vector<32x128xf32>
    %17 = arith.truncf %16 : vector<32x128xf32> to vector<32x128xbf16>
    %c0_15 = arith.constant 0 : index
    %c0_16 = arith.constant 0 : index
    %18 = vector.load %arg7[%c0_15, %c0_16] : memref<32x128xbf16, #tpu.memory_space<vmem>>, vector<32x128xbf16>
    tpu.vector_store %arg7[%c0_15, %c0_16], %17 {strides = array<i32>} : memref<32x128xbf16, #tpu.memory_space<vmem>>, vector<32x128xbf16>,
    return
  }
  func.func @transform_0(%arg0: i32) -> (i32, i32) {
    %c0_i32 = arith.constant 0 : i32
    %c0_i32_0 = arith.constant 0 : i32
    %c0_i32_1 = arith.constant 0 : i32
    return %c0_i32, %c0_i32_0 : i32, i32
  }
  func.func @transform_1(%arg0: i32) -> (i32, i32) {
    %c0_i32 = arith.constant 0 : i32
    %c0_i32_0 = arith.constant 0 : i32
    return %c0_i32, %arg0 : i32, i32
  }
  func.func @transform_2(%arg0: i32) -> (i32, i32) {
    %c0_i32 = arith.constant 0 : i32
    %c0_i32_0 = arith.constant 0 : i32
    return %c0_i32, %arg0 : i32, i32
  }
  func.func @transform_3(%arg0: i32) -> (i32, i32) {
    %c0_i32 = arith.constant 0 : i32
    %c0_i32_0 = arith.constant 0 : i32
    return %c0_i32, %arg0 : i32, i32
  }
  func.func @transform_4(%arg0: i32) -> (i32, i32) {
    %c0_i32 = arith.constant 0 : i32
    %c0_i32_0 = arith.constant 0 : i32
    return %c0_i32, %arg0 : i32, i32
  }
  func.func @transform_5(%arg0: i32) -> (i32, i32) {
    %c0_i32 = arith.constant 0 : i32
    %c0_i32_0 = arith.constant 0 : i32
    %c0_i32_1 = arith.constant 0 : i32
    return %c0_i32, %c0_i32_0 : i32, i32
  }
  func.func @transform_6(%arg0: i32) -> (i32, i32) {
    %c0_i32 = arith.constant 0 : i32
    %c0_i32_0 = arith.constant 0 : i32
    return %c0_i32, %arg0 : i32, i32
  }
}

module attributes {stable_mosaic.version = 11 : i64} {
  func.func @_conv_pool_relu_kernel(%arg0: i32, %arg1: memref<64x800xbf16, #tpu.memory_space<vmem>>, %arg2: memref<800x32xbf16, #tpu.memory_space<vmem>>, %arg3: memref<800x32xbf16, #tpu.memory_space<vmem>>, %arg4: memref<800x32xbf16, #tpu.memory_space<vmem>>, %arg5: memref<800x32xbf16, #tpu.memory_space<vmem>>, %arg6: memref<64x1xf32, #tpu.memory_space<vmem>>, %arg7: memref<64x32xbf16, #tpu.memory_space<vmem>>) attributes {dimension_semantics = [#tpu.dimension_semantics<parallel>], iteration_bounds = array<i64: 1>, scalar_prefetch = 0 : i64, scratch_operands = 0 : i64, tpu.core_type = #tpu.core_type<tc>, window_params = [{pipeline_mode = #tpu.pipeline_mode<synchronous>, transform_indices = @transform_0, window_bounds = array<i64: 64, 800>}, {transform_indices = @transform_1, window_bounds = array<i64: 800, 32>}, {transform_indices = @transform_2, window_bounds = array<i64: 800, 32>}, {transform_indices = @transform_3, window_bounds = array<i64: 800, 32>}, {transform_indices = @transform_4, window_bounds = array<i64: 800, 32>}, {pipeline_mode = #tpu.pipeline_mode<synchronous>, transform_indices = @transform_5, window_bounds = array<i64: 64, 1>}, {transform_indices = @transform_6, window_bounds = array<i64: 64, 32>}]} {
    %c0 = arith.constant 0 : index
    %c0_0 = arith.constant 0 : index
    %0 = vector.load %arg1[%c0, %c0_0] : memref<64x800xbf16, #tpu.memory_space<vmem>>, vector<64x800xbf16>
    %c0_1 = arith.constant 0 : index
    %c0_2 = arith.constant 0 : index
    %1 = vector.load %arg2[%c0_1, %c0_2] : memref<800x32xbf16, #tpu.memory_space<vmem>>, vector<800x32xbf16>
    %cst = arith.constant dense<0.000000e+00> : vector<64x32xf32>
    %2 = tpu.matmul %0, %1, %cst {dimension_numbers = #tpu.dot_dimension_numbers<[1], [0], [0], [1], [0, 0, 1, 1], [], []>} : vector<64x800xbf16>, vector<800x32xbf16>, vector<64x32xf32> -> vector<64x32xf32>
    %c0_3 = arith.constant 0 : index
    %c0_4 = arith.constant 0 : index
    %3 = vector.load %arg3[%c0_3, %c0_4] : memref<800x32xbf16, #tpu.memory_space<vmem>>, vector<800x32xbf16>
    %cst_5 = arith.constant dense<0.000000e+00> : vector<64x32xf32>
    %4 = tpu.matmul %0, %3, %cst_5 {dimension_numbers = #tpu.dot_dimension_numbers<[1], [0], [0], [1], [0, 0, 1, 1], [], []>} : vector<64x800xbf16>, vector<800x32xbf16>, vector<64x32xf32> -> vector<64x32xf32>
    %c0_6 = arith.constant 0 : index
    %c0_7 = arith.constant 0 : index
    %5 = vector.load %arg4[%c0_6, %c0_7] : memref<800x32xbf16, #tpu.memory_space<vmem>>, vector<800x32xbf16>
    %cst_8 = arith.constant dense<0.000000e+00> : vector<64x32xf32>
    %6 = tpu.matmul %0, %5, %cst_8 {dimension_numbers = #tpu.dot_dimension_numbers<[1], [0], [0], [1], [0, 0, 1, 1], [], []>} : vector<64x800xbf16>, vector<800x32xbf16>, vector<64x32xf32> -> vector<64x32xf32>
    %c0_9 = arith.constant 0 : index
    %c0_10 = arith.constant 0 : index
    %7 = vector.load %arg5[%c0_9, %c0_10] : memref<800x32xbf16, #tpu.memory_space<vmem>>, vector<800x32xbf16>
    %cst_11 = arith.constant dense<0.000000e+00> : vector<64x32xf32>
    %8 = tpu.matmul %0, %7, %cst_11 {dimension_numbers = #tpu.dot_dimension_numbers<[1], [0], [0], [1], [0, 0, 1, 1], [], []>} : vector<64x800xbf16>, vector<800x32xbf16>, vector<64x32xf32> -> vector<64x32xf32>
    %9 = arith.maximumf %2, %4 : vector<64x32xf32>
    %10 = arith.maximumf %6, %8 : vector<64x32xf32>
    %11 = arith.maximumf %9, %10 : vector<64x32xf32>
    %c0_12 = arith.constant 0 : index
    %c0_13 = arith.constant 0 : index
    %12 = vector.load %arg6[%c0_12, %c0_13] : memref<64x1xf32, #tpu.memory_space<vmem>>, vector<64x1xf32>
    %13 = vector.broadcast %12 : vector<64x1xf32> to vector<64x32xf32>
    %14 = arith.addf %11, %13 : vector<64x32xf32>
    %cst_14 = arith.constant 0.000000e+00 : f32
    %15 = vector.broadcast %cst_14 : f32 to vector<64x32xf32>
    %16 = arith.maximumf %14, %15 : vector<64x32xf32>
    %17 = arith.truncf %16 : vector<64x32xf32> to vector<64x32xbf16>
    %c0_15 = arith.constant 0 : index
    %c0_16 = arith.constant 0 : index
    %18 = vector.load %arg7[%c0_15, %c0_16] : memref<64x32xbf16, #tpu.memory_space<vmem>>, vector<64x32xbf16>
    tpu.vector_store %arg7[%c0_15, %c0_16], %17 {strides = array<i32>} : memref<64x32xbf16, #tpu.memory_space<vmem>>, vector<64x32xbf16>,
    return
  }
  func.func @transform_0(%arg0: i32) -> (i32, i32) {
    %c0_i32 = arith.constant 0 : i32
    %c0_i32_0 = arith.constant 0 : i32
    %c0_i32_1 = arith.constant 0 : i32
    return %c0_i32, %c0_i32_0 : i32, i32
  }
  func.func @transform_1(%arg0: i32) -> (i32, i32) {
    %c0_i32 = arith.constant 0 : i32
    %c0_i32_0 = arith.constant 0 : i32
    return %c0_i32, %arg0 : i32, i32
  }
  func.func @transform_2(%arg0: i32) -> (i32, i32) {
    %c0_i32 = arith.constant 0 : i32
    %c0_i32_0 = arith.constant 0 : i32
    return %c0_i32, %arg0 : i32, i32
  }
  func.func @transform_3(%arg0: i32) -> (i32, i32) {
    %c0_i32 = arith.constant 0 : i32
    %c0_i32_0 = arith.constant 0 : i32
    return %c0_i32, %arg0 : i32, i32
  }
  func.func @transform_4(%arg0: i32) -> (i32, i32) {
    %c0_i32 = arith.constant 0 : i32
    %c0_i32_0 = arith.constant 0 : i32
    return %c0_i32, %arg0 : i32, i32
  }
  func.func @transform_5(%arg0: i32) -> (i32, i32) {
    %c0_i32 = arith.constant 0 : i32
    %c0_i32_0 = arith.constant 0 : i32
    %c0_i32_1 = arith.constant 0 : i32
    return %c0_i32, %c0_i32_0 : i32, i32
  }
  func.func @transform_6(%arg0: i32) -> (i32, i32) {
    %c0_i32 = arith.constant 0 : i32
    %c0_i32_0 = arith.constant 0 : i32
    return %c0_i32, %arg0 : i32, i32
  }
}

module attributes {stable_mosaic.version = 11 : i64} {
  func.func @_mlp_kernel(%arg0: i32, %arg1: memref<2x4096xbf16, #tpu.memory_space<vmem>>, %arg2: memref<4096x256xbf16, #tpu.memory_space<vmem>>, %arg3: memref<1x256xf32, #tpu.memory_space<vmem>>, %arg4: memref<256x10xbf16, #tpu.memory_space<vmem>>, %arg5: memref<1x10xf32, #tpu.memory_space<vmem>>, %arg6: memref<2x10xf32, #tpu.memory_space<vmem>>) attributes {dimension_semantics = [#tpu.dimension_semantics<parallel>], iteration_bounds = array<i64: 1>, scalar_prefetch = 0 : i64, scratch_operands = 0 : i64, tpu.core_type = #tpu.core_type<tc>, window_params = [{transform_indices = @transform_0, window_bounds = array<i64: 2, 4096>}, {pipeline_mode = #tpu.pipeline_mode<synchronous>, transform_indices = @transform_1, window_bounds = array<i64: 4096, 256>}, {pipeline_mode = #tpu.pipeline_mode<synchronous>, transform_indices = @transform_2, window_bounds = array<i64: 1, 256>}, {pipeline_mode = #tpu.pipeline_mode<synchronous>, transform_indices = @transform_3, window_bounds = array<i64: 256, 10>}, {pipeline_mode = #tpu.pipeline_mode<synchronous>, transform_indices = @transform_4, window_bounds = array<i64: 1, 10>}, {transform_indices = @transform_5, window_bounds = array<i64: 2, 10>}]} {
    %c0 = arith.constant 0 : index
    %c0_0 = arith.constant 0 : index
    %0 = vector.load %arg1[%c0, %c0_0] : memref<2x4096xbf16, #tpu.memory_space<vmem>>, vector<2x4096xbf16>
    %c0_1 = arith.constant 0 : index
    %c0_2 = arith.constant 0 : index
    %1 = vector.load %arg2[%c0_1, %c0_2] : memref<4096x256xbf16, #tpu.memory_space<vmem>>, vector<4096x256xbf16>
    %cst = arith.constant dense<0.000000e+00> : vector<2x256xf32>
    %2 = tpu.matmul %0, %1, %cst {dimension_numbers = #tpu.dot_dimension_numbers<[1], [0], [0], [1], [0, 0, 1, 1], [], []>} : vector<2x4096xbf16>, vector<4096x256xbf16>, vector<2x256xf32> -> vector<2x256xf32>
    %c0_3 = arith.constant 0 : index
    %c0_4 = arith.constant 0 : index
    %3 = vector.load %arg3[%c0_3, %c0_4] : memref<1x256xf32, #tpu.memory_space<vmem>>, vector<1x256xf32>
    %4 = vector.broadcast %3 : vector<1x256xf32> to vector<2x256xf32>
    %5 = arith.addf %2, %4 : vector<2x256xf32>
    %cst_5 = arith.constant 0.000000e+00 : f32
    %6 = vector.broadcast %cst_5 : f32 to vector<2x256xf32>
    %7 = arith.maximumf %5, %6 : vector<2x256xf32>
    %8 = arith.truncf %7 : vector<2x256xf32> to vector<2x256xbf16>
    %c0_6 = arith.constant 0 : index
    %c0_7 = arith.constant 0 : index
    %9 = vector.load %arg4[%c0_6, %c0_7] : memref<256x10xbf16, #tpu.memory_space<vmem>>, vector<256x10xbf16>
    %cst_8 = arith.constant dense<0.000000e+00> : vector<2x10xf32>
    %10 = tpu.matmul %8, %9, %cst_8 {dimension_numbers = #tpu.dot_dimension_numbers<[1], [0], [0], [1], [0, 0, 1, 1], [], []>} : vector<2x256xbf16>, vector<256x10xbf16>, vector<2x10xf32> -> vector<2x10xf32>
    %c0_9 = arith.constant 0 : index
    %c0_10 = arith.constant 0 : index
    %11 = vector.load %arg5[%c0_9, %c0_10] : memref<1x10xf32, #tpu.memory_space<vmem>>, vector<1x10xf32>
    %12 = vector.broadcast %11 : vector<1x10xf32> to vector<2x10xf32>
    %13 = arith.addf %10, %12 : vector<2x10xf32>
    %c0_11 = arith.constant 0 : index
    %c0_12 = arith.constant 0 : index
    %14 = vector.load %arg6[%c0_11, %c0_12] : memref<2x10xf32, #tpu.memory_space<vmem>>, vector<2x10xf32>
    tpu.vector_store %arg6[%c0_11, %c0_12], %13 {strides = array<i32>} : memref<2x10xf32, #tpu.memory_space<vmem>>, vector<2x10xf32>,
    return
  }
  func.func @transform_0(%arg0: i32) -> (i32, i32) {
    %c0_i32 = arith.constant 0 : i32
    %c0_i32_0 = arith.constant 0 : i32
    return %arg0, %c0_i32 : i32, i32
  }
  func.func @transform_1(%arg0: i32) -> (i32, i32) {
    %c0_i32 = arith.constant 0 : i32
    %c0_i32_0 = arith.constant 0 : i32
    %c0_i32_1 = arith.constant 0 : i32
    return %c0_i32, %c0_i32_0 : i32, i32
  }
  func.func @transform_2(%arg0: i32) -> (i32, i32) {
    %c0_i32 = arith.constant 0 : i32
    %c0_i32_0 = arith.constant 0 : i32
    %c0_i32_1 = arith.constant 0 : i32
    return %c0_i32, %c0_i32_0 : i32, i32
  }
  func.func @transform_3(%arg0: i32) -> (i32, i32) {
    %c0_i32 = arith.constant 0 : i32
    %c0_i32_0 = arith.constant 0 : i32
    %c0_i32_1 = arith.constant 0 : i32
    return %c0_i32, %c0_i32_0 : i32, i32
  }
  func.func @transform_4(%arg0: i32) -> (i32, i32) {
    %c0_i32 = arith.constant 0 : i32
    %c0_i32_0 = arith.constant 0 : i32
    %c0_i32_1 = arith.constant 0 : i32
    return %c0_i32, %c0_i32_0 : i32, i32
  }
  func.func @transform_5(%arg0: i32) -> (i32, i32) {
    %c0_i32 = arith.constant 0 : i32
    %c0_i32_0 = arith.constant 0 : i32
    return %arg0, %c0_i32 : i32, i32
  }
}

</mosaic_0001>

<llo_original>
// kernel: hkcnn_forward.4
$region0: #{hkcnn_forward.4}
  #allocation0 [shape = 'u32[]', space=smem, size = 0x4, offset = 0x4, fixed_abs, tag = 'smem constant byte address 0x4 - core index']
  #allocation1 [shape = 'u32[72,128]{1,0:T(1,128)}', space=vmem, size = 0x9000, scoped, tag = 'internal scratch']
  %s0 = inlined_call_operand.vmem [shape: bf16[16,75], index: 0, kind: input, shape index: {}]
  %s1 = inlined_call_operand.vmem [shape: bf16[75,512], index: 1, kind: input, shape index: {}]
  %s2 = inlined_call_operand.vmem [shape: bf16[75,512], index: 2, kind: input, shape index: {}]
  %s3 = inlined_call_operand.vmem [shape: bf16[75,512], index: 3, kind: input, shape index: {}]
  %s4 = inlined_call_operand.vmem [shape: bf16[75,512], index: 4, kind: input, shape index: {}]
  %s5 = inlined_call_operand.vmem [shape: f32[16,1], index: 5, kind: input, shape index: {}]
  %s6 = inlined_call_operand.vmem [shape: bf16[16,512], index: 6, kind: output, shape index: {}]
  %s7 = sld [smem:[#allocation0]]
  $region243: #{hkcnn_forward.4} parent=0
    _
  %s9 = ssub.s32 1, %s7
  %s10 = scalar_select 0, %s9, %s7
  $region1: #{hkcnn_forward.4} parent=0
    #allocation2 [shape = 'u8[81920]{0}', space=vmem, size = 0x14000, scoped, tag = 'input window, operand 1']
    #allocation3 [shape = 'u8[81920]{0}', space=vmem, size = 0x14000, scoped, tag = 'input window, operand 2']
    #allocation4 [shape = 'u8[81920]{0}', space=vmem, size = 0x14000, scoped, tag = 'input window, operand 3']
    #allocation5 [shape = 'u8[81920]{0}', space=vmem, size = 0x14000, scoped, tag = 'input window, operand 4']
    #allocation6 [shape = 'u8[16384]{0}', space=vmem, size = 0x4000, scoped, tag = 'output window, operand 0']
    loop: start=0, step=1, limit=4
    $region2: #{hkcnn_forward.4} parent=1 // loop_pre_header
      _
    $region3: #{hkcnn_forward.4} parent=1 // loop_header
      %s12 = sphi 0, %s16
      %p13 = scmp.ge.s32.totalorder %s12, 4
      %s20 = sphi 0, %s20
      %s22 = sphi 0, %s20
      %s23 = sphi 0, %s22
      %s37 = sphi 0, %s23
      %s43 = sphi 0, %s45
      %s46 = sphi 0, %s43
      %s47 = sphi 0, %s46
      %s63 = sphi 0, %s47
      %s69 = sphi 0, %s71
      %s72 = sphi 0, %s69
      %s73 = sphi 0, %s72
      %s89 = sphi 0, %s73
      %s95 = sphi 0, %s97
      %s98 = sphi 0, %s95
      %s99 = sphi 0, %s98
      %s115 = sphi 0, %s99
      %s121 = sphi 0, %s123
      %s124 = sphi 0, %s121
      %s125 = sphi 0, %s124
      %s141 = sphi 0, %s125
      %s145 = sphi 0, %s145
      %s147 = sphi 0, %s145
      %s148 = sphi 0, %s147
      %s162 = sphi 0, %s148
      %s168 = sphi 0, %s170
      %s171 = sphi 0, %s168
      %s172 = sphi 0, %s171
      %s188 = sphi 0, %s172
    $region4: #{hkcnn_forward.4} parent=1 // loop_header_branch
      %15 = sbr.rel (%p13) target = $region8
    $region5: #{hkcnn_forward.4} parent=1 // loop_body
      %s17 = ssub.s32 %s12, 1
      %s18 = ssub.s32 %s12, 2
      %s19 = sadd.s32 %s12, 1
      %s21 = sadd.s32 %s20, 1
      %p24 = scmp.eq.s32.totalorder %s12, 1
      %p25 = scmp.ne.s32.totalorder %s20, %s22
      %p26 = scmp.eq.s32.totalorder %s12, 0
      %p27 = por %p25, %p26
      %p28 = scmp.ne.s32.totalorder %s20, %s22
      %p29 = scmp.eq.s32.totalorder %s17, 1
      %p30 = por %p28, %p29
      %p31 = scmp.ne.s32.totalorder %s22, %s23
      %p32 = scmp.eq.s32.totalorder %s17, 0
      %p33 = por %p31, %p32
      %p34 = scmp.ne.s32.totalorder %s22, %s23
      %p35 = scmp.eq.s32.totalorder %s18, 1
      %p36 = por %p34, %p35
      %p38 = scmp.ne.s32.totalorder %s23, %s37
      %p39 = scmp.eq.s32.totalorder %s18, 0
      %p40 = por %p38, %p39
      %s41 = ssub.s32 %s12, %s19
      %p42 = scmp.eq.s32.totalorder %s41, 0
      %s44 = sadd.s32 %s43, 1
      %s45 = scalar_select %p42, %s43, %s44
      %p48 = pneg %p42
      %p49 = scmp.eq.s32.totalorder %s12, 1
      %p50 = por %p48, %p49
      %p51 = scmp.ne.s32.totalorder %s43, %s46
      %p52 = scmp.eq.s32.totalorder %s12, 0
      %p53 = por %p51, %p52
      %p54 = scmp.ne.s32.totalorder %s43, %s46
      %p55 = scmp.eq.s32.totalorder %s17, 1
      %p56 = por %p54, %p55
      %p57 = scmp.ne.s32.totalorder %s46, %s47
      %p58 = scmp.eq.s32.totalorder %s17, 0
      %p59 = por %p57, %p58
      %p60 = scmp.ne.s32.totalorder %s46, %s47
      %p61 = scmp.eq.s32.totalorder %s18, 1
      %p62 = por %p60, %p61
      %p64 = scmp.ne.s32.totalorder %s47, %s63
      %p65 = scmp.eq.s32.totalorder %s18, 0
      %p66 = por %p64, %p65
      %s67 = ssub.s32 %s12, %s19
      %p68 = scmp.eq.s32.totalorder %s67, 0
      %s70 = sadd.s32 %s69, 1
      %s71 = scalar_select %p68, %s69, %s70
      %p74 = pneg %p68
      %p75 = scmp.eq.s32.totalorder %s12, 1
      %p76 = por %p74, %p75
      %p77 = scmp.ne.s32.totalorder %s69, %s72
      %p78 = scmp.eq.s32.totalorder %s12, 0
      %p79 = por %p77, %p78
      %p80 = scmp.ne.s32.totalorder %s69, %s72
      %p81 = scmp.eq.s32.totalorder %s17, 1
      %p82 = por %p80, %p81
      %p83 = scmp.ne.s32.totalorder %s72, %s73
      %p84 = scmp.eq.s32.totalorder %s17, 0
      %p85 = por %p83, %p84
      %p86 = scmp.ne.s32.totalorder %s72, %s73
      %p87 = scmp.eq.s32.totalorder %s18, 1
      %p88 = por %p86, %p87
      %p90 = scmp.ne.s32.totalorder %s73, %s89
      %p91 = scmp.eq.s32.totalorder %s18, 0
      %p92 = por %p90, %p91
      %s93 = ssub.s32 %s12, %s19
      %p94 = scmp.eq.s32.totalorder %s93, 0
      %s96 = sadd.s32 %s95, 1
      %s97 = scalar_select %p94, %s95, %s96
      %p100 = pneg %p94
      %p101 = scmp.eq.s32.totalorder %s12, 1
      %p102 = por %p100, %p101
      %p103 = scmp.ne.s32.totalorder %s95, %s98
      %p104 = scmp.eq.s32.totalorder %s12, 0
      %p105 = por %p103, %p104
      %p106 = scmp.ne.s32.totalorder %s95, %s98
      %p107 = scmp.eq.s32.totalorder %s17, 1
      %p108 = por %p106, %p107
      %p109 = scmp.ne.s32.totalorder %s98, %s99
      %p110 = scmp.eq.s32.totalorder %s17, 0
      %p111 = por %p109, %p110
      %p112 = scmp.ne.s32.totalorder %s98, %s99
      %p113 = scmp.eq.s32.totalorder %s18, 1
      %p114 = por %p112, %p113
      %p116 = scmp.ne.s32.totalorder %s99, %s115
      %p117 = scmp.eq.s32.totalorder %s18, 0
      %p118 = por %p116, %p117
      %s119 = ssub.s32 %s12, %s19
      %p120 = scmp.eq.s32.totalorder %s119, 0
      %s122 = sadd.s32 %s121, 1
      %s123 = scalar_select %p120, %s121, %s122
      %p126 = pneg %p120
      %p127 = scmp.eq.s32.totalorder %s12, 1
      %p128 = por %p126, %p127
      %p129 = scmp.ne.s32.totalorder %s121, %s124
      %p130 = scmp.eq.s32.totalorder %s12, 0
      %p131 = por %p129, %p130
      %p132 = scmp.ne.s32.totalorder %s121, %s124
      %p133 = scmp.eq.s32.totalorder %s17, 1
      %p134 = por %p132, %p133
      %p135 = scmp.ne.s32.totalorder %s124, %s125
      %p136 = scmp.eq.s32.totalorder %s17, 0
      %p137 = por %p135, %p136
      %p138 = scmp.ne.s32.totalorder %s124, %s125
      %p139 = scmp.eq.s32.totalorder %s18, 1
      %p140 = por %p138, %p139
      %p142 = scmp.ne.s32.totalorder %s125, %s141
      %p143 = scmp.eq.s32.totalorder %s18, 0
      %p144 = por %p142, %p143
      %s146 = sadd.s32 %s145, 1
      %p149 = scmp.eq.s32.totalorder %s12, 1
      %p150 = scmp.ne.s32.totalorder %s145, %s147
      %p151 = scmp.eq.s32.totalorder %s12, 0
      %p152 = por %p150, %p151
      %p153 = scmp.ne.s32.totalorder %s145, %s147
      %p154 = scmp.eq.s32.totalorder %s17, 1
      %p155 = por %p153, %p154
      %p156 = scmp.ne.s32.totalorder %s147, %s148
      %p157 = scmp.eq.s32.totalorder %s17, 0
      %p158 = por %p156, %p157
      %p159 = scmp.ne.s32.totalorder %s147, %s148
      %p160 = scmp.eq.s32.totalorder %s18, 1
      %p161 = por %p159, %p160
      %p163 = scmp.ne.s32.totalorder %s148, %s162
      %p164 = scmp.eq.s32.totalorder %s18, 0
      %p165 = por %p163, %p164
      %s166 = ssub.s32 %s12, %s19
      %p167 = scmp.eq.s32.totalorder %s166, 0
      %s169 = sadd.s32 %s168, 1
      %s170 = scalar_select %p167, %s168, %s169
      %p173 = pneg %p167
      %p174 = scmp.eq.s32.totalorder %s12, 1
      %p175 = por %p173, %p174
      %p176 = scmp.ne.s32.totalorder %s168, %s171
      %p177 = scmp.eq.s32.totalorder %s12, 0
      %p178 = por %p176, %p177
      %p179 = scmp.ne.s32.totalorder %s168, %s171
      %p180 = scmp.eq.s32.totalorder %s17, 1
      %p181 = por %p179, %p180
      %p182 = scmp.ne.s32.totalorder %s171, %s172
      %p183 = scmp.eq.s32.totalorder %s17, 0
      %p184 = por %p182, %p183
      %p185 = scmp.ne.s32.totalorder %s171, %s172
      %p186 = scmp.eq.s32.totalorder %s18, 1
      %p187 = por %p185, %p186
      %p189 = scmp.ne.s32.totalorder %s172, %s188
      %p190 = scmp.eq.s32.totalorder %s18, 0
      %p191 = por %p189, %p190
      %p192 = scmp.le.s32.totalorder 1, %s12
      %p193 = scmp.lt.s32.totalorder %s12, 3
      %p194 = pnand %p192, %p193
      %p195 = pneg %p194
      // Predicated region
      $region9: #{hkcnn_forward.4} parent=5 // pred_check
        _
      $region10: #{hkcnn_forward.4} parent=5 // pred_check_branch
        %197 = sbr.rel (%p194) target = $region12
      $region11: #{hkcnn_forward.4} parent=5 // pred_region
        %s198 = ssub.s32 %s12, 1
        // Predicated region
        $region13: #{hkcnn_forward.4} parent=11 // pred_check
          %p199 = pneg %p33
        $region14: #{hkcnn_forward.4} parent=11 // pred_check_branch
          %201 = sbr.rel (%p199) target = $region16
        $region15: #{hkcnn_forward.4} parent=11 // pred_region
          _
        $region16: #{hkcnn_forward.4} parent=11 // pred_fallthru
          _
        // Predicated region
        $region17: #{hkcnn_forward.4} parent=11 // pred_check
          %p202 = pneg %p158
        $region18: #{hkcnn_forward.4} parent=11 // pred_check_branch
          %204 = sbr.rel (%p202) target = $region20
        $region19: #{hkcnn_forward.4} parent=11 // pred_region
          _
        $region20: #{hkcnn_forward.4} parent=11 // pred_fallthru
          _
      $region12: #{hkcnn_forward.4} parent=5 // pred_fallthru
        _
      %p205 = scmp.lt.s32.totalorder %s12, 2
      // Predicated region
      $region21: #{hkcnn_forward.4} parent=5 // pred_check
        %p206 = pneg %p205
      $region22: #{hkcnn_forward.4} parent=5 // pred_check_branch
        %208 = sbr.rel (%p206) target = $region24
      $region23: #{hkcnn_forward.4} parent=5 // pred_region
        // Predicated region
        $region25: #{hkcnn_forward.4} parent=23 // pred_check
          %p209 = pneg %p53
        $region26: #{hkcnn_forward.4} parent=23 // pred_check_branch
          %211 = sbr.rel (%p209) target = $region28
        $region27: #{hkcnn_forward.4} parent=23 // pred_region
          %s212 = sand.u32 %s43, 1
          %s213 = sand.u32 %s43, 1
          %s214 = smul.addr %s213, 80
          %s215 = scalar_lea.vmem [#allocation2], %s214
          %s216 = smul.u32 2, %s12
          %s217 = smul.addr %s216, 4
          %s218 = scalar_lea.vmem %s1, %s217
          // Predicated region
          $region29: #{hkcnn_forward.4} parent=27 // pred_check
            _
          $region30: #{hkcnn_forward.4} parent=27 // pred_check_branch
            %220 = sbr.rel (0) target = $region32
          $region31: #{hkcnn_forward.4} parent=27 // pred_region
            // Predicated region
            $region33: #{hkcnn_forward.4} parent=31 // pred_check
              _
            $region34: #{hkcnn_forward.4} parent=31 // pred_check_branch
              %222 = sbr.rel (0) target = $region36
            $region35: #{hkcnn_forward.4} parent=31 // pred_region
              // Predicated region
              $region48: #{hkcnn_forward.4} parent=35 // pred_check
                _
              $region49: #{hkcnn_forward.4} parent=35 // pred_check_branch
                %256 = sbr.rel (0) target = $region51
              $region50: #{hkcnn_forward.4} parent=35 // pred_region
                loop: start=0, step=1, limit=1
                $region52: #{hkcnn_forward.4} parent=50 // loop_pre_header
                  _
                $region53: #{hkcnn_forward.4} parent=50 // loop_header
                  %s258 = sphi 0, %s262
                  %p259 = scmp.ge.s32.totalorder %s258, 1
                  %s263 = sphi %s218, %s218
                  %s264 = sphi %s215, %s215
                $region54: #{hkcnn_forward.4} parent=50 // loop_header_branch
                  %261 = sbr.rel (%p259) target = $region58
                $region55: #{hkcnn_forward.4} parent=50 // loop_body
                  %v265 = vld [vmem:[%s263] sm:$0xff]
                  %266 = vst [vmem:[%s264] sm:$0xff] %v265
                  %v267 = vld [vmem:[%s263 + $0x10] sm:$0xff]
                  %268 = vst [vmem:[%s264 + $0x8] sm:$0xff] %v267
                  %v269 = vld [vmem:[%s263 + $0x20] sm:$0xff]
                  %270 = vst [vmem:[%s264 + $0x10] sm:$0xff] %v269
                  %v271 = vld [vmem:[%s263 + $0x30] sm:$0xff]
                  %272 = vst [vmem:[%s264 + $0x18] sm:$0xff] %v271
                  %v273 = vld [vmem:[%s263 + $0x40] sm:$0xff]
                  %274 = vst [vmem:[%s264 + $0x20] sm:$0xff] %v273
                  %v275 = vld [vmem:[%s263 + $0x50] sm:$0xff]
                  %276 = vst [vmem:[%s264 + $0x28] sm:$0xff] %v275
                  %v277 = vld [vmem:[%s263 + $0x60] sm:$0xff]
                  %278 = vst [vmem:[%s264 + $0x30] sm:$0xff] %v277
                  %v279 = vld [vmem:[%s263 + $0x70] sm:$0xff]
                  %280 = vst [vmem:[%s264 + $0x38] sm:$0xff] %v279
                  %v281 = vld [vmem:[%s263 + $0x80] sm:$0xff]
                  %282 = vst [vmem:[%s264 + $0x40] sm:$0xff] %v281
                  %v283 = vld [vmem:[%s263 + $0x90] sm:$0xff]
                  %284 = vst [vmem:[%s264 + $0x48] sm:$0xff] %v283
                $region56: #{hkcnn_forward.4} parent=50 // loop_footer
                  %s262 = sadd.s32 1, %s258
                $region57: #{hkcnn_forward.4} parent=50 // loop_footer_branch
                  %257 = sbr.rel target = $region53
                $region58: #{hkcnn_forward.4} parent=50 // loop_exit
                  _
              $region51: #{hkcnn_forward.4} parent=35 // pred_fallthru
                _
              // Predicated region
              $region59: #{hkcnn_forward.4} parent=35 // pred_check
                _
              $region60: #{hkcnn_forward.4} parent=35 // pred_check_branch
                %286 = sbr.rel target = $region62
              $region61: #{hkcnn_forward.4} parent=35 // pred_region
                _
              $region62: #{hkcnn_forward.4} parent=35 // pred_fallthru
                _
            $region36: #{hkcnn_forward.4} parent=31 // pred_fallthru
              _
            // Predicated region
            $region37: #{hkcnn_forward.4} parent=31 // pred_check
              _
            $region38: #{hkcnn_forward.4} parent=31 // pred_check_branch
              %224 = sbr.rel target = $region40
            $region39: #{hkcnn_forward.4} parent=31 // pred_region
              %s226 = ssub.s32 256, 1
              loop: start=0, step=1, limit=1
              $region41: #{hkcnn_forward.4} parent=39 // loop_pre_header
                _
              $region42: #{hkcnn_forward.4} parent=39 // loop_header
                %s228 = sphi 0, %s232
                %p229 = scmp.ge.s32.totalorder %s228, 1
                %s233 = sphi %s218, %s218
                %s234 = sphi %s215, %s215
              $region43: #{hkcnn_forward.4} parent=39 // loop_header_branch
                %231 = sbr.rel (%p229) target = $region47
              $region44: #{hkcnn_forward.4} parent=39 // loop_body
                %v235 = vld [vmem:[%s233] sm:%s226]
                %236 = vst [vmem:[%s234] sm:%s226] %v235
                %v237 = vld [vmem:[%s233 + $0x10] sm:%s226]
                %238 = vst [vmem:[%s234 + $0x8] sm:%s226] %v237
                %v239 = vld [vmem:[%s233 + $0x20] sm:%s226]
                %240 = vst [vmem:[%s234 + $0x10] sm:%s226] %v239
                %v241 = vld [vmem:[%s233 + $0x30] sm:%s226]
                %242 = vst [vmem:[%s234 + $0x18] sm:%s226] %v241
                %v243 = vld [vmem:[%s233 + $0x40] sm:%s226]
                %244 = vst [vmem:[%s234 + $0x20] sm:%s226] %v243
                %v245 = vld [vmem:[%s233 + $0x50] sm:%s226]
                %246 = vst [vmem:[%s234 + $0x28] sm:%s226] %v245
                %v247 = vld [vmem:[%s233 + $0x60] sm:%s226]
                %248 = vst [vmem:[%s234 + $0x30] sm:%s226] %v247
                %v249 = vld [vmem:[%s233 + $0x70] sm:%s226]
                %250 = vst [vmem:[%s234 + $0x38] sm:%s226] %v249
                %v251 = vld [vmem:[%s233 + $0x80] sm:%s226]
                %252 = vst [vmem:[%s234 + $0x40] sm:%s226] %v251
                %v253 = vld [vmem:[%s233 + $0x90] sm:%s226]
                %254 = vst [vmem:[%s234 + $0x48] sm:%s226] %v253
              $region45: #{hkcnn_forward.4} parent=39 // loop_footer
                %s232 = sadd.s32 1, %s228
              $region46: #{hkcnn_forward.4} parent=39 // loop_footer_branch
                %227 = sbr.rel target = $region42
              $region47: #{hkcnn_forward.4} parent=39 // loop_exit
                _
            $region40: #{hkcnn_forward.4} parent=31 // pred_fallthru
              _
          $region32: #{hkcnn_forward.4} parent=27 // pred_fallthru
            _
          %287 = vnop
        $region28: #{hkcnn_forward.4} parent=23 // pred_fallthru
          _
        // Predicated region
        $region63: #{hkcnn_forward.4} parent=23 // pred_check
          %p288 = pneg %p79
        $region64: #{hkcnn_forward.4} parent=23 // pred_check_branch
          %290 = sbr.rel (%p288) target = $region66
        $region65: #{hkcnn_forward.4} parent=23 // pred_region
          %s291 = sand.u32 %s69, 1
          %s292 = sand.u32 %s69, 1
          %s293 = smul.addr %s292, 80
          %s294 = scalar_lea.vmem [#allocation3], %s293
          %s295 = smul.u32 2, %s12
          %s296 = smul.addr %s295, 4
          %s297 = scalar_lea.vmem %s2, %s296
          // Predicated region
          $region67: #{hkcnn_forward.4} parent=65 // pred_check
            _
          $region68: #{hkcnn_forward.4} parent=65 // pred_check_branch
            %299 = sbr.rel (0) target = $region70
          $region69: #{hkcnn_forward.4} parent=65 // pred_region
            // Predicated region
            $region71: #{hkcnn_forward.4} parent=69 // pred_check
              _
            $region72: #{hkcnn_forward.4} parent=69 // pred_check_branch
              %301 = sbr.rel (0) target = $region74
            $region73: #{hkcnn_forward.4} parent=69 // pred_region
              // Predicated region
              $region86: #{hkcnn_forward.4} parent=73 // pred_check
                _
              $region87: #{hkcnn_forward.4} parent=73 // pred_check_branch
                %335 = sbr.rel (0) target = $region89
              $region88: #{hkcnn_forward.4} parent=73 // pred_region
                loop: start=0, step=1, limit=1
                $region90: #{hkcnn_forward.4} parent=88 // loop_pre_header
                  _
                $region91: #{hkcnn_forward.4} parent=88 // loop_header
                  %s337 = sphi 0, %s341
                  %p338 = scmp.ge.s32.totalorder %s337, 1
                  %s342 = sphi %s297, %s297
                  %s343 = sphi %s294, %s294
                $region92: #{hkcnn_forward.4} parent=88 // loop_header_branch
                  %340 = sbr.rel (%p338) target = $region96
                $region93: #{hkcnn_forward.4} parent=88 // loop_body
                  %v344 = vld [vmem:[%s342] sm:$0xff]
                  %345 = vst [vmem:[%s343] sm:$0xff] %v344
                  %v346 = vld [vmem:[%s342 + $0x10] sm:$0xff]
                  %347 = vst [vmem:[%s343 + $0x8] sm:$0xff] %v346
                  %v348 = vld [vmem:[%s342 + $0x20] sm:$0xff]
                  %349 = vst [vmem:[%s343 + $0x10] sm:$0xff] %v348
                  %v350 = vld [vmem:[%s342 + $0x30] sm:$0xff]
                  %351 = vst [vmem:[%s343 + $0x18] sm:$0xff] %v350
                  %v352 = vld [vmem:[%s342 + $0x40] sm:$0xff]
                  %353 = vst [vmem:[%s343 + $0x20] sm:$0xff] %v352
                  %v354 = vld [vmem:[%s342 + $0x50] sm:$0xff]
                  %355 = vst [vmem:[%s343 + $0x28] sm:$0xff] %v354
                  %v356 = vld [vmem:[%s342 + $0x60] sm:$0xff]
                  %357 = vst [vmem:[%s343 + $0x30] sm:$0xff] %v356
                  %v358 = vld [vmem:[%s342 + $0x70] sm:$0xff]
                  %359 = vst [vmem:[%s343 + $0x38] sm:$0xff] %v358
                  %v360 = vld [vmem:[%s342 + $0x80] sm:$0xff]
                  %361 = vst [vmem:[%s343 + $0x40] sm:$0xff] %v360
                  %v362 = vld [vmem:[%s342 + $0x90] sm:$0xff]
                  %363 = vst [vmem:[%s343 + $0x48] sm:$0xff] %v362
                $region94: #{hkcnn_forward.4} parent=88 // loop_footer
                  %s341 = sadd.s32 1, %s337
                $region95: #{hkcnn_forward.4} parent=88 // loop_footer_branch
                  %336 = sbr.rel target = $region91
                $region96: #{hkcnn_forward.4} parent=88 // loop_exit
                  _
              $region89: #{hkcnn_forward.4} parent=73 // pred_fallthru
                _
              // Predicated region
              $region97: #{hkcnn_forward.4} parent=73 // pred_check
                _
              $region98: #{hkcnn_forward.4} parent=73 // pred_check_branch
                %365 = sbr.rel target = $region100
              $region99: #{hkcnn_forward.4} parent=73 // pred_region
                _
              $region100: #{hkcnn_forward.4} parent=73 // pred_fallthru
                _
            $region74: #{hkcnn_forward.4} parent=69 // pred_fallthru
              _
            // Predicated region
            $region75: #{hkcnn_forward.4} parent=69 // pred_check
              _
            $region76: #{hkcnn_forward.4} parent=69 // pred_check_branch
              %303 = sbr.rel target = $region78
            $region77: #{hkcnn_forward.4} parent=69 // pred_region
              %s305 = ssub.s32 256, 1
              loop: start=0, step=1, limit=1
              $region79: #{hkcnn_forward.4} parent=77 // loop_pre_header
                _
              $region80: #{hkcnn_forward.4} parent=77 // loop_header
                %s307 = sphi 0, %s311
                %p308 = scmp.ge.s32.totalorder %s307, 1
                %s312 = sphi %s297, %s297
                %s313 = sphi %s294, %s294
              $region81: #{hkcnn_forward.4} parent=77 // loop_header_branch
                %310 = sbr.rel (%p308) target = $region85
              $region82: #{hkcnn_forward.4} parent=77 // loop_body
                %v314 = vld [vmem:[%s312] sm:%s305]
                %315 = vst [vmem:[%s313] sm:%s305] %v314
                %v316 = vld [vmem:[%s312 + $0x10] sm:%s305]
                %317 = vst [vmem:[%s313 + $0x8] sm:%s305] %v316
                %v318 = vld [vmem:[%s312 + $0x20] sm:%s305]
                %319 = vst [vmem:[%s313 + $0x10] sm:%s305] %v318
                %v320 = vld [vmem:[%s312 + $0x30] sm:%s305]
                %321 = vst [vmem:[%s313 + $0x18] sm:%s305] %v320
                %v322 = vld [vmem:[%s312 + $0x40] sm:%s305]
                %323 = vst [vmem:[%s313 + $0x20] sm:%s305] %v322
                %v324 = vld [vmem:[%s312 + $0x50] sm:%s305]
                %325 = vst [vmem:[%s313 + $0x28] sm:%s305] %v324
                %v326 = vld [vmem:[%s312 + $0x60] sm:%s305]
                %327 = vst [vmem:[%s313 + $0x30] sm:%s305] %v326
                %v328 = vld [vmem:[%s312 + $0x70] sm:%s305]
                %329 = vst [vmem:[%s313 + $0x38] sm:%s305] %v328
                %v330 = vld [vmem:[%s312 + $0x80] sm:%s305]
                %331 = vst [vmem:[%s313 + $0x40] sm:%s305] %v330
                %v332 = vld [vmem:[%s312 + $0x90] sm:%s305]
                %333 = vst [vmem:[%s313 + $0x48] sm:%s305] %v332
              $region83: #{hkcnn_forward.4} parent=77 // loop_footer
                %s311 = sadd.s32 1, %s307
              $region84: #{hkcnn_forward.4} parent=77 // loop_footer_branch
                %306 = sbr.rel target = $region80
              $region85: #{hkcnn_forward.4} parent=77 // loop_exit
                _
            $region78: #{hkcnn_forward.4} parent=69 // pred_fallthru
              _
          $region70: #{hkcnn_forward.4} parent=65 // pred_fallthru
            _
          %366 = vnop
        $region66: #{hkcnn_forward.4} parent=23 // pred_fallthru
          _
        // Predicated region
        $region101: #{hkcnn_forward.4} parent=23 // pred_check
          %p367 = pneg %p105
        $region102: #{hkcnn_forward.4} parent=23 // pred_check_branch
          %369 = sbr.rel (%p367) target = $region104
        $region103: #{hkcnn_forward.4} parent=23 // pred_region
          %s370 = sand.u32 %s95, 1
          %s371 = sand.u32 %s95, 1
          %s372 = smul.addr %s371, 80
          %s373 = scalar_lea.vmem [#allocation4], %s372
          %s374 = smul.u32 2, %s12
          %s375 = smul.addr %s374, 4
          %s376 = scalar_lea.vmem %s3, %s375
          // Predicated region
          $region105: #{hkcnn_forward.4} parent=103 // pred_check
            _
          $region106: #{hkcnn_forward.4} parent=103 // pred_check_branch
            %378 = sbr.rel (0) target = $region108
          $region107: #{hkcnn_forward.4} parent=103 // pred_region
            // Predicated region
            $region109: #{hkcnn_forward.4} parent=107 // pred_check
              _
            $region110: #{hkcnn_forward.4} parent=107 // pred_check_branch
              %380 = sbr.rel (0) target = $region112
            $region111: #{hkcnn_forward.4} parent=107 // pred_region
              // Predicated region
              $region124: #{hkcnn_forward.4} parent=111 // pred_check
                _
              $region125: #{hkcnn_forward.4} parent=111 // pred_check_branch
                %414 = sbr.rel (0) target = $region127
              $region126: #{hkcnn_forward.4} parent=111 // pred_region
                loop: start=0, step=1, limit=1
                $region128: #{hkcnn_forward.4} parent=126 // loop_pre_header
                  _
                $region129: #{hkcnn_forward.4} parent=126 // loop_header
                  %s416 = sphi 0, %s420
                  %p417 = scmp.ge.s32.totalorder %s416, 1
                  %s421 = sphi %s376, %s376
                  %s422 = sphi %s373, %s373
                $region130: #{hkcnn_forward.4} parent=126 // loop_header_branch
                  %419 = sbr.rel (%p417) target = $region134
                $region131: #{hkcnn_forward.4} parent=126 // loop_body
                  %v423 = vld [vmem:[%s421] sm:$0xff]
                  %424 = vst [vmem:[%s422] sm:$0xff] %v423
                  %v425 = vld [vmem:[%s421 + $0x10] sm:$0xff]
                  %426 = vst [vmem:[%s422 + $0x8] sm:$0xff] %v425
                  %v427 = vld [vmem:[%s421 + $0x20] sm:$0xff]
                  %428 = vst [vmem:[%s422 + $0x10] sm:$0xff] %v427
                  %v429 = vld [vmem:[%s421 + $0x30] sm:$0xff]
                  %430 = vst [vmem:[%s422 + $0x18] sm:$0xff] %v429
                  %v431 = vld [vmem:[%s421 + $0x40] sm:$0xff]
                  %432 = vst [vmem:[%s422 + $0x20] sm:$0xff] %v431
                  %v433 = vld [vmem:[%s421 + $0x50] sm:$0xff]
                  %434 = vst [vmem:[%s422 + $0x28] sm:$0xff] %v433
                  %v435 = vld [vmem:[%s421 + $0x60] sm:$0xff]
                  %436 = vst [vmem:[%s422 + $0x30] sm:$0xff] %v435
                  %v437 = vld [vmem:[%s421 + $0x70] sm:$0xff]
                  %438 = vst [vmem:[%s422 + $0x38] sm:$0xff] %v437
                  %v439 = vld [vmem:[%s421 + $0x80] sm:$0xff]
                  %440 = vst [vmem:[%s422 + $0x40] sm:$0xff] %v439
                  %v441 = vld [vmem:[%s421 + $0x90] sm:$0xff]
                  %442 = vst [vmem:[%s422 + $0x48] sm:$0xff] %v441
                $region132: #{hkcnn_forward.4} parent=126 // loop_footer
                  %s420 = sadd.s32 1, %s416
                $region133: #{hkcnn_forward.4} parent=126 // loop_footer_branch
                  %415 = sbr.rel target = $region129
                $region134: #{hkcnn_forward.4} parent=126 // loop_exit
                  _
              $region127: #{hkcnn_forward.4} parent=111 // pred_fallthru
                _
              // Predicated region
              $region135: #{hkcnn_forward.4} parent=111 // pred_check
                _
              $region136: #{hkcnn_forward.4} parent=111 // pred_check_branch
                %444 = sbr.rel target = $region138
              $region137: #{hkcnn_forward.4} parent=111 // pred_region
                _
              $region138: #{hkcnn_forward.4} parent=111 // pred_fallthru
                _
            $region112: #{hkcnn_forward.4} parent=107 // pred_fallthru
              _
            // Predicated region
            $region113: #{hkcnn_forward.4} parent=107 // pred_check
              _
            $region114: #{hkcnn_forward.4} parent=107 // pred_check_branch
              %382 = sbr.rel target = $region116
            $region115: #{hkcnn_forward.4} parent=107 // pred_region
              %s384 = ssub.s32 256, 1
              loop: start=0, step=1, limit=1
              $region117: #{hkcnn_forward.4} parent=115 // loop_pre_header
                _
              $region118: #{hkcnn_forward.4} parent=115 // loop_header
                %s386 = sphi 0, %s390
                %p387 = scmp.ge.s32.totalorder %s386, 1
                %s391 = sphi %s376, %s376
                %s392 = sphi %s373, %s373
              $region119: #{hkcnn_forward.4} parent=115 // loop_header_branch
                %389 = sbr.rel (%p387) target = $region123
              $region120: #{hkcnn_forward.4} parent=115 // loop_body
                %v393 = vld [vmem:[%s391] sm:%s384]
                %394 = vst [vmem:[%s392] sm:%s384] %v393
                %v395 = vld [vmem:[%s391 + $0x10] sm:%s384]
                %396 = vst [vmem:[%s392 + $0x8] sm:%s384] %v395
                %v397 = vld [vmem:[%s391 + $0x20] sm:%s384]
                %398 = vst [vmem:[%s392 + $0x10] sm:%s384] %v397
                %v399 = vld [vmem:[%s391 + $0x30] sm:%s384]
                %400 = vst [vmem:[%s392 + $0x18] sm:%s384] %v399
                %v401 = vld [vmem:[%s391 + $0x40] sm:%s384]
                %402 = vst [vmem:[%s392 + $0x20] sm:%s384] %v401
                %v403 = vld [vmem:[%s391 + $0x50] sm:%s384]
                %404 = vst [vmem:[%s392 + $0x28] sm:%s384] %v403
                %v405 = vld [vmem:[%s391 + $0x60] sm:%s384]
                %406 = vst [vmem:[%s392 + $0x30] sm:%s384] %v405
                %v407 = vld [vmem:[%s391 + $0x70] sm:%s384]
                %408 = vst [vmem:[%s392 + $0x38] sm:%s384] %v407
                %v409 = vld [vmem:[%s391 + $0x80] sm:%s384]
                %410 = vst [vmem:[%s392 + $0x40] sm:%s384] %v409
                %v411 = vld [vmem:[%s391 + $0x90] sm:%s384]
                %412 = vst [vmem:[%s392 + $0x48] sm:%s384] %v411
              $region121: #{hkcnn_forward.4} parent=115 // loop_footer
                %s390 = sadd.s32 1, %s386
              $region122: #{hkcnn_forward.4} parent=115 // loop_footer_branch
                %385 = sbr.rel target = $region118
              $region123: #{hkcnn_forward.4} parent=115 // loop_exit
                _
            $region116: #{hkcnn_forward.4} parent=107 // pred_fallthru
              _
          $region108: #{hkcnn_forward.4} parent=103 // pred_fallthru
            _
          %445 = vnop
        $region104: #{hkcnn_forward.4} parent=23 // pred_fallthru
          _
        // Predicated region
        $region139: #{hkcnn_forward.4} parent=23 // pred_check
          %p446 = pneg %p131
        $region140: #{hkcnn_forward.4} parent=23 // pred_check_branch
          %448 = sbr.rel (%p446) target = $region142
        $region141: #{hkcnn_forward.4} parent=23 // pred_region
          %s449 = sand.u32 %s121, 1
          %s450 = sand.u32 %s121, 1
          %s451 = smul.addr %s450, 80
          %s452 = scalar_lea.vmem [#allocation5], %s451
          %s453 = smul.u32 2, %s12
          %s454 = smul.addr %s453, 4
          %s455 = scalar_lea.vmem %s4, %s454
          // Predicated region
          $region143: #{hkcnn_forward.4} parent=141 // pred_check
            _
          $region144: #{hkcnn_forward.4} parent=141 // pred_check_branch
            %457 = sbr.rel (0) target = $region146
          $region145: #{hkcnn_forward.4} parent=141 // pred_region
            // Predicated region
            $region147: #{hkcnn_forward.4} parent=145 // pred_check
              _
            $region148: #{hkcnn_forward.4} parent=145 // pred_check_branch
              %459 = sbr.rel (0) target = $region150
            $region149: #{hkcnn_forward.4} parent=145 // pred_region
              // Predicated region
              $region162: #{hkcnn_forward.4} parent=149 // pred_check
                _
              $region163: #{hkcnn_forward.4} parent=149 // pred_check_branch
                %493 = sbr.rel (0) target = $region165
              $region164: #{hkcnn_forward.4} parent=149 // pred_region
                loop: start=0, step=1, limit=1
                $region166: #{hkcnn_forward.4} parent=164 // loop_pre_header
                  _
                $region167: #{hkcnn_forward.4} parent=164 // loop_header
                  %s495 = sphi 0, %s499
                  %p496 = scmp.ge.s32.totalorder %s495, 1
                  %s500 = sphi %s455, %s455
                  %s501 = sphi %s452, %s452
                $region168: #{hkcnn_forward.4} parent=164 // loop_header_branch
                  %498 = sbr.rel (%p496) target = $region172
                $region169: #{hkcnn_forward.4} parent=164 // loop_body
                  %v502 = vld [vmem:[%s500] sm:$0xff]
                  %503 = vst [vmem:[%s501] sm:$0xff] %v502
                  %v504 = vld [vmem:[%s500 + $0x10] sm:$0xff]
                  %505 = vst [vmem:[%s501 + $0x8] sm:$0xff] %v504
                  %v506 = vld [vmem:[%s500 + $0x20] sm:$0xff]
                  %507 = vst [vmem:[%s501 + $0x10] sm:$0xff] %v506
                  %v508 = vld [vmem:[%s500 + $0x30] sm:$0xff]
                  %509 = vst [vmem:[%s501 + $0x18] sm:$0xff] %v508
                  %v510 = vld [vmem:[%s500 + $0x40] sm:$0xff]
                  %511 = vst [vmem:[%s501 + $0x20] sm:$0xff] %v510
                  %v512 = vld [vmem:[%s500 + $0x50] sm:$0xff]
                  %513 = vst [vmem:[%s501 + $0x28] sm:$0xff] %v512
                  %v514 = vld [vmem:[%s500 + $0x60] sm:$0xff]
                  %515 = vst [vmem:[%s501 + $0x30] sm:$0xff] %v514
                  %v516 = vld [vmem:[%s500 + $0x70] sm:$0xff]
                  %517 = vst [vmem:[%s501 + $0x38] sm:$0xff] %v516
                  %v518 = vld [vmem:[%s500 + $0x80] sm:$0xff]
                  %519 = vst [vmem:[%s501 + $0x40] sm:$0xff] %v518
                  %v520 = vld [vmem:[%s500 + $0x90] sm:$0xff]
                  %521 = vst [vmem:[%s501 + $0x48] sm:$0xff] %v520
                $region170: #{hkcnn_forward.4} parent=164 // loop_footer
                  %s499 = sadd.s32 1, %s495
                $region171: #{hkcnn_forward.4} parent=164 // loop_footer_branch
                  %494 = sbr.rel target = $region167
                $region172: #{hkcnn_forward.4} parent=164 // loop_exit
                  _
              $region165: #{hkcnn_forward.4} parent=149 // pred_fallthru
                _
              // Predicated region
              $region173: #{hkcnn_forward.4} parent=149 // pred_check
                _
              $region174: #{hkcnn_forward.4} parent=149 // pred_check_branch
                %523 = sbr.rel target = $region176
              $region175: #{hkcnn_forward.4} parent=149 // pred_region
                _
              $region176: #{hkcnn_forward.4} parent=149 // pred_fallthru
                _
            $region150: #{hkcnn_forward.4} parent=145 // pred_fallthru
              _
            // Predicated region
            $region151: #{hkcnn_forward.4} parent=145 // pred_check
              _
            $region152: #{hkcnn_forward.4} parent=145 // pred_check_branch
              %461 = sbr.rel target = $region154
            $region153: #{hkcnn_forward.4} parent=145 // pred_region
              %s463 = ssub.s32 256, 1
              loop: start=0, step=1, limit=1
              $region155: #{hkcnn_forward.4} parent=153 // loop_pre_header
                _
              $region156: #{hkcnn_forward.4} parent=153 // loop_header
                %s465 = sphi 0, %s469
                %p466 = scmp.ge.s32.totalorder %s465, 1
                %s470 = sphi %s455, %s455
                %s471 = sphi %s452, %s452
              $region157: #{hkcnn_forward.4} parent=153 // loop_header_branch
                %468 = sbr.rel (%p466) target = $region161
              $region158: #{hkcnn_forward.4} parent=153 // loop_body
                %v472 = vld [vmem:[%s470] sm:%s463]
                %473 = vst [vmem:[%s471] sm:%s463] %v472
                %v474 = vld [vmem:[%s470 + $0x10] sm:%s463]
                %475 = vst [vmem:[%s471 + $0x8] sm:%s463] %v474
                %v476 = vld [vmem:[%s470 + $0x20] sm:%s463]
                %477 = vst [vmem:[%s471 + $0x10] sm:%s463] %v476
                %v478 = vld [vmem:[%s470 + $0x30] sm:%s463]
                %479 = vst [vmem:[%s471 + $0x18] sm:%s463] %v478
                %v480 = vld [vmem:[%s470 + $0x40] sm:%s463]
                %481 = vst [vmem:[%s471 + $0x20] sm:%s463] %v480
                %v482 = vld [vmem:[%s470 + $0x50] sm:%s463]
                %483 = vst [vmem:[%s471 + $0x28] sm:%s463] %v482
                %v484 = vld [vmem:[%s470 + $0x60] sm:%s463]
                %485 = vst [vmem:[%s471 + $0x30] sm:%s463] %v484
                %v486 = vld [vmem:[%s470 + $0x70] sm:%s463]
                %487 = vst [vmem:[%s471 + $0x38] sm:%s463] %v486
                %v488 = vld [vmem:[%s470 + $0x80] sm:%s463]
                %489 = vst [vmem:[%s471 + $0x40] sm:%s463] %v488
                %v490 = vld [vmem:[%s470 + $0x90] sm:%s463]
                %491 = vst [vmem:[%s471 + $0x48] sm:%s463] %v490
              $region159: #{hkcnn_forward.4} parent=153 // loop_footer
                %s469 = sadd.s32 1, %s465
              $region160: #{hkcnn_forward.4} parent=153 // loop_footer_branch
                %464 = sbr.rel target = $region156
              $region161: #{hkcnn_forward.4} parent=153 // loop_exit
                _
            $region154: #{hkcnn_forward.4} parent=145 // pred_fallthru
              _
          $region146: #{hkcnn_forward.4} parent=141 // pred_fallthru
            _
          %524 = vnop
        $region142: #{hkcnn_forward.4} parent=23 // pred_fallthru
          _
      $region24: #{hkcnn_forward.4} parent=5 // pred_fallthru
        _
      %p525 = scmp.le.s32.totalorder 1, %s12
      %p526 = scmp.lt.s32.totalorder %s12, 3
      %p527 = pnand %p525, %p526
      %p528 = pneg %p527
      // Predicated region
      $region177: #{hkcnn_forward.4} parent=5 // pred_check
        _
      $region178: #{hkcnn_forward.4} parent=5 // pred_check_branch
        %530 = sbr.rel (%p527) target = $region180
      $region179: #{hkcnn_forward.4} parent=5 // pred_region
        %s531 = ssub.s32 %s12, 1
        %s532 = sand.u32 %s46, 1
        %s533 = sand.u32 %s46, 1
        %s534 = smul.addr %s533, 80
        %s535 = scalar_lea.vmem [#allocation2], %s534
        // Predicated region
        $region181: #{hkcnn_forward.4} parent=179 // pred_check
          %p536 = pneg %p59
        $region182: #{hkcnn_forward.4} parent=179 // pred_check_branch
          %538 = sbr.rel (%p536) target = $region184
        $region183: #{hkcnn_forward.4} parent=179 // pred_region
          _
        $region184: #{hkcnn_forward.4} parent=179 // pred_fallthru
          _
        %s539 = sand.u32 %s72, 1
        %s540 = sand.u32 %s72, 1
        %s541 = smul.addr %s540, 80
        %s542 = scalar_lea.vmem [#allocation3], %s541
        // Predicated region
        $region185: #{hkcnn_forward.4} parent=179 // pred_check
          %p543 = pneg %p85
        $region186: #{hkcnn_forward.4} parent=179 // pred_check_branch
          %545 = sbr.rel (%p543) target = $region188
        $region187: #{hkcnn_forward.4} parent=179 // pred_region
          _
        $region188: #{hkcnn_forward.4} parent=179 // pred_fallthru
          _
        %s546 = sand.u32 %s98, 1
        %s547 = sand.u32 %s98, 1
        %s548 = smul.addr %s547, 80
        %s549 = scalar_lea.vmem [#allocation4], %s548
        // Predicated region
        $region189: #{hkcnn_forward.4} parent=179 // pred_check
          %p550 = pneg %p111
        $region190: #{hkcnn_forward.4} parent=179 // pred_check_branch
          %552 = sbr.rel (%p550) target = $region192
        $region191: #{hkcnn_forward.4} parent=179 // pred_region
          _
        $region192: #{hkcnn_forward.4} parent=179 // pred_fallthru
          _
        %s553 = sand.u32 %s124, 1
        %s554 = sand.u32 %s124, 1
        %s555 = smul.addr %s554, 80
        %s556 = scalar_lea.vmem [#allocation5], %s555
        // Predicated region
        $region193: #{hkcnn_forward.4} parent=179 // pred_check
          %p557 = pneg %p137
        $region194: #{hkcnn_forward.4} parent=179 // pred_check_branch
          %559 = sbr.rel (%p557) target = $region196
        $region195: #{hkcnn_forward.4} parent=179 // pred_region
          _
        $region196: #{hkcnn_forward.4} parent=179 // pred_fallthru
          _
        %p560 = pneg %p33
        %p561 = pneg %p30
        %s562 = sand.u32 %s46, 1
        %s563 = sand.u32 %s46, 1
        %s564 = smul.addr %s563, 80
        %s565 = scalar_lea.vmem [#allocation2], %s564
        %p566 = pneg %p59
        %p567 = pneg %p56
        %s568 = sand.u32 %s72, 1
        %s569 = sand.u32 %s72, 1
        %s570 = smul.addr %s569, 80
        %s571 = scalar_lea.vmem [#allocation3], %s570
        %p572 = pneg %p85
        %p573 = pneg %p82
        %s574 = sand.u32 %s98, 1
        %s575 = sand.u32 %s98, 1
        %s576 = smul.addr %s575, 80
        %s577 = scalar_lea.vmem [#allocation4], %s576
        %p578 = pneg %p111
        %p579 = pneg %p108
        %s580 = sand.u32 %s124, 1
        %s581 = sand.u32 %s124, 1
        %s582 = smul.addr %s581, 80
        %s583 = scalar_lea.vmem [#allocation5], %s582
        %p584 = pneg %p137
        %p585 = pneg %p134
        %p586 = pneg %p158
        %p587 = pneg %p155
        %p588 = pneg %p184
        %p589 = pneg %p181
        %s590 = sand.u32 %s171, 1
        %s591 = sand.u32 %s171, 1
        %s592 = smul.addr %s591, 16
        %s593 = scalar_lea.vmem [#allocation6], %s592
        %s594 = smul.u32 2, %s17
        %s595 = smul.u32 2, %s17
        %s596 = smul.u32 2, %s17
        %s597 = smul.u32 2, %s17
        %s598 = smul.u32 2, %s17
        %v600 = vld [vmem:[%s0] sm:$0xf]
        %v601 = vld [vmem:[%s0 + $0x4] sm:$0xf]
        %v602 = vld [vmem:[%s535] sm:$0xff]
        %v603 = vld [vmem:[%s535 + $0x8] sm:$0xff]
        %v604 = vld [vmem:[%s535 + $0x10] sm:$0xff]
        %v605 = vld [vmem:[%s535 + $0x18] sm:$0xff]
        %v606 = vld [vmem:[%s535 + $0x20] sm:$0xff]
        %v607 = vld [vmem:[%s535 + $0x28] sm:$0xff]
        %v608 = vld [vmem:[%s535 + $0x30] sm:$0xff]
        %v609 = vld [vmem:[%s535 + $0x38] sm:$0xff]
        %v610 = vld [vmem:[%s535 + $0x40] sm:$0xff]
        %v611 = vld [vmem:[%s535 + $0x48] sm:$0x33]
        %v614 = vunpack.c.l.b16 %v600
        %v615 = vunpack.c.l.b16 %v601
        %v616 = vpack.c.b16 %v615, %v614
        %v627 = vunpack.c.l.b16 %v602
        %v628 = vunpack.c.h.b16 %v602
        %v629 = vunpack.c.l.b16 %v603
        %v630 = vunpack.c.h.b16 %v603
        %v631 = vunpack.c.l.b16 %v604
        %v632 = vunpack.c.h.b16 %v604
        %v633 = vunpack.c.l.b16 %v605
        %v634 = vunpack.c.h.b16 %v605
        %v635 = vunpack.c.l.b16 %v606
        %v636 = vunpack.c.h.b16 %v606
        %v637 = vunpack.c.l.b16 %v607
        %v638 = vunpack.c.h.b16 %v607
        %v639 = vunpack.c.l.b16 %v608
        %v640 = vunpack.c.h.b16 %v608
        %v641 = vunpack.c.l.b16 %v609
        %v642 = vunpack.c.h.b16 %v609
        %v643 = vunpack.c.l.b16 %v610
        %v644 = vunpack.c.h.b16 %v610
        %v645 = vunpack.c.l.b16 %v611
        %v646 = vunpack.c.h.b16 %v611
        %v647 = vpack.c.b16 %v629, %v627
        %v648 = vpack.c.b16 %v630, %v628
        %v649 = vpack.c.b16 %v633, %v631
        %v650 = vpack.c.b16 %v634, %v632
        %v651 = vpack.c.b16 %v637, %v635
        %v652 = vpack.c.b16 %v638, %v636
        %v653 = vpack.c.b16 %v641, %v639
        %v654 = vpack.c.b16 %v642, %v640
        %v655 = vpack.c.b16 %v645, %v643
        %v656 = vpack.c.b16 %v646, %v644
        %vm665 = vcmask 613376
        %v667 = vsel %vm665, %v616, 0
        %vm669 = vcmask 1044480
        %vm670 = vcmask 1045504
        %v671 = vsel %vm669, 4294967295, 65535
        %v672 = vsel %vm670, %v671, 0
        %v674 = vand.u32 %v655, %v672
        %v677 = vand.u32 %v656, %v672
        %679 = vmatpush.bf16.msra.mxu0 0
        %680 = vmatpush.bf16.msra.mxu0 0
        %681 = vmatpush.bf16.msra.mxu0 0
        %682 = vmatpush.bf16.msra.mxu0 %v674
        %683 = vmatpush.bf16.msra.mxu0 %v653
        %684 = vmatpush.bf16.msra.mxu0 %v651
        %685 = vmatpush.bf16.msra.mxu0 %v649
        %686 = vmatpush.bf16.msra.mxu0 %v647
        %687 = vmatmul.bf16.gmra.mxu0 %v667
        %v688 = vpop.f32.mrf.mxu0
        %v689 = vadd.f32 0.0, %v688
        %v690 = vpop.f32.mrf.mxu0
        %v691 = vadd.f32 0.0, %v690
        %692 = vdwg.mxu0
        %693 = vmatpush.bf16.msra.mxu0 0
        %694 = vmatpush.bf16.msra.mxu0 0
        %695 = vmatpush.bf16.msra.mxu0 0
        %696 = vmatpush.bf16.msra.mxu0 %v677
        %697 = vmatpush.bf16.msra.mxu0 %v654
        %698 = vmatpush.bf16.msra.mxu0 %v652
        %699 = vmatpush.bf16.msra.mxu0 %v650
        %700 = vmatpush.bf16.msra.mxu0 %v648
        %701 = vmatmul.bf16.gmra.mxu0 %v667
        %v702 = vpop.f32.mrf.mxu0
        %v703 = vadd.f32 0.0, %v702
        %v704 = vpop.f32.mrf.mxu0
        %v705 = vadd.f32 0.0, %v704
        %706 = vdwg.mxu0
        %v707 = vld [vmem:[%s542] sm:$0xff]
        %v708 = vld [vmem:[%s542 + $0x8] sm:$0xff]
        %v709 = vld [vmem:[%s542 + $0x10] sm:$0xff]
        %v710 = vld [vmem:[%s542 + $0x18] sm:$0xff]
        %v711 = vld [vmem:[%s542 + $0x20] sm:$0xff]
        %v712 = vld [vmem:[%s542 + $0x28] sm:$0xff]
        %v713 = vld [vmem:[%s542 + $0x30] sm:$0xff]
        %v714 = vld [vmem:[%s542 + $0x38] sm:$0xff]
        %v715 = vld [vmem:[%s542 + $0x40] sm:$0xff]
        %v716 = vld [vmem:[%s542 + $0x48] sm:$0x33]
        %v727 = vunpack.c.l.b16 %v707
        %v728 = vunpack.c.h.b16 %v707
        %v729 = vunpack.c.l.b16 %v708
        %v730 = vunpack.c.h.b16 %v708
        %v731 = vunpack.c.l.b16 %v709
        %v732 = vunpack.c.h.b16 %v709
        %v733 = vunpack.c.l.b16 %v710
        %v734 = vunpack.c.h.b16 %v710
        %v735 = vunpack.c.l.b16 %v711
        %v736 = vunpack.c.h.b16 %v711
        %v737 = vunpack.c.l.b16 %v712
        %v738 = vunpack.c.h.b16 %v712
        %v739 = vunpack.c.l.b16 %v713
        %v740 = vunpack.c.h.b16 %v713
        %v741 = vunpack.c.l.b16 %v714
        %v742 = vunpack.c.h.b16 %v714
        %v743 = vunpack.c.l.b16 %v715
        %v744 = vunpack.c.h.b16 %v715
        %v745 = vunpack.c.l.b16 %v716
        %v746 = vunpack.c.h.b16 %v716
        %v747 = vpack.c.b16 %v729, %v727
        %v748 = vpack.c.b16 %v730, %v728
        %v749 = vpack.c.b16 %v733, %v731
        %v750 = vpack.c.b16 %v734, %v732
        %v751 = vpack.c.b16 %v737, %v735
        %v752 = vpack.c.b16 %v738, %v736
        %v753 = vpack.c.b16 %v741, %v739
        %v754 = vpack.c.b16 %v742, %v740
        %v755 = vpack.c.b16 %v745, %v743
        %v756 = vpack.c.b16 %v746, %v744
        %v766 = vand.u32 %v755, %v672
        %v769 = vand.u32 %v756, %v672
        %771 = vmatpush.bf16.msra.mxu0 0
        %772 = vmatpush.bf16.msra.mxu0 0
        %773 = vmatpush.bf16.msra.mxu0 0
        %774 = vmatpush.bf16.msra.mxu0 %v766
        %775 = vmatpush.bf16.msra.mxu0 %v753
        %776 = vmatpush.bf16.msra.mxu0 %v751
        %777 = vmatpush.bf16.msra.mxu0 %v749
        %778 = vmatpush.bf16.msra.mxu0 %v747
        %779 = vmatmul.bf16.gmra.mxu0 %v667
        %v780 = vpop.f32.mrf.mxu0
        %v781 = vadd.f32 0.0, %v780
        %v782 = vpop.f32.mrf.mxu0
        %v783 = vadd.f32 0.0, %v782
        %784 = vdwg.mxu0
        %785 = vmatpush.bf16.msra.mxu0 0
        %786 = vmatpush.bf16.msra.mxu0 0
        %787 = vmatpush.bf16.msra.mxu0 0
        %788 = vmatpush.bf16.msra.mxu0 %v769
        %789 = vmatpush.bf16.msra.mxu0 %v754
        %790 = vmatpush.bf16.msra.mxu0 %v752
        %791 = vmatpush.bf16.msra.mxu0 %v750
        %792 = vmatpush.bf16.msra.mxu0 %v748
        %793 = vmatmul.bf16.gmra.mxu0 %v667
        %v794 = vpop.f32.mrf.mxu0
        %v795 = vadd.f32 0.0, %v794
        %v796 = vpop.f32.mrf.mxu0
        %v797 = vadd.f32 0.0, %v796
        %798 = vdwg.mxu0
        %v799 = vld [vmem:[%s549] sm:$0xff]
        %v800 = vld [vmem:[%s549 + $0x8] sm:$0xff]
        %v801 = vld [vmem:[%s549 + $0x10] sm:$0xff]
        %v802 = vld [vmem:[%s549 + $0x18] sm:$0xff]
        %v803 = vld [vmem:[%s549 + $0x20] sm:$0xff]
        %v804 = vld [vmem:[%s549 + $0x28] sm:$0xff]
        %v805 = vld [vmem:[%s549 + $0x30] sm:$0xff]
        %v806 = vld [vmem:[%s549 + $0x38] sm:$0xff]
        %v807 = vld [vmem:[%s549 + $0x40] sm:$0xff]
        %v808 = vld [vmem:[%s549 + $0x48] sm:$0x33]
        %v819 = vunpack.c.l.b16 %v799
        %v820 = vunpack.c.h.b16 %v799
        %v821 = vunpack.c.l.b16 %v800
        %v822 = vunpack.c.h.b16 %v800
        %v823 = vunpack.c.l.b16 %v801
        %v824 = vunpack.c.h.b16 %v801
        %v825 = vunpack.c.l.b16 %v802
        %v826 = vunpack.c.h.b16 %v802
        %v827 = vunpack.c.l.b16 %v803
        %v828 = vunpack.c.h.b16 %v803
        %v829 = vunpack.c.l.b16 %v804
        %v830 = vunpack.c.h.b16 %v804
        %v831 = vunpack.c.l.b16 %v805
        %v832 = vunpack.c.h.b16 %v805
        %v833 = vunpack.c.l.b16 %v806
        %v834 = vunpack.c.h.b16 %v806
        %v835 = vunpack.c.l.b16 %v807
        %v836 = vunpack.c.h.b16 %v807
        %v837 = vunpack.c.l.b16 %v808
        %v838 = vunpack.c.h.b16 %v808
        %v839 = vpack.c.b16 %v821, %v819
        %v840 = vpack.c.b16 %v822, %v820
        %v841 = vpack.c.b16 %v825, %v823
        %v842 = vpack.c.b16 %v826, %v824
        %v843 = vpack.c.b16 %v829, %v827
        %v844 = vpack.c.b16 %v830, %v828
        %v845 = vpack.c.b16 %v833, %v831
        %v846 = vpack.c.b16 %v834, %v832
        %v847 = vpack.c.b16 %v837, %v835
        %v848 = vpack.c.b16 %v838, %v836
        %v858 = vand.u32 %v847, %v672
        %v861 = vand.u32 %v848, %v672
        %863 = vmatpush.bf16.msra.mxu0 0
        %864 = vmatpush.bf16.msra.mxu0 0
        %865 = vmatpush.bf16.msra.mxu0 0
        %866 = vmatpush.bf16.msra.mxu0 %v858
        %867 = vmatpush.bf16.msra.mxu0 %v845
        %868 = vmatpush.bf16.msra.mxu0 %v843
        %869 = vmatpush.bf16.msra.mxu0 %v841
        %870 = vmatpush.bf16.msra.mxu0 %v839
        %871 = vmatmul.bf16.gmra.mxu0 %v667
        %v872 = vpop.f32.mrf.mxu0
        %v873 = vadd.f32 0.0, %v872
        %v874 = vpop.f32.mrf.mxu0
        %v875 = vadd.f32 0.0, %v874
        %876 = vdwg.mxu0
        %877 = vmatpush.bf16.msra.mxu0 0
        %878 = vmatpush.bf16.msra.mxu0 0
        %879 = vmatpush.bf16.msra.mxu0 0
        %880 = vmatpush.bf16.msra.mxu0 %v861
        %881 = vmatpush.bf16.msra.mxu0 %v846
        %882 = vmatpush.bf16.msra.mxu0 %v844
        %883 = vmatpush.bf16.msra.mxu0 %v842
        %884 = vmatpush.bf16.msra.mxu0 %v840
        %885 = vmatmul.bf16.gmra.mxu0 %v667
        %v886 = vpop.f32.mrf.mxu0
        %v887 = vadd.f32 0.0, %v886
        %v888 = vpop.f32.mrf.mxu0
        %v889 = vadd.f32 0.0, %v888
        %890 = vdwg.mxu0
        %v891 = vld [vmem:[%s556] sm:$0xff]
        %v892 = vld [vmem:[%s556 + $0x8] sm:$0xff]
        %v893 = vld [vmem:[%s556 + $0x10] sm:$0xff]
        %v894 = vld [vmem:[%s556 + $0x18] sm:$0xff]
        %v895 = vld [vmem:[%s556 + $0x20] sm:$0xff]
        %v896 = vld [vmem:[%s556 + $0x28] sm:$0xff]
        %v897 = vld [vmem:[%s556 + $0x30] sm:$0xff]
        %v898 = vld [vmem:[%s556 + $0x38] sm:$0xff]
        %v899 = vld [vmem:[%s556 + $0x40] sm:$0xff]
        %v900 = vld [vmem:[%s556 + $0x48] sm:$0x33]
        %v911 = vunpack.c.l.b16 %v891
        %v912 = vunpack.c.h.b16 %v891
        %v913 = vunpack.c.l.b16 %v892
        %v914 = vunpack.c.h.b16 %v892
        %v915 = vunpack.c.l.b16 %v893
        %v916 = vunpack.c.h.b16 %v893
        %v917 = vunpack.c.l.b16 %v894
        %v918 = vunpack.c.h.b16 %v894
        %v919 = vunpack.c.l.b16 %v895
        %v920 = vunpack.c.h.b16 %v895
        %v921 = vunpack.c.l.b16 %v896
        %v922 = vunpack.c.h.b16 %v896
        %v923 = vunpack.c.l.b16 %v897
        %v924 = vunpack.c.h.b16 %v897
        %v925 = vunpack.c.l.b16 %v898
        %v926 = vunpack.c.h.b16 %v898
        %v927 = vunpack.c.l.b16 %v899
        %v928 = vunpack.c.h.b16 %v899
        %v929 = vunpack.c.l.b16 %v900
        %v930 = vunpack.c.h.b16 %v900
        %v931 = vpack.c.b16 %v913, %v911
        %v932 = vpack.c.b16 %v914, %v912
        %v933 = vpack.c.b16 %v917, %v915
        %v934 = vpack.c.b16 %v918, %v916
        %v935 = vpack.c.b16 %v921, %v919
        %v936 = vpack.c.b16 %v922, %v920
        %v937 = vpack.c.b16 %v925, %v923
        %v938 = vpack.c.b16 %v926, %v924
        %v939 = vpack.c.b16 %v929, %v927
        %v940 = vpack.c.b16 %v930, %v928
        %v950 = vand.u32 %v939, %v672
        %v953 = vand.u32 %v940, %v672
        %955 = vmatpush.bf16.msra.mxu0 0
        %956 = vmatpush.bf16.msra.mxu0 0
        %957 = vmatpush.bf16.msra.mxu0 0
        %958 = vmatpush.bf16.msra.mxu0 %v950
        %959 = vmatpush.bf16.msra.mxu0 %v937
        %960 = vmatpush.bf16.msra.mxu0 %v935
        %961 = vmatpush.bf16.msra.mxu0 %v933
        %962 = vmatpush.bf16.msra.mxu0 %v931
        %963 = vmatmul.bf16.gmra.mxu0 %v667
        %v964 = vpop.f32.mrf.mxu0
        %v965 = vadd.f32 0.0, %v964
        %v966 = vpop.f32.mrf.mxu0
        %v967 = vadd.f32 0.0, %v966
        %968 = vdwg.mxu0
        %969 = vmatpush.bf16.msra.mxu0 0
        %970 = vmatpush.bf16.msra.mxu0 0
        %971 = vmatpush.bf16.msra.mxu0 0
        %972 = vmatpush.bf16.msra.mxu0 %v953
        %973 = vmatpush.bf16.msra.mxu0 %v938
        %974 = vmatpush.bf16.msra.mxu0 %v936
        %975 = vmatpush.bf16.msra.mxu0 %v934
        %976 = vmatpush.bf16.msra.mxu0 %v932
        %977 = vmatmul.bf16.gmra.mxu0 %v667
        %v978 = vpop.f32.mrf.mxu0
        %v979 = vadd.f32 0.0, %v978
        %v980 = vpop.f32.mrf.mxu0
        %v981 = vadd.f32 0.0, %v980
        %982 = vdwg.mxu0
        %v983 = vmax.f32 %v689, %v781
        %v984 = vmax.f32 %v703, %v795
        %v985 = vmax.f32 %v691, %v783
        %v986 = vmax.f32 %v705, %v797
        %v987 = vmax.f32 %v873, %v965
        %v988 = vmax.f32 %v887, %v979
        %v989 = vmax.f32 %v875, %v967
        %v990 = vmax.f32 %v889, %v981
        %v991 = vmax.f32 %v983, %v987
        %v992 = vmax.f32 %v984, %v988
        %v993 = vmax.f32 %v985, %v989
        %v994 = vmax.f32 %v986, %v990
        %v995 = vld [vmem:[%s5] sm:$0xff]
        %v996 = vld [vmem:[%s5 + $0x8] sm:$0xff]
        %998 = vset.pattern.permute.xlu0 0
        %999 = vperm.xlu0 %998, %v995
        %v1000 = vpop.permute.xlu0 %999
        %1003 = vset.pattern.permute.xlu0 0
        %1004 = vperm.xlu0 %1003, %v996
        %v1005 = vpop.permute.xlu0 %1004
        %v1007 = vadd.f32 %v991, %v1000
        %v1008 = vadd.f32 %v992, %v1000
        %v1009 = vadd.f32 %v993, %v1005
        %v1010 = vadd.f32 %v994, %v1005
        %v1011 = vmax.f32 %v1007, 0.0
        %v1012 = vmax.f32 %v1008, 0.0
        %v1013 = vmax.f32 %v1009, 0.0
        %v1014 = vmax.f32 %v1010, 0.0
        %v1015 = vpack.c.bf16 %v1012, %v1011
        %v1016 = vpack.c.bf16 %v1014, %v1013
        %1017 = vst [vmem:[%s593] sm:$0xff] %v1015
        %1018 = vst [vmem:[%s593 + $0x8] sm:$0xff] %v1016
        %s1019 = sand.u32 %s171, 1
        %s1020 = sand.u32 %s171, 1
        %s1021 = smul.addr %s1020, 16
        %s1022 = scalar_lea.vmem [#allocation6], %s1021
        // Predicated region
        $region197: #{hkcnn_forward.4} parent=179 // pred_check
          %p1023 = pneg %p181
        $region198: #{hkcnn_forward.4} parent=179 // pred_check_branch
          %1025 = sbr.rel (%p1023) target = $region200
        $region199: #{hkcnn_forward.4} parent=179 // pred_region
          %s1026 = smul.u32 2, %s17
          %s1027 = smul.addr %s1026, 4
          %s1028 = scalar_lea.vmem %s6, %s1027
          // Predicated region
          $region201: #{hkcnn_forward.4} parent=199 // pred_check
            _
          $region202: #{hkcnn_forward.4} parent=199 // pred_check_branch
            %1030 = sbr.rel (0) target = $region204
          $region203: #{hkcnn_forward.4} parent=199 // pred_region
            // Predicated region
            $region205: #{hkcnn_forward.4} parent=203 // pred_check
              _
            $region206: #{hkcnn_forward.4} parent=203 // pred_check_branch
              %1032 = sbr.rel (0) target = $region208
            $region207: #{hkcnn_forward.4} parent=203 // pred_region
              // Predicated region
              $region220: #{hkcnn_forward.4} parent=207 // pred_check
                _
              $region221: #{hkcnn_forward.4} parent=207 // pred_check_branch
                %1050 = sbr.rel (0) target = $region223
              $region222: #{hkcnn_forward.4} parent=207 // pred_region
                loop: start=0, step=1, limit=1
                $region224: #{hkcnn_forward.4} parent=222 // loop_pre_header
                  _
                $region225: #{hkcnn_forward.4} parent=222 // loop_header
                  %s1052 = sphi 0, %s1056
                  %p1053 = scmp.ge.s32.totalorder %s1052, 1
                  %s1057 = sphi %s1022, %s1022
                  %s1058 = sphi %s1028, %s1028
                $region226: #{hkcnn_forward.4} parent=222 // loop_header_branch
                  %1055 = sbr.rel (%p1053) target = $region230
                $region227: #{hkcnn_forward.4} parent=222 // loop_body
                  %v1059 = vld [vmem:[%s1057] sm:$0xff]
                  %1060 = vst [vmem:[%s1058] sm:$0xff] %v1059
                  %v1061 = vld [vmem:[%s1057 + $0x8] sm:$0xff]
                  %1062 = vst [vmem:[%s1058 + $0x10] sm:$0xff] %v1061
                $region228: #{hkcnn_forward.4} parent=222 // loop_footer
                  %s1056 = sadd.s32 1, %s1052
                $region229: #{hkcnn_forward.4} parent=222 // loop_footer_branch
                  %1051 = sbr.rel target = $region225
                $region230: #{hkcnn_forward.4} parent=222 // loop_exit
                  _
              $region223: #{hkcnn_forward.4} parent=207 // pred_fallthru
                _
              // Predicated region
              $region231: #{hkcnn_forward.4} parent=207 // pred_check
                _
              $region232: #{hkcnn_forward.4} parent=207 // pred_check_branch
                %1064 = sbr.rel target = $region234
              $region233: #{hkcnn_forward.4} parent=207 // pred_region
                _
              $region234: #{hkcnn_forward.4} parent=207 // pred_fallthru
                _
            $region208: #{hkcnn_forward.4} parent=203 // pred_fallthru
              _
            // Predicated region
            $region209: #{hkcnn_forward.4} parent=203 // pred_check
              _
            $region210: #{hkcnn_forward.4} parent=203 // pred_check_branch
              %1034 = sbr.rel target = $region212
            $region211: #{hkcnn_forward.4} parent=203 // pred_region
              %s1036 = ssub.s32 256, 1
              loop: start=0, step=1, limit=1
              $region213: #{hkcnn_forward.4} parent=211 // loop_pre_header
                _
              $region214: #{hkcnn_forward.4} parent=211 // loop_header
                %s1038 = sphi 0, %s1042
                %p1039 = scmp.ge.s32.totalorder %s1038, 1
                %s1043 = sphi %s1022, %s1022
                %s1044 = sphi %s1028, %s1028
              $region215: #{hkcnn_forward.4} parent=211 // loop_header_branch
                %1041 = sbr.rel (%p1039) target = $region219
              $region216: #{hkcnn_forward.4} parent=211 // loop_body
                %v1045 = vld [vmem:[%s1043] sm:%s1036]
                %1046 = vst [vmem:[%s1044] sm:%s1036] %v1045
                %v1047 = vld [vmem:[%s1043 + $0x8] sm:%s1036]
                %1048 = vst [vmem:[%s1044 + $0x10] sm:%s1036] %v1047
              $region217: #{hkcnn_forward.4} parent=211 // loop_footer
                %s1042 = sadd.s32 1, %s1038
              $region218: #{hkcnn_forward.4} parent=211 // loop_footer_branch
                %1037 = sbr.rel target = $region214
              $region219: #{hkcnn_forward.4} parent=211 // loop_exit
                _
            $region212: #{hkcnn_forward.4} parent=203 // pred_fallthru
              _
          $region204: #{hkcnn_forward.4} parent=199 // pred_fallthru
            _
          %1065 = vnop
        $region200: #{hkcnn_forward.4} parent=179 // pred_fallthru
          _
      $region180: #{hkcnn_forward.4} parent=5 // pred_fallthru
        _
      %p1066 = scmp.le.s32.totalorder 2, %s12
      // Predicated region
      $region235: #{hkcnn_forward.4} parent=5 // pred_check
        %p1067 = pneg %p1066
      $region236: #{hkcnn_forward.4} parent=5 // pred_check_branch
        %1069 = sbr.rel (%p1067) target = $region238
      $region237: #{hkcnn_forward.4} parent=5 // pred_region
        %s1070 = ssub.s32 %s12, 2
        // Predicated region
        $region239: #{hkcnn_forward.4} parent=237 // pred_check
          %p1071 = pneg %p187
        $region240: #{hkcnn_forward.4} parent=237 // pred_check_branch
          %1073 = sbr.rel (%p1071) target = $region242
        $region241: #{hkcnn_forward.4} parent=237 // pred_region
          %s1074 = sand.u32 %s172, 1
          %s1075 = sand.u32 %s172, 1
          %s1076 = smul.addr %s1075, 16
          %s1077 = scalar_lea.vmem [#allocation6], %s1076
        $region242: #{hkcnn_forward.4} parent=237 // pred_fallthru
          _
      $region238: #{hkcnn_forward.4} parent=5 // pred_fallthru
        _
    $region6: #{hkcnn_forward.4} parent=1 // loop_footer
      %s16 = sadd.s32 1, %s12
    $region7: #{hkcnn_forward.4} parent=1 // loop_footer_branch
      %11 = sbr.rel target = $region3
    $region8: #{hkcnn_forward.4} parent=1 // loop_exit
      _

// kernel: hkcnn_forward.5
$region0: #{hkcnn_forward.5}
  #allocation0 [shape = 'u32[]', space=smem, size = 0x4, offset = 0x4, fixed_abs, tag = 'smem constant byte address 0x4 - core index']
  #allocation1 [shape = 'u32[72,128]{1,0:T(1,128)}', space=vmem, size = 0x9000, scoped, tag = 'internal scratch']
  %s0 = inlined_call_operand.vmem [shape: bf16[32,400], index: 0, kind: input, shape index: {}]
  %s1 = inlined_call_operand.vmem [shape: bf16[400,128], index: 1, kind: input, shape index: {}]
  %s2 = inlined_call_operand.vmem [shape: bf16[400,128], index: 2, kind: input, shape index: {}]
  %s3 = inlined_call_operand.vmem [shape: bf16[400,128], index: 3, kind: input, shape index: {}]
  %s4 = inlined_call_operand.vmem [shape: bf16[400,128], index: 4, kind: input, shape index: {}]
  %s5 = inlined_call_operand.vmem [shape: f32[32,1], index: 5, kind: input, shape index: {}]
  %s6 = inlined_call_operand.vmem [shape: bf16[32,128], index: 6, kind: output, shape index: {}]
  %s7 = sld [smem:[#allocation0]]
  $region34: #{hkcnn_forward.5} parent=0
    _
  %s9 = ssub.s32 1, %s7
  %s10 = scalar_select 0, %s9, %s7
  // Predicated region
  $region2: #{hkcnn_forward.5} parent=0 // pred_check
    _
  $region3: #{hkcnn_forward.5} parent=0 // pred_check_branch
    %12 = sbr.rel (0) target = $region5
  $region4: #{hkcnn_forward.5} parent=0 // pred_region
    _
  $region5: #{hkcnn_forward.5} parent=0 // pred_fallthru
    _
  // Predicated region
  $region6: #{hkcnn_forward.5} parent=0 // pred_check
    _
  $region7: #{hkcnn_forward.5} parent=0 // pred_check_branch
    %14 = sbr.rel (0) target = $region9
  $region8: #{hkcnn_forward.5} parent=0 // pred_region
    _
  $region9: #{hkcnn_forward.5} parent=0 // pred_fallthru
    _
  // Predicated region
  $region10: #{hkcnn_forward.5} parent=0 // pred_check
    _
  $region11: #{hkcnn_forward.5} parent=0 // pred_check_branch
    %16 = sbr.rel (0) target = $region13
  $region12: #{hkcnn_forward.5} parent=0 // pred_region
    _
  $region13: #{hkcnn_forward.5} parent=0 // pred_fallthru
    _
  // Predicated region
  $region14: #{hkcnn_forward.5} parent=0 // pred_check
    _
  $region15: #{hkcnn_forward.5} parent=0 // pred_check_branch
    %18 = sbr.rel (0) target = $region17
  $region16: #{hkcnn_forward.5} parent=0 // pred_region
    _
  $region17: #{hkcnn_forward.5} parent=0 // pred_fallthru
    _
  // Predicated region
  $region18: #{hkcnn_forward.5} parent=0 // pred_check
    _
  $region19: #{hkcnn_forward.5} parent=0 // pred_check_branch
    %20 = sbr.rel (0) target = $region21
  $region20: #{hkcnn_forward.5} parent=0 // pred_region
    _
  $region21: #{hkcnn_forward.5} parent=0 // pred_fallthru
    _
  // Predicated region
  $region22: #{hkcnn_forward.5} parent=0 // pred_check
    _
  $region23: #{hkcnn_forward.5} parent=0 // pred_check_branch
    %22 = sbr.rel (0) target = $region25
  $region24: #{hkcnn_forward.5} parent=0 // pred_region
    _
  $region25: #{hkcnn_forward.5} parent=0 // pred_fallthru
    _
  %v24 = vld [vmem:[%s0] sm:$0xff]
  %v25 = vld [vmem:[%s0 + $0x8] sm:$0xff]
  %v26 = vld [vmem:[%s0 + $0x10] sm:$0xff]
  %v27 = vld [vmem:[%s0 + $0x18] sm:$0xff]
  %v28 = vld [vmem:[%s0 + $0x20] sm:$0xff]
  %v29 = vld [vmem:[%s0 + $0x28] sm:$0xff]
  %v30 = vld [vmem:[%s0 + $0x30] sm:$0xff]
  %v31 = vld [vmem:[%s0 + $0x38] sm:$0xff]
  %v32 = vld [vmem:[%s1] sm:$0xf]
  %v33 = vld [vmem:[%s1 + $0x4] sm:$0xf]
  %v34 = vld [vmem:[%s1 + $0x8] sm:$0xf]
  %v35 = vld [vmem:[%s1 + $0xc] sm:$0xf]
  %v36 = vld [vmem:[%s1 + $0x10] sm:$0xf]
  %v37 = vld [vmem:[%s1 + $0x14] sm:$0xf]
  %v38 = vld [vmem:[%s1 + $0x18] sm:$0xf]
  %v39 = vld [vmem:[%s1 + $0x1c] sm:$0xf]
  %v40 = vld [vmem:[%s1 + $0x20] sm:$0xf]
  %v41 = vld [vmem:[%s1 + $0x24] sm:$0xf]
  %v42 = vld [vmem:[%s1 + $0x28] sm:$0xf]
  %v43 = vld [vmem:[%s1 + $0x2c] sm:$0xf]
  %v44 = vld [vmem:[%s1 + $0x30] sm:$0xf]
  %v45 = vld [vmem:[%s1 + $0x34] sm:$0xf]
  %v46 = vld [vmem:[%s1 + $0x38] sm:$0xf]
  %v47 = vld [vmem:[%s1 + $0x3c] sm:$0xf]
  %v48 = vld [vmem:[%s1 + $0x40] sm:$0xf]
  %v49 = vld [vmem:[%s1 + $0x44] sm:$0xf]
  %v50 = vld [vmem:[%s1 + $0x48] sm:$0xf]
  %v51 = vld [vmem:[%s1 + $0x4c] sm:$0xf]
  %v52 = vld [vmem:[%s1 + $0x50] sm:$0xf]
  %v53 = vld [vmem:[%s1 + $0x54] sm:$0xf]
  %v54 = vld [vmem:[%s1 + $0x58] sm:$0xf]
  %v55 = vld [vmem:[%s1 + $0x5c] sm:$0xf]
  %v56 = vld [vmem:[%s1 + $0x60] sm:$0xf]
  %v57 = vld [vmem:[%s1 + $0x64] sm:$0xf]
  %v58 = vld [vmem:[%s1 + $0x68] sm:$0xf]
  %v59 = vld [vmem:[%s1 + $0x6c] sm:$0xf]
  %v60 = vld [vmem:[%s1 + $0x70] sm:$0xf]
  %v61 = vld [vmem:[%s1 + $0x74] sm:$0xf]
  %v62 = vld [vmem:[%s1 + $0x78] sm:$0xf]
  %v63 = vld [vmem:[%s1 + $0x7c] sm:$0xf]
  %v64 = vld [vmem:[%s1 + $0x80] sm:$0xf]
  %v65 = vld [vmem:[%s1 + $0x84] sm:$0xf]
  %v66 = vld [vmem:[%s1 + $0x88] sm:$0xf]
  %v67 = vld [vmem:[%s1 + $0x8c] sm:$0xf]
  %v68 = vld [vmem:[%s1 + $0x90] sm:$0xf]
  %v69 = vld [vmem:[%s1 + $0x94] sm:$0xf]
  %v70 = vld [vmem:[%s1 + $0x98] sm:$0xf]
  %v71 = vld [vmem:[%s1 + $0x9c] sm:$0xf]
  %v72 = vld [vmem:[%s1 + $0xa0] sm:$0xf]
  %v73 = vld [vmem:[%s1 + $0xa4] sm:$0xf]
  %v74 = vld [vmem:[%s1 + $0xa8] sm:$0xf]
  %v75 = vld [vmem:[%s1 + $0xac] sm:$0xf]
  %v76 = vld [vmem:[%s1 + $0xb0] sm:$0xf]
  %v77 = vld [vmem:[%s1 + $0xb4] sm:$0xf]
  %v78 = vld [vmem:[%s1 + $0xb8] sm:$0xf]
  %v79 = vld [vmem:[%s1 + $0xbc] sm:$0xf]
  %v80 = vld [vmem:[%s1 + $0xc0] sm:$0xf]
  %v81 = vld [vmem:[%s1 + $0xc4] sm:$0xf]
  %v90 = vunpack.c.l.b16 %v24
  %v91 = vunpack.c.h.b16 %v24
  %v92 = vunpack.c.l.b16 %v25
  %v93 = vunpack.c.h.b16 %v25
  %v94 = vunpack.c.l.b16 %v26
  %v95 = vunpack.c.h.b16 %v26
  %v96 = vunpack.c.l.b16 %v27
  %v97 = vunpack.c.h.b16 %v27
  %v98 = vunpack.c.l.b16 %v28
  %v99 = vunpack.c.h.b16 %v28
  %v100 = vunpack.c.l.b16 %v29
  %v101 = vunpack.c.h.b16 %v29
  %v102 = vunpack.c.l.b16 %v30
  %v103 = vunpack.c.h.b16 %v30
  %v104 = vunpack.c.l.b16 %v31
  %v105 = vunpack.c.h.b16 %v31
  %v106 = vpack.c.b16 %v94, %v90
  %v107 = vpack.c.b16 %v95, %v91
  %v108 = vpack.c.b16 %v96, %v92
  %v109 = vpack.c.b16 %v97, %v93
  %v110 = vpack.c.b16 %v102, %v98
  %v111 = vpack.c.b16 %v103, %v99
  %v112 = vpack.c.b16 %v104, %v100
  %v113 = vpack.c.b16 %v105, %v101
  %v170 = vunpack.c.l.b16 %v32
  %v171 = vunpack.c.l.b16 %v33
  %v172 = vunpack.c.l.b16 %v34
  %v173 = vunpack.c.l.b16 %v35
  %v174 = vunpack.c.l.b16 %v36
  %v175 = vunpack.c.l.b16 %v37
  %v176 = vunpack.c.l.b16 %v38
  %v177 = vunpack.c.l.b16 %v39
  %v178 = vunpack.c.l.b16 %v40
  %v179 = vunpack.c.l.b16 %v41
  %v180 = vunpack.c.l.b16 %v42
  %v181 = vunpack.c.l.b16 %v43
  %v182 = vunpack.c.l.b16 %v44
  %v183 = vunpack.c.l.b16 %v45
  %v184 = vunpack.c.l.b16 %v46
  %v185 = vunpack.c.l.b16 %v47
  %v186 = vunpack.c.l.b16 %v48
  %v187 = vunpack.c.l.b16 %v49
  %v188 = vunpack.c.l.b16 %v50
  %v189 = vunpack.c.l.b16 %v51
  %v190 = vunpack.c.l.b16 %v52
  %v191 = vunpack.c.l.b16 %v53
  %v192 = vunpack.c.l.b16 %v54
  %v193 = vunpack.c.l.b16 %v55
  %v194 = vunpack.c.l.b16 %v56
  %v195 = vunpack.c.l.b16 %v57
  %v196 = vunpack.c.l.b16 %v58
  %v197 = vunpack.c.l.b16 %v59
  %v198 = vunpack.c.l.b16 %v60
  %v199 = vunpack.c.l.b16 %v61
  %v200 = vunpack.c.l.b16 %v62
  %v201 = vunpack.c.l.b16 %v63
  %v202 = vunpack.c.l.b16 %v64
  %v203 = vunpack.c.l.b16 %v65
  %v204 = vunpack.c.l.b16 %v66
  %v205 = vunpack.c.l.b16 %v67
  %v206 = vunpack.c.l.b16 %v68
  %v207 = vunpack.c.l.b16 %v69
  %v208 = vunpack.c.l.b16 %v70
  %v209 = vunpack.c.l.b16 %v71
  %v210 = vunpack.c.l.b16 %v72
  %v211 = vunpack.c.l.b16 %v73
  %v212 = vunpack.c.l.b16 %v74
  %v213 = vunpack.c.l.b16 %v75
  %v214 = vunpack.c.l.b16 %v76
  %v215 = vunpack.c.l.b16 %v77
  %v216 = vunpack.c.l.b16 %v78
  %v217 = vunpack.c.l.b16 %v79
  %v218 = vunpack.c.l.b16 %v80
  %v219 = vunpack.c.l.b16 %v81
  %v220 = vpack.c.b16 %v171, %v170
  %v221 = vpack.c.b16 %v173, %v172
  %v222 = vpack.c.b16 %v175, %v174
  %v223 = vpack.c.b16 %v177, %v176
  %v224 = vpack.c.b16 %v179, %v178
  %v225 = vpack.c.b16 %v181, %v180
  %v226 = vpack.c.b16 %v183, %v182
  %v227 = vpack.c.b16 %v185, %v184
  %v228 = vpack.c.b16 %v187, %v186
  %v229 = vpack.c.b16 %v189, %v188
  %v230 = vpack.c.b16 %v191, %v190
  %v231 = vpack.c.b16 %v193, %v192
  %v232 = vpack.c.b16 %v195, %v194
  %v233 = vpack.c.b16 %v197, %v196
  %v234 = vpack.c.b16 %v199, %v198
  %v235 = vpack.c.b16 %v201, %v200
  %v236 = vpack.c.b16 %v203, %v202
  %v237 = vpack.c.b16 %v205, %v204
  %v238 = vpack.c.b16 %v207, %v206
  %v239 = vpack.c.b16 %v209, %v208
  %v240 = vpack.c.b16 %v211, %v210
  %v241 = vpack.c.b16 %v213, %v212
  %v242 = vpack.c.b16 %v215, %v214
  %v243 = vpack.c.b16 %v217, %v216
  %v244 = vpack.c.b16 %v219, %v218
  %vm270 = vcmask 130048
  %v272 = vsel %vm270, %v109, 0
  %v275 = vsel %vm270, %v113, 0
  %277 = vmatpush.bf16.msra.mxu0 %v227
  %278 = vmatpush.bf16.msra.mxu0 %v226
  %279 = vmatpush.bf16.msra.mxu0 %v225
  %280 = vmatpush.bf16.msra.mxu0 %v224
  %281 = vmatpush.bf16.msra.mxu0 %v223
  %282 = vmatpush.bf16.msra.mxu0 %v222
  %283 = vmatpush.bf16.msra.mxu0 %v221
  %284 = vmatpush.bf16.msra.mxu0 %v220
  %285 = vmatmul.bf16.gmra.mxu0 %v106
  %v286 = vpop.f32.mrf.mxu0
  %v287 = vadd.f32 0.0, %v286
  %v288 = vpop.f32.mrf.mxu0
  %v289 = vadd.f32 0.0, %v288
  %290 = vmatmul.bf16.gmra.mxu0 %v110
  %v291 = vpop.f32.mrf.mxu0
  %v292 = vadd.f32 0.0, %v291
  %v293 = vpop.f32.mrf.mxu0
  %v294 = vadd.f32 0.0, %v293
  %295 = vdwg.mxu0
  %296 = vmatpush.bf16.msra.mxu0 %v235
  %297 = vmatpush.bf16.msra.mxu0 %v234
  %298 = vmatpush.bf16.msra.mxu0 %v233
  %299 = vmatpush.bf16.msra.mxu0 %v232
  %300 = vmatpush.bf16.msra.mxu0 %v231
  %301 = vmatpush.bf16.msra.mxu0 %v230
  %302 = vmatpush.bf16.msra.mxu0 %v229
  %303 = vmatpush.bf16.msra.mxu0 %v228
  %304 = vmatmul.bf16.gmra.mxu0 %v107
  %v305 = vpop.f32.mrf.mxu0
  %v306 = vadd.f32 %v287, %v305
  %v307 = vpop.f32.mrf.mxu0
  %v308 = vadd.f32 %v289, %v307
  %309 = vmatmul.bf16.gmra.mxu0 %v111
  %v310 = vpop.f32.mrf.mxu0
  %v311 = vadd.f32 %v292, %v310
  %v312 = vpop.f32.mrf.mxu0
  %v313 = vadd.f32 %v294, %v312
  %314 = vdwg.mxu0
  %315 = vmatpush.bf16.msra.mxu0 %v243
  %316 = vmatpush.bf16.msra.mxu0 %v242
  %317 = vmatpush.bf16.msra.mxu0 %v241
  %318 = vmatpush.bf16.msra.mxu0 %v240
  %319 = vmatpush.bf16.msra.mxu0 %v239
  %320 = vmatpush.bf16.msra.mxu0 %v238
  %321 = vmatpush.bf16.msra.mxu0 %v237
  %322 = vmatpush.bf16.msra.mxu0 %v236
  %323 = vmatmul.bf16.gmra.mxu0 %v108
  %v324 = vpop.f32.mrf.mxu0
  %v325 = vadd.f32 %v306, %v324
  %v326 = vpop.f32.mrf.mxu0
  %v327 = vadd.f32 %v308, %v326
  %328 = vmatmul.bf16.gmra.mxu0 %v112
  %v329 = vpop.f32.mrf.mxu0
  %v330 = vadd.f32 %v311, %v329
  %v331 = vpop.f32.mrf.mxu0
  %v332 = vadd.f32 %v313, %v331
  %333 = vdwg.mxu0
  %334 = vmatpush.bf16.msra.mxu0 0
  %335 = vmatpush.bf16.msra.mxu0 0
  %336 = vmatpush.bf16.msra.mxu0 0
  %337 = vmatpush.bf16.msra.mxu0 0
  %338 = vmatpush.bf16.msra.mxu0 0
  %339 = vmatpush.bf16.msra.mxu0 0
  %340 = vmatpush.bf16.msra.mxu0 0
  %341 = vmatpush.bf16.msra.mxu0 %v244
  %342 = vmatmul.bf16.gmra.mxu0 %v272
  %v343 = vpop.f32.mrf.mxu0
  %v344 = vadd.f32 %v325, %v343
  %v345 = vpop.f32.mrf.mxu0
  %v346 = vadd.f32 %v327, %v345
  %347 = vmatmul.bf16.gmra.mxu0 %v275
  %v348 = vpop.f32.mrf.mxu0
  %v349 = vadd.f32 %v330, %v348
  %v350 = vpop.f32.mrf.mxu0
  %v351 = vadd.f32 %v332, %v350
  %352 = vdwg.mxu0
  %v353 = vld [vmem:[%s2] sm:$0xf]
  %v354 = vld [vmem:[%s2 + $0x4] sm:$0xf]
  %v355 = vld [vmem:[%s2 + $0x8] sm:$0xf]
  %v356 = vld [vmem:[%s2 + $0xc] sm:$0xf]
  %v357 = vld [vmem:[%s2 + $0x10] sm:$0xf]
  %v358 = vld [vmem:[%s2 + $0x14] sm:$0xf]
  %v359 = vld [vmem:[%s2 + $0x18] sm:$0xf]
  %v360 = vld [vmem:[%s2 + $0x1c] sm:$0xf]
  %v361 = vld [vmem:[%s2 + $0x20] sm:$0xf]
  %v362 = vld [vmem:[%s2 + $0x24] sm:$0xf]
  %v363 = vld [vmem:[%s2 + $0x28] sm:$0xf]
  %v364 = vld [vmem:[%s2 + $0x2c] sm:$0xf]
  %v365 = vld [vmem:[%s2 + $0x30] sm:$0xf]
  %v366 = vld [vmem:[%s2 + $0x34] sm:$0xf]
  %v367 = vld [vmem:[%s2 + $0x38] sm:$0xf]
  %v368 = vld [vmem:[%s2 + $0x3c] sm:$0xf]
  %v369 = vld [vmem:[%s2 + $0x40] sm:$0xf]
  %v370 = vld [vmem:[%s2 + $0x44] sm:$0xf]
  %v371 = vld [vmem:[%s2 + $0x48] sm:$0xf]
  %v372 = vld [vmem:[%s2 + $0x4c] sm:$0xf]
  %v373 = vld [vmem:[%s2 + $0x50] sm:$0xf]
  %v374 = vld [vmem:[%s2 + $0x54] sm:$0xf]
  %v375 = vld [vmem:[%s2 + $0x58] sm:$0xf]
  %v376 = vld [vmem:[%s2 + $0x5c] sm:$0xf]
  %v377 = vld [vmem:[%s2 + $0x60] sm:$0xf]
  %v378 = vld [vmem:[%s2 + $0x64] sm:$0xf]
  %v379 = vld [vmem:[%s2 + $0x68] sm:$0xf]
  %v380 = vld [vmem:[%s2 + $0x6c] sm:$0xf]
  %v381 = vld [vmem:[%s2 + $0x70] sm:$0xf]
  %v382 = vld [vmem:[%s2 + $0x74] sm:$0xf]
  %v383 = vld [vmem:[%s2 + $0x78] sm:$0xf]
  %v384 = vld [vmem:[%s2 + $0x7c] sm:$0xf]
  %v385 = vld [vmem:[%s2 + $0x80] sm:$0xf]
  %v386 = vld [vmem:[%s2 + $0x84] sm:$0xf]
  %v387 = vld [vmem:[%s2 + $0x88] sm:$0xf]
  %v388 = vld [vmem:[%s2 + $0x8c] sm:$0xf]
  %v389 = vld [vmem:[%s2 + $0x90] sm:$0xf]
  %v390 = vld [vmem:[%s2 + $0x94] sm:$0xf]
  %v391 = vld [vmem:[%s2 + $0x98] sm:$0xf]
  %v392 = vld [vmem:[%s2 + $0x9c] sm:$0xf]
  %v393 = vld [vmem:[%s2 + $0xa0] sm:$0xf]
  %v394 = vld [vmem:[%s2 + $0xa4] sm:$0xf]
  %v395 = vld [vmem:[%s2 + $0xa8] sm:$0xf]
  %v396 = vld [vmem:[%s2 + $0xac] sm:$0xf]
  %v397 = vld [vmem:[%s2 + $0xb0] sm:$0xf]
  %v398 = vld [vmem:[%s2 + $0xb4] sm:$0xf]
  %v399 = vld [vmem:[%s2 + $0xb8] sm:$0xf]
  %v400 = vld [vmem:[%s2 + $0xbc] sm:$0xf]
  %v401 = vld [vmem:[%s2 + $0xc0] sm:$0xf]
  %v402 = vld [vmem:[%s2 + $0xc4] sm:$0xf]
  %v453 = vunpack.c.l.b16 %v353
  %v454 = vunpack.c.l.b16 %v354
  %v455 = vunpack.c.l.b16 %v355
  %v456 = vunpack.c.l.b16 %v356
  %v457 = vunpack.c.l.b16 %v357
  %v458 = vunpack.c.l.b16 %v358
  %v459 = vunpack.c.l.b16 %v359
  %v460 = vunpack.c.l.b16 %v360
  %v461 = vunpack.c.l.b16 %v361
  %v462 = vunpack.c.l.b16 %v362
  %v463 = vunpack.c.l.b16 %v363
  %v464 = vunpack.c.l.b16 %v364
  %v465 = vunpack.c.l.b16 %v365
  %v466 = vunpack.c.l.b16 %v366
  %v467 = vunpack.c.l.b16 %v367
  %v468 = vunpack.c.l.b16 %v368
  %v469 = vunpack.c.l.b16 %v369
  %v470 = vunpack.c.l.b16 %v370
  %v471 = vunpack.c.l.b16 %v371
  %v472 = vunpack.c.l.b16 %v372
  %v473 = vunpack.c.l.b16 %v373
  %v474 = vunpack.c.l.b16 %v374
  %v475 = vunpack.c.l.b16 %v375
  %v476 = vunpack.c.l.b16 %v376
  %v477 = vunpack.c.l.b16 %v377
  %v478 = vunpack.c.l.b16 %v378
  %v479 = vunpack.c.l.b16 %v379
  %v480 = vunpack.c.l.b16 %v380
  %v481 = vunpack.c.l.b16 %v381
  %v482 = vunpack.c.l.b16 %v382
  %v483 = vunpack.c.l.b16 %v383
  %v484 = vunpack.c.l.b16 %v384
  %v485 = vunpack.c.l.b16 %v385
  %v486 = vunpack.c.l.b16 %v386
  %v487 = vunpack.c.l.b16 %v387
  %v488 = vunpack.c.l.b16 %v388
  %v489 = vunpack.c.l.b16 %v389
  %v490 = vunpack.c.l.b16 %v390
  %v491 = vunpack.c.l.b16 %v391
  %v492 = vunpack.c.l.b16 %v392
  %v493 = vunpack.c.l.b16 %v393
  %v494 = vunpack.c.l.b16 %v394
  %v495 = vunpack.c.l.b16 %v395
  %v496 = vunpack.c.l.b16 %v396
  %v497 = vunpack.c.l.b16 %v397
  %v498 = vunpack.c.l.b16 %v398
  %v499 = vunpack.c.l.b16 %v399
  %v500 = vunpack.c.l.b16 %v400
  %v501 = vunpack.c.l.b16 %v401
  %v502 = vunpack.c.l.b16 %v402
  %v503 = vpack.c.b16 %v454, %v453
  %v504 = vpack.c.b16 %v456, %v455
  %v505 = vpack.c.b16 %v458, %v457
  %v506 = vpack.c.b16 %v460, %v459
  %v507 = vpack.c.b16 %v462, %v461
  %v508 = vpack.c.b16 %v464, %v463
  %v509 = vpack.c.b16 %v466, %v465
  %v510 = vpack.c.b16 %v468, %v467
  %v511 = vpack.c.b16 %v470, %v469
  %v512 = vpack.c.b16 %v472, %v471
  %v513 = vpack.c.b16 %v474, %v473
  %v514 = vpack.c.b16 %v476, %v475
  %v515 = vpack.c.b16 %v478, %v477
  %v516 = vpack.c.b16 %v480, %v479
  %v517 = vpack.c.b16 %v482, %v481
  %v518 = vpack.c.b16 %v484, %v483
  %v519 = vpack.c.b16 %v486, %v485
  %v520 = vpack.c.b16 %v488, %v487
  %v521 = vpack.c.b16 %v490, %v489
  %v522 = vpack.c.b16 %v492, %v491
  %v523 = vpack.c.b16 %v494, %v493
  %v524 = vpack.c.b16 %v496, %v495
  %v525 = vpack.c.b16 %v498, %v497
  %v526 = vpack.c.b16 %v500, %v499
  %v527 = vpack.c.b16 %v502, %v501
  %553 = vmatpush.bf16.msra.mxu0 %v510
  %554 = vmatpush.bf16.msra.mxu0 %v509
  %555 = vmatpush.bf16.msra.mxu0 %v508
  %556 = vmatpush.bf16.msra.mxu0 %v507
  %557 = vmatpush.bf16.msra.mxu0 %v506
  %558 = vmatpush.bf16.msra.mxu0 %v505
  %559 = vmatpush.bf16.msra.mxu0 %v504
  %560 = vmatpush.bf16.msra.mxu0 %v503
  %561 = vmatmul.bf16.gmra.mxu0 %v106
  %v562 = vpop.f32.mrf.mxu0
  %v563 = vadd.f32 0.0, %v562
  %v564 = vpop.f32.mrf.mxu0
  %v565 = vadd.f32 0.0, %v564
  %566 = vmatmul.bf16.gmra.mxu0 %v110
  %v567 = vpop.f32.mrf.mxu0
  %v568 = vadd.f32 0.0, %v567
  %v569 = vpop.f32.mrf.mxu0
  %v570 = vadd.f32 0.0, %v569
  %571 = vdwg.mxu0
  %572 = vmatpush.bf16.msra.mxu0 %v518
  %573 = vmatpush.bf16.msra.mxu0 %v517
  %574 = vmatpush.bf16.msra.mxu0 %v516
  %575 = vmatpush.bf16.msra.mxu0 %v515
  %576 = vmatpush.bf16.msra.mxu0 %v514
  %577 = vmatpush.bf16.msra.mxu0 %v513
  %578 = vmatpush.bf16.msra.mxu0 %v512
  %579 = vmatpush.bf16.msra.mxu0 %v511
  %580 = vmatmul.bf16.gmra.mxu0 %v107
  %v581 = vpop.f32.mrf.mxu0
  %v582 = vadd.f32 %v563, %v581
  %v583 = vpop.f32.mrf.mxu0
  %v584 = vadd.f32 %v565, %v583
  %585 = vmatmul.bf16.gmra.mxu0 %v111
  %v586 = vpop.f32.mrf.mxu0
  %v587 = vadd.f32 %v568, %v586
  %v588 = vpop.f32.mrf.mxu0
  %v589 = vadd.f32 %v570, %v588
  %590 = vdwg.mxu0
  %591 = vmatpush.bf16.msra.mxu0 %v526
  %592 = vmatpush.bf16.msra.mxu0 %v525
  %593 = vmatpush.bf16.msra.mxu0 %v524
  %594 = vmatpush.bf16.msra.mxu0 %v523
  %595 = vmatpush.bf16.msra.mxu0 %v522
  %596 = vmatpush.bf16.msra.mxu0 %v521
  %597 = vmatpush.bf16.msra.mxu0 %v520
  %598 = vmatpush.bf16.msra.mxu0 %v519
  %599 = vmatmul.bf16.gmra.mxu0 %v108
  %v600 = vpop.f32.mrf.mxu0
  %v601 = vadd.f32 %v582, %v600
  %v602 = vpop.f32.mrf.mxu0
  %v603 = vadd.f32 %v584, %v602
  %604 = vmatmul.bf16.gmra.mxu0 %v112
  %v605 = vpop.f32.mrf.mxu0
  %v606 = vadd.f32 %v587, %v605
  %v607 = vpop.f32.mrf.mxu0
  %v608 = vadd.f32 %v589, %v607
  %609 = vdwg.mxu0
  %610 = vmatpush.bf16.msra.mxu0 0
  %611 = vmatpush.bf16.msra.mxu0 0
  %612 = vmatpush.bf16.msra.mxu0 0
  %613 = vmatpush.bf16.msra.mxu0 0
  %614 = vmatpush.bf16.msra.mxu0 0
  %615 = vmatpush.bf16.msra.mxu0 0
  %616 = vmatpush.bf16.msra.mxu0 0
  %617 = vmatpush.bf16.msra.mxu0 %v527
  %618 = vmatmul.bf16.gmra.mxu0 %v272
  %v619 = vpop.f32.mrf.mxu0
  %v620 = vadd.f32 %v601, %v619
  %v621 = vpop.f32.mrf.mxu0
  %v622 = vadd.f32 %v603, %v621
  %623 = vmatmul.bf16.gmra.mxu0 %v275
  %v624 = vpop.f32.mrf.mxu0
  %v625 = vadd.f32 %v606, %v624
  %v626 = vpop.f32.mrf.mxu0
  %v627 = vadd.f32 %v608, %v626
  %628 = vdwg.mxu0
  %v629 = vld [vmem:[%s3] sm:$0xf]
  %v630 = vld [vmem:[%s3 + $0x4] sm:$0xf]
  %v631 = vld [vmem:[%s3 + $0x8] sm:$0xf]
  %v632 = vld [vmem:[%s3 + $0xc] sm:$0xf]
  %v633 = vld [vmem:[%s3 + $0x10] sm:$0xf]
  %v634 = vld [vmem:[%s3 + $0x14] sm:$0xf]
  %v635 = vld [vmem:[%s3 + $0x18] sm:$0xf]
  %v636 = vld [vmem:[%s3 + $0x1c] sm:$0xf]
  %v637 = vld [vmem:[%s3 + $0x20] sm:$0xf]
  %v638 = vld [vmem:[%s3 + $0x24] sm:$0xf]
  %v639 = vld [vmem:[%s3 + $0x28] sm:$0xf]
  %v640 = vld [vmem:[%s3 + $0x2c] sm:$0xf]
  %v641 = vld [vmem:[%s3 + $0x30] sm:$0xf]
  %v642 = vld [vmem:[%s3 + $0x34] sm:$0xf]
  %v643 = vld [vmem:[%s3 + $0x38] sm:$0xf]
  %v644 = vld [vmem:[%s3 + $0x3c] sm:$0xf]
  %v645 = vld [vmem:[%s3 + $0x40] sm:$0xf]
  %v646 = vld [vmem:[%s3 + $0x44] sm:$0xf]
  %v647 = vld [vmem:[%s3 + $0x48] sm:$0xf]
  %v648 = vld [vmem:[%s3 + $0x4c] sm:$0xf]
  %v649 = vld [vmem:[%s3 + $0x50] sm:$0xf]
  %v650 = vld [vmem:[%s3 + $0x54] sm:$0xf]
  %v651 = vld [vmem:[%s3 + $0x58] sm:$0xf]
  %v652 = vld [vmem:[%s3 + $0x5c] sm:$0xf]
  %v653 = vld [vmem:[%s3 + $0x60] sm:$0xf]
  %v654 = vld [vmem:[%s3 + $0x64] sm:$0xf]
  %v655 = vld [vmem:[%s3 + $0x68] sm:$0xf]
  %v656 = vld [vmem:[%s3 + $0x6c] sm:$0xf]
  %v657 = vld [vmem:[%s3 + $0x70] sm:$0xf]
  %v658 = vld [vmem:[%s3 + $0x74] sm:$0xf]
  %v659 = vld [vmem:[%s3 + $0x78] sm:$0xf]
  %v660 = vld [vmem:[%s3 + $0x7c] sm:$0xf]
  %v661 = vld [vmem:[%s3 + $0x80] sm:$0xf]
  %v662 = vld [vmem:[%s3 + $0x84] sm:$0xf]
  %v663 = vld [vmem:[%s3 + $0x88] sm:$0xf]
  %v664 = vld [vmem:[%s3 + $0x8c] sm:$0xf]
  %v665 = vld [vmem:[%s3 + $0x90] sm:$0xf]
  %v666 = vld [vmem:[%s3 + $0x94] sm:$0xf]
  %v667 = vld [vmem:[%s3 + $0x98] sm:$0xf]
  %v668 = vld [vmem:[%s3 + $0x9c] sm:$0xf]
  %v669 = vld [vmem:[%s3 + $0xa0] sm:$0xf]
  %v670 = vld [vmem:[%s3 + $0xa4] sm:$0xf]
  %v671 = vld [vmem:[%s3 + $0xa8] sm:$0xf]
  %v672 = vld [vmem:[%s3 + $0xac] sm:$0xf]
  %v673 = vld [vmem:[%s3 + $0xb0] sm:$0xf]
  %v674 = vld [vmem:[%s3 + $0xb4] sm:$0xf]
  %v675 = vld [vmem:[%s3 + $0xb8] sm:$0xf]
  %v676 = vld [vmem:[%s3 + $0xbc] sm:$0xf]
  %v677 = vld [vmem:[%s3 + $0xc0] sm:$0xf]
  %v678 = vld [vmem:[%s3 + $0xc4] sm:$0xf]
  %v729 = vunpack.c.l.b16 %v629
  %v730 = vunpack.c.l.b16 %v630
  %v731 = vunpack.c.l.b16 %v631
  %v732 = vunpack.c.l.b16 %v632
  %v733 = vunpack.c.l.b16 %v633
  %v734 = vunpack.c.l.b16 %v634
  %v735 = vunpack.c.l.b16 %v635
  %v736 = vunpack.c.l.b16 %v636
  %v737 = vunpack.c.l.b16 %v637
  %v738 = vunpack.c.l.b16 %v638
  %v739 = vunpack.c.l.b16 %v639
  %v740 = vunpack.c.l.b16 %v640
  %v741 = vunpack.c.l.b16 %v641
  %v742 = vunpack.c.l.b16 %v642
  %v743 = vunpack.c.l.b16 %v643
  %v744 = vunpack.c.l.b16 %v644
  %v745 = vunpack.c.l.b16 %v645
  %v746 = vunpack.c.l.b16 %v646
  %v747 = vunpack.c.l.b16 %v647
  %v748 = vunpack.c.l.b16 %v648
  %v749 = vunpack.c.l.b16 %v649
  %v750 = vunpack.c.l.b16 %v650
  %v751 = vunpack.c.l.b16 %v651
  %v752 = vunpack.c.l.b16 %v652
  %v753 = vunpack.c.l.b16 %v653
  %v754 = vunpack.c.l.b16 %v654
  %v755 = vunpack.c.l.b16 %v655
  %v756 = vunpack.c.l.b16 %v656
  %v757 = vunpack.c.l.b16 %v657
  %v758 = vunpack.c.l.b16 %v658
  %v759 = vunpack.c.l.b16 %v659
  %v760 = vunpack.c.l.b16 %v660
  %v761 = vunpack.c.l.b16 %v661
  %v762 = vunpack.c.l.b16 %v662
  %v763 = vunpack.c.l.b16 %v663
  %v764 = vunpack.c.l.b16 %v664
  %v765 = vunpack.c.l.b16 %v665
  %v766 = vunpack.c.l.b16 %v666
  %v767 = vunpack.c.l.b16 %v667
  %v768 = vunpack.c.l.b16 %v668
  %v769 = vunpack.c.l.b16 %v669
  %v770 = vunpack.c.l.b16 %v670
  %v771 = vunpack.c.l.b16 %v671
  %v772 = vunpack.c.l.b16 %v672
  %v773 = vunpack.c.l.b16 %v673
  %v774 = vunpack.c.l.b16 %v674
  %v775 = vunpack.c.l.b16 %v675
  %v776 = vunpack.c.l.b16 %v676
  %v777 = vunpack.c.l.b16 %v677
  %v778 = vunpack.c.l.b16 %v678
  %v779 = vpack.c.b16 %v730, %v729
  %v780 = vpack.c.b16 %v732, %v731
  %v781 = vpack.c.b16 %v734, %v733
  %v782 = vpack.c.b16 %v736, %v735
  %v783 = vpack.c.b16 %v738, %v737
  %v784 = vpack.c.b16 %v740, %v739
  %v785 = vpack.c.b16 %v742, %v741
  %v786 = vpack.c.b16 %v744, %v743
  %v787 = vpack.c.b16 %v746, %v745
  %v788 = vpack.c.b16 %v748, %v747
  %v789 = vpack.c.b16 %v750, %v749
  %v790 = vpack.c.b16 %v752, %v751
  %v791 = vpack.c.b16 %v754, %v753
  %v792 = vpack.c.b16 %v756, %v755
  %v793 = vpack.c.b16 %v758, %v757
  %v794 = vpack.c.b16 %v760, %v759
  %v795 = vpack.c.b16 %v762, %v761
  %v796 = vpack.c.b16 %v764, %v763
  %v797 = vpack.c.b16 %v766, %v765
  %v798 = vpack.c.b16 %v768, %v767
  %v799 = vpack.c.b16 %v770, %v769
  %v800 = vpack.c.b16 %v772, %v771
  %v801 = vpack.c.b16 %v774, %v773
  %v802 = vpack.c.b16 %v776, %v775
  %v803 = vpack.c.b16 %v778, %v777
  %829 = vmatpush.bf16.msra.mxu0 %v786
  %830 = vmatpush.bf16.msra.mxu0 %v785
  %831 = vmatpush.bf16.msra.mxu0 %v784
  %832 = vmatpush.bf16.msra.mxu0 %v783
  %833 = vmatpush.bf16.msra.mxu0 %v782
  %834 = vmatpush.bf16.msra.mxu0 %v781
  %835 = vmatpush.bf16.msra.mxu0 %v780
  %836 = vmatpush.bf16.msra.mxu0 %v779
  %837 = vmatmul.bf16.gmra.mxu0 %v106
  %v838 = vpop.f32.mrf.mxu0
  %v839 = vadd.f32 0.0, %v838
  %v840 = vpop.f32.mrf.mxu0
  %v841 = vadd.f32 0.0, %v840
  %842 = vmatmul.bf16.gmra.mxu0 %v110
  %v843 = vpop.f32.mrf.mxu0
  %v844 = vadd.f32 0.0, %v843
  %v845 = vpop.f32.mrf.mxu0
  %v846 = vadd.f32 0.0, %v845
  %847 = vdwg.mxu0
  %848 = vmatpush.bf16.msra.mxu0 %v794
  %849 = vmatpush.bf16.msra.mxu0 %v793
  %850 = vmatpush.bf16.msra.mxu0 %v792
  %851 = vmatpush.bf16.msra.mxu0 %v791
  %852 = vmatpush.bf16.msra.mxu0 %v790
  %853 = vmatpush.bf16.msra.mxu0 %v789
  %854 = vmatpush.bf16.msra.mxu0 %v788
  %855 = vmatpush.bf16.msra.mxu0 %v787
  %856 = vmatmul.bf16.gmra.mxu0 %v107
  %v857 = vpop.f32.mrf.mxu0
  %v858 = vadd.f32 %v839, %v857
  %v859 = vpop.f32.mrf.mxu0
  %v860 = vadd.f32 %v841, %v859
  %861 = vmatmul.bf16.gmra.mxu0 %v111
  %v862 = vpop.f32.mrf.mxu0
  %v863 = vadd.f32 %v844, %v862
  %v864 = vpop.f32.mrf.mxu0
  %v865 = vadd.f32 %v846, %v864
  %866 = vdwg.mxu0
  %867 = vmatpush.bf16.msra.mxu0 %v802
  %868 = vmatpush.bf16.msra.mxu0 %v801
  %869 = vmatpush.bf16.msra.mxu0 %v800
  %870 = vmatpush.bf16.msra.mxu0 %v799
  %871 = vmatpush.bf16.msra.mxu0 %v798
  %872 = vmatpush.bf16.msra.mxu0 %v797
  %873 = vmatpush.bf16.msra.mxu0 %v796
  %874 = vmatpush.bf16.msra.mxu0 %v795
  %875 = vmatmul.bf16.gmra.mxu0 %v108
  %v876 = vpop.f32.mrf.mxu0
  %v877 = vadd.f32 %v858, %v876
  %v878 = vpop.f32.mrf.mxu0
  %v879 = vadd.f32 %v860, %v878
  %880 = vmatmul.bf16.gmra.mxu0 %v112
  %v881 = vpop.f32.mrf.mxu0
  %v882 = vadd.f32 %v863, %v881
  %v883 = vpop.f32.mrf.mxu0
  %v884 = vadd.f32 %v865, %v883
  %885 = vdwg.mxu0
  %886 = vmatpush.bf16.msra.mxu0 0
  %887 = vmatpush.bf16.msra.mxu0 0
  %888 = vmatpush.bf16.msra.mxu0 0
  %889 = vmatpush.bf16.msra.mxu0 0
  %890 = vmatpush.bf16.msra.mxu0 0
  %891 = vmatpush.bf16.msra.mxu0 0
  %892 = vmatpush.bf16.msra.mxu0 0
  %893 = vmatpush.bf16.msra.mxu0 %v803
  %894 = vmatmul.bf16.gmra.mxu0 %v272
  %v895 = vpop.f32.mrf.mxu0
  %v896 = vadd.f32 %v877, %v895
  %v897 = vpop.f32.mrf.mxu0
  %v898 = vadd.f32 %v879, %v897
  %899 = vmatmul.bf16.gmra.mxu0 %v275
  %v900 = vpop.f32.mrf.mxu0
  %v901 = vadd.f32 %v882, %v900
  %v902 = vpop.f32.mrf.mxu0
  %v903 = vadd.f32 %v884, %v902
  %904 = vdwg.mxu0
  %v905 = vld [vmem:[%s4] sm:$0xf]
  %v906 = vld [vmem:[%s4 + $0x4] sm:$0xf]
  %v907 = vld [vmem:[%s4 + $0x8] sm:$0xf]
  %v908 = vld [vmem:[%s4 + $0xc] sm:$0xf]
  %v909 = vld [vmem:[%s4 + $0x10] sm:$0xf]
  %v910 = vld [vmem:[%s4 + $0x14] sm:$0xf]
  %v911 = vld [vmem:[%s4 + $0x18] sm:$0xf]
  %v912 = vld [vmem:[%s4 + $0x1c] sm:$0xf]
  %v913 = vld [vmem:[%s4 + $0x20] sm:$0xf]
  %v914 = vld [vmem:[%s4 + $0x24] sm:$0xf]
  %v915 = vld [vmem:[%s4 + $0x28] sm:$0xf]
  %v916 = vld [vmem:[%s4 + $0x2c] sm:$0xf]
  %v917 = vld [vmem:[%s4 + $0x30] sm:$0xf]
  %v918 = vld [vmem:[%s4 + $0x34] sm:$0xf]
  %v919 = vld [vmem:[%s4 + $0x38] sm:$0xf]
  %v920 = vld [vmem:[%s4 + $0x3c] sm:$0xf]
  %v921 = vld [vmem:[%s4 + $0x40] sm:$0xf]
  %v922 = vld [vmem:[%s4 + $0x44] sm:$0xf]
  %v923 = vld [vmem:[%s4 + $0x48] sm:$0xf]
  %v924 = vld [vmem:[%s4 + $0x4c] sm:$0xf]
  %v925 = vld [vmem:[%s4 + $0x50] sm:$0xf]
  %v926 = vld [vmem:[%s4 + $0x54] sm:$0xf]
  %v927 = vld [vmem:[%s4 + $0x58] sm:$0xf]
  %v928 = vld [vmem:[%s4 + $0x5c] sm:$0xf]
  %v929 = vld [vmem:[%s4 + $0x60] sm:$0xf]
  %v930 = vld [vmem:[%s4 + $0x64] sm:$0xf]
  %v931 = vld [vmem:[%s4 + $0x68] sm:$0xf]
  %v932 = vld [vmem:[%s4 + $0x6c] sm:$0xf]
  %v933 = vld [vmem:[%s4 + $0x70] sm:$0xf]
  %v934 = vld [vmem:[%s4 + $0x74] sm:$0xf]
  %v935 = vld [vmem:[%s4 + $0x78] sm:$0xf]
  %v936 = vld [vmem:[%s4 + $0x7c] sm:$0xf]
  %v937 = vld [vmem:[%s4 + $0x80] sm:$0xf]
  %v938 = vld [vmem:[%s4 + $0x84] sm:$0xf]
  %v939 = vld [vmem:[%s4 + $0x88] sm:$0xf]
  %v940 = vld [vmem:[%s4 + $0x8c] sm:$0xf]
  %v941 = vld [vmem:[%s4 + $0x90] sm:$0xf]
  %v942 = vld [vmem:[%s4 + $0x94] sm:$0xf]
  %v943 = vld [vmem:[%s4 + $0x98] sm:$0xf]
  %v944 = vld [vmem:[%s4 + $0x9c] sm:$0xf]
  %v945 = vld [vmem:[%s4 + $0xa0] sm:$0xf]
  %v946 = vld [vmem:[%s4 + $0xa4] sm:$0xf]
  %v947 = vld [vmem:[%s4 + $0xa8] sm:$0xf]
  %v948 = vld [vmem:[%s4 + $0xac] sm:$0xf]
  %v949 = vld [vmem:[%s4 + $0xb0] sm:$0xf]
  %v950 = vld [vmem:[%s4 + $0xb4] sm:$0xf]
  %v951 = vld [vmem:[%s4 + $0xb8] sm:$0xf]
  %v952 = vld [vmem:[%s4 + $0xbc] sm:$0xf]
  %v953 = vld [vmem:[%s4 + $0xc0] sm:$0xf]
  %v954 = vld [vmem:[%s4 + $0xc4] sm:$0xf]
  %v1005 = vunpack.c.l.b16 %v905
  %v1006 = vunpack.c.l.b16 %v906
  %v1007 = vunpack.c.l.b16 %v907
  %v1008 = vunpack.c.l.b16 %v908
  %v1009 = vunpack.c.l.b16 %v909
  %v1010 = vunpack.c.l.b16 %v910
  %v1011 = vunpack.c.l.b16 %v911
  %v1012 = vunpack.c.l.b16 %v912
  %v1013 = vunpack.c.l.b16 %v913
  %v1014 = vunpack.c.l.b16 %v914
  %v1015 = vunpack.c.l.b16 %v915
  %v1016 = vunpack.c.l.b16 %v916
  %v1017 = vunpack.c.l.b16 %v917
  %v1018 = vunpack.c.l.b16 %v918
  %v1019 = vunpack.c.l.b16 %v919
  %v1020 = vunpack.c.l.b16 %v920
  %v1021 = vunpack.c.l.b16 %v921
  %v1022 = vunpack.c.l.b16 %v922
  %v1023 = vunpack.c.l.b16 %v923
  %v1024 = vunpack.c.l.b16 %v924
  %v1025 = vunpack.c.l.b16 %v925
  %v1026 = vunpack.c.l.b16 %v926
  %v1027 = vunpack.c.l.b16 %v927
  %v1028 = vunpack.c.l.b16 %v928
  %v1029 = vunpack.c.l.b16 %v929
  %v1030 = vunpack.c.l.b16 %v930
  %v1031 = vunpack.c.l.b16 %v931
  %v1032 = vunpack.c.l.b16 %v932
  %v1033 = vunpack.c.l.b16 %v933
  %v1034 = vunpack.c.l.b16 %v934
  %v1035 = vunpack.c.l.b16 %v935
  %v1036 = vunpack.c.l.b16 %v936
  %v1037 = vunpack.c.l.b16 %v937
  %v1038 = vunpack.c.l.b16 %v938
  %v1039 = vunpack.c.l.b16 %v939
  %v1040 = vunpack.c.l.b16 %v940
  %v1041 = vunpack.c.l.b16 %v941
  %v1042 = vunpack.c.l.b16 %v942
  %v1043 = vunpack.c.l.b16 %v943
  %v1044 = vunpack.c.l.b16 %v944
  %v1045 = vunpack.c.l.b16 %v945
  %v1046 = vunpack.c.l.b16 %v946
  %v1047 = vunpack.c.l.b16 %v947
  %v1048 = vunpack.c.l.b16 %v948
  %v1049 = vunpack.c.l.b16 %v949
  %v1050 = vunpack.c.l.b16 %v950
  %v1051 = vunpack.c.l.b16 %v951
  %v1052 = vunpack.c.l.b16 %v952
  %v1053 = vunpack.c.l.b16 %v953
  %v1054 = vunpack.c.l.b16 %v954
  %v1055 = vpack.c.b16 %v1006, %v1005
  %v1056 = vpack.c.b16 %v1008, %v1007
  %v1057 = vpack.c.b16 %v1010, %v1009
  %v1058 = vpack.c.b16 %v1012, %v1011
  %v1059 = vpack.c.b16 %v1014, %v1013
  %v1060 = vpack.c.b16 %v1016, %v1015
  %v1061 = vpack.c.b16 %v1018, %v1017
  %v1062 = vpack.c.b16 %v1020, %v1019
  %v1063 = vpack.c.b16 %v1022, %v1021
  %v1064 = vpack.c.b16 %v1024, %v1023
  %v1065 = vpack.c.b16 %v1026, %v1025
  %v1066 = vpack.c.b16 %v1028, %v1027
  %v1067 = vpack.c.b16 %v1030, %v1029
  %v1068 = vpack.c.b16 %v1032, %v1031
  %v1069 = vpack.c.b16 %v1034, %v1033
  %v1070 = vpack.c.b16 %v1036, %v1035
  %v1071 = vpack.c.b16 %v1038, %v1037
  %v1072 = vpack.c.b16 %v1040, %v1039
  %v1073 = vpack.c.b16 %v1042, %v1041
  %v1074 = vpack.c.b16 %v1044, %v1043
  %v1075 = vpack.c.b16 %v1046, %v1045
  %v1076 = vpack.c.b16 %v1048, %v1047
  %v1077 = vpack.c.b16 %v1050, %v1049
  %v1078 = vpack.c.b16 %v1052, %v1051
  %v1079 = vpack.c.b16 %v1054, %v1053
  %1105 = vmatpush.bf16.msra.mxu0 %v1062
  %1106 = vmatpush.bf16.msra.mxu0 %v1061
  %1107 = vmatpush.bf16.msra.mxu0 %v1060
  %1108 = vmatpush.bf16.msra.mxu0 %v1059
  %1109 = vmatpush.bf16.msra.mxu0 %v1058
  %1110 = vmatpush.bf16.msra.mxu0 %v1057
  %1111 = vmatpush.bf16.msra.mxu0 %v1056
  %1112 = vmatpush.bf16.msra.mxu0 %v1055
  %1113 = vmatmul.bf16.gmra.mxu0 %v106
  %v1114 = vpop.f32.mrf.mxu0
  %v1115 = vadd.f32 0.0, %v1114
  %v1116 = vpop.f32.mrf.mxu0
  %v1117 = vadd.f32 0.0, %v1116
  %1118 = vmatmul.bf16.gmra.mxu0 %v110
  %v1119 = vpop.f32.mrf.mxu0
  %v1120 = vadd.f32 0.0, %v1119
  %v1121 = vpop.f32.mrf.mxu0
  %v1122 = vadd.f32 0.0, %v1121
  %1123 = vdwg.mxu0
  %1124 = vmatpush.bf16.msra.mxu0 %v1070
  %1125 = vmatpush.bf16.msra.mxu0 %v1069
  %1126 = vmatpush.bf16.msra.mxu0 %v1068
  %1127 = vmatpush.bf16.msra.mxu0 %v1067
  %1128 = vmatpush.bf16.msra.mxu0 %v1066
  %1129 = vmatpush.bf16.msra.mxu0 %v1065
  %1130 = vmatpush.bf16.msra.mxu0 %v1064
  %1131 = vmatpush.bf16.msra.mxu0 %v1063
  %1132 = vmatmul.bf16.gmra.mxu0 %v107
  %v1133 = vpop.f32.mrf.mxu0
  %v1134 = vadd.f32 %v1115, %v1133
  %v1135 = vpop.f32.mrf.mxu0
  %v1136 = vadd.f32 %v1117, %v1135
  %1137 = vmatmul.bf16.gmra.mxu0 %v111
  %v1138 = vpop.f32.mrf.mxu0
  %v1139 = vadd.f32 %v1120, %v1138
  %v1140 = vpop.f32.mrf.mxu0
  %v1141 = vadd.f32 %v1122, %v1140
  %1142 = vdwg.mxu0
  %1143 = vmatpush.bf16.msra.mxu0 %v1078
  %1144 = vmatpush.bf16.msra.mxu0 %v1077
  %1145 = vmatpush.bf16.msra.mxu0 %v1076
  %1146 = vmatpush.bf16.msra.mxu0 %v1075
  %1147 = vmatpush.bf16.msra.mxu0 %v1074
  %1148 = vmatpush.bf16.msra.mxu0 %v1073
  %1149 = vmatpush.bf16.msra.mxu0 %v1072
  %1150 = vmatpush.bf16.msra.mxu0 %v1071
  %1151 = vmatmul.bf16.gmra.mxu0 %v108
  %v1152 = vpop.f32.mrf.mxu0
  %v1153 = vadd.f32 %v1134, %v1152
  %v1154 = vpop.f32.mrf.mxu0
  %v1155 = vadd.f32 %v1136, %v1154
  %1156 = vmatmul.bf16.gmra.mxu0 %v112
  %v1157 = vpop.f32.mrf.mxu0
  %v1158 = vadd.f32 %v1139, %v1157
  %v1159 = vpop.f32.mrf.mxu0
  %v1160 = vadd.f32 %v1141, %v1159
  %1161 = vdwg.mxu0
  %1162 = vmatpush.bf16.msra.mxu0 0
  %1163 = vmatpush.bf16.msra.mxu0 0
  %1164 = vmatpush.bf16.msra.mxu0 0
  %1165 = vmatpush.bf16.msra.mxu0 0
  %1166 = vmatpush.bf16.msra.mxu0 0
  %1167 = vmatpush.bf16.msra.mxu0 0
  %1168 = vmatpush.bf16.msra.mxu0 0
  %1169 = vmatpush.bf16.msra.mxu0 %v1079
  %1170 = vmatmul.bf16.gmra.mxu0 %v272
  %v1171 = vpop.f32.mrf.mxu0
  %v1172 = vadd.f32 %v1153, %v1171
  %v1173 = vpop.f32.mrf.mxu0
  %v1174 = vadd.f32 %v1155, %v1173
  %1175 = vmatmul.bf16.gmra.mxu0 %v275
  %v1176 = vpop.f32.mrf.mxu0
  %v1177 = vadd.f32 %v1158, %v1176
  %v1178 = vpop.f32.mrf.mxu0
  %v1179 = vadd.f32 %v1160, %v1178
  %1180 = vdwg.mxu0
  %v1181 = vmax.f32 %v344, %v620
  %v1182 = vmax.f32 %v346, %v622
  %v1183 = vmax.f32 %v349, %v625
  %v1184 = vmax.f32 %v351, %v627
  %v1185 = vmax.f32 %v896, %v1172
  %v1186 = vmax.f32 %v898, %v1174
  %v1187 = vmax.f32 %v901, %v1177
  %v1188 = vmax.f32 %v903, %v1179
  %v1189 = vmax.f32 %v1181, %v1185
  %v1190 = vmax.f32 %v1182, %v1186
  %v1191 = vmax.f32 %v1183, %v1187
  %v1192 = vmax.f32 %v1184, %v1188
  %v1193 = vld [vmem:[%s5] sm:$0xff]
  %v1194 = vld [vmem:[%s5 + $0x8] sm:$0xff]
  %v1195 = vld [vmem:[%s5 + $0x10] sm:$0xff]
  %v1196 = vld [vmem:[%s5 + $0x18] sm:$0xff]
  %1198 = vset.pattern.permute.xlu0 0
  %1199 = vperm.xlu0 %1198, %v1193
  %v1200 = vpop.permute.xlu0 %1199
  %1203 = vset.pattern.permute.xlu0 0
  %1204 = vperm.xlu0 %1203, %v1194
  %v1205 = vpop.permute.xlu0 %1204
  %1208 = vset.pattern.permute.xlu0 0
  %1209 = vperm.xlu0 %1208, %v1195
  %v1210 = vpop.permute.xlu0 %1209
  %1213 = vset.pattern.permute.xlu0 0
  %1214 = vperm.xlu0 %1213, %v1196
  %v1215 = vpop.permute.xlu0 %1214
  %v1217 = vadd.f32 %v1189, %v1200
  %v1218 = vadd.f32 %v1190, %v1205
  %v1219 = vadd.f32 %v1191, %v1210
  %v1220 = vadd.f32 %v1192, %v1215
  %v1221 = vmax.f32 %v1217, 0.0
  %v1222 = vmax.f32 %v1218, 0.0
  %v1223 = vmax.f32 %v1219, 0.0
  %v1224 = vmax.f32 %v1220, 0.0
  %v1225 = vpack.c.bf16 %v1221, %v1221
  %v1226 = vpack.c.bf16 %v1222, %v1222
  %v1227 = vpack.c.bf16 %v1223, %v1223
  %v1228 = vpack.c.bf16 %v1224, %v1224
  %1229 = vst [vmem:[%s6] sm:$0xf] %v1225
  %1230 = vst [vmem:[%s6 + $0x4] sm:$0xf] %v1226
  %1231 = vst [vmem:[%s6 + $0x8] sm:$0xf] %v1227
  %1232 = vst [vmem:[%s6 + $0xc] sm:$0xf] %v1228
  // Predicated region
  $region26: #{hkcnn_forward.5} parent=0 // pred_check
    _
  $region27: #{hkcnn_forward.5} parent=0 // pred_check_branch
    %1234 = sbr.rel (0) target = $region29
  $region28: #{hkcnn_forward.5} parent=0 // pred_region
    _
  $region29: #{hkcnn_forward.5} parent=0 // pred_fallthru
    _
  // Predicated region
  $region30: #{hkcnn_forward.5} parent=0 // pred_check
    _
  $region31: #{hkcnn_forward.5} parent=0 // pred_check_branch
    %1236 = sbr.rel (0) target = $region33
  $region32: #{hkcnn_forward.5} parent=0 // pred_region
    _
  $region33: #{hkcnn_forward.5} parent=0 // pred_fallthru
    _

// kernel: hkcnn_forward.6
$region0: #{hkcnn_forward.6}
  #allocation0 [shape = 'u32[]', space=smem, size = 0x4, offset = 0x4, fixed_abs, tag = 'smem constant byte address 0x4 - core index']
  #allocation1 [shape = 'u32[72,128]{1,0:T(1,128)}', space=vmem, size = 0x9000, scoped, tag = 'internal scratch']
  %s0 = inlined_call_operand.vmem [shape: bf16[64,800], index: 0, kind: input, shape index: {}]
  %s1 = inlined_call_operand.vmem [shape: bf16[800,32], index: 1, kind: input, shape index: {}]
  %s2 = inlined_call_operand.vmem [shape: bf16[800,32], index: 2, kind: input, shape index: {}]
  %s3 = inlined_call_operand.vmem [shape: bf16[800,32], index: 3, kind: input, shape index: {}]
  %s4 = inlined_call_operand.vmem [shape: bf16[800,32], index: 4, kind: input, shape index: {}]
  %s5 = inlined_call_operand.vmem [shape: f32[64,1], index: 5, kind: input, shape index: {}]
  %s6 = inlined_call_operand.vmem [shape: bf16[64,32], index: 6, kind: output, shape index: {}]
  %s7 = sld [smem:[#allocation0]]
  $region34: #{hkcnn_forward.6} parent=0
    _
  %s9 = ssub.s32 1, %s7
  %s10 = scalar_select 0, %s9, %s7
  // Predicated region
  $region2: #{hkcnn_forward.6} parent=0 // pred_check
    _
  $region3: #{hkcnn_forward.6} parent=0 // pred_check_branch
    %12 = sbr.rel (0) target = $region5
  $region4: #{hkcnn_forward.6} parent=0 // pred_region
    _
  $region5: #{hkcnn_forward.6} parent=0 // pred_fallthru
    _
  // Predicated region
  $region6: #{hkcnn_forward.6} parent=0 // pred_check
    _
  $region7: #{hkcnn_forward.6} parent=0 // pred_check_branch
    %14 = sbr.rel (0) target = $region9
  $region8: #{hkcnn_forward.6} parent=0 // pred_region
    _
  $region9: #{hkcnn_forward.6} parent=0 // pred_fallthru
    _
  // Predicated region
  $region10: #{hkcnn_forward.6} parent=0 // pred_check
    _
  $region11: #{hkcnn_forward.6} parent=0 // pred_check_branch
    %16 = sbr.rel (0) target = $region13
  $region12: #{hkcnn_forward.6} parent=0 // pred_region
    _
  $region13: #{hkcnn_forward.6} parent=0 // pred_fallthru
    _
  // Predicated region
  $region14: #{hkcnn_forward.6} parent=0 // pred_check
    _
  $region15: #{hkcnn_forward.6} parent=0 // pred_check_branch
    %18 = sbr.rel (0) target = $region17
  $region16: #{hkcnn_forward.6} parent=0 // pred_region
    _
  $region17: #{hkcnn_forward.6} parent=0 // pred_fallthru
    _
  // Predicated region
  $region18: #{hkcnn_forward.6} parent=0 // pred_check
    _
  $region19: #{hkcnn_forward.6} parent=0 // pred_check_branch
    %20 = sbr.rel (0) target = $region21
  $region20: #{hkcnn_forward.6} parent=0 // pred_region
    _
  $region21: #{hkcnn_forward.6} parent=0 // pred_fallthru
    _
  // Predicated region
  $region22: #{hkcnn_forward.6} parent=0 // pred_check
    _
  $region23: #{hkcnn_forward.6} parent=0 // pred_check_branch
    %22 = sbr.rel (0) target = $region25
  $region24: #{hkcnn_forward.6} parent=0 // pred_region
    _
  $region25: #{hkcnn_forward.6} parent=0 // pred_fallthru
    _
  %v24 = vld [vmem:[%s0] sm:$0xff]
  %v25 = vld [vmem:[%s0 + $0x8] sm:$0xff]
  %v26 = vld [vmem:[%s0 + $0x10] sm:$0xff]
  %v27 = vld [vmem:[%s0 + $0x18] sm:$0xf]
  %v28 = vld [vmem:[%s0 + $0x1c] sm:$0xff]
  %v29 = vld [vmem:[%s0 + $0x24] sm:$0xff]
  %v30 = vld [vmem:[%s0 + $0x2c] sm:$0xff]
  %v31 = vld [vmem:[%s0 + $0x34] sm:$0xf]
  %v32 = vld [vmem:[%s0 + $0x38] sm:$0xff]
  %v33 = vld [vmem:[%s0 + $0x40] sm:$0xff]
  %v34 = vld [vmem:[%s0 + $0x48] sm:$0xff]
  %v35 = vld [vmem:[%s0 + $0x50] sm:$0xf]
  %v36 = vld [vmem:[%s0 + $0x54] sm:$0xff]
  %v37 = vld [vmem:[%s0 + $0x5c] sm:$0xff]
  %v38 = vld [vmem:[%s0 + $0x64] sm:$0xff]
  %v39 = vld [vmem:[%s0 + $0x6c] sm:$0xf]
  %v40 = vld [vmem:[%s0 + $0x70] sm:$0xff]
  %v41 = vld [vmem:[%s0 + $0x78] sm:$0xff]
  %v42 = vld [vmem:[%s0 + $0x80] sm:$0xff]
  %v43 = vld [vmem:[%s0 + $0x88] sm:$0xf]
  %v44 = vld [vmem:[%s0 + $0x8c] sm:$0xff]
  %v45 = vld [vmem:[%s0 + $0x94] sm:$0xff]
  %v46 = vld [vmem:[%s0 + $0x9c] sm:$0xff]
  %v47 = vld [vmem:[%s0 + $0xa4] sm:$0xf]
  %v48 = vld [vmem:[%s0 + $0xa8] sm:$0xff]
  %v49 = vld [vmem:[%s0 + $0xb0] sm:$0xff]
  %v50 = vld [vmem:[%s0 + $0xb8] sm:$0xff]
  %v51 = vld [vmem:[%s0 + $0xc0] sm:$0xf]
  %v52 = vld [vmem:[%s0 + $0xc4] sm:$0xff]
  %v53 = vld [vmem:[%s0 + $0xcc] sm:$0xff]
  %v54 = vld [vmem:[%s0 + $0xd4] sm:$0xff]
  %v55 = vld [vmem:[%s0 + $0xdc] sm:$0xf]
  %v56 = vld [vmem:[%s1] sm:$0xf]
  %v57 = vld [vmem:[%s1 + $0x4] sm:$0xf]
  %v58 = vld [vmem:[%s1 + $0x8] sm:$0xf]
  %v59 = vld [vmem:[%s1 + $0xc] sm:$0xf]
  %v60 = vld [vmem:[%s1 + $0x10] sm:$0xf]
  %v61 = vld [vmem:[%s1 + $0x14] sm:$0xf]
  %v62 = vld [vmem:[%s1 + $0x18] sm:$0xf]
  %v63 = vld [vmem:[%s1 + $0x1c] sm:$0xf]
  %v64 = vld [vmem:[%s1 + $0x20] sm:$0xf]
  %v65 = vld [vmem:[%s1 + $0x24] sm:$0xf]
  %v66 = vld [vmem:[%s1 + $0x28] sm:$0xf]
  %v67 = vld [vmem:[%s1 + $0x2c] sm:$0xf]
  %v68 = vld [vmem:[%s1 + $0x30] sm:$0xf]
  %v69 = vld [vmem:[%s1 + $0x34] sm:$0xf]
  %v70 = vld [vmem:[%s1 + $0x38] sm:$0xf]
  %v71 = vld [vmem:[%s1 + $0x3c] sm:$0xf]
  %v72 = vld [vmem:[%s1 + $0x40] sm:$0xf]
  %v73 = vld [vmem:[%s1 + $0x44] sm:$0xf]
  %v74 = vld [vmem:[%s1 + $0x48] sm:$0xf]
  %v75 = vld [vmem:[%s1 + $0x4c] sm:$0xf]
  %v76 = vld [vmem:[%s1 + $0x50] sm:$0xf]
  %v77 = vld [vmem:[%s1 + $0x54] sm:$0xf]
  %v78 = vld [vmem:[%s1 + $0x58] sm:$0xf]
  %v79 = vld [vmem:[%s1 + $0x5c] sm:$0xf]
  %v80 = vld [vmem:[%s1 + $0x60] sm:$0xf]
  %v81 = vld [vmem:[%s1 + $0x64] sm:$0xf]
  %v82 = vld [vmem:[%s1 + $0x68] sm:$0xf]
  %v83 = vld [vmem:[%s1 + $0x6c] sm:$0xf]
  %v84 = vld [vmem:[%s1 + $0x70] sm:$0xf]
  %v85 = vld [vmem:[%s1 + $0x74] sm:$0xf]
  %v86 = vld [vmem:[%s1 + $0x78] sm:$0xf]
  %v87 = vld [vmem:[%s1 + $0x7c] sm:$0xf]
  %v88 = vld [vmem:[%s1 + $0x80] sm:$0xf]
  %v89 = vld [vmem:[%s1 + $0x84] sm:$0xf]
  %v90 = vld [vmem:[%s1 + $0x88] sm:$0xf]
  %v91 = vld [vmem:[%s1 + $0x8c] sm:$0xf]
  %v92 = vld [vmem:[%s1 + $0x90] sm:$0xf]
  %v93 = vld [vmem:[%s1 + $0x94] sm:$0xf]
  %v94 = vld [vmem:[%s1 + $0x98] sm:$0xf]
  %v95 = vld [vmem:[%s1 + $0x9c] sm:$0xf]
  %v96 = vld [vmem:[%s1 + $0xa0] sm:$0xf]
  %v97 = vld [vmem:[%s1 + $0xa4] sm:$0xf]
  %v98 = vld [vmem:[%s1 + $0xa8] sm:$0xf]
  %v99 = vld [vmem:[%s1 + $0xac] sm:$0xf]
  %v100 = vld [vmem:[%s1 + $0xb0] sm:$0xf]
  %v101 = vld [vmem:[%s1 + $0xb4] sm:$0xf]
  %v102 = vld [vmem:[%s1 + $0xb8] sm:$0xf]
  %v103 = vld [vmem:[%s1 + $0xbc] sm:$0xf]
  %v104 = vld [vmem:[%s1 + $0xc0] sm:$0xf]
  %v105 = vld [vmem:[%s1 + $0xc4] sm:$0xf]
  %v106 = vld [vmem:[%s1 + $0xc8] sm:$0xf]
  %v107 = vld [vmem:[%s1 + $0xcc] sm:$0xf]
  %v108 = vld [vmem:[%s1 + $0xd0] sm:$0xf]
  %v109 = vld [vmem:[%s1 + $0xd4] sm:$0xf]
  %v110 = vld [vmem:[%s1 + $0xd8] sm:$0xf]
  %v111 = vld [vmem:[%s1 + $0xdc] sm:$0xf]
  %v112 = vld [vmem:[%s1 + $0xe0] sm:$0xf]
  %v113 = vld [vmem:[%s1 + $0xe4] sm:$0xf]
  %v114 = vld [vmem:[%s1 + $0xe8] sm:$0xf]
  %v115 = vld [vmem:[%s1 + $0xec] sm:$0xf]
  %v116 = vld [vmem:[%s1 + $0xf0] sm:$0xf]
  %v117 = vld [vmem:[%s1 + $0xf4] sm:$0xf]
  %v118 = vld [vmem:[%s1 + $0xf8] sm:$0xf]
  %v119 = vld [vmem:[%s1 + $0xfc] sm:$0xf]
  %v120 = vld [vmem:[%s1 + $0x100] sm:$0xf]
  %v121 = vld [vmem:[%s1 + $0x104] sm:$0xf]
  %v122 = vld [vmem:[%s1 + $0x108] sm:$0xf]
  %v123 = vld [vmem:[%s1 + $0x10c] sm:$0xf]
  %v124 = vld [vmem:[%s1 + $0x110] sm:$0xf]
  %v125 = vld [vmem:[%s1 + $0x114] sm:$0xf]
  %v126 = vld [vmem:[%s1 + $0x118] sm:$0xf]
  %v127 = vld [vmem:[%s1 + $0x11c] sm:$0xf]
  %v128 = vld [vmem:[%s1 + $0x120] sm:$0xf]
  %v129 = vld [vmem:[%s1 + $0x124] sm:$0xf]
  %v130 = vld [vmem:[%s1 + $0x128] sm:$0xf]
  %v131 = vld [vmem:[%s1 + $0x12c] sm:$0xf]
  %v132 = vld [vmem:[%s1 + $0x130] sm:$0xf]
  %v133 = vld [vmem:[%s1 + $0x134] sm:$0xf]
  %v134 = vld [vmem:[%s1 + $0x138] sm:$0xf]
  %v135 = vld [vmem:[%s1 + $0x13c] sm:$0xf]
  %v136 = vld [vmem:[%s1 + $0x140] sm:$0xf]
  %v137 = vld [vmem:[%s1 + $0x144] sm:$0xf]
  %v138 = vld [vmem:[%s1 + $0x148] sm:$0xf]
  %v139 = vld [vmem:[%s1 + $0x14c] sm:$0xf]
  %v140 = vld [vmem:[%s1 + $0x150] sm:$0xf]
  %v141 = vld [vmem:[%s1 + $0x154] sm:$0xf]
  %v142 = vld [vmem:[%s1 + $0x158] sm:$0xf]
  %v143 = vld [vmem:[%s1 + $0x15c] sm:$0xf]
  %v144 = vld [vmem:[%s1 + $0x160] sm:$0xf]
  %v145 = vld [vmem:[%s1 + $0x164] sm:$0xf]
  %v146 = vld [vmem:[%s1 + $0x168] sm:$0xf]
  %v147 = vld [vmem:[%s1 + $0x16c] sm:$0xf]
  %v148 = vld [vmem:[%s1 + $0x170] sm:$0xf]
  %v149 = vld [vmem:[%s1 + $0x174] sm:$0xf]
  %v150 = vld [vmem:[%s1 + $0x178] sm:$0xf]
  %v151 = vld [vmem:[%s1 + $0x17c] sm:$0xf]
  %v152 = vld [vmem:[%s1 + $0x180] sm:$0xf]
  %v153 = vld [vmem:[%s1 + $0x184] sm:$0xf]
  %v154 = vld [vmem:[%s1 + $0x188] sm:$0xf]
  %v155 = vld [vmem:[%s1 + $0x18c] sm:$0xf]
  %v188 = vunpack.c.l.b16 %v24
  %v189 = vunpack.c.h.b16 %v24
  %v190 = vunpack.c.l.b16 %v25
  %v191 = vunpack.c.h.b16 %v25
  %v192 = vunpack.c.l.b16 %v26
  %v193 = vunpack.c.h.b16 %v26
  %v194 = vunpack.c.l.b16 %v27
  %v195 = vunpack.c.l.b16 %v28
  %v196 = vunpack.c.h.b16 %v28
  %v197 = vunpack.c.l.b16 %v29
  %v198 = vunpack.c.h.b16 %v29
  %v199 = vunpack.c.l.b16 %v30
  %v200 = vunpack.c.h.b16 %v30
  %v201 = vunpack.c.l.b16 %v31
  %v202 = vunpack.c.l.b16 %v32
  %v203 = vunpack.c.h.b16 %v32
  %v204 = vunpack.c.l.b16 %v33
  %v205 = vunpack.c.h.b16 %v33
  %v206 = vunpack.c.l.b16 %v34
  %v207 = vunpack.c.h.b16 %v34
  %v208 = vunpack.c.l.b16 %v35
  %v209 = vunpack.c.l.b16 %v36
  %v210 = vunpack.c.h.b16 %v36
  %v211 = vunpack.c.l.b16 %v37
  %v212 = vunpack.c.h.b16 %v37
  %v213 = vunpack.c.l.b16 %v38
  %v214 = vunpack.c.h.b16 %v38
  %v215 = vunpack.c.l.b16 %v39
  %v216 = vunpack.c.l.b16 %v40
  %v217 = vunpack.c.h.b16 %v40
  %v218 = vunpack.c.l.b16 %v41
  %v219 = vunpack.c.h.b16 %v41
  %v220 = vunpack.c.l.b16 %v42
  %v221 = vunpack.c.h.b16 %v42
  %v222 = vunpack.c.l.b16 %v43
  %v223 = vunpack.c.l.b16 %v44
  %v224 = vunpack.c.h.b16 %v44
  %v225 = vunpack.c.l.b16 %v45
  %v226 = vunpack.c.h.b16 %v45
  %v227 = vunpack.c.l.b16 %v46
  %v228 = vunpack.c.h.b16 %v46
  %v229 = vunpack.c.l.b16 %v47
  %v230 = vunpack.c.l.b16 %v48
  %v231 = vunpack.c.h.b16 %v48
  %v232 = vunpack.c.l.b16 %v49
  %v233 = vunpack.c.h.b16 %v49
  %v234 = vunpack.c.l.b16 %v50
  %v235 = vunpack.c.h.b16 %v50
  %v236 = vunpack.c.l.b16 %v51
  %v237 = vunpack.c.l.b16 %v52
  %v238 = vunpack.c.h.b16 %v52
  %v239 = vunpack.c.l.b16 %v53
  %v240 = vunpack.c.h.b16 %v53
  %v241 = vunpack.c.l.b16 %v54
  %v242 = vunpack.c.h.b16 %v54
  %v243 = vunpack.c.l.b16 %v55
  %v244 = vpack.c.b16 %v195, %v188
  %v245 = vpack.c.b16 %v196, %v189
  %v246 = vpack.c.b16 %v197, %v190
  %v247 = vpack.c.b16 %v198, %v191
  %v248 = vpack.c.b16 %v199, %v192
  %v249 = vpack.c.b16 %v200, %v193
  %v250 = vpack.c.b16 %v201, %v194
  %v251 = vpack.c.b16 %v209, %v202
  %v252 = vpack.c.b16 %v210, %v203
  %v253 = vpack.c.b16 %v211, %v204
  %v254 = vpack.c.b16 %v212, %v205
  %v255 = vpack.c.b16 %v213, %v206
  %v256 = vpack.c.b16 %v214, %v207
  %v257 = vpack.c.b16 %v215, %v208
  %v258 = vpack.c.b16 %v223, %v216
  %v259 = vpack.c.b16 %v224, %v217
  %v260 = vpack.c.b16 %v225, %v218
  %v261 = vpack.c.b16 %v226, %v219
  %v262 = vpack.c.b16 %v227, %v220
  %v263 = vpack.c.b16 %v228, %v221
  %v264 = vpack.c.b16 %v229, %v222
  %v265 = vpack.c.b16 %v237, %v230
  %v266 = vpack.c.b16 %v238, %v231
  %v267 = vpack.c.b16 %v239, %v232
  %v268 = vpack.c.b16 %v240, %v233
  %v269 = vpack.c.b16 %v241, %v234
  %v270 = vpack.c.b16 %v242, %v235
  %v271 = vpack.c.b16 %v243, %v236
  %v396 = vunpack.c.l.b16 %v56
  %v397 = vunpack.c.l.b16 %v57
  %v398 = vunpack.c.l.b16 %v58
  %v399 = vunpack.c.l.b16 %v59
  %v400 = vunpack.c.l.b16 %v60
  %v401 = vunpack.c.l.b16 %v61
  %v402 = vunpack.c.l.b16 %v62
  %v403 = vunpack.c.l.b16 %v63
  %v404 = vunpack.c.l.b16 %v64
  %v405 = vunpack.c.l.b16 %v65
  %v406 = vunpack.c.l.b16 %v66
  %v407 = vunpack.c.l.b16 %v67
  %v408 = vunpack.c.l.b16 %v68
  %v409 = vunpack.c.l.b16 %v69
  %v410 = vunpack.c.l.b16 %v70
  %v411 = vunpack.c.l.b16 %v71
  %v412 = vunpack.c.l.b16 %v72
  %v413 = vunpack.c.l.b16 %v73
  %v414 = vunpack.c.l.b16 %v74
  %v415 = vunpack.c.l.b16 %v75
  %v416 = vunpack.c.l.b16 %v76
  %v417 = vunpack.c.l.b16 %v77
  %v418 = vunpack.c.l.b16 %v78
  %v419 = vunpack.c.l.b16 %v79
  %v420 = vunpack.c.l.b16 %v80
  %v421 = vunpack.c.l.b16 %v81
  %v422 = vunpack.c.l.b16 %v82
  %v423 = vunpack.c.l.b16 %v83
  %v424 = vunpack.c.l.b16 %v84
  %v425 = vunpack.c.l.b16 %v85
  %v426 = vunpack.c.l.b16 %v86
  %v427 = vunpack.c.l.b16 %v87
  %v428 = vunpack.c.l.b16 %v88
  %v429 = vunpack.c.l.b16 %v89
  %v430 = vunpack.c.l.b16 %v90
  %v431 = vunpack.c.l.b16 %v91
  %v432 = vunpack.c.l.b16 %v92
  %v433 = vunpack.c.l.b16 %v93
  %v434 = vunpack.c.l.b16 %v94
  %v435 = vunpack.c.l.b16 %v95
  %v436 = vunpack.c.l.b16 %v96
  %v437 = vunpack.c.l.b16 %v97
  %v438 = vunpack.c.l.b16 %v98
  %v439 = vunpack.c.l.b16 %v99
  %v440 = vunpack.c.l.b16 %v100
  %v441 = vunpack.c.l.b16 %v101
  %v442 = vunpack.c.l.b16 %v102
  %v443 = vunpack.c.l.b16 %v103
  %v444 = vunpack.c.l.b16 %v104
  %v445 = vunpack.c.l.b16 %v105
  %v446 = vunpack.c.l.b16 %v106
  %v447 = vunpack.c.l.b16 %v107
  %v448 = vunpack.c.l.b16 %v108
  %v449 = vunpack.c.l.b16 %v109
  %v450 = vunpack.c.l.b16 %v110
  %v451 = vunpack.c.l.b16 %v111
  %v452 = vunpack.c.l.b16 %v112
  %v453 = vunpack.c.l.b16 %v113
  %v454 = vunpack.c.l.b16 %v114
  %v455 = vunpack.c.l.b16 %v115
  %v456 = vunpack.c.l.b16 %v116
  %v457 = vunpack.c.l.b16 %v117
  %v458 = vunpack.c.l.b16 %v118
  %v459 = vunpack.c.l.b16 %v119
  %v460 = vunpack.c.l.b16 %v120
  %v461 = vunpack.c.l.b16 %v121
  %v462 = vunpack.c.l.b16 %v122
  %v463 = vunpack.c.l.b16 %v123
  %v464 = vunpack.c.l.b16 %v124
  %v465 = vunpack.c.l.b16 %v125
  %v466 = vunpack.c.l.b16 %v126
  %v467 = vunpack.c.l.b16 %v127
  %v468 = vunpack.c.l.b16 %v128
  %v469 = vunpack.c.l.b16 %v129
  %v470 = vunpack.c.l.b16 %v130
  %v471 = vunpack.c.l.b16 %v131
  %v472 = vunpack.c.l.b16 %v132
  %v473 = vunpack.c.l.b16 %v133
  %v474 = vunpack.c.l.b16 %v134
  %v475 = vunpack.c.l.b16 %v135
  %v476 = vunpack.c.l.b16 %v136
  %v477 = vunpack.c.l.b16 %v137
  %v478 = vunpack.c.l.b16 %v138
  %v479 = vunpack.c.l.b16 %v139
  %v480 = vunpack.c.l.b16 %v140
  %v481 = vunpack.c.l.b16 %v141
  %v482 = vunpack.c.l.b16 %v142
  %v483 = vunpack.c.l.b16 %v143
  %v484 = vunpack.c.l.b16 %v144
  %v485 = vunpack.c.l.b16 %v145
  %v486 = vunpack.c.l.b16 %v146
  %v487 = vunpack.c.l.b16 %v147
  %v488 = vunpack.c.l.b16 %v148
  %v489 = vunpack.c.l.b16 %v149
  %v490 = vunpack.c.l.b16 %v150
  %v491 = vunpack.c.l.b16 %v151
  %v492 = vunpack.c.l.b16 %v152
  %v493 = vunpack.c.l.b16 %v153
  %v494 = vunpack.c.l.b16 %v154
  %v495 = vunpack.c.l.b16 %v155
  %v496 = vpack.c.b16 %v397, %v396
  %v497 = vpack.c.b16 %v399, %v398
  %v498 = vpack.c.b16 %v401, %v400
  %v499 = vpack.c.b16 %v403, %v402
  %v500 = vpack.c.b16 %v405, %v404
  %v501 = vpack.c.b16 %v407, %v406
  %v502 = vpack.c.b16 %v409, %v408
  %v503 = vpack.c.b16 %v411, %v410
  %v504 = vpack.c.b16 %v413, %v412
  %v505 = vpack.c.b16 %v415, %v414
  %v506 = vpack.c.b16 %v417, %v416
  %v507 = vpack.c.b16 %v419, %v418
  %v508 = vpack.c.b16 %v421, %v420
  %v509 = vpack.c.b16 %v423, %v422
  %v510 = vpack.c.b16 %v425, %v424
  %v511 = vpack.c.b16 %v427, %v426
  %v512 = vpack.c.b16 %v429, %v428
  %v513 = vpack.c.b16 %v431, %v430
  %v514 = vpack.c.b16 %v433, %v432
  %v515 = vpack.c.b16 %v435, %v434
  %v516 = vpack.c.b16 %v437, %v436
  %v517 = vpack.c.b16 %v439, %v438
  %v518 = vpack.c.b16 %v441, %v440
  %v519 = vpack.c.b16 %v443, %v442
  %v520 = vpack.c.b16 %v445, %v444
  %v521 = vpack.c.b16 %v447, %v446
  %v522 = vpack.c.b16 %v449, %v448
  %v523 = vpack.c.b16 %v451, %v450
  %v524 = vpack.c.b16 %v453, %v452
  %v525 = vpack.c.b16 %v455, %v454
  %v526 = vpack.c.b16 %v457, %v456
  %v527 = vpack.c.b16 %v459, %v458
  %v528 = vpack.c.b16 %v461, %v460
  %v529 = vpack.c.b16 %v463, %v462
  %v530 = vpack.c.b16 %v465, %v464
  %v531 = vpack.c.b16 %v467, %v466
  %v532 = vpack.c.b16 %v469, %v468
  %v533 = vpack.c.b16 %v471, %v470
  %v534 = vpack.c.b16 %v473, %v472
  %v535 = vpack.c.b16 %v475, %v474
  %v536 = vpack.c.b16 %v477, %v476
  %v537 = vpack.c.b16 %v479, %v478
  %v538 = vpack.c.b16 %v481, %v480
  %v539 = vpack.c.b16 %v483, %v482
  %v540 = vpack.c.b16 %v485, %v484
  %v541 = vpack.c.b16 %v487, %v486
  %v542 = vpack.c.b16 %v489, %v488
  %v543 = vpack.c.b16 %v491, %v490
  %v544 = vpack.c.b16 %v493, %v492
  %v545 = vpack.c.b16 %v495, %v494
  %vm596 = vcmask 261120
  %v598 = vsel %vm596, %v250, 0
  %v601 = vsel %vm596, %v257, 0
  %v604 = vsel %vm596, %v264, 0
  %v607 = vsel %vm596, %v271, 0
  %609 = vmatpush.bf16.msra.mxu0 %v503
  %610 = vmatpush.bf16.msra.mxu0 %v502
  %611 = vmatpush.bf16.msra.mxu0 %v501
  %612 = vmatpush.bf16.msra.mxu0 %v500
  %613 = vmatpush.bf16.msra.mxu0 %v499
  %614 = vmatpush.bf16.msra.mxu0 %v498
  %615 = vmatpush.bf16.msra.mxu0 %v497
  %616 = vmatpush.bf16.msra.mxu0 %v496
  %617 = vmatmul.bf16.gmra.mxu0 %v244
  %v618 = vpop.f32.mrf.mxu0
  %v619 = vadd.f32 0.0, %v618
  %v620 = vpop.f32.mrf.mxu0
  %v621 = vadd.f32 0.0, %v620
  %622 = vmatmul.bf16.gmra.mxu0 %v251
  %v623 = vpop.f32.mrf.mxu0
  %v624 = vadd.f32 0.0, %v623
  %v625 = vpop.f32.mrf.mxu0
  %v626 = vadd.f32 0.0, %v625
  %627 = vmatmul.bf16.gmra.mxu0 %v258
  %v628 = vpop.f32.mrf.mxu0
  %v629 = vadd.f32 0.0, %v628
  %v630 = vpop.f32.mrf.mxu0
  %v631 = vadd.f32 0.0, %v630
  %632 = vmatmul.bf16.gmra.mxu0 %v265
  %v633 = vpop.f32.mrf.mxu0
  %v634 = vadd.f32 0.0, %v633
  %v635 = vpop.f32.mrf.mxu0
  %v636 = vadd.f32 0.0, %v635
  %637 = vdwg.mxu0
  %638 = vmatpush.bf16.msra.mxu0 %v511
  %639 = vmatpush.bf16.msra.mxu0 %v510
  %640 = vmatpush.bf16.msra.mxu0 %v509
  %641 = vmatpush.bf16.msra.mxu0 %v508
  %642 = vmatpush.bf16.msra.mxu0 %v507
  %643 = vmatpush.bf16.msra.mxu0 %v506
  %644 = vmatpush.bf16.msra.mxu0 %v505
  %645 = vmatpush.bf16.msra.mxu0 %v504
  %646 = vmatmul.bf16.gmra.mxu0 %v245
  %v647 = vpop.f32.mrf.mxu0
  %v648 = vadd.f32 %v619, %v647
  %v649 = vpop.f32.mrf.mxu0
  %v650 = vadd.f32 %v621, %v649
  %651 = vmatmul.bf16.gmra.mxu0 %v252
  %v652 = vpop.f32.mrf.mxu0
  %v653 = vadd.f32 %v624, %v652
  %v654 = vpop.f32.mrf.mxu0
  %v655 = vadd.f32 %v626, %v654
  %656 = vmatmul.bf16.gmra.mxu0 %v259
  %v657 = vpop.f32.mrf.mxu0
  %v658 = vadd.f32 %v629, %v657
  %v659 = vpop.f32.mrf.mxu0
  %v660 = vadd.f32 %v631, %v659
  %661 = vmatmul.bf16.gmra.mxu0 %v266
  %v662 = vpop.f32.mrf.mxu0
  %v663 = vadd.f32 %v634, %v662
  %v664 = vpop.f32.mrf.mxu0
  %v665 = vadd.f32 %v636, %v664
  %666 = vdwg.mxu0
  %667 = vmatpush.bf16.msra.mxu0 %v519
  %668 = vmatpush.bf16.msra.mxu0 %v518
  %669 = vmatpush.bf16.msra.mxu0 %v517
  %670 = vmatpush.bf16.msra.mxu0 %v516
  %671 = vmatpush.bf16.msra.mxu0 %v515
  %672 = vmatpush.bf16.msra.mxu0 %v514
  %673 = vmatpush.bf16.msra.mxu0 %v513
  %674 = vmatpush.bf16.msra.mxu0 %v512
  %675 = vmatmul.bf16.gmra.mxu0 %v246
  %v676 = vpop.f32.mrf.mxu0
  %v677 = vadd.f32 %v648, %v676
  %v678 = vpop.f32.mrf.mxu0
  %v679 = vadd.f32 %v650, %v678
  %680 = vmatmul.bf16.gmra.mxu0 %v253
  %v681 = vpop.f32.mrf.mxu0
  %v682 = vadd.f32 %v653, %v681
  %v683 = vpop.f32.mrf.mxu0
  %v684 = vadd.f32 %v655, %v683
  %685 = vmatmul.bf16.gmra.mxu0 %v260
  %v686 = vpop.f32.mrf.mxu0
  %v687 = vadd.f32 %v658, %v686
  %v688 = vpop.f32.mrf.mxu0
  %v689 = vadd.f32 %v660, %v688
  %690 = vmatmul.bf16.gmra.mxu0 %v267
  %v691 = vpop.f32.mrf.mxu0
  %v692 = vadd.f32 %v663, %v691
  %v693 = vpop.f32.mrf.mxu0
  %v694 = vadd.f32 %v665, %v693
  %695 = vdwg.mxu0
  %696 = vmatpush.bf16.msra.mxu0 %v527
  %697 = vmatpush.bf16.msra.mxu0 %v526
  %698 = vmatpush.bf16.msra.mxu0 %v525
  %699 = vmatpush.bf16.msra.mxu0 %v524
  %700 = vmatpush.bf16.msra.mxu0 %v523
  %701 = vmatpush.bf16.msra.mxu0 %v522
  %702 = vmatpush.bf16.msra.mxu0 %v521
  %703 = vmatpush.bf16.msra.mxu0 %v520
  %704 = vmatmul.bf16.gmra.mxu0 %v247
  %v705 = vpop.f32.mrf.mxu0
  %v706 = vadd.f32 %v677, %v705
  %v707 = vpop.f32.mrf.mxu0
  %v708 = vadd.f32 %v679, %v707
  %709 = vmatmul.bf16.gmra.mxu0 %v254
  %v710 = vpop.f32.mrf.mxu0
  %v711 = vadd.f32 %v682, %v710
  %v712 = vpop.f32.mrf.mxu0
  %v713 = vadd.f32 %v684, %v712
  %714 = vmatmul.bf16.gmra.mxu0 %v261
  %v715 = vpop.f32.mrf.mxu0
  %v716 = vadd.f32 %v687, %v715
  %v717 = vpop.f32.mrf.mxu0
  %v718 = vadd.f32 %v689, %v717
  %719 = vmatmul.bf16.gmra.mxu0 %v268
  %v720 = vpop.f32.mrf.mxu0
  %v721 = vadd.f32 %v692, %v720
  %v722 = vpop.f32.mrf.mxu0
  %v723 = vadd.f32 %v694, %v722
  %724 = vdwg.mxu0
  %725 = vmatpush.bf16.msra.mxu0 %v535
  %726 = vmatpush.bf16.msra.mxu0 %v534
  %727 = vmatpush.bf16.msra.mxu0 %v533
  %728 = vmatpush.bf16.msra.mxu0 %v532
  %729 = vmatpush.bf16.msra.mxu0 %v531
  %730 = vmatpush.bf16.msra.mxu0 %v530
  %731 = vmatpush.bf16.msra.mxu0 %v529
  %732 = vmatpush.bf16.msra.mxu0 %v528
  %733 = vmatmul.bf16.gmra.mxu0 %v248
  %v734 = vpop.f32.mrf.mxu0
  %v735 = vadd.f32 %v706, %v734
  %v736 = vpop.f32.mrf.mxu0
  %v737 = vadd.f32 %v708, %v736
  %738 = vmatmul.bf16.gmra.mxu0 %v255
  %v739 = vpop.f32.mrf.mxu0
  %v740 = vadd.f32 %v711, %v739
  %v741 = vpop.f32.mrf.mxu0
  %v742 = vadd.f32 %v713, %v741
  %743 = vmatmul.bf16.gmra.mxu0 %v262
  %v744 = vpop.f32.mrf.mxu0
  %v745 = vadd.f32 %v716, %v744
  %v746 = vpop.f32.mrf.mxu0
  %v747 = vadd.f32 %v718, %v746
  %748 = vmatmul.bf16.gmra.mxu0 %v269
  %v749 = vpop.f32.mrf.mxu0
  %v750 = vadd.f32 %v721, %v749
  %v751 = vpop.f32.mrf.mxu0
  %v752 = vadd.f32 %v723, %v751
  %753 = vdwg.mxu0
  %754 = vmatpush.bf16.msra.mxu0 %v543
  %755 = vmatpush.bf16.msra.mxu0 %v542
  %756 = vmatpush.bf16.msra.mxu0 %v541
  %757 = vmatpush.bf16.msra.mxu0 %v540
  %758 = vmatpush.bf16.msra.mxu0 %v539
  %759 = vmatpush.bf16.msra.mxu0 %v538
  %760 = vmatpush.bf16.msra.mxu0 %v537
  %761 = vmatpush.bf16.msra.mxu0 %v536
  %762 = vmatmul.bf16.gmra.mxu0 %v249
  %v763 = vpop.f32.mrf.mxu0
  %v764 = vadd.f32 %v735, %v763
  %v765 = vpop.f32.mrf.mxu0
  %v766 = vadd.f32 %v737, %v765
  %767 = vmatmul.bf16.gmra.mxu0 %v256
  %v768 = vpop.f32.mrf.mxu0
  %v769 = vadd.f32 %v740, %v768
  %v770 = vpop.f32.mrf.mxu0
  %v771 = vadd.f32 %v742, %v770
  %772 = vmatmul.bf16.gmra.mxu0 %v263
  %v773 = vpop.f32.mrf.mxu0
  %v774 = vadd.f32 %v745, %v773
  %v775 = vpop.f32.mrf.mxu0
  %v776 = vadd.f32 %v747, %v775
  %777 = vmatmul.bf16.gmra.mxu0 %v270
  %v778 = vpop.f32.mrf.mxu0
  %v779 = vadd.f32 %v750, %v778
  %v780 = vpop.f32.mrf.mxu0
  %v781 = vadd.f32 %v752, %v780
  %782 = vdwg.mxu0
  %783 = vmatpush.bf16.msra.mxu0 0
  %784 = vmatpush.bf16.msra.mxu0 0
  %785 = vmatpush.bf16.msra.mxu0 0
  %786 = vmatpush.bf16.msra.mxu0 0
  %787 = vmatpush.bf16.msra.mxu0 0
  %788 = vmatpush.bf16.msra.mxu0 0
  %789 = vmatpush.bf16.msra.mxu0 %v545
  %790 = vmatpush.bf16.msra.mxu0 %v544
  %791 = vmatmul.bf16.gmra.mxu0 %v598
  %v792 = vpop.f32.mrf.mxu0
  %v793 = vadd.f32 %v764, %v792
  %v794 = vpop.f32.mrf.mxu0
  %v795 = vadd.f32 %v766, %v794
  %796 = vmatmul.bf16.gmra.mxu0 %v601
  %v797 = vpop.f32.mrf.mxu0
  %v798 = vadd.f32 %v769, %v797
  %v799 = vpop.f32.mrf.mxu0
  %v800 = vadd.f32 %v771, %v799
  %801 = vmatmul.bf16.gmra.mxu0 %v604
  %v802 = vpop.f32.mrf.mxu0
  %v803 = vadd.f32 %v774, %v802
  %v804 = vpop.f32.mrf.mxu0
  %v805 = vadd.f32 %v776, %v804
  %806 = vmatmul.bf16.gmra.mxu0 %v607
  %v807 = vpop.f32.mrf.mxu0
  %v808 = vadd.f32 %v779, %v807
  %v809 = vpop.f32.mrf.mxu0
  %v810 = vadd.f32 %v781, %v809
  %811 = vdwg.mxu0
  %v812 = vld [vmem:[%s2] sm:$0xf]
  %v813 = vld [vmem:[%s2 + $0x4] sm:$0xf]
  %v814 = vld [vmem:[%s2 + $0x8] sm:$0xf]
  %v815 = vld [vmem:[%s2 + $0xc] sm:$0xf]
  %v816 = vld [vmem:[%s2 + $0x10] sm:$0xf]
  %v817 = vld [vmem:[%s2 + $0x14] sm:$0xf]
  %v818 = vld [vmem:[%s2 + $0x18] sm:$0xf]
  %v819 = vld [vmem:[%s2 + $0x1c] sm:$0xf]
  %v820 = vld [vmem:[%s2 + $0x20] sm:$0xf]
  %v821 = vld [vmem:[%s2 + $0x24] sm:$0xf]
  %v822 = vld [vmem:[%s2 + $0x28] sm:$0xf]
  %v823 = vld [vmem:[%s2 + $0x2c] sm:$0xf]
  %v824 = vld [vmem:[%s2 + $0x30] sm:$0xf]
  %v825 = vld [vmem:[%s2 + $0x34] sm:$0xf]
  %v826 = vld [vmem:[%s2 + $0x38] sm:$0xf]
  %v827 = vld [vmem:[%s2 + $0x3c] sm:$0xf]
  %v828 = vld [vmem:[%s2 + $0x40] sm:$0xf]
  %v829 = vld [vmem:[%s2 + $0x44] sm:$0xf]
  %v830 = vld [vmem:[%s2 + $0x48] sm:$0xf]
  %v831 = vld [vmem:[%s2 + $0x4c] sm:$0xf]
  %v832 = vld [vmem:[%s2 + $0x50] sm:$0xf]
  %v833 = vld [vmem:[%s2 + $0x54] sm:$0xf]
  %v834 = vld [vmem:[%s2 + $0x58] sm:$0xf]
  %v835 = vld [vmem:[%s2 + $0x5c] sm:$0xf]
  %v836 = vld [vmem:[%s2 + $0x60] sm:$0xf]
  %v837 = vld [vmem:[%s2 + $0x64] sm:$0xf]
  %v838 = vld [vmem:[%s2 + $0x68] sm:$0xf]
  %v839 = vld [vmem:[%s2 + $0x6c] sm:$0xf]
  %v840 = vld [vmem:[%s2 + $0x70] sm:$0xf]
  %v841 = vld [vmem:[%s2 + $0x74] sm:$0xf]
  %v842 = vld [vmem:[%s2 + $0x78] sm:$0xf]
  %v843 = vld [vmem:[%s2 + $0x7c] sm:$0xf]
  %v844 = vld [vmem:[%s2 + $0x80] sm:$0xf]
  %v845 = vld [vmem:[%s2 + $0x84] sm:$0xf]
  %v846 = vld [vmem:[%s2 + $0x88] sm:$0xf]
  %v847 = vld [vmem:[%s2 + $0x8c] sm:$0xf]
  %v848 = vld [vmem:[%s2 + $0x90] sm:$0xf]
  %v849 = vld [vmem:[%s2 + $0x94] sm:$0xf]
  %v850 = vld [vmem:[%s2 + $0x98] sm:$0xf]
  %v851 = vld [vmem:[%s2 + $0x9c] sm:$0xf]
  %v852 = vld [vmem:[%s2 + $0xa0] sm:$0xf]
  %v853 = vld [vmem:[%s2 + $0xa4] sm:$0xf]
  %v854 = vld [vmem:[%s2 + $0xa8] sm:$0xf]
  %v855 = vld [vmem:[%s2 + $0xac] sm:$0xf]
  %v856 = vld [vmem:[%s2 + $0xb0] sm:$0xf]
  %v857 = vld [vmem:[%s2 + $0xb4] sm:$0xf]
  %v858 = vld [vmem:[%s2 + $0xb8] sm:$0xf]
  %v859 = vld [vmem:[%s2 + $0xbc] sm:$0xf]
  %v860 = vld [vmem:[%s2 + $0xc0] sm:$0xf]
  %v861 = vld [vmem:[%s2 + $0xc4] sm:$0xf]
  %v862 = vld [vmem:[%s2 + $0xc8] sm:$0xf]
  %v863 = vld [vmem:[%s2 + $0xcc] sm:$0xf]
  %v864 = vld [vmem:[%s2 + $0xd0] sm:$0xf]
  %v865 = vld [vmem:[%s2 + $0xd4] sm:$0xf]
  %v866 = vld [vmem:[%s2 + $0xd8] sm:$0xf]
  %v867 = vld [vmem:[%s2 + $0xdc] sm:$0xf]
  %v868 = vld [vmem:[%s2 + $0xe0] sm:$0xf]
  %v869 = vld [vmem:[%s2 + $0xe4] sm:$0xf]
  %v870 = vld [vmem:[%s2 + $0xe8] sm:$0xf]
  %v871 = vld [vmem:[%s2 + $0xec] sm:$0xf]
  %v872 = vld [vmem:[%s2 + $0xf0] sm:$0xf]
  %v873 = vld [vmem:[%s2 + $0xf4] sm:$0xf]
  %v874 = vld [vmem:[%s2 + $0xf8] sm:$0xf]
  %v875 = vld [vmem:[%s2 + $0xfc] sm:$0xf]
  %v876 = vld [vmem:[%s2 + $0x100] sm:$0xf]
  %v877 = vld [vmem:[%s2 + $0x104] sm:$0xf]
  %v878 = vld [vmem:[%s2 + $0x108] sm:$0xf]
  %v879 = vld [vmem:[%s2 + $0x10c] sm:$0xf]
  %v880 = vld [vmem:[%s2 + $0x110] sm:$0xf]
  %v881 = vld [vmem:[%s2 + $0x114] sm:$0xf]
  %v882 = vld [vmem:[%s2 + $0x118] sm:$0xf]
  %v883 = vld [vmem:[%s2 + $0x11c] sm:$0xf]
  %v884 = vld [vmem:[%s2 + $0x120] sm:$0xf]
  %v885 = vld [vmem:[%s2 + $0x124] sm:$0xf]
  %v886 = vld [vmem:[%s2 + $0x128] sm:$0xf]
  %v887 = vld [vmem:[%s2 + $0x12c] sm:$0xf]
  %v888 = vld [vmem:[%s2 + $0x130] sm:$0xf]
  %v889 = vld [vmem:[%s2 + $0x134] sm:$0xf]
  %v890 = vld [vmem:[%s2 + $0x138] sm:$0xf]
  %v891 = vld [vmem:[%s2 + $0x13c] sm:$0xf]
  %v892 = vld [vmem:[%s2 + $0x140] sm:$0xf]
  %v893 = vld [vmem:[%s2 + $0x144] sm:$0xf]
  %v894 = vld [vmem:[%s2 + $0x148] sm:$0xf]
  %v895 = vld [vmem:[%s2 + $0x14c] sm:$0xf]
  %v896 = vld [vmem:[%s2 + $0x150] sm:$0xf]
  %v897 = vld [vmem:[%s2 + $0x154] sm:$0xf]
  %v898 = vld [vmem:[%s2 + $0x158] sm:$0xf]
  %v899 = vld [vmem:[%s2 + $0x15c] sm:$0xf]
  %v900 = vld [vmem:[%s2 + $0x160] sm:$0xf]
  %v901 = vld [vmem:[%s2 + $0x164] sm:$0xf]
  %v902 = vld [vmem:[%s2 + $0x168] sm:$0xf]
  %v903 = vld [vmem:[%s2 + $0x16c] sm:$0xf]
  %v904 = vld [vmem:[%s2 + $0x170] sm:$0xf]
  %v905 = vld [vmem:[%s2 + $0x174] sm:$0xf]
  %v906 = vld [vmem:[%s2 + $0x178] sm:$0xf]
  %v907 = vld [vmem:[%s2 + $0x17c] sm:$0xf]
  %v908 = vld [vmem:[%s2 + $0x180] sm:$0xf]
  %v909 = vld [vmem:[%s2 + $0x184] sm:$0xf]
  %v910 = vld [vmem:[%s2 + $0x188] sm:$0xf]
  %v911 = vld [vmem:[%s2 + $0x18c] sm:$0xf]
  %v1012 = vunpack.c.l.b16 %v812
  %v1013 = vunpack.c.l.b16 %v813
  %v1014 = vunpack.c.l.b16 %v814
  %v1015 = vunpack.c.l.b16 %v815
  %v1016 = vunpack.c.l.b16 %v816
  %v1017 = vunpack.c.l.b16 %v817
  %v1018 = vunpack.c.l.b16 %v818
  %v1019 = vunpack.c.l.b16 %v819
  %v1020 = vunpack.c.l.b16 %v820
  %v1021 = vunpack.c.l.b16 %v821
  %v1022 = vunpack.c.l.b16 %v822
  %v1023 = vunpack.c.l.b16 %v823
  %v1024 = vunpack.c.l.b16 %v824
  %v1025 = vunpack.c.l.b16 %v825
  %v1026 = vunpack.c.l.b16 %v826
  %v1027 = vunpack.c.l.b16 %v827
  %v1028 = vunpack.c.l.b16 %v828
  %v1029 = vunpack.c.l.b16 %v829
  %v1030 = vunpack.c.l.b16 %v830
  %v1031 = vunpack.c.l.b16 %v831
  %v1032 = vunpack.c.l.b16 %v832
  %v1033 = vunpack.c.l.b16 %v833
  %v1034 = vunpack.c.l.b16 %v834
  %v1035 = vunpack.c.l.b16 %v835
  %v1036 = vunpack.c.l.b16 %v836
  %v1037 = vunpack.c.l.b16 %v837
  %v1038 = vunpack.c.l.b16 %v838
  %v1039 = vunpack.c.l.b16 %v839
  %v1040 = vunpack.c.l.b16 %v840
  %v1041 = vunpack.c.l.b16 %v841
  %v1042 = vunpack.c.l.b16 %v842
  %v1043 = vunpack.c.l.b16 %v843
  %v1044 = vunpack.c.l.b16 %v844
  %v1045 = vunpack.c.l.b16 %v845
  %v1046 = vunpack.c.l.b16 %v846
  %v1047 = vunpack.c.l.b16 %v847
  %v1048 = vunpack.c.l.b16 %v848
  %v1049 = vunpack.c.l.b16 %v849
  %v1050 = vunpack.c.l.b16 %v850
  %v1051 = vunpack.c.l.b16 %v851
  %v1052 = vunpack.c.l.b16 %v852
  %v1053 = vunpack.c.l.b16 %v853
  %v1054 = vunpack.c.l.b16 %v854
  %v1055 = vunpack.c.l.b16 %v855
  %v1056 = vunpack.c.l.b16 %v856
  %v1057 = vunpack.c.l.b16 %v857
  %v1058 = vunpack.c.l.b16 %v858
  %v1059 = vunpack.c.l.b16 %v859
  %v1060 = vunpack.c.l.b16 %v860
  %v1061 = vunpack.c.l.b16 %v861
  %v1062 = vunpack.c.l.b16 %v862
  %v1063 = vunpack.c.l.b16 %v863
  %v1064 = vunpack.c.l.b16 %v864
  %v1065 = vunpack.c.l.b16 %v865
  %v1066 = vunpack.c.l.b16 %v866
  %v1067 = vunpack.c.l.b16 %v867
  %v1068 = vunpack.c.l.b16 %v868
  %v1069 = vunpack.c.l.b16 %v869
  %v1070 = vunpack.c.l.b16 %v870
  %v1071 = vunpack.c.l.b16 %v871
  %v1072 = vunpack.c.l.b16 %v872
  %v1073 = vunpack.c.l.b16 %v873
  %v1074 = vunpack.c.l.b16 %v874
  %v1075 = vunpack.c.l.b16 %v875
  %v1076 = vunpack.c.l.b16 %v876
  %v1077 = vunpack.c.l.b16 %v877
  %v1078 = vunpack.c.l.b16 %v878
  %v1079 = vunpack.c.l.b16 %v879
  %v1080 = vunpack.c.l.b16 %v880
  %v1081 = vunpack.c.l.b16 %v881
  %v1082 = vunpack.c.l.b16 %v882
  %v1083 = vunpack.c.l.b16 %v883
  %v1084 = vunpack.c.l.b16 %v884
  %v1085 = vunpack.c.l.b16 %v885
  %v1086 = vunpack.c.l.b16 %v886
  %v1087 = vunpack.c.l.b16 %v887
  %v1088 = vunpack.c.l.b16 %v888
  %v1089 = vunpack.c.l.b16 %v889
  %v1090 = vunpack.c.l.b16 %v890
  %v1091 = vunpack.c.l.b16 %v891
  %v1092 = vunpack.c.l.b16 %v892
  %v1093 = vunpack.c.l.b16 %v893
  %v1094 = vunpack.c.l.b16 %v894
  %v1095 = vunpack.c.l.b16 %v895
  %v1096 = vunpack.c.l.b16 %v896
  %v1097 = vunpack.c.l.b16 %v897
  %v1098 = vunpack.c.l.b16 %v898
  %v1099 = vunpack.c.l.b16 %v899
  %v1100 = vunpack.c.l.b16 %v900
  %v1101 = vunpack.c.l.b16 %v901
  %v1102 = vunpack.c.l.b16 %v902
  %v1103 = vunpack.c.l.b16 %v903
  %v1104 = vunpack.c.l.b16 %v904
  %v1105 = vunpack.c.l.b16 %v905
  %v1106 = vunpack.c.l.b16 %v906
  %v1107 = vunpack.c.l.b16 %v907
  %v1108 = vunpack.c.l.b16 %v908
  %v1109 = vunpack.c.l.b16 %v909
  %v1110 = vunpack.c.l.b16 %v910
  %v1111 = vunpack.c.l.b16 %v911
  %v1112 = vpack.c.b16 %v1013, %v1012
  %v1113 = vpack.c.b16 %v1015, %v1014
  %v1114 = vpack.c.b16 %v1017, %v1016
  %v1115 = vpack.c.b16 %v1019, %v1018
  %v1116 = vpack.c.b16 %v1021, %v1020
  %v1117 = vpack.c.b16 %v1023, %v1022
  %v1118 = vpack.c.b16 %v1025, %v1024
  %v1119 = vpack.c.b16 %v1027, %v1026
  %v1120 = vpack.c.b16 %v1029, %v1028
  %v1121 = vpack.c.b16 %v1031, %v1030
  %v1122 = vpack.c.b16 %v1033, %v1032
  %v1123 = vpack.c.b16 %v1035, %v1034
  %v1124 = vpack.c.b16 %v1037, %v1036
  %v1125 = vpack.c.b16 %v1039, %v1038
  %v1126 = vpack.c.b16 %v1041, %v1040
  %v1127 = vpack.c.b16 %v1043, %v1042
  %v1128 = vpack.c.b16 %v1045, %v1044
  %v1129 = vpack.c.b16 %v1047, %v1046
  %v1130 = vpack.c.b16 %v1049, %v1048
  %v1131 = vpack.c.b16 %v1051, %v1050
  %v1132 = vpack.c.b16 %v1053, %v1052
  %v1133 = vpack.c.b16 %v1055, %v1054
  %v1134 = vpack.c.b16 %v1057, %v1056
  %v1135 = vpack.c.b16 %v1059, %v1058
  %v1136 = vpack.c.b16 %v1061, %v1060
  %v1137 = vpack.c.b16 %v1063, %v1062
  %v1138 = vpack.c.b16 %v1065, %v1064
  %v1139 = vpack.c.b16 %v1067, %v1066
  %v1140 = vpack.c.b16 %v1069, %v1068
  %v1141 = vpack.c.b16 %v1071, %v1070
  %v1142 = vpack.c.b16 %v1073, %v1072
  %v1143 = vpack.c.b16 %v1075, %v1074
  %v1144 = vpack.c.b16 %v1077, %v1076
  %v1145 = vpack.c.b16 %v1079, %v1078
  %v1146 = vpack.c.b16 %v1081, %v1080
  %v1147 = vpack.c.b16 %v1083, %v1082
  %v1148 = vpack.c.b16 %v1085, %v1084
  %v1149 = vpack.c.b16 %v1087, %v1086
  %v1150 = vpack.c.b16 %v1089, %v1088
  %v1151 = vpack.c.b16 %v1091, %v1090
  %v1152 = vpack.c.b16 %v1093, %v1092
  %v1153 = vpack.c.b16 %v1095, %v1094
  %v1154 = vpack.c.b16 %v1097, %v1096
  %v1155 = vpack.c.b16 %v1099, %v1098
  %v1156 = vpack.c.b16 %v1101, %v1100
  %v1157 = vpack.c.b16 %v1103, %v1102
  %v1158 = vpack.c.b16 %v1105, %v1104
  %v1159 = vpack.c.b16 %v1107, %v1106
  %v1160 = vpack.c.b16 %v1109, %v1108
  %v1161 = vpack.c.b16 %v1111, %v1110
  %1212 = vmatpush.bf16.msra.mxu0 %v1119
  %1213 = vmatpush.bf16.msra.mxu0 %v1118
  %1214 = vmatpush.bf16.msra.mxu0 %v1117
  %1215 = vmatpush.bf16.msra.mxu0 %v1116
  %1216 = vmatpush.bf16.msra.mxu0 %v1115
  %1217 = vmatpush.bf16.msra.mxu0 %v1114
  %1218 = vmatpush.bf16.msra.mxu0 %v1113
  %1219 = vmatpush.bf16.msra.mxu0 %v1112
  %1220 = vmatmul.bf16.gmra.mxu0 %v244
  %v1221 = vpop.f32.mrf.mxu0
  %v1222 = vadd.f32 0.0, %v1221
  %v1223 = vpop.f32.mrf.mxu0
  %v1224 = vadd.f32 0.0, %v1223
  %1225 = vmatmul.bf16.gmra.mxu0 %v251
  %v1226 = vpop.f32.mrf.mxu0
  %v1227 = vadd.f32 0.0, %v1226
  %v1228 = vpop.f32.mrf.mxu0
  %v1229 = vadd.f32 0.0, %v1228
  %1230 = vmatmul.bf16.gmra.mxu0 %v258
  %v1231 = vpop.f32.mrf.mxu0
  %v1232 = vadd.f32 0.0, %v1231
  %v1233 = vpop.f32.mrf.mxu0
  %v1234 = vadd.f32 0.0, %v1233
  %1235 = vmatmul.bf16.gmra.mxu0 %v265
  %v1236 = vpop.f32.mrf.mxu0
  %v1237 = vadd.f32 0.0, %v1236
  %v1238 = vpop.f32.mrf.mxu0
  %v1239 = vadd.f32 0.0, %v1238
  %1240 = vdwg.mxu0
  %1241 = vmatpush.bf16.msra.mxu0 %v1127
  %1242 = vmatpush.bf16.msra.mxu0 %v1126
  %1243 = vmatpush.bf16.msra.mxu0 %v1125
  %1244 = vmatpush.bf16.msra.mxu0 %v1124
  %1245 = vmatpush.bf16.msra.mxu0 %v1123
  %1246 = vmatpush.bf16.msra.mxu0 %v1122
  %1247 = vmatpush.bf16.msra.mxu0 %v1121
  %1248 = vmatpush.bf16.msra.mxu0 %v1120
  %1249 = vmatmul.bf16.gmra.mxu0 %v245
  %v1250 = vpop.f32.mrf.mxu0
  %v1251 = vadd.f32 %v1222, %v1250
  %v1252 = vpop.f32.mrf.mxu0
  %v1253 = vadd.f32 %v1224, %v1252
  %1254 = vmatmul.bf16.gmra.mxu0 %v252
  %v1255 = vpop.f32.mrf.mxu0
  %v1256 = vadd.f32 %v1227, %v1255
  %v1257 = vpop.f32.mrf.mxu0
  %v1258 = vadd.f32 %v1229, %v1257
  %1259 = vmatmul.bf16.gmra.mxu0 %v259
  %v1260 = vpop.f32.mrf.mxu0
  %v1261 = vadd.f32 %v1232, %v1260
  %v1262 = vpop.f32.mrf.mxu0
  %v1263 = vadd.f32 %v1234, %v1262
  %1264 = vmatmul.bf16.gmra.mxu0 %v266
  %v1265 = vpop.f32.mrf.mxu0
  %v1266 = vadd.f32 %v1237, %v1265
  %v1267 = vpop.f32.mrf.mxu0
  %v1268 = vadd.f32 %v1239, %v1267
  %1269 = vdwg.mxu0
  %1270 = vmatpush.bf16.msra.mxu0 %v1135
  %1271 = vmatpush.bf16.msra.mxu0 %v1134
  %1272 = vmatpush.bf16.msra.mxu0 %v1133
  %1273 = vmatpush.bf16.msra.mxu0 %v1132
  %1274 = vmatpush.bf16.msra.mxu0 %v1131
  %1275 = vmatpush.bf16.msra.mxu0 %v1130
  %1276 = vmatpush.bf16.msra.mxu0 %v1129
  %1277 = vmatpush.bf16.msra.mxu0 %v1128
  %1278 = vmatmul.bf16.gmra.mxu0 %v246
  %v1279 = vpop.f32.mrf.mxu0
  %v1280 = vadd.f32 %v1251, %v1279
  %v1281 = vpop.f32.mrf.mxu0
  %v1282 = vadd.f32 %v1253, %v1281
  %1283 = vmatmul.bf16.gmra.mxu0 %v253
  %v1284 = vpop.f32.mrf.mxu0
  %v1285 = vadd.f32 %v1256, %v1284
  %v1286 = vpop.f32.mrf.mxu0
  %v1287 = vadd.f32 %v1258, %v1286
  %1288 = vmatmul.bf16.gmra.mxu0 %v260
  %v1289 = vpop.f32.mrf.mxu0
  %v1290 = vadd.f32 %v1261, %v1289
  %v1291 = vpop.f32.mrf.mxu0
  %v1292 = vadd.f32 %v1263, %v1291
  %1293 = vmatmul.bf16.gmra.mxu0 %v267
  %v1294 = vpop.f32.mrf.mxu0
  %v1295 = vadd.f32 %v1266, %v1294
  %v1296 = vpop.f32.mrf.mxu0
  %v1297 = vadd.f32 %v1268, %v1296
  %1298 = vdwg.mxu0
  %1299 = vmatpush.bf16.msra.mxu0 %v1143
  %1300 = vmatpush.bf16.msra.mxu0 %v1142
  %1301 = vmatpush.bf16.msra.mxu0 %v1141
  %1302 = vmatpush.bf16.msra.mxu0 %v1140
  %1303 = vmatpush.bf16.msra.mxu0 %v1139
  %1304 = vmatpush.bf16.msra.mxu0 %v1138
  %1305 = vmatpush.bf16.msra.mxu0 %v1137
  %1306 = vmatpush.bf16.msra.mxu0 %v1136
  %1307 = vmatmul.bf16.gmra.mxu0 %v247
  %v1308 = vpop.f32.mrf.mxu0
  %v1309 = vadd.f32 %v1280, %v1308
  %v1310 = vpop.f32.mrf.mxu0
  %v1311 = vadd.f32 %v1282, %v1310
  %1312 = vmatmul.bf16.gmra.mxu0 %v254
  %v1313 = vpop.f32.mrf.mxu0
  %v1314 = vadd.f32 %v1285, %v1313
  %v1315 = vpop.f32.mrf.mxu0
  %v1316 = vadd.f32 %v1287, %v1315
  %1317 = vmatmul.bf16.gmra.mxu0 %v261
  %v1318 = vpop.f32.mrf.mxu0
  %v1319 = vadd.f32 %v1290, %v1318
  %v1320 = vpop.f32.mrf.mxu0
  %v1321 = vadd.f32 %v1292, %v1320
  %1322 = vmatmul.bf16.gmra.mxu0 %v268
  %v1323 = vpop.f32.mrf.mxu0
  %v1324 = vadd.f32 %v1295, %v1323
  %v1325 = vpop.f32.mrf.mxu0
  %v1326 = vadd.f32 %v1297, %v1325
  %1327 = vdwg.mxu0
  %1328 = vmatpush.bf16.msra.mxu0 %v1151
  %1329 = vmatpush.bf16.msra.mxu0 %v1150
  %1330 = vmatpush.bf16.msra.mxu0 %v1149
  %1331 = vmatpush.bf16.msra.mxu0 %v1148
  %1332 = vmatpush.bf16.msra.mxu0 %v1147
  %1333 = vmatpush.bf16.msra.mxu0 %v1146
  %1334 = vmatpush.bf16.msra.mxu0 %v1145
  %1335 = vmatpush.bf16.msra.mxu0 %v1144
  %1336 = vmatmul.bf16.gmra.mxu0 %v248
  %v1337 = vpop.f32.mrf.mxu0
  %v1338 = vadd.f32 %v1309, %v1337
  %v1339 = vpop.f32.mrf.mxu0
  %v1340 = vadd.f32 %v1311, %v1339
  %1341 = vmatmul.bf16.gmra.mxu0 %v255
  %v1342 = vpop.f32.mrf.mxu0
  %v1343 = vadd.f32 %v1314, %v1342
  %v1344 = vpop.f32.mrf.mxu0
  %v1345 = vadd.f32 %v1316, %v1344
  %1346 = vmatmul.bf16.gmra.mxu0 %v262
  %v1347 = vpop.f32.mrf.mxu0
  %v1348 = vadd.f32 %v1319, %v1347
  %v1349 = vpop.f32.mrf.mxu0
  %v1350 = vadd.f32 %v1321, %v1349
  %1351 = vmatmul.bf16.gmra.mxu0 %v269
  %v1352 = vpop.f32.mrf.mxu0
  %v1353 = vadd.f32 %v1324, %v1352
  %v1354 = vpop.f32.mrf.mxu0
  %v1355 = vadd.f32 %v1326, %v1354
  %1356 = vdwg.mxu0
  %1357 = vmatpush.bf16.msra.mxu0 %v1159
  %1358 = vmatpush.bf16.msra.mxu0 %v1158
  %1359 = vmatpush.bf16.msra.mxu0 %v1157
  %1360 = vmatpush.bf16.msra.mxu0 %v1156
  %1361 = vmatpush.bf16.msra.mxu0 %v1155
  %1362 = vmatpush.bf16.msra.mxu0 %v1154
  %1363 = vmatpush.bf16.msra.mxu0 %v1153
  %1364 = vmatpush.bf16.msra.mxu0 %v1152
  %1365 = vmatmul.bf16.gmra.mxu0 %v249
  %v1366 = vpop.f32.mrf.mxu0
  %v1367 = vadd.f32 %v1338, %v1366
  %v1368 = vpop.f32.mrf.mxu0
  %v1369 = vadd.f32 %v1340, %v1368
  %1370 = vmatmul.bf16.gmra.mxu0 %v256
  %v1371 = vpop.f32.mrf.mxu0
  %v1372 = vadd.f32 %v1343, %v1371
  %v1373 = vpop.f32.mrf.mxu0
  %v1374 = vadd.f32 %v1345, %v1373
  %1375 = vmatmul.bf16.gmra.mxu0 %v263
  %v1376 = vpop.f32.mrf.mxu0
  %v1377 = vadd.f32 %v1348, %v1376
  %v1378 = vpop.f32.mrf.mxu0
  %v1379 = vadd.f32 %v1350, %v1378
  %1380 = vmatmul.bf16.gmra.mxu0 %v270
  %v1381 = vpop.f32.mrf.mxu0
  %v1382 = vadd.f32 %v1353, %v1381
  %v1383 = vpop.f32.mrf.mxu0
  %v1384 = vadd.f32 %v1355, %v1383
  %1385 = vdwg.mxu0
  %1386 = vmatpush.bf16.msra.mxu0 0
  %1387 = vmatpush.bf16.msra.mxu0 0
  %1388 = vmatpush.bf16.msra.mxu0 0
  %1389 = vmatpush.bf16.msra.mxu0 0
  %1390 = vmatpush.bf16.msra.mxu0 0
  %1391 = vmatpush.bf16.msra.mxu0 0
  %1392 = vmatpush.bf16.msra.mxu0 %v1161
  %1393 = vmatpush.bf16.msra.mxu0 %v1160
  %1394 = vmatmul.bf16.gmra.mxu0 %v598
  %v1395 = vpop.f32.mrf.mxu0
  %v1396 = vadd.f32 %v1367, %v1395
  %v1397 = vpop.f32.mrf.mxu0
  %v1398 = vadd.f32 %v1369, %v1397
  %1399 = vmatmul.bf16.gmra.mxu0 %v601
  %v1400 = vpop.f32.mrf.mxu0
  %v1401 = vadd.f32 %v1372, %v1400
  %v1402 = vpop.f32.mrf.mxu0
  %v1403 = vadd.f32 %v1374, %v1402
  %1404 = vmatmul.bf16.gmra.mxu0 %v604
  %v1405 = vpop.f32.mrf.mxu0
  %v1406 = vadd.f32 %v1377, %v1405
  %v1407 = vpop.f32.mrf.mxu0
  %v1408 = vadd.f32 %v1379, %v1407
  %1409 = vmatmul.bf16.gmra.mxu0 %v607
  %v1410 = vpop.f32.mrf.mxu0
  %v1411 = vadd.f32 %v1382, %v1410
  %v1412 = vpop.f32.mrf.mxu0
  %v1413 = vadd.f32 %v1384, %v1412
  %1414 = vdwg.mxu0
  %v1415 = vld [vmem:[%s3] sm:$0xf]
  %v1416 = vld [vmem:[%s3 + $0x4] sm:$0xf]
  %v1417 = vld [vmem:[%s3 + $0x8] sm:$0xf]
  %v1418 = vld [vmem:[%s3 + $0xc] sm:$0xf]
  %v1419 = vld [vmem:[%s3 + $0x10] sm:$0xf]
  %v1420 = vld [vmem:[%s3 + $0x14] sm:$0xf]
  %v1421 = vld [vmem:[%s3 + $0x18] sm:$0xf]
  %v1422 = vld [vmem:[%s3 + $0x1c] sm:$0xf]
  %v1423 = vld [vmem:[%s3 + $0x20] sm:$0xf]
  %v1424 = vld [vmem:[%s3 + $0x24] sm:$0xf]
  %v1425 = vld [vmem:[%s3 + $0x28] sm:$0xf]
  %v1426 = vld [vmem:[%s3 + $0x2c] sm:$0xf]
  %v1427 = vld [vmem:[%s3 + $0x30] sm:$0xf]
  %v1428 = vld [vmem:[%s3 + $0x34] sm:$0xf]
  %v1429 = vld [vmem:[%s3 + $0x38] sm:$0xf]
  %v1430 = vld [vmem:[%s3 + $0x3c] sm:$0xf]
  %v1431 = vld [vmem:[%s3 + $0x40] sm:$0xf]
  %v1432 = vld [vmem:[%s3 + $0x44] sm:$0xf]
  %v1433 = vld [vmem:[%s3 + $0x48] sm:$0xf]
  %v1434 = vld [vmem:[%s3 + $0x4c] sm:$0xf]
  %v1435 = vld [vmem:[%s3 + $0x50] sm:$0xf]
  %v1436 = vld [vmem:[%s3 + $0x54] sm:$0xf]
  %v1437 = vld [vmem:[%s3 + $0x58] sm:$0xf]
  %v1438 = vld [vmem:[%s3 + $0x5c] sm:$0xf]
  %v1439 = vld [vmem:[%s3 + $0x60] sm:$0xf]
  %v1440 = vld [vmem:[%s3 + $0x64] sm:$0xf]
  %v1441 = vld [vmem:[%s3 + $0x68] sm:$0xf]
  %v1442 = vld [vmem:[%s3 + $0x6c] sm:$0xf]
  %v1443 = vld [vmem:[%s3 + $0x70] sm:$0xf]
  %v1444 = vld [vmem:[%s3 + $0x74] sm:$0xf]
  %v1445 = vld [vmem:[%s3 + $0x78] sm:$0xf]
  %v1446 = vld [vmem:[%s3 + $0x7c] sm:$0xf]
  %v1447 = vld [vmem:[%s3 + $0x80] sm:$0xf]
  %v1448 = vld [vmem:[%s3 + $0x84] sm:$0xf]
  %v1449 = vld [vmem:[%s3 + $0x88] sm:$0xf]
  %v1450 = vld [vmem:[%s3 + $0x8c] sm:$0xf]
  %v1451 = vld [vmem:[%s3 + $0x90] sm:$0xf]
  %v1452 = vld [vmem:[%s3 + $0x94] sm:$0xf]
  %v1453 = vld [vmem:[%s3 + $0x98] sm:$0xf]
  %v1454 = vld [vmem:[%s3 + $0x9c] sm:$0xf]
  %v1455 = vld [vmem:[%s3 + $0xa0] sm:$0xf]
  %v1456 = vld [vmem:[%s3 + $0xa4] sm:$0xf]
  %v1457 = vld [vmem:[%s3 + $0xa8] sm:$0xf]
  %v1458 = vld [vmem:[%s3 + $0xac] sm:$0xf]
  %v1459 = vld [vmem:[%s3 + $0xb0] sm:$0xf]
  %v1460 = vld [vmem:[%s3 + $0xb4] sm:$0xf]
  %v1461 = vld [vmem:[%s3 + $0xb8] sm:$0xf]
  %v1462 = vld [vmem:[%s3 + $0xbc] sm:$0xf]
  %v1463 = vld [vmem:[%s3 + $0xc0] sm:$0xf]
  %v1464 = vld [vmem:[%s3 + $0xc4] sm:$0xf]
  %v1465 = vld [vmem:[%s3 + $0xc8] sm:$0xf]
  %v1466 = vld [vmem:[%s3 + $0xcc] sm:$0xf]
  %v1467 = vld [vmem:[%s3 + $0xd0] sm:$0xf]
  %v1468 = vld [vmem:[%s3 + $0xd4] sm:$0xf]
  %v1469 = vld [vmem:[%s3 + $0xd8] sm:$0xf]
  %v1470 = vld [vmem:[%s3 + $0xdc] sm:$0xf]
  %v1471 = vld [vmem:[%s3 + $0xe0] sm:$0xf]
  %v1472 = vld [vmem:[%s3 + $0xe4] sm:$0xf]
  %v1473 = vld [vmem:[%s3 + $0xe8] sm:$0xf]
  %v1474 = vld [vmem:[%s3 + $0xec] sm:$0xf]
  %v1475 = vld [vmem:[%s3 + $0xf0] sm:$0xf]
  %v1476 = vld [vmem:[%s3 + $0xf4] sm:$0xf]
  %v1477 = vld [vmem:[%s3 + $0xf8] sm:$0xf]
  %v1478 = vld [vmem:[%s3 + $0xfc] sm:$0xf]
  %v1479 = vld [vmem:[%s3 + $0x100] sm:$0xf]
  %v1480 = vld [vmem:[%s3 + $0x104] sm:$0xf]
  %v1481 = vld [vmem:[%s3 + $0x108] sm:$0xf]
  %v1482 = vld [vmem:[%s3 + $0x10c] sm:$0xf]
  %v1483 = vld [vmem:[%s3 + $0x110] sm:$0xf]
  %v1484 = vld [vmem:[%s3 + $0x114] sm:$0xf]
  %v1485 = vld [vmem:[%s3 + $0x118] sm:$0xf]
  %v1486 = vld [vmem:[%s3 + $0x11c] sm:$0xf]
  %v1487 = vld [vmem:[%s3 + $0x120] sm:$0xf]
  %v1488 = vld [vmem:[%s3 + $0x124] sm:$0xf]
  %v1489 = vld [vmem:[%s3 + $0x128] sm:$0xf]
  %v1490 = vld [vmem:[%s3 + $0x12c] sm:$0xf]
  %v1491 = vld [vmem:[%s3 + $0x130] sm:$0xf]
  %v1492 = vld [vmem:[%s3 + $0x134] sm:$0xf]
  %v1493 = vld [vmem:[%s3 + $0x138] sm:$0xf]
  %v1494 = vld [vmem:[%s3 + $0x13c] sm:$0xf]
  %v1495 = vld [vmem:[%s3 + $0x140] sm:$0xf]
  %v1496 = vld [vmem:[%s3 + $0x144] sm:$0xf]
  %v1497 = vld [vmem:[%s3 + $0x148] sm:$0xf]
  %v1498 = vld [vmem:[%s3 + $0x14c] sm:$0xf]
  %v1499 = vld [vmem:[%s3 + $0x150] sm:$0xf]
  %v1500 = vld [vmem:[%s3 + $0x154] sm:$0xf]
  %v1501 = vld [vmem:[%s3 + $0x158] sm:$0xf]
  %v1502 = vld [vmem:[%s3 + $0x15c] sm:$0xf]
  %v1503 = vld [vmem:[%s3 + $0x160] sm:$0xf]
  %v1504 = vld [vmem:[%s3 + $0x164] sm:$0xf]
  %v1505 = vld [vmem:[%s3 + $0x168] sm:$0xf]
  %v1506 = vld [vmem:[%s3 + $0x16c] sm:$0xf]
  %v1507 = vld [vmem:[%s3 + $0x170] sm:$0xf]
  %v1508 = vld [vmem:[%s3 + $0x174] sm:$0xf]
  %v1509 = vld [vmem:[%s3 + $0x178] sm:$0xf]
  %v1510 = vld [vmem:[%s3 + $0x17c] sm:$0xf]
  %v1511 = vld [vmem:[%s3 + $0x180] sm:$0xf]
  %v1512 = vld [vmem:[%s3 + $0x184] sm:$0xf]
  %v1513 = vld [vmem:[%s3 + $0x188] sm:$0xf]
  %v1514 = vld [vmem:[%s3 + $0x18c] sm:$0xf]
  %v1615 = vunpack.c.l.b16 %v1415
  %v1616 = vunpack.c.l.b16 %v1416
  %v1617 = vunpack.c.l.b16 %v1417
  %v1618 = vunpack.c.l.b16 %v1418
  %v1619 = vunpack.c.l.b16 %v1419
  %v1620 = vunpack.c.l.b16 %v1420
  %v1621 = vunpack.c.l.b16 %v1421
  %v1622 = vunpack.c.l.b16 %v1422
  %v1623 = vunpack.c.l.b16 %v1423
  %v1624 = vunpack.c.l.b16 %v1424
  %v1625 = vunpack.c.l.b16 %v1425
  %v1626 = vunpack.c.l.b16 %v1426
  %v1627 = vunpack.c.l.b16 %v1427
  %v1628 = vunpack.c.l.b16 %v1428
  %v1629 = vunpack.c.l.b16 %v1429
  %v1630 = vunpack.c.l.b16 %v1430
  %v1631 = vunpack.c.l.b16 %v1431
  %v1632 = vunpack.c.l.b16 %v1432
  %v1633 = vunpack.c.l.b16 %v1433
  %v1634 = vunpack.c.l.b16 %v1434
  %v1635 = vunpack.c.l.b16 %v1435
  %v1636 = vunpack.c.l.b16 %v1436
  %v1637 = vunpack.c.l.b16 %v1437
  %v1638 = vunpack.c.l.b16 %v1438
  %v1639 = vunpack.c.l.b16 %v1439
  %v1640 = vunpack.c.l.b16 %v1440
  %v1641 = vunpack.c.l.b16 %v1441
  %v1642 = vunpack.c.l.b16 %v1442
  %v1643 = vunpack.c.l.b16 %v1443
  %v1644 = vunpack.c.l.b16 %v1444
  %v1645 = vunpack.c.l.b16 %v1445
  %v1646 = vunpack.c.l.b16 %v1446
  %v1647 = vunpack.c.l.b16 %v1447
  %v1648 = vunpack.c.l.b16 %v1448
  %v1649 = vunpack.c.l.b16 %v1449
  %v1650 = vunpack.c.l.b16 %v1450
  %v1651 = vunpack.c.l.b16 %v1451
  %v1652 = vunpack.c.l.b16 %v1452
  %v1653 = vunpack.c.l.b16 %v1453
  %v1654 = vunpack.c.l.b16 %v1454
  %v1655 = vunpack.c.l.b16 %v1455
  %v1656 = vunpack.c.l.b16 %v1456
  %v1657 = vunpack.c.l.b16 %v1457
  %v1658 = vunpack.c.l.b16 %v1458
  %v1659 = vunpack.c.l.b16 %v1459
  %v1660 = vunpack.c.l.b16 %v1460
  %v1661 = vunpack.c.l.b16 %v1461
  %v1662 = vunpack.c.l.b16 %v1462
  %v1663 = vunpack.c.l.b16 %v1463
  %v1664 = vunpack.c.l.b16 %v1464
  %v1665 = vunpack.c.l.b16 %v1465
  %v1666 = vunpack.c.l.b16 %v1466
  %v1667 = vunpack.c.l.b16 %v1467
  %v1668 = vunpack.c.l.b16 %v1468
  %v1669 = vunpack.c.l.b16 %v1469
  %v1670 = vunpack.c.l.b16 %v1470
  %v1671 = vunpack.c.l.b16 %v1471
  %v1672 = vunpack.c.l.b16 %v1472
  %v1673 = vunpack.c.l.b16 %v1473
  %v1674 = vunpack.c.l.b16 %v1474
  %v1675 = vunpack.c.l.b16 %v1475
  %v1676 = vunpack.c.l.b16 %v1476
  %v1677 = vunpack.c.l.b16 %v1477
  %v1678 = vunpack.c.l.b16 %v1478
  %v1679 = vunpack.c.l.b16 %v1479
  %v1680 = vunpack.c.l.b16 %v1480
  %v1681 = vunpack.c.l.b16 %v1481
  %v1682 = vunpack.c.l.b16 %v1482
  %v1683 = vunpack.c.l.b16 %v1483
  %v1684 = vunpack.c.l.b16 %v1484
  %v1685 = vunpack.c.l.b16 %v1485
  %v1686 = vunpack.c.l.b16 %v1486
  %v1687 = vunpack.c.l.b16 %v1487
  %v1688 = vunpack.c.l.b16 %v1488
  %v1689 = vunpack.c.l.b16 %v1489
  %v1690 = vunpack.c.l.b16 %v1490
  %v1691 = vunpack.c.l.b16 %v1491
  %v1692 = vunpack.c.l.b16 %v1492
  %v1693 = vunpack.c.l.b16 %v1493
  %v1694 = vunpack.c.l.b16 %v1494
  %v1695 = vunpack.c.l.b16 %v1495
  %v1696 = vunpack.c.l.b16 %v1496
  %v1697 = vunpack.c.l.b16 %v1497
  %v1698 = vunpack.c.l.b16 %v1498
  %v1699 = vunpack.c.l.b16 %v1499
  %v1700 = vunpack.c.l.b16 %v1500
  %v1701 = vunpack.c.l.b16 %v1501
  %v1702 = vunpack.c.l.b16 %v1502
  %v1703 = vunpack.c.l.b16 %v1503
  %v1704 = vunpack.c.l.b16 %v1504
  %v1705 = vunpack.c.l.b16 %v1505
  %v1706 = vunpack.c.l.b16 %v1506
  %v1707 = vunpack.c.l.b16 %v1507
  %v1708 = vunpack.c.l.b16 %v1508
  %v1709 = vunpack.c.l.b16 %v1509
  %v1710 = vunpack.c.l.b16 %v1510
  %v1711 = vunpack.c.l.b16 %v1511
  %v1712 = vunpack.c.l.b16 %v1512
  %v1713 = vunpack.c.l.b16 %v1513
  %v1714 = vunpack.c.l.b16 %v1514
  %v1715 = vpack.c.b16 %v1616, %v1615
  %v1716 = vpack.c.b16 %v1618, %v1617
  %v1717 = vpack.c.b16 %v1620, %v1619
  %v1718 = vpack.c.b16 %v1622, %v1621
  %v1719 = vpack.c.b16 %v1624, %v1623
  %v1720 = vpack.c.b16 %v1626, %v1625
  %v1721 = vpack.c.b16 %v1628, %v1627
  %v1722 = vpack.c.b16 %v1630, %v1629
  %v1723 = vpack.c.b16 %v1632, %v1631
  %v1724 = vpack.c.b16 %v1634, %v1633
  %v1725 = vpack.c.b16 %v1636, %v1635
  %v1726 = vpack.c.b16 %v1638, %v1637
  %v1727 = vpack.c.b16 %v1640, %v1639
  %v1728 = vpack.c.b16 %v1642, %v1641
  %v1729 = vpack.c.b16 %v1644, %v1643
  %v1730 = vpack.c.b16 %v1646, %v1645
  %v1731 = vpack.c.b16 %v1648, %v1647
  %v1732 = vpack.c.b16 %v1650, %v1649
  %v1733 = vpack.c.b16 %v1652, %v1651
  %v1734 = vpack.c.b16 %v1654, %v1653
  %v1735 = vpack.c.b16 %v1656, %v1655
  %v1736 = vpack.c.b16 %v1658, %v1657
  %v1737 = vpack.c.b16 %v1660, %v1659
  %v1738 = vpack.c.b16 %v1662, %v1661
  %v1739 = vpack.c.b16 %v1664, %v1663
  %v1740 = vpack.c.b16 %v1666, %v1665
  %v1741 = vpack.c.b16 %v1668, %v1667
  %v1742 = vpack.c.b16 %v1670, %v1669
  %v1743 = vpack.c.b16 %v1672, %v1671
  %v1744 = vpack.c.b16 %v1674, %v1673
  %v1745 = vpack.c.b16 %v1676, %v1675
  %v1746 = vpack.c.b16 %v1678, %v1677
  %v1747 = vpack.c.b16 %v1680, %v1679
  %v1748 = vpack.c.b16 %v1682, %v1681
  %v1749 = vpack.c.b16 %v1684, %v1683
  %v1750 = vpack.c.b16 %v1686, %v1685
  %v1751 = vpack.c.b16 %v1688, %v1687
  %v1752 = vpack.c.b16 %v1690, %v1689
  %v1753 = vpack.c.b16 %v1692, %v1691
  %v1754 = vpack.c.b16 %v1694, %v1693
  %v1755 = vpack.c.b16 %v1696, %v1695
  %v1756 = vpack.c.b16 %v1698, %v1697
  %v1757 = vpack.c.b16 %v1700, %v1699
  %v1758 = vpack.c.b16 %v1702, %v1701
  %v1759 = vpack.c.b16 %v1704, %v1703
  %v1760 = vpack.c.b16 %v1706, %v1705
  %v1761 = vpack.c.b16 %v1708, %v1707
  %v1762 = vpack.c.b16 %v1710, %v1709
  %v1763 = vpack.c.b16 %v1712, %v1711
  %v1764 = vpack.c.b16 %v1714, %v1713
  %1815 = vmatpush.bf16.msra.mxu0 %v1722
  %1816 = vmatpush.bf16.msra.mxu0 %v1721
  %1817 = vmatpush.bf16.msra.mxu0 %v1720
  %1818 = vmatpush.bf16.msra.mxu0 %v1719
  %1819 = vmatpush.bf16.msra.mxu0 %v1718
  %1820 = vmatpush.bf16.msra.mxu0 %v1717
  %1821 = vmatpush.bf16.msra.mxu0 %v1716
  %1822 = vmatpush.bf16.msra.mxu0 %v1715
  %1823 = vmatmul.bf16.gmra.mxu0 %v244
  %v1824 = vpop.f32.mrf.mxu0
  %v1825 = vadd.f32 0.0, %v1824
  %v1826 = vpop.f32.mrf.mxu0
  %v1827 = vadd.f32 0.0, %v1826
  %1828 = vmatmul.bf16.gmra.mxu0 %v251
  %v1829 = vpop.f32.mrf.mxu0
  %v1830 = vadd.f32 0.0, %v1829
  %v1831 = vpop.f32.mrf.mxu0
  %v1832 = vadd.f32 0.0, %v1831
  %1833 = vmatmul.bf16.gmra.mxu0 %v258
  %v1834 = vpop.f32.mrf.mxu0
  %v1835 = vadd.f32 0.0, %v1834
  %v1836 = vpop.f32.mrf.mxu0
  %v1837 = vadd.f32 0.0, %v1836
  %1838 = vmatmul.bf16.gmra.mxu0 %v265
  %v1839 = vpop.f32.mrf.mxu0
  %v1840 = vadd.f32 0.0, %v1839
  %v1841 = vpop.f32.mrf.mxu0
  %v1842 = vadd.f32 0.0, %v1841
  %1843 = vdwg.mxu0
  %1844 = vmatpush.bf16.msra.mxu0 %v1730
  %1845 = vmatpush.bf16.msra.mxu0 %v1729
  %1846 = vmatpush.bf16.msra.mxu0 %v1728
  %1847 = vmatpush.bf16.msra.mxu0 %v1727
  %1848 = vmatpush.bf16.msra.mxu0 %v1726
  %1849 = vmatpush.bf16.msra.mxu0 %v1725
  %1850 = vmatpush.bf16.msra.mxu0 %v1724
  %1851 = vmatpush.bf16.msra.mxu0 %v1723
  %1852 = vmatmul.bf16.gmra.mxu0 %v245
  %v1853 = vpop.f32.mrf.mxu0
  %v1854 = vadd.f32 %v1825, %v1853
  %v1855 = vpop.f32.mrf.mxu0
  %v1856 = vadd.f32 %v1827, %v1855
  %1857 = vmatmul.bf16.gmra.mxu0 %v252
  %v1858 = vpop.f32.mrf.mxu0
  %v1859 = vadd.f32 %v1830, %v1858
  %v1860 = vpop.f32.mrf.mxu0
  %v1861 = vadd.f32 %v1832, %v1860
  %1862 = vmatmul.bf16.gmra.mxu0 %v259
  %v1863 = vpop.f32.mrf.mxu0
  %v1864 = vadd.f32 %v1835, %v1863
  %v1865 = vpop.f32.mrf.mxu0
  %v1866 = vadd.f32 %v1837, %v1865
  %1867 = vmatmul.bf16.gmra.mxu0 %v266
  %v1868 = vpop.f32.mrf.mxu0
  %v1869 = vadd.f32 %v1840, %v1868
  %v1870 = vpop.f32.mrf.mxu0
  %v1871 = vadd.f32 %v1842, %v1870
  %1872 = vdwg.mxu0
  %1873 = vmatpush.bf16.msra.mxu0 %v1738
  %1874 = vmatpush.bf16.msra.mxu0 %v1737
  %1875 = vmatpush.bf16.msra.mxu0 %v1736
  %1876 = vmatpush.bf16.msra.mxu0 %v1735
  %1877 = vmatpush.bf16.msra.mxu0 %v1734
  %1878 = vmatpush.bf16.msra.mxu0 %v1733
  %1879 = vmatpush.bf16.msra.mxu0 %v1732
  %1880 = vmatpush.bf16.msra.mxu0 %v1731
  %1881 = vmatmul.bf16.gmra.mxu0 %v246
  %v1882 = vpop.f32.mrf.mxu0
  %v1883 = vadd.f32 %v1854, %v1882
  %v1884 = vpop.f32.mrf.mxu0
  %v1885 = vadd.f32 %v1856, %v1884
  %1886 = vmatmul.bf16.gmra.mxu0 %v253
  %v1887 = vpop.f32.mrf.mxu0
  %v1888 = vadd.f32 %v1859, %v1887
  %v1889 = vpop.f32.mrf.mxu0
  %v1890 = vadd.f32 %v1861, %v1889
  %1891 = vmatmul.bf16.gmra.mxu0 %v260
  %v1892 = vpop.f32.mrf.mxu0
  %v1893 = vadd.f32 %v1864, %v1892
  %v1894 = vpop.f32.mrf.mxu0
  %v1895 = vadd.f32 %v1866, %v1894
  %1896 = vmatmul.bf16.gmra.mxu0 %v267
  %v1897 = vpop.f32.mrf.mxu0
  %v1898 = vadd.f32 %v1869, %v1897
  %v1899 = vpop.f32.mrf.mxu0
  %v1900 = vadd.f32 %v1871, %v1899
  %1901 = vdwg.mxu0
  %1902 = vmatpush.bf16.msra.mxu0 %v1746
  %1903 = vmatpush.bf16.msra.mxu0 %v1745
  %1904 = vmatpush.bf16.msra.mxu0 %v1744
  %1905 = vmatpush.bf16.msra.mxu0 %v1743
  %1906 = vmatpush.bf16.msra.mxu0 %v1742
  %1907 = vmatpush.bf16.msra.mxu0 %v1741
  %1908 = vmatpush.bf16.msra.mxu0 %v1740
  %1909 = vmatpush.bf16.msra.mxu0 %v1739
  %1910 = vmatmul.bf16.gmra.mxu0 %v247
  %v1911 = vpop.f32.mrf.mxu0
  %v1912 = vadd.f32 %v1883, %v1911
  %v1913 = vpop.f32.mrf.mxu0
  %v1914 = vadd.f32 %v1885, %v1913
  %1915 = vmatmul.bf16.gmra.mxu0 %v254
  %v1916 = vpop.f32.mrf.mxu0
  %v1917 = vadd.f32 %v1888, %v1916
  %v1918 = vpop.f32.mrf.mxu0
  %v1919 = vadd.f32 %v1890, %v1918
  %1920 = vmatmul.bf16.gmra.mxu0 %v261
  %v1921 = vpop.f32.mrf.mxu0
  %v1922 = vadd.f32 %v1893, %v1921
  %v1923 = vpop.f32.mrf.mxu0
  %v1924 = vadd.f32 %v1895, %v1923
  %1925 = vmatmul.bf16.gmra.mxu0 %v268
  %v1926 = vpop.f32.mrf.mxu0
  %v1927 = vadd.f32 %v1898, %v1926
  %v1928 = vpop.f32.mrf.mxu0
  %v1929 = vadd.f32 %v1900, %v1928
  %1930 = vdwg.mxu0
  %1931 = vmatpush.bf16.msra.mxu0 %v1754
  %1932 = vmatpush.bf16.msra.mxu0 %v1753
  %1933 = vmatpush.bf16.msra.mxu0 %v1752
  %1934 = vmatpush.bf16.msra.mxu0 %v1751
  %1935 = vmatpush.bf16.msra.mxu0 %v1750
  %1936 = vmatpush.bf16.msra.mxu0 %v1749
  %1937 = vmatpush.bf16.msra.mxu0 %v1748
  %1938 = vmatpush.bf16.msra.mxu0 %v1747
  %1939 = vmatmul.bf16.gmra.mxu0 %v248
  %v1940 = vpop.f32.mrf.mxu0
  %v1941 = vadd.f32 %v1912, %v1940
  %v1942 = vpop.f32.mrf.mxu0
  %v1943 = vadd.f32 %v1914, %v1942
  %1944 = vmatmul.bf16.gmra.mxu0 %v255
  %v1945 = vpop.f32.mrf.mxu0
  %v1946 = vadd.f32 %v1917, %v1945
  %v1947 = vpop.f32.mrf.mxu0
  %v1948 = vadd.f32 %v1919, %v1947
  %1949 = vmatmul.bf16.gmra.mxu0 %v262
  %v1950 = vpop.f32.mrf.mxu0
  %v1951 = vadd.f32 %v1922, %v1950
  %v1952 = vpop.f32.mrf.mxu0
  %v1953 = vadd.f32 %v1924, %v1952
  %1954 = vmatmul.bf16.gmra.mxu0 %v269
  %v1955 = vpop.f32.mrf.mxu0
  %v1956 = vadd.f32 %v1927, %v1955
  %v1957 = vpop.f32.mrf.mxu0
  %v1958 = vadd.f32 %v1929, %v1957
  %1959 = vdwg.mxu0
  %1960 = vmatpush.bf16.msra.mxu0 %v1762
  %1961 = vmatpush.bf16.msra.mxu0 %v1761
  %1962 = vmatpush.bf16.msra.mxu0 %v1760
  %1963 = vmatpush.bf16.msra.mxu0 %v1759
  %1964 = vmatpush.bf16.msra.mxu0 %v1758
  %1965 = vmatpush.bf16.msra.mxu0 %v1757
  %1966 = vmatpush.bf16.msra.mxu0 %v1756
  %1967 = vmatpush.bf16.msra.mxu0 %v1755
  %1968 = vmatmul.bf16.gmra.mxu0 %v249
  %v1969 = vpop.f32.mrf.mxu0
  %v1970 = vadd.f32 %v1941, %v1969
  %v1971 = vpop.f32.mrf.mxu0
  %v1972 = vadd.f32 %v1943, %v1971
  %1973 = vmatmul.bf16.gmra.mxu0 %v256
  %v1974 = vpop.f32.mrf.mxu0
  %v1975 = vadd.f32 %v1946, %v1974
  %v1976 = vpop.f32.mrf.mxu0
  %v1977 = vadd.f32 %v1948, %v1976
  %1978 = vmatmul.bf16.gmra.mxu0 %v263
  %v1979 = vpop.f32.mrf.mxu0
  %v1980 = vadd.f32 %v1951, %v1979
  %v1981 = vpop.f32.mrf.mxu0
  %v1982 = vadd.f32 %v1953, %v1981
  %1983 = vmatmul.bf16.gmra.mxu0 %v270
  %v1984 = vpop.f32.mrf.mxu0
  %v1985 = vadd.f32 %v1956, %v1984
  %v1986 = vpop.f32.mrf.mxu0
  %v1987 = vadd.f32 %v1958, %v1986
  %1988 = vdwg.mxu0
  %1989 = vmatpush.bf16.msra.mxu0 0
  %1990 = vmatpush.bf16.msra.mxu0 0
  %1991 = vmatpush.bf16.msra.mxu0 0
  %1992 = vmatpush.bf16.msra.mxu0 0
  %1993 = vmatpush.bf16.msra.mxu0 0
  %1994 = vmatpush.bf16.msra.mxu0 0
  %1995 = vmatpush.bf16.msra.mxu0 %v1764
  %1996 = vmatpush.bf16.msra.mxu0 %v1763
  %1997 = vmatmul.bf16.gmra.mxu0 %v598
  %v1998 = vpop.f32.mrf.mxu0
  %v1999 = vadd.f32 %v1970, %v1998
  %v2000 = vpop.f32.mrf.mxu0
  %v2001 = vadd.f32 %v1972, %v2000
  %2002 = vmatmul.bf16.gmra.mxu0 %v601
  %v2003 = vpop.f32.mrf.mxu0
  %v2004 = vadd.f32 %v1975, %v2003
  %v2005 = vpop.f32.mrf.mxu0
  %v2006 = vadd.f32 %v1977, %v2005
  %2007 = vmatmul.bf16.gmra.mxu0 %v604
  %v2008 = vpop.f32.mrf.mxu0
  %v2009 = vadd.f32 %v1980, %v2008
  %v2010 = vpop.f32.mrf.mxu0
  %v2011 = vadd.f32 %v1982, %v2010
  %2012 = vmatmul.bf16.gmra.mxu0 %v607
  %v2013 = vpop.f32.mrf.mxu0
  %v2014 = vadd.f32 %v1985, %v2013
  %v2015 = vpop.f32.mrf.mxu0
  %v2016 = vadd.f32 %v1987, %v2015
  %2017 = vdwg.mxu0
  %v2018 = vld [vmem:[%s4] sm:$0xf]
  %v2019 = vld [vmem:[%s4 + $0x4] sm:$0xf]
  %v2020 = vld [vmem:[%s4 + $0x8] sm:$0xf]
  %v2021 = vld [vmem:[%s4 + $0xc] sm:$0xf]
  %v2022 = vld [vmem:[%s4 + $0x10] sm:$0xf]
  %v2023 = vld [vmem:[%s4 + $0x14] sm:$0xf]
  %v2024 = vld [vmem:[%s4 + $0x18] sm:$0xf]
  %v2025 = vld [vmem:[%s4 + $0x1c] sm:$0xf]
  %v2026 = vld [vmem:[%s4 + $0x20] sm:$0xf]
  %v2027 = vld [vmem:[%s4 + $0x24] sm:$0xf]
  %v2028 = vld [vmem:[%s4 + $0x28] sm:$0xf]
  %v2029 = vld [vmem:[%s4 + $0x2c] sm:$0xf]
  %v2030 = vld [vmem:[%s4 + $0x30] sm:$0xf]
  %v2031 = vld [vmem:[%s4 + $0x34] sm:$0xf]
  %v2032 = vld [vmem:[%s4 + $0x38] sm:$0xf]
  %v2033 = vld [vmem:[%s4 + $0x3c] sm:$0xf]
  %v2034 = vld [vmem:[%s4 + $0x40] sm:$0xf]
  %v2035 = vld [vmem:[%s4 + $0x44] sm:$0xf]
  %v2036 = vld [vmem:[%s4 + $0x48] sm:$0xf]
  %v2037 = vld [vmem:[%s4 + $0x4c] sm:$0xf]
  %v2038 = vld [vmem:[%s4 + $0x50] sm:$0xf]
  %v2039 = vld [vmem:[%s4 + $0x54] sm:$0xf]
  %v2040 = vld [vmem:[%s4 + $0x58] sm:$0xf]
  %v2041 = vld [vmem:[%s4 + $0x5c] sm:$0xf]
  %v2042 = vld [vmem:[%s4 + $0x60] sm:$0xf]
  %v2043 = vld [vmem:[%s4 + $0x64] sm:$0xf]
  %v2044 = vld [vmem:[%s4 + $0x68] sm:$0xf]
  %v2045 = vld [vmem:[%s4 + $0x6c] sm:$0xf]
  %v2046 = vld [vmem:[%s4 + $0x70] sm:$0xf]
  %v2047 = vld [vmem:[%s4 + $0x74] sm:$0xf]
  %v2048 = vld [vmem:[%s4 + $0x78] sm:$0xf]
  %v2049 = vld [vmem:[%s4 + $0x7c] sm:$0xf]
  %v2050 = vld [vmem:[%s4 + $0x80] sm:$0xf]
  %v2051 = vld [vmem:[%s4 + $0x84] sm:$0xf]
  %v2052 = vld [vmem:[%s4 + $0x88] sm:$0xf]
  %v2053 = vld [vmem:[%s4 + $0x8c] sm:$0xf]
  %v2054 = vld [vmem:[%s4 + $0x90] sm:$0xf]
  %v2055 = vld [vmem:[%s4 + $0x94] sm:$0xf]
  %v2056 = vld [vmem:[%s4 + $0x98] sm:$0xf]
  %v2057 = vld [vmem:[%s4 + $0x9c] sm:$0xf]
  %v2058 = vld [vmem:[%s4 + $0xa0] sm:$0xf]
  %v2059 = vld [vmem:[%s4 + $0xa4] sm:$0xf]
  %v2060 = vld [vmem:[%s4 + $0xa8] sm:$0xf]
  %v2061 = vld [vmem:[%s4 + $0xac] sm:$0xf]
  %v2062 = vld [vmem:[%s4 + $0xb0] sm:$0xf]
  %v2063 = vld [vmem:[%s4 + $0xb4] sm:$0xf]
  %v2064 = vld [vmem:[%s4 + $0xb8] sm:$0xf]
  %v2065 = vld [vmem:[%s4 + $0xbc] sm:$0xf]
  %v2066 = vld [vmem:[%s4 + $0xc0] sm:$0xf]
  %v2067 = vld [vmem:[%s4 + $0xc4] sm:$0xf]
  %v2068 = vld [vmem:[%s4 + $0xc8] sm:$0xf]
  %v2069 = vld [vmem:[%s4 + $0xcc] sm:$0xf]
  %v2070 = vld [vmem:[%s4 + $0xd0] sm:$0xf]
  %v2071 = vld [vmem:[%s4 + $0xd4] sm:$0xf]
  %v2072 = vld [vmem:[%s4 + $0xd8] sm:$0xf]
  %v2073 = vld [vmem:[%s4 + $0xdc] sm:$0xf]
  %v2074 = vld [vmem:[%s4 + $0xe0] sm:$0xf]
  %v2075 = vld [vmem:[%s4 + $0xe4] sm:$0xf]
  %v2076 = vld [vmem:[%s4 + $0xe8] sm:$0xf]
  %v2077 = vld [vmem:[%s4 + $0xec] sm:$0xf]
  %v2078 = vld [vmem:[%s4 + $0xf0] sm:$0xf]
  %v2079 = vld [vmem:[%s4 + $0xf4] sm:$0xf]
  %v2080 = vld [vmem:[%s4 + $0xf8] sm:$0xf]
  %v2081 = vld [vmem:[%s4 + $0xfc] sm:$0xf]
  %v2082 = vld [vmem:[%s4 + $0x100] sm:$0xf]
  %v2083 = vld [vmem:[%s4 + $0x104] sm:$0xf]
  %v2084 = vld [vmem:[%s4 + $0x108] sm:$0xf]
  %v2085 = vld [vmem:[%s4 + $0x10c] sm:$0xf]
  %v2086 = vld [vmem:[%s4 + $0x110] sm:$0xf]
  %v2087 = vld [vmem:[%s4 + $0x114] sm:$0xf]
  %v2088 = vld [vmem:[%s4 + $0x118] sm:$0xf]
  %v2089 = vld [vmem:[%s4 + $0x11c] sm:$0xf]
  %v2090 = vld [vmem:[%s4 + $0x120] sm:$0xf]
  %v2091 = vld [vmem:[%s4 + $0x124] sm:$0xf]
  %v2092 = vld [vmem:[%s4 + $0x128] sm:$0xf]
  %v2093 = vld [vmem:[%s4 + $0x12c] sm:$0xf]
  %v2094 = vld [vmem:[%s4 + $0x130] sm:$0xf]
  %v2095 = vld [vmem:[%s4 + $0x134] sm:$0xf]
  %v2096 = vld [vmem:[%s4 + $0x138] sm:$0xf]
  %v2097 = vld [vmem:[%s4 + $0x13c] sm:$0xf]
  %v2098 = vld [vmem:[%s4 + $0x140] sm:$0xf]
  %v2099 = vld [vmem:[%s4 + $0x144] sm:$0xf]
  %v2100 = vld [vmem:[%s4 + $0x148] sm:$0xf]
  %v2101 = vld [vmem:[%s4 + $0x14c] sm:$0xf]
  %v2102 = vld [vmem:[%s4 + $0x150] sm:$0xf]
  %v2103 = vld [vmem:[%s4 + $0x154] sm:$0xf]
  %v2104 = vld [vmem:[%s4 + $0x158] sm:$0xf]
  %v2105 = vld [vmem:[%s4 + $0x15c] sm:$0xf]
  %v2106 = vld [vmem:[%s4 + $0x160] sm:$0xf]
  %v2107 = vld [vmem:[%s4 + $0x164] sm:$0xf]
  %v2108 = vld [vmem:[%s4 + $0x168] sm:$0xf]
  %v2109 = vld [vmem:[%s4 + $0x16c] sm:$0xf]
  %v2110 = vld [vmem:[%s4 + $0x170] sm:$0xf]
  %v2111 = vld [vmem:[%s4 + $0x174] sm:$0xf]
  %v2112 = vld [vmem:[%s4 + $0x178] sm:$0xf]
  %v2113 = vld [vmem:[%s4 + $0x17c] sm:$0xf]
  %v2114 = vld [vmem:[%s4 + $0x180] sm:$0xf]
  %v2115 = vld [vmem:[%s4 + $0x184] sm:$0xf]
  %v2116 = vld [vmem:[%s4 + $0x188] sm:$0xf]
  %v2117 = vld [vmem:[%s4 + $0x18c] sm:$0xf]
  %v2218 = vunpack.c.l.b16 %v2018
  %v2219 = vunpack.c.l.b16 %v2019
  %v2220 = vunpack.c.l.b16 %v2020
  %v2221 = vunpack.c.l.b16 %v2021
  %v2222 = vunpack.c.l.b16 %v2022
  %v2223 = vunpack.c.l.b16 %v2023
  %v2224 = vunpack.c.l.b16 %v2024
  %v2225 = vunpack.c.l.b16 %v2025
  %v2226 = vunpack.c.l.b16 %v2026
  %v2227 = vunpack.c.l.b16 %v2027
  %v2228 = vunpack.c.l.b16 %v2028
  %v2229 = vunpack.c.l.b16 %v2029
  %v2230 = vunpack.c.l.b16 %v2030
  %v2231 = vunpack.c.l.b16 %v2031
  %v2232 = vunpack.c.l.b16 %v2032
  %v2233 = vunpack.c.l.b16 %v2033
  %v2234 = vunpack.c.l.b16 %v2034
  %v2235 = vunpack.c.l.b16 %v2035
  %v2236 = vunpack.c.l.b16 %v2036
  %v2237 = vunpack.c.l.b16 %v2037
  %v2238 = vunpack.c.l.b16 %v2038
  %v2239 = vunpack.c.l.b16 %v2039
  %v2240 = vunpack.c.l.b16 %v2040
  %v2241 = vunpack.c.l.b16 %v2041
  %v2242 = vunpack.c.l.b16 %v2042
  %v2243 = vunpack.c.l.b16 %v2043
  %v2244 = vunpack.c.l.b16 %v2044
  %v2245 = vunpack.c.l.b16 %v2045
  %v2246 = vunpack.c.l.b16 %v2046
  %v2247 = vunpack.c.l.b16 %v2047
  %v2248 = vunpack.c.l.b16 %v2048
  %v2249 = vunpack.c.l.b16 %v2049
  %v2250 = vunpack.c.l.b16 %v2050
  %v2251 = vunpack.c.l.b16 %v2051
  %v2252 = vunpack.c.l.b16 %v2052
  %v2253 = vunpack.c.l.b16 %v2053
  %v2254 = vunpack.c.l.b16 %v2054
  %v2255 = vunpack.c.l.b16 %v2055
  %v2256 = vunpack.c.l.b16 %v2056
  %v2257 = vunpack.c.l.b16 %v2057
  %v2258 = vunpack.c.l.b16 %v2058
  %v2259 = vunpack.c.l.b16 %v2059
  %v2260 = vunpack.c.l.b16 %v2060
  %v2261 = vunpack.c.l.b16 %v2061
  %v2262 = vunpack.c.l.b16 %v2062
  %v2263 = vunpack.c.l.b16 %v2063
  %v2264 = vunpack.c.l.b16 %v2064
  %v2265 = vunpack.c.l.b16 %v2065
  %v2266 = vunpack.c.l.b16 %v2066
  %v2267 = vunpack.c.l.b16 %v2067
  %v2268 = vunpack.c.l.b16 %v2068
  %v2269 = vunpack.c.l.b16 %v2069
  %v2270 = vunpack.c.l.b16 %v2070
  %v2271 = vunpack.c.l.b16 %v2071
  %v2272 = vunpack.c.l.b16 %v2072
  %v2273 = vunpack.c.l.b16 %v2073
  %v2274 = vunpack.c.l.b16 %v2074
  %v2275 = vunpack.c.l.b16 %v2075
  %v2276 = vunpack.c.l.b16 %v2076
  %v2277 = vunpack.c.l.b16 %v2077
  %v2278 = vunpack.c.l.b16 %v2078
  %v2279 = vunpack.c.l.b16 %v2079
  %v2280 = vunpack.c.l.b16 %v2080
  %v2281 = vunpack.c.l.b16 %v2081
  %v2282 = vunpack.c.l.b16 %v2082
  %v2283 = vunpack.c.l.b16 %v2083
  %v2284 = vunpack.c.l.b16 %v2084
  %v2285 = vunpack.c.l.b16 %v2085
  %v2286 = vunpack.c.l.b16 %v2086
  %v2287 = vunpack.c.l.b16 %v2087
  %v2288 = vunpack.c.l.b16 %v2088
  %v2289 = vunpack.c.l.b16 %v2089
  %v2290 = vunpack.c.l.b16 %v2090
  %v2291 = vunpack.c.l.b16 %v2091
  %v2292 = vunpack.c.l.b16 %v2092
  %v2293 = vunpack.c.l.b16 %v2093
  %v2294 = vunpack.c.l.b16 %v2094
  %v2295 = vunpack.c.l.b16 %v2095
  %v2296 = vunpack.c.l.b16 %v2096
  %v2297 = vunpack.c.l.b16 %v2097
  %v2298 = vunpack.c.l.b16 %v2098
  %v2299 = vunpack.c.l.b16 %v2099
  %v2300 = vunpack.c.l.b16 %v2100
  %v2301 = vunpack.c.l.b16 %v2101
  %v2302 = vunpack.c.l.b16 %v2102
  %v2303 = vunpack.c.l.b16 %v2103
  %v2304 = vunpack.c.l.b16 %v2104
  %v2305 = vunpack.c.l.b16 %v2105
  %v2306 = vunpack.c.l.b16 %v2106
  %v2307 = vunpack.c.l.b16 %v2107
  %v2308 = vunpack.c.l.b16 %v2108
  %v2309 = vunpack.c.l.b16 %v2109
  %v2310 = vunpack.c.l.b16 %v2110
  %v2311 = vunpack.c.l.b16 %v2111
  %v2312 = vunpack.c.l.b16 %v2112
  %v2313 = vunpack.c.l.b16 %v2113
  %v2314 = vunpack.c.l.b16 %v2114
  %v2315 = vunpack.c.l.b16 %v2115
  %v2316 = vunpack.c.l.b16 %v2116
  %v2317 = vunpack.c.l.b16 %v2117
  %v2318 = vpack.c.b16 %v2219, %v2218
  %v2319 = vpack.c.b16 %v2221, %v2220
  %v2320 = vpack.c.b16 %v2223, %v2222
  %v2321 = vpack.c.b16 %v2225, %v2224
  %v2322 = vpack.c.b16 %v2227, %v2226
  %v2323 = vpack.c.b16 %v2229, %v2228
  %v2324 = vpack.c.b16 %v2231, %v2230
  %v2325 = vpack.c.b16 %v2233, %v2232
  %v2326 = vpack.c.b16 %v2235, %v2234
  %v2327 = vpack.c.b16 %v2237, %v2236
  %v2328 = vpack.c.b16 %v2239, %v2238
  %v2329 = vpack.c.b16 %v2241, %v2240
  %v2330 = vpack.c.b16 %v2243, %v2242
  %v2331 = vpack.c.b16 %v2245, %v2244
  %v2332 = vpack.c.b16 %v2247, %v2246
  %v2333 = vpack.c.b16 %v2249, %v2248
  %v2334 = vpack.c.b16 %v2251, %v2250
  %v2335 = vpack.c.b16 %v2253, %v2252
  %v2336 = vpack.c.b16 %v2255, %v2254
  %v2337 = vpack.c.b16 %v2257, %v2256
  %v2338 = vpack.c.b16 %v2259, %v2258
  %v2339 = vpack.c.b16 %v2261, %v2260
  %v2340 = vpack.c.b16 %v2263, %v2262
  %v2341 = vpack.c.b16 %v2265, %v2264
  %v2342 = vpack.c.b16 %v2267, %v2266
  %v2343 = vpack.c.b16 %v2269, %v2268
  %v2344 = vpack.c.b16 %v2271, %v2270
  %v2345 = vpack.c.b16 %v2273, %v2272
  %v2346 = vpack.c.b16 %v2275, %v2274
  %v2347 = vpack.c.b16 %v2277, %v2276
  %v2348 = vpack.c.b16 %v2279, %v2278
  %v2349 = vpack.c.b16 %v2281, %v2280
  %v2350 = vpack.c.b16 %v2283, %v2282
  %v2351 = vpack.c.b16 %v2285, %v2284
  %v2352 = vpack.c.b16 %v2287, %v2286
  %v2353 = vpack.c.b16 %v2289, %v2288
  %v2354 = vpack.c.b16 %v2291, %v2290
  %v2355 = vpack.c.b16 %v2293, %v2292
  %v2356 = vpack.c.b16 %v2295, %v2294
  %v2357 = vpack.c.b16 %v2297, %v2296
  %v2358 = vpack.c.b16 %v2299, %v2298
  %v2359 = vpack.c.b16 %v2301, %v2300
  %v2360 = vpack.c.b16 %v2303, %v2302
  %v2361 = vpack.c.b16 %v2305, %v2304
  %v2362 = vpack.c.b16 %v2307, %v2306
  %v2363 = vpack.c.b16 %v2309, %v2308
  %v2364 = vpack.c.b16 %v2311, %v2310
  %v2365 = vpack.c.b16 %v2313, %v2312
  %v2366 = vpack.c.b16 %v2315, %v2314
  %v2367 = vpack.c.b16 %v2317, %v2316
  %2418 = vmatpush.bf16.msra.mxu0 %v2325
  %2419 = vmatpush.bf16.msra.mxu0 %v2324
  %2420 = vmatpush.bf16.msra.mxu0 %v2323
  %2421 = vmatpush.bf16.msra.mxu0 %v2322
  %2422 = vmatpush.bf16.msra.mxu0 %v2321
  %2423 = vmatpush.bf16.msra.mxu0 %v2320
  %2424 = vmatpush.bf16.msra.mxu0 %v2319
  %2425 = vmatpush.bf16.msra.mxu0 %v2318
  %2426 = vmatmul.bf16.gmra.mxu0 %v244
  %v2427 = vpop.f32.mrf.mxu0
  %v2428 = vadd.f32 0.0, %v2427
  %v2429 = vpop.f32.mrf.mxu0
  %v2430 = vadd.f32 0.0, %v2429
  %2431 = vmatmul.bf16.gmra.mxu0 %v251
  %v2432 = vpop.f32.mrf.mxu0
  %v2433 = vadd.f32 0.0, %v2432
  %v2434 = vpop.f32.mrf.mxu0
  %v2435 = vadd.f32 0.0, %v2434
  %2436 = vmatmul.bf16.gmra.mxu0 %v258
  %v2437 = vpop.f32.mrf.mxu0
  %v2438 = vadd.f32 0.0, %v2437
  %v2439 = vpop.f32.mrf.mxu0
  %v2440 = vadd.f32 0.0, %v2439
  %2441 = vmatmul.bf16.gmra.mxu0 %v265
  %v2442 = vpop.f32.mrf.mxu0
  %v2443 = vadd.f32 0.0, %v2442
  %v2444 = vpop.f32.mrf.mxu0
  %v2445 = vadd.f32 0.0, %v2444
  %2446 = vdwg.mxu0
  %2447 = vmatpush.bf16.msra.mxu0 %v2333
  %2448 = vmatpush.bf16.msra.mxu0 %v2332
  %2449 = vmatpush.bf16.msra.mxu0 %v2331
  %2450 = vmatpush.bf16.msra.mxu0 %v2330
  %2451 = vmatpush.bf16.msra.mxu0 %v2329
  %2452 = vmatpush.bf16.msra.mxu0 %v2328
  %2453 = vmatpush.bf16.msra.mxu0 %v2327
  %2454 = vmatpush.bf16.msra.mxu0 %v2326
  %2455 = vmatmul.bf16.gmra.mxu0 %v245
  %v2456 = vpop.f32.mrf.mxu0
  %v2457 = vadd.f32 %v2428, %v2456
  %v2458 = vpop.f32.mrf.mxu0
  %v2459 = vadd.f32 %v2430, %v2458
  %2460 = vmatmul.bf16.gmra.mxu0 %v252
  %v2461 = vpop.f32.mrf.mxu0
  %v2462 = vadd.f32 %v2433, %v2461
  %v2463 = vpop.f32.mrf.mxu0
  %v2464 = vadd.f32 %v2435, %v2463
  %2465 = vmatmul.bf16.gmra.mxu0 %v259
  %v2466 = vpop.f32.mrf.mxu0
  %v2467 = vadd.f32 %v2438, %v2466
  %v2468 = vpop.f32.mrf.mxu0
  %v2469 = vadd.f32 %v2440, %v2468
  %2470 = vmatmul.bf16.gmra.mxu0 %v266
  %v2471 = vpop.f32.mrf.mxu0
  %v2472 = vadd.f32 %v2443, %v2471
  %v2473 = vpop.f32.mrf.mxu0
  %v2474 = vadd.f32 %v2445, %v2473
  %2475 = vdwg.mxu0
  %2476 = vmatpush.bf16.msra.mxu0 %v2341
  %2477 = vmatpush.bf16.msra.mxu0 %v2340
  %2478 = vmatpush.bf16.msra.mxu0 %v2339
  %2479 = vmatpush.bf16.msra.mxu0 %v2338
  %2480 = vmatpush.bf16.msra.mxu0 %v2337
  %2481 = vmatpush.bf16.msra.mxu0 %v2336
  %2482 = vmatpush.bf16.msra.mxu0 %v2335
  %2483 = vmatpush.bf16.msra.mxu0 %v2334
  %2484 = vmatmul.bf16.gmra.mxu0 %v246
  %v2485 = vpop.f32.mrf.mxu0
  %v2486 = vadd.f32 %v2457, %v2485
  %v2487 = vpop.f32.mrf.mxu0
  %v2488 = vadd.f32 %v2459, %v2487
  %2489 = vmatmul.bf16.gmra.mxu0 %v253
  %v2490 = vpop.f32.mrf.mxu0
  %v2491 = vadd.f32 %v2462, %v2490
  %v2492 = vpop.f32.mrf.mxu0
  %v2493 = vadd.f32 %v2464, %v2492
  %2494 = vmatmul.bf16.gmra.mxu0 %v260
  %v2495 = vpop.f32.mrf.mxu0
  %v2496 = vadd.f32 %v2467, %v2495
  %v2497 = vpop.f32.mrf.mxu0
  %v2498 = vadd.f32 %v2469, %v2497
  %2499 = vmatmul.bf16.gmra.mxu0 %v267
  %v2500 = vpop.f32.mrf.mxu0
  %v2501 = vadd.f32 %v2472, %v2500
  %v2502 = vpop.f32.mrf.mxu0
  %v2503 = vadd.f32 %v2474, %v2502
  %2504 = vdwg.mxu0
  %2505 = vmatpush.bf16.msra.mxu0 %v2349
  %2506 = vmatpush.bf16.msra.mxu0 %v2348
  %2507 = vmatpush.bf16.msra.mxu0 %v2347
  %2508 = vmatpush.bf16.msra.mxu0 %v2346
  %2509 = vmatpush.bf16.msra.mxu0 %v2345
  %2510 = vmatpush.bf16.msra.mxu0 %v2344
  %2511 = vmatpush.bf16.msra.mxu0 %v2343
  %2512 = vmatpush.bf16.msra.mxu0 %v2342
  %2513 = vmatmul.bf16.gmra.mxu0 %v247
  %v2514 = vpop.f32.mrf.mxu0
  %v2515 = vadd.f32 %v2486, %v2514
  %v2516 = vpop.f32.mrf.mxu0
  %v2517 = vadd.f32 %v2488, %v2516
  %2518 = vmatmul.bf16.gmra.mxu0 %v254
  %v2519 = vpop.f32.mrf.mxu0
  %v2520 = vadd.f32 %v2491, %v2519
  %v2521 = vpop.f32.mrf.mxu0
  %v2522 = vadd.f32 %v2493, %v2521
  %2523 = vmatmul.bf16.gmra.mxu0 %v261
  %v2524 = vpop.f32.mrf.mxu0
  %v2525 = vadd.f32 %v2496, %v2524
  %v2526 = vpop.f32.mrf.mxu0
  %v2527 = vadd.f32 %v2498, %v2526
  %2528 = vmatmul.bf16.gmra.mxu0 %v268
  %v2529 = vpop.f32.mrf.mxu0
  %v2530 = vadd.f32 %v2501, %v2529
  %v2531 = vpop.f32.mrf.mxu0
  %v2532 = vadd.f32 %v2503, %v2531
  %2533 = vdwg.mxu0
  %2534 = vmatpush.bf16.msra.mxu0 %v2357
  %2535 = vmatpush.bf16.msra.mxu0 %v2356
  %2536 = vmatpush.bf16.msra.mxu0 %v2355
  %2537 = vmatpush.bf16.msra.mxu0 %v2354
  %2538 = vmatpush.bf16.msra.mxu0 %v2353
  %2539 = vmatpush.bf16.msra.mxu0 %v2352
  %2540 = vmatpush.bf16.msra.mxu0 %v2351
  %2541 = vmatpush.bf16.msra.mxu0 %v2350
  %2542 = vmatmul.bf16.gmra.mxu0 %v248
  %v2543 = vpop.f32.mrf.mxu0
  %v2544 = vadd.f32 %v2515, %v2543
  %v2545 = vpop.f32.mrf.mxu0
  %v2546 = vadd.f32 %v2517, %v2545
  %2547 = vmatmul.bf16.gmra.mxu0 %v255
  %v2548 = vpop.f32.mrf.mxu0
  %v2549 = vadd.f32 %v2520, %v2548
  %v2550 = vpop.f32.mrf.mxu0
  %v2551 = vadd.f32 %v2522, %v2550
  %2552 = vmatmul.bf16.gmra.mxu0 %v262
  %v2553 = vpop.f32.mrf.mxu0
  %v2554 = vadd.f32 %v2525, %v2553
  %v2555 = vpop.f32.mrf.mxu0
  %v2556 = vadd.f32 %v2527, %v2555
  %2557 = vmatmul.bf16.gmra.mxu0 %v269
  %v2558 = vpop.f32.mrf.mxu0
  %v2559 = vadd.f32 %v2530, %v2558
  %v2560 = vpop.f32.mrf.mxu0
  %v2561 = vadd.f32 %v2532, %v2560
  %2562 = vdwg.mxu0
  %2563 = vmatpush.bf16.msra.mxu0 %v2365
  %2564 = vmatpush.bf16.msra.mxu0 %v2364
  %2565 = vmatpush.bf16.msra.mxu0 %v2363
  %2566 = vmatpush.bf16.msra.mxu0 %v2362
  %2567 = vmatpush.bf16.msra.mxu0 %v2361
  %2568 = vmatpush.bf16.msra.mxu0 %v2360
  %2569 = vmatpush.bf16.msra.mxu0 %v2359
  %2570 = vmatpush.bf16.msra.mxu0 %v2358
  %2571 = vmatmul.bf16.gmra.mxu0 %v249
  %v2572 = vpop.f32.mrf.mxu0
  %v2573 = vadd.f32 %v2544, %v2572
  %v2574 = vpop.f32.mrf.mxu0
  %v2575 = vadd.f32 %v2546, %v2574
  %2576 = vmatmul.bf16.gmra.mxu0 %v256
  %v2577 = vpop.f32.mrf.mxu0
  %v2578 = vadd.f32 %v2549, %v2577
  %v2579 = vpop.f32.mrf.mxu0
  %v2580 = vadd.f32 %v2551, %v2579
  %2581 = vmatmul.bf16.gmra.mxu0 %v263
  %v2582 = vpop.f32.mrf.mxu0
  %v2583 = vadd.f32 %v2554, %v2582
  %v2584 = vpop.f32.mrf.mxu0
  %v2585 = vadd.f32 %v2556, %v2584
  %2586 = vmatmul.bf16.gmra.mxu0 %v270
  %v2587 = vpop.f32.mrf.mxu0
  %v2588 = vadd.f32 %v2559, %v2587
  %v2589 = vpop.f32.mrf.mxu0
  %v2590 = vadd.f32 %v2561, %v2589
  %2591 = vdwg.mxu0
  %2592 = vmatpush.bf16.msra.mxu0 0
  %2593 = vmatpush.bf16.msra.mxu0 0
  %2594 = vmatpush.bf16.msra.mxu0 0
  %2595 = vmatpush.bf16.msra.mxu0 0
  %2596 = vmatpush.bf16.msra.mxu0 0
  %2597 = vmatpush.bf16.msra.mxu0 0
  %2598 = vmatpush.bf16.msra.mxu0 %v2367
  %2599 = vmatpush.bf16.msra.mxu0 %v2366
  %2600 = vmatmul.bf16.gmra.mxu0 %v598
  %v2601 = vpop.f32.mrf.mxu0
  %v2602 = vadd.f32 %v2573, %v2601
  %v2603 = vpop.f32.mrf.mxu0
  %v2604 = vadd.f32 %v2575, %v2603
  %2605 = vmatmul.bf16.gmra.mxu0 %v601
  %v2606 = vpop.f32.mrf.mxu0
  %v2607 = vadd.f32 %v2578, %v2606
  %v2608 = vpop.f32.mrf.mxu0
  %v2609 = vadd.f32 %v2580, %v2608
  %2610 = vmatmul.bf16.gmra.mxu0 %v604
  %v2611 = vpop.f32.mrf.mxu0
  %v2612 = vadd.f32 %v2583, %v2611
  %v2613 = vpop.f32.mrf.mxu0
  %v2614 = vadd.f32 %v2585, %v2613
  %2615 = vmatmul.bf16.gmra.mxu0 %v607
  %v2616 = vpop.f32.mrf.mxu0
  %v2617 = vadd.f32 %v2588, %v2616
  %v2618 = vpop.f32.mrf.mxu0
  %v2619 = vadd.f32 %v2590, %v2618
  %2620 = vdwg.mxu0
  %v2621 = vmax.f32 %v793, %v1396
  %v2622 = vmax.f32 %v795, %v1398
  %v2623 = vmax.f32 %v798, %v1401
  %v2624 = vmax.f32 %v800, %v1403
  %v2625 = vmax.f32 %v803, %v1406
  %v2626 = vmax.f32 %v805, %v1408
  %v2627 = vmax.f32 %v808, %v1411
  %v2628 = vmax.f32 %v810, %v1413
  %v2629 = vmax.f32 %v1999, %v2602
  %v2630 = vmax.f32 %v2001, %v2604
  %v2631 = vmax.f32 %v2004, %v2607
  %v2632 = vmax.f32 %v2006, %v2609
  %v2633 = vmax.f32 %v2009, %v2612
  %v2634 = vmax.f32 %v2011, %v2614
  %v2635 = vmax.f32 %v2014, %v2617
  %v2636 = vmax.f32 %v2016, %v2619
  %v2637 = vmax.f32 %v2621, %v2629
  %v2638 = vmax.f32 %v2622, %v2630
  %v2639 = vmax.f32 %v2623, %v2631
  %v2640 = vmax.f32 %v2624, %v2632
  %v2641 = vmax.f32 %v2625, %v2633
  %v2642 = vmax.f32 %v2626, %v2634
  %v2643 = vmax.f32 %v2627, %v2635
  %v2644 = vmax.f32 %v2628, %v2636
  %v2645 = vld [vmem:[%s5] sm:$0xff]
  %v2646 = vld [vmem:[%s5 + $0x8] sm:$0xff]
  %v2647 = vld [vmem:[%s5 + $0x10] sm:$0xff]
  %v2648 = vld [vmem:[%s5 + $0x18] sm:$0xff]
  %v2649 = vld [vmem:[%s5 + $0x20] sm:$0xff]
  %v2650 = vld [vmem:[%s5 + $0x28] sm:$0xff]
  %v2651 = vld [vmem:[%s5 + $0x30] sm:$0xff]
  %v2652 = vld [vmem:[%s5 + $0x38] sm:$0xff]
  %2654 = vset.pattern.permute.xlu0 0
  %2655 = vperm.xlu0 %2654, %v2645
  %v2656 = vpop.permute.xlu0 %2655
  %2659 = vset.pattern.permute.xlu0 0
  %2660 = vperm.xlu0 %2659, %v2646
  %v2661 = vpop.permute.xlu0 %2660
  %2664 = vset.pattern.permute.xlu0 0
  %2665 = vperm.xlu0 %2664, %v2647
  %v2666 = vpop.permute.xlu0 %2665
  %2669 = vset.pattern.permute.xlu0 0
  %2670 = vperm.xlu0 %2669, %v2648
  %v2671 = vpop.permute.xlu0 %2670
  %2674 = vset.pattern.permute.xlu0 0
  %2675 = vperm.xlu0 %2674, %v2649
  %v2676 = vpop.permute.xlu0 %2675
  %2679 = vset.pattern.permute.xlu0 0
  %2680 = vperm.xlu0 %2679, %v2650
  %v2681 = vpop.permute.xlu0 %2680
  %2684 = vset.pattern.permute.xlu0 0
  %2685 = vperm.xlu0 %2684, %v2651
  %v2686 = vpop.permute.xlu0 %2685
  %2689 = vset.pattern.permute.xlu0 0
  %2690 = vperm.xlu0 %2689, %v2652
  %v2691 = vpop.permute.xlu0 %2690
  %v2693 = vadd.f32 %v2637, %v2656
  %v2694 = vadd.f32 %v2638, %v2661
  %v2695 = vadd.f32 %v2639, %v2666
  %v2696 = vadd.f32 %v2640, %v2671
  %v2697 = vadd.f32 %v2641, %v2676
  %v2698 = vadd.f32 %v2642, %v2681
  %v2699 = vadd.f32 %v2643, %v2686
  %v2700 = vadd.f32 %v2644, %v2691
  %v2701 = vmax.f32 %v2693, 0.0
  %v2702 = vmax.f32 %v2694, 0.0
  %v2703 = vmax.f32 %v2695, 0.0
  %v2704 = vmax.f32 %v2696, 0.0
  %v2705 = vmax.f32 %v2697, 0.0
  %v2706 = vmax.f32 %v2698, 0.0
  %v2707 = vmax.f32 %v2699, 0.0
  %v2708 = vmax.f32 %v2700, 0.0
  %v2709 = vpack.c.bf16 %v2701, %v2701
  %v2710 = vpack.c.bf16 %v2702, %v2702
  %v2711 = vpack.c.bf16 %v2703, %v2703
  %v2712 = vpack.c.bf16 %v2704, %v2704
  %v2713 = vpack.c.bf16 %v2705, %v2705
  %v2714 = vpack.c.bf16 %v2706, %v2706
  %v2715 = vpack.c.bf16 %v2707, %v2707
  %v2716 = vpack.c.bf16 %v2708, %v2708
  %vm2717 = vcmask 257024
  %2718 = vst.msk [vmem:[%s6] sm:$0xf] %vm2717, %v2709
  %2719 = vst.msk [vmem:[%s6 + $0x4] sm:$0xf] %vm2717, %v2710
  %2720 = vst.msk [vmem:[%s6 + $0x8] sm:$0xf] %vm2717, %v2711
  %2721 = vst.msk [vmem:[%s6 + $0xc] sm:$0xf] %vm2717, %v2712
  %2722 = vst.msk [vmem:[%s6 + $0x10] sm:$0xf] %vm2717, %v2713
  %2723 = vst.msk [vmem:[%s6 + $0x14] sm:$0xf] %vm2717, %v2714
  %2724 = vst.msk [vmem:[%s6 + $0x18] sm:$0xf] %vm2717, %v2715
  %2725 = vst.msk [vmem:[%s6 + $0x1c] sm:$0xf] %vm2717, %v2716
  // Predicated region
  $region26: #{hkcnn_forward.6} parent=0 // pred_check
    _
  $region27: #{hkcnn_forward.6} parent=0 // pred_check_branch
    %2727 = sbr.rel (0) target = $region29
  $region28: #{hkcnn_forward.6} parent=0 // pred_region
    _
  $region29: #{hkcnn_forward.6} parent=0 // pred_fallthru
    _
  // Predicated region
  $region30: #{hkcnn_forward.6} parent=0 // pred_check
    _
  $region31: #{hkcnn_forward.6} parent=0 // pred_check_branch
    %2729 = sbr.rel (0) target = $region33
  $region32: #{hkcnn_forward.6} parent=0 // pred_region
    _
  $region33: #{hkcnn_forward.6} parent=0 // pred_fallthru
    _

// kernel: hkcnn_forward.7
$region0: #{hkcnn_forward.7}
  #allocation0 [shape = 'u32[]', space=smem, size = 0x4, offset = 0x4, fixed_abs, tag = 'smem constant byte address 0x4 - core index']
  #allocation1 [shape = 'u32[72,128]{1,0:T(1,128)}', space=vmem, size = 0x9000, scoped, tag = 'internal scratch']
  %s0 = inlined_call_operand.vmem [shape: bf16[2,4096], index: 0, kind: input, shape index: {}]
  %s1 = inlined_call_operand.vmem [shape: bf16[4096,256], index: 1, kind: input, shape index: {}]
  %s2 = inlined_call_operand.vmem [shape: f32[1,256], index: 2, kind: input, shape index: {}]
  %s3 = inlined_call_operand.vmem [shape: bf16[256,10], index: 3, kind: input, shape index: {}]
  %s4 = inlined_call_operand.vmem [shape: f32[1,10], index: 4, kind: input, shape index: {}]
  %s5 = inlined_call_operand.hbm [shape: f32[2,10], index: 5, kind: output, shape index: {}]
  %s6 = sld [smem:[#allocation0]]
  $region30: #{hkcnn_forward.7} parent=0
    _
  %s8 = ssub.s32 1, %s6
  %s9 = scalar_select 0, %s8, %s6
  $region1: #{hkcnn_forward.7} parent=0
    #allocation2 [shape = 'u8[1024]{0}', space=vmem, size = 0x400, scoped, tag = 'output window, operand 0, single buffered']
    #allocation3 [shape = 's32[1]{0}', space=sflag, size = 0x4, scoped, tag = 'scoped memory for hkcnn_forward.7']
    %10 = vsyncpa [#allocation3], 0
    // Predicated region
    $region2: #{hkcnn_forward.7} parent=1 // pred_check
      _
    $region3: #{hkcnn_forward.7} parent=1 // pred_check_branch
      %12 = sbr.rel (0) target = $region5
    $region4: #{hkcnn_forward.7} parent=1 // pred_region
      _
    $region5: #{hkcnn_forward.7} parent=1 // pred_fallthru
      _
    // Predicated region
    $region6: #{hkcnn_forward.7} parent=1 // pred_check
      _
    $region7: #{hkcnn_forward.7} parent=1 // pred_check_branch
      %14 = sbr.rel (0) target = $region9
    $region8: #{hkcnn_forward.7} parent=1 // pred_region
      _
    $region9: #{hkcnn_forward.7} parent=1 // pred_fallthru
      _
    // Predicated region
    $region10: #{hkcnn_forward.7} parent=1 // pred_check
      _
    $region11: #{hkcnn_forward.7} parent=1 // pred_check_branch
      %16 = sbr.rel (0) target = $region13
    $region12: #{hkcnn_forward.7} parent=1 // pred_region
      _
    $region13: #{hkcnn_forward.7} parent=1 // pred_fallthru
      _
    // Predicated region
    $region14: #{hkcnn_forward.7} parent=1 // pred_check
      _
    $region15: #{hkcnn_forward.7} parent=1 // pred_check_branch
      %18 = sbr.rel (0) target = $region17
    $region16: #{hkcnn_forward.7} parent=1 // pred_region
      _
    $region17: #{hkcnn_forward.7} parent=1 // pred_fallthru
      _
    // Predicated region
    $region18: #{hkcnn_forward.7} parent=1 // pred_check
      _
    $region19: #{hkcnn_forward.7} parent=1 // pred_check_branch
      %20 = sbr.rel (0) target = $region21
    $region20: #{hkcnn_forward.7} parent=1 // pred_region
      _
    $region21: #{hkcnn_forward.7} parent=1 // pred_fallthru
      _
    %v21 = vld [vmem:[%s0] sm:$0xff]
    %v22 = vld [vmem:[%s0 + $0x8] sm:$0xff]
    %v23 = vld [vmem:[%s0 + $0x10] sm:$0xff]
    %v24 = vld [vmem:[%s0 + $0x18] sm:$0xff]
    %v25 = vld [vmem:[%s1] sm:$0xff]
    %v26 = vld [vmem:[%s1 + $0x8] sm:$0xff]
    %v27 = vld [vmem:[%s1 + $0x10] sm:$0xff]
    %v28 = vld [vmem:[%s1 + $0x18] sm:$0xff]
    %v29 = vld [vmem:[%s1 + $0x20] sm:$0xff]
    %v30 = vld [vmem:[%s1 + $0x28] sm:$0xff]
    %v31 = vld [vmem:[%s1 + $0x30] sm:$0xff]
    %v32 = vld [vmem:[%s1 + $0x38] sm:$0xff]
    %v33 = vld [vmem:[%s1 + $0x40] sm:$0xff]
    %v34 = vld [vmem:[%s1 + $0x48] sm:$0xff]
    %v35 = vld [vmem:[%s1 + $0x50] sm:$0xff]
    %v36 = vld [vmem:[%s1 + $0x58] sm:$0xff]
    %v37 = vld [vmem:[%s1 + $0x60] sm:$0xff]
    %v38 = vld [vmem:[%s1 + $0x68] sm:$0xff]
    %v39 = vld [vmem:[%s1 + $0x70] sm:$0xff]
    %v40 = vld [vmem:[%s1 + $0x78] sm:$0xff]
    %v41 = vld [vmem:[%s1 + $0x80] sm:$0xff]
    %v42 = vld [vmem:[%s1 + $0x88] sm:$0xff]
    %v43 = vld [vmem:[%s1 + $0x90] sm:$0xff]
    %v44 = vld [vmem:[%s1 + $0x98] sm:$0xff]
    %v45 = vld [vmem:[%s1 + $0xa0] sm:$0xff]
    %v46 = vld [vmem:[%s1 + $0xa8] sm:$0xff]
    %v47 = vld [vmem:[%s1 + $0xb0] sm:$0xff]
    %v48 = vld [vmem:[%s1 + $0xb8] sm:$0xff]
    %v49 = vld [vmem:[%s1 + $0xc0] sm:$0xff]
    %v50 = vld [vmem:[%s1 + $0xc8] sm:$0xff]
    %v51 = vld [vmem:[%s1 + $0xd0] sm:$0xff]
    %v52 = vld [vmem:[%s1 + $0xd8] sm:$0xff]
    %v53 = vld [vmem:[%s1 + $0xe0] sm:$0xff]
    %v54 = vld [vmem:[%s1 + $0xe8] sm:$0xff]
    %v55 = vld [vmem:[%s1 + $0xf0] sm:$0xff]
    %v56 = vld [vmem:[%s1 + $0xf8] sm:$0xff]
    %v57 = vld [vmem:[%s1 + $0x100] sm:$0xff]
    %v58 = vld [vmem:[%s1 + $0x108] sm:$0xff]
    %v59 = vld [vmem:[%s1 + $0x110] sm:$0xff]
    %v60 = vld [vmem:[%s1 + $0x118] sm:$0xff]
    %v61 = vld [vmem:[%s1 + $0x120] sm:$0xff]
    %v62 = vld [vmem:[%s1 + $0x128] sm:$0xff]
    %v63 = vld [vmem:[%s1 + $0x130] sm:$0xff]
    %v64 = vld [vmem:[%s1 + $0x138] sm:$0xff]
    %v65 = vld [vmem:[%s1 + $0x140] sm:$0xff]
    %v66 = vld [vmem:[%s1 + $0x148] sm:$0xff]
    %v67 = vld [vmem:[%s1 + $0x150] sm:$0xff]
    %v68 = vld [vmem:[%s1 + $0x158] sm:$0xff]
    %v69 = vld [vmem:[%s1 + $0x160] sm:$0xff]
    %v70 = vld [vmem:[%s1 + $0x168] sm:$0xff]
    %v71 = vld [vmem:[%s1 + $0x170] sm:$0xff]
    %v72 = vld [vmem:[%s1 + $0x178] sm:$0xff]
    %v73 = vld [vmem:[%s1 + $0x180] sm:$0xff]
    %v74 = vld [vmem:[%s1 + $0x188] sm:$0xff]
    %v75 = vld [vmem:[%s1 + $0x190] sm:$0xff]
    %v76 = vld [vmem:[%s1 + $0x198] sm:$0xff]
    %v77 = vld [vmem:[%s1 + $0x1a0] sm:$0xff]
    %v78 = vld [vmem:[%s1 + $0x1a8] sm:$0xff]
    %v79 = vld [vmem:[%s1 + $0x1b0] sm:$0xff]
    %v80 = vld [vmem:[%s1 + $0x1b8] sm:$0xff]
    %v81 = vld [vmem:[%s1 + $0x1c0] sm:$0xff]
    %v82 = vld [vmem:[%s1 + $0x1c8] sm:$0xff]
    %v83 = vld [vmem:[%s1 + $0x1d0] sm:$0xff]
    %v84 = vld [vmem:[%s1 + $0x1d8] sm:$0xff]
    %v85 = vld [vmem:[%s1 + $0x1e0] sm:$0xff]
    %v86 = vld [vmem:[%s1 + $0x1e8] sm:$0xff]
    %v87 = vld [vmem:[%s1 + $0x1f0] sm:$0xff]
    %v88 = vld [vmem:[%s1 + $0x1f8] sm:$0xff]
    %v89 = vld [vmem:[%s1 + $0x200] sm:$0xff]
    %v90 = vld [vmem:[%s1 + $0x208] sm:$0xff]
    %v91 = vld [vmem:[%s1 + $0x210] sm:$0xff]
    %v92 = vld [vmem:[%s1 + $0x218] sm:$0xff]
    %v93 = vld [vmem:[%s1 + $0x220] sm:$0xff]
    %v94 = vld [vmem:[%s1 + $0x228] sm:$0xff]
    %v95 = vld [vmem:[%s1 + $0x230] sm:$0xff]
    %v96 = vld [vmem:[%s1 + $0x238] sm:$0xff]
    %v97 = vld [vmem:[%s1 + $0x240] sm:$0xff]
    %v98 = vld [vmem:[%s1 + $0x248] sm:$0xff]
    %v99 = vld [vmem:[%s1 + $0x250] sm:$0xff]
    %v100 = vld [vmem:[%s1 + $0x258] sm:$0xff]
    %v101 = vld [vmem:[%s1 + $0x260] sm:$0xff]
    %v102 = vld [vmem:[%s1 + $0x268] sm:$0xff]
    %v103 = vld [vmem:[%s1 + $0x270] sm:$0xff]
    %v104 = vld [vmem:[%s1 + $0x278] sm:$0xff]
    %v105 = vld [vmem:[%s1 + $0x280] sm:$0xff]
    %v106 = vld [vmem:[%s1 + $0x288] sm:$0xff]
    %v107 = vld [vmem:[%s1 + $0x290] sm:$0xff]
    %v108 = vld [vmem:[%s1 + $0x298] sm:$0xff]
    %v109 = vld [vmem:[%s1 + $0x2a0] sm:$0xff]
    %v110 = vld [vmem:[%s1 + $0x2a8] sm:$0xff]
    %v111 = vld [vmem:[%s1 + $0x2b0] sm:$0xff]
    %v112 = vld [vmem:[%s1 + $0x2b8] sm:$0xff]
    %v113 = vld [vmem:[%s1 + $0x2c0] sm:$0xff]
    %v114 = vld [vmem:[%s1 + $0x2c8] sm:$0xff]
    %v115 = vld [vmem:[%s1 + $0x2d0] sm:$0xff]
    %v116 = vld [vmem:[%s1 + $0x2d8] sm:$0xff]
    %v117 = vld [vmem:[%s1 + $0x2e0] sm:$0xff]
    %v118 = vld [vmem:[%s1 + $0x2e8] sm:$0xff]
    %v119 = vld [vmem:[%s1 + $0x2f0] sm:$0xff]
    %v120 = vld [vmem:[%s1 + $0x2f8] sm:$0xff]
    %v121 = vld [vmem:[%s1 + $0x300] sm:$0xff]
    %v122 = vld [vmem:[%s1 + $0x308] sm:$0xff]
    %v123 = vld [vmem:[%s1 + $0x310] sm:$0xff]
    %v124 = vld [vmem:[%s1 + $0x318] sm:$0xff]
    %v125 = vld [vmem:[%s1 + $0x320] sm:$0xff]
    %v126 = vld [vmem:[%s1 + $0x328] sm:$0xff]
    %v127 = vld [vmem:[%s1 + $0x330] sm:$0xff]
    %v128 = vld [vmem:[%s1 + $0x338] sm:$0xff]
    %v129 = vld [vmem:[%s1 + $0x340] sm:$0xff]
    %v130 = vld [vmem:[%s1 + $0x348] sm:$0xff]
    %v131 = vld [vmem:[%s1 + $0x350] sm:$0xff]
    %v132 = vld [vmem:[%s1 + $0x358] sm:$0xff]
    %v133 = vld [vmem:[%s1 + $0x360] sm:$0xff]
    %v134 = vld [vmem:[%s1 + $0x368] sm:$0xff]
    %v135 = vld [vmem:[%s1 + $0x370] sm:$0xff]
    %v136 = vld [vmem:[%s1 + $0x378] sm:$0xff]
    %v137 = vld [vmem:[%s1 + $0x380] sm:$0xff]
    %v138 = vld [vmem:[%s1 + $0x388] sm:$0xff]
    %v139 = vld [vmem:[%s1 + $0x390] sm:$0xff]
    %v140 = vld [vmem:[%s1 + $0x398] sm:$0xff]
    %v141 = vld [vmem:[%s1 + $0x3a0] sm:$0xff]
    %v142 = vld [vmem:[%s1 + $0x3a8] sm:$0xff]
    %v143 = vld [vmem:[%s1 + $0x3b0] sm:$0xff]
    %v144 = vld [vmem:[%s1 + $0x3b8] sm:$0xff]
    %v145 = vld [vmem:[%s1 + $0x3c0] sm:$0xff]
    %v146 = vld [vmem:[%s1 + $0x3c8] sm:$0xff]
    %v147 = vld [vmem:[%s1 + $0x3d0] sm:$0xff]
    %v148 = vld [vmem:[%s1 + $0x3d8] sm:$0xff]
    %v149 = vld [vmem:[%s1 + $0x3e0] sm:$0xff]
    %v150 = vld [vmem:[%s1 + $0x3e8] sm:$0xff]
    %v151 = vld [vmem:[%s1 + $0x3f0] sm:$0xff]
    %v152 = vld [vmem:[%s1 + $0x3f8] sm:$0xff]
    %v153 = vld [vmem:[%s1 + $0x400] sm:$0xff]
    %v154 = vld [vmem:[%s1 + $0x408] sm:$0xff]
    %v155 = vld [vmem:[%s1 + $0x410] sm:$0xff]
    %v156 = vld [vmem:[%s1 + $0x418] sm:$0xff]
    %v157 = vld [vmem:[%s1 + $0x420] sm:$0xff]
    %v158 = vld [vmem:[%s1 + $0x428] sm:$0xff]
    %v159 = vld [vmem:[%s1 + $0x430] sm:$0xff]
    %v160 = vld [vmem:[%s1 + $0x438] sm:$0xff]
    %v161 = vld [vmem:[%s1 + $0x440] sm:$0xff]
    %v162 = vld [vmem:[%s1 + $0x448] sm:$0xff]
    %v163 = vld [vmem:[%s1 + $0x450] sm:$0xff]
    %v164 = vld [vmem:[%s1 + $0x458] sm:$0xff]
    %v165 = vld [vmem:[%s1 + $0x460] sm:$0xff]
    %v166 = vld [vmem:[%s1 + $0x468] sm:$0xff]
    %v167 = vld [vmem:[%s1 + $0x470] sm:$0xff]
    %v168 = vld [vmem:[%s1 + $0x478] sm:$0xff]
    %v169 = vld [vmem:[%s1 + $0x480] sm:$0xff]
    %v170 = vld [vmem:[%s1 + $0x488] sm:$0xff]
    %v171 = vld [vmem:[%s1 + $0x490] sm:$0xff]
    %v172 = vld [vmem:[%s1 + $0x498] sm:$0xff]
    %v173 = vld [vmem:[%s1 + $0x4a0] sm:$0xff]
    %v174 = vld [vmem:[%s1 + $0x4a8] sm:$0xff]
    %v175 = vld [vmem:[%s1 + $0x4b0] sm:$0xff]
    %v176 = vld [vmem:[%s1 + $0x4b8] sm:$0xff]
    %v177 = vld [vmem:[%s1 + $0x4c0] sm:$0xff]
    %v178 = vld [vmem:[%s1 + $0x4c8] sm:$0xff]
    %v179 = vld [vmem:[%s1 + $0x4d0] sm:$0xff]
    %v180 = vld [vmem:[%s1 + $0x4d8] sm:$0xff]
    %v181 = vld [vmem:[%s1 + $0x4e0] sm:$0xff]
    %v182 = vld [vmem:[%s1 + $0x4e8] sm:$0xff]
    %v183 = vld [vmem:[%s1 + $0x4f0] sm:$0xff]
    %v184 = vld [vmem:[%s1 + $0x4f8] sm:$0xff]
    %v185 = vld [vmem:[%s1 + $0x500] sm:$0xff]
    %v186 = vld [vmem:[%s1 + $0x508] sm:$0xff]
    %v187 = vld [vmem:[%s1 + $0x510] sm:$0xff]
    %v188 = vld [vmem:[%s1 + $0x518] sm:$0xff]
    %v189 = vld [vmem:[%s1 + $0x520] sm:$0xff]
    %v190 = vld [vmem:[%s1 + $0x528] sm:$0xff]
    %v191 = vld [vmem:[%s1 + $0x530] sm:$0xff]
    %v192 = vld [vmem:[%s1 + $0x538] sm:$0xff]
    %v193 = vld [vmem:[%s1 + $0x540] sm:$0xff]
    %v194 = vld [vmem:[%s1 + $0x548] sm:$0xff]
    %v195 = vld [vmem:[%s1 + $0x550] sm:$0xff]
    %v196 = vld [vmem:[%s1 + $0x558] sm:$0xff]
    %v197 = vld [vmem:[%s1 + $0x560] sm:$0xff]
    %v198 = vld [vmem:[%s1 + $0x568] sm:$0xff]
    %v199 = vld [vmem:[%s1 + $0x570] sm:$0xff]
    %v200 = vld [vmem:[%s1 + $0x578] sm:$0xff]
    %v201 = vld [vmem:[%s1 + $0x580] sm:$0xff]
    %v202 = vld [vmem:[%s1 + $0x588] sm:$0xff]
    %v203 = vld [vmem:[%s1 + $0x590] sm:$0xff]
    %v204 = vld [vmem:[%s1 + $0x598] sm:$0xff]
    %v205 = vld [vmem:[%s1 + $0x5a0] sm:$0xff]
    %v206 = vld [vmem:[%s1 + $0x5a8] sm:$0xff]
    %v207 = vld [vmem:[%s1 + $0x5b0] sm:$0xff]
    %v208 = vld [vmem:[%s1 + $0x5b8] sm:$0xff]
    %v209 = vld [vmem:[%s1 + $0x5c0] sm:$0xff]
    %v210 = vld [vmem:[%s1 + $0x5c8] sm:$0xff]
    %v211 = vld [vmem:[%s1 + $0x5d0] sm:$0xff]
    %v212 = vld [vmem:[%s1 + $0x5d8] sm:$0xff]
    %v213 = vld [vmem:[%s1 + $0x5e0] sm:$0xff]
    %v214 = vld [vmem:[%s1 + $0x5e8] sm:$0xff]
    %v215 = vld [vmem:[%s1 + $0x5f0] sm:$0xff]
    %v216 = vld [vmem:[%s1 + $0x5f8] sm:$0xff]
    %v217 = vld [vmem:[%s1 + $0x600] sm:$0xff]
    %v218 = vld [vmem:[%s1 + $0x608] sm:$0xff]
    %v219 = vld [vmem:[%s1 + $0x610] sm:$0xff]
    %v220 = vld [vmem:[%s1 + $0x618] sm:$0xff]
    %v221 = vld [vmem:[%s1 + $0x620] sm:$0xff]
    %v222 = vld [vmem:[%s1 + $0x628] sm:$0xff]
    %v223 = vld [vmem:[%s1 + $0x630] sm:$0xff]
    %v224 = vld [vmem:[%s1 + $0x638] sm:$0xff]
    %v225 = vld [vmem:[%s1 + $0x640] sm:$0xff]
    %v226 = vld [vmem:[%s1 + $0x648] sm:$0xff]
    %v227 = vld [vmem:[%s1 + $0x650] sm:$0xff]
    %v228 = vld [vmem:[%s1 + $0x658] sm:$0xff]
    %v229 = vld [vmem:[%s1 + $0x660] sm:$0xff]
    %v230 = vld [vmem:[%s1 + $0x668] sm:$0xff]
    %v231 = vld [vmem:[%s1 + $0x670] sm:$0xff]
    %v232 = vld [vmem:[%s1 + $0x678] sm:$0xff]
    %v233 = vld [vmem:[%s1 + $0x680] sm:$0xff]
    %v234 = vld [vmem:[%s1 + $0x688] sm:$0xff]
    %v235 = vld [vmem:[%s1 + $0x690] sm:$0xff]
    %v236 = vld [vmem:[%s1 + $0x698] sm:$0xff]
    %v237 = vld [vmem:[%s1 + $0x6a0] sm:$0xff]
    %v238 = vld [vmem:[%s1 + $0x6a8] sm:$0xff]
    %v239 = vld [vmem:[%s1 + $0x6b0] sm:$0xff]
    %v240 = vld [vmem:[%s1 + $0x6b8] sm:$0xff]
    %v241 = vld [vmem:[%s1 + $0x6c0] sm:$0xff]
    %v242 = vld [vmem:[%s1 + $0x6c8] sm:$0xff]
    %v243 = vld [vmem:[%s1 + $0x6d0] sm:$0xff]
    %v244 = vld [vmem:[%s1 + $0x6d8] sm:$0xff]
    %v245 = vld [vmem:[%s1 + $0x6e0] sm:$0xff]
    %v246 = vld [vmem:[%s1 + $0x6e8] sm:$0xff]
    %v247 = vld [vmem:[%s1 + $0x6f0] sm:$0xff]
    %v248 = vld [vmem:[%s1 + $0x6f8] sm:$0xff]
    %v249 = vld [vmem:[%s1 + $0x700] sm:$0xff]
    %v250 = vld [vmem:[%s1 + $0x708] sm:$0xff]
    %v251 = vld [vmem:[%s1 + $0x710] sm:$0xff]
    %v252 = vld [vmem:[%s1 + $0x718] sm:$0xff]
    %v253 = vld [vmem:[%s1 + $0x720] sm:$0xff]
    %v254 = vld [vmem:[%s1 + $0x728] sm:$0xff]
    %v255 = vld [vmem:[%s1 + $0x730] sm:$0xff]
    %v256 = vld [vmem:[%s1 + $0x738] sm:$0xff]
    %v257 = vld [vmem:[%s1 + $0x740] sm:$0xff]
    %v258 = vld [vmem:[%s1 + $0x748] sm:$0xff]
    %v259 = vld [vmem:[%s1 + $0x750] sm:$0xff]
    %v260 = vld [vmem:[%s1 + $0x758] sm:$0xff]
    %v261 = vld [vmem:[%s1 + $0x760] sm:$0xff]
    %v262 = vld [vmem:[%s1 + $0x768] sm:$0xff]
    %v263 = vld [vmem:[%s1 + $0x770] sm:$0xff]
    %v264 = vld [vmem:[%s1 + $0x778] sm:$0xff]
    %v265 = vld [vmem:[%s1 + $0x780] sm:$0xff]
    %v266 = vld [vmem:[%s1 + $0x788] sm:$0xff]
    %v267 = vld [vmem:[%s1 + $0x790] sm:$0xff]
    %v268 = vld [vmem:[%s1 + $0x798] sm:$0xff]
    %v269 = vld [vmem:[%s1 + $0x7a0] sm:$0xff]
    %v270 = vld [vmem:[%s1 + $0x7a8] sm:$0xff]
    %v271 = vld [vmem:[%s1 + $0x7b0] sm:$0xff]
    %v272 = vld [vmem:[%s1 + $0x7b8] sm:$0xff]
    %v273 = vld [vmem:[%s1 + $0x7c0] sm:$0xff]
    %v274 = vld [vmem:[%s1 + $0x7c8] sm:$0xff]
    %v275 = vld [vmem:[%s1 + $0x7d0] sm:$0xff]
    %v276 = vld [vmem:[%s1 + $0x7d8] sm:$0xff]
    %v277 = vld [vmem:[%s1 + $0x7e0] sm:$0xff]
    %v278 = vld [vmem:[%s1 + $0x7e8] sm:$0xff]
    %v279 = vld [vmem:[%s1 + $0x7f0] sm:$0xff]
    %v280 = vld [vmem:[%s1 + $0x7f8] sm:$0xff]
    %v281 = vld [vmem:[%s1 + $0x800] sm:$0xff]
    %v282 = vld [vmem:[%s1 + $0x808] sm:$0xff]
    %v283 = vld [vmem:[%s1 + $0x810] sm:$0xff]
    %v284 = vld [vmem:[%s1 + $0x818] sm:$0xff]
    %v285 = vld [vmem:[%s1 + $0x820] sm:$0xff]
    %v286 = vld [vmem:[%s1 + $0x828] sm:$0xff]
    %v287 = vld [vmem:[%s1 + $0x830] sm:$0xff]
    %v288 = vld [vmem:[%s1 + $0x838] sm:$0xff]
    %v289 = vld [vmem:[%s1 + $0x840] sm:$0xff]
    %v290 = vld [vmem:[%s1 + $0x848] sm:$0xff]
    %v291 = vld [vmem:[%s1 + $0x850] sm:$0xff]
    %v292 = vld [vmem:[%s1 + $0x858] sm:$0xff]
    %v293 = vld [vmem:[%s1 + $0x860] sm:$0xff]
    %v294 = vld [vmem:[%s1 + $0x868] sm:$0xff]
    %v295 = vld [vmem:[%s1 + $0x870] sm:$0xff]
    %v296 = vld [vmem:[%s1 + $0x878] sm:$0xff]
    %v297 = vld [vmem:[%s1 + $0x880] sm:$0xff]
    %v298 = vld [vmem:[%s1 + $0x888] sm:$0xff]
    %v299 = vld [vmem:[%s1 + $0x890] sm:$0xff]
    %v300 = vld [vmem:[%s1 + $0x898] sm:$0xff]
    %v301 = vld [vmem:[%s1 + $0x8a0] sm:$0xff]
    %v302 = vld [vmem:[%s1 + $0x8a8] sm:$0xff]
    %v303 = vld [vmem:[%s1 + $0x8b0] sm:$0xff]
    %v304 = vld [vmem:[%s1 + $0x8b8] sm:$0xff]
    %v305 = vld [vmem:[%s1 + $0x8c0] sm:$0xff]
    %v306 = vld [vmem:[%s1 + $0x8c8] sm:$0xff]
    %v307 = vld [vmem:[%s1 + $0x8d0] sm:$0xff]
    %v308 = vld [vmem:[%s1 + $0x8d8] sm:$0xff]
    %v309 = vld [vmem:[%s1 + $0x8e0] sm:$0xff]
    %v310 = vld [vmem:[%s1 + $0x8e8] sm:$0xff]
    %v311 = vld [vmem:[%s1 + $0x8f0] sm:$0xff]
    %v312 = vld [vmem:[%s1 + $0x8f8] sm:$0xff]
    %v313 = vld [vmem:[%s1 + $0x900] sm:$0xff]
    %v314 = vld [vmem:[%s1 + $0x908] sm:$0xff]
    %v315 = vld [vmem:[%s1 + $0x910] sm:$0xff]
    %v316 = vld [vmem:[%s1 + $0x918] sm:$0xff]
    %v317 = vld [vmem:[%s1 + $0x920] sm:$0xff]
    %v318 = vld [vmem:[%s1 + $0x928] sm:$0xff]
    %v319 = vld [vmem:[%s1 + $0x930] sm:$0xff]
    %v320 = vld [vmem:[%s1 + $0x938] sm:$0xff]
    %v321 = vld [vmem:[%s1 + $0x940] sm:$0xff]
    %v322 = vld [vmem:[%s1 + $0x948] sm:$0xff]
    %v323 = vld [vmem:[%s1 + $0x950] sm:$0xff]
    %v324 = vld [vmem:[%s1 + $0x958] sm:$0xff]
    %v325 = vld [vmem:[%s1 + $0x960] sm:$0xff]
    %v326 = vld [vmem:[%s1 + $0x968] sm:$0xff]
    %v327 = vld [vmem:[%s1 + $0x970] sm:$0xff]
    %v328 = vld [vmem:[%s1 + $0x978] sm:$0xff]
    %v329 = vld [vmem:[%s1 + $0x980] sm:$0xff]
    %v330 = vld [vmem:[%s1 + $0x988] sm:$0xff]
    %v331 = vld [vmem:[%s1 + $0x990] sm:$0xff]
    %v332 = vld [vmem:[%s1 + $0x998] sm:$0xff]
    %v333 = vld [vmem:[%s1 + $0x9a0] sm:$0xff]
    %v334 = vld [vmem:[%s1 + $0x9a8] sm:$0xff]
    %v335 = vld [vmem:[%s1 + $0x9b0] sm:$0xff]
    %v336 = vld [vmem:[%s1 + $0x9b8] sm:$0xff]
    %v337 = vld [vmem:[%s1 + $0x9c0] sm:$0xff]
    %v338 = vld [vmem:[%s1 + $0x9c8] sm:$0xff]
    %v339 = vld [vmem:[%s1 + $0x9d0] sm:$0xff]
    %v340 = vld [vmem:[%s1 + $0x9d8] sm:$0xff]
    %v341 = vld [vmem:[%s1 + $0x9e0] sm:$0xff]
    %v342 = vld [vmem:[%s1 + $0x9e8] sm:$0xff]
    %v343 = vld [vmem:[%s1 + $0x9f0] sm:$0xff]
    %v344 = vld [vmem:[%s1 + $0x9f8] sm:$0xff]
    %v345 = vld [vmem:[%s1 + $0xa00] sm:$0xff]
    %v346 = vld [vmem:[%s1 + $0xa08] sm:$0xff]
    %v347 = vld [vmem:[%s1 + $0xa10] sm:$0xff]
    %v348 = vld [vmem:[%s1 + $0xa18] sm:$0xff]
    %v349 = vld [vmem:[%s1 + $0xa20] sm:$0xff]
    %v350 = vld [vmem:[%s1 + $0xa28] sm:$0xff]
    %v351 = vld [vmem:[%s1 + $0xa30] sm:$0xff]
    %v352 = vld [vmem:[%s1 + $0xa38] sm:$0xff]
    %v353 = vld [vmem:[%s1 + $0xa40] sm:$0xff]
    %v354 = vld [vmem:[%s1 + $0xa48] sm:$0xff]
    %v355 = vld [vmem:[%s1 + $0xa50] sm:$0xff]
    %v356 = vld [vmem:[%s1 + $0xa58] sm:$0xff]
    %v357 = vld [vmem:[%s1 + $0xa60] sm:$0xff]
    %v358 = vld [vmem:[%s1 + $0xa68] sm:$0xff]
    %v359 = vld [vmem:[%s1 + $0xa70] sm:$0xff]
    %v360 = vld [vmem:[%s1 + $0xa78] sm:$0xff]
    %v361 = vld [vmem:[%s1 + $0xa80] sm:$0xff]
    %v362 = vld [vmem:[%s1 + $0xa88] sm:$0xff]
    %v363 = vld [vmem:[%s1 + $0xa90] sm:$0xff]
    %v364 = vld [vmem:[%s1 + $0xa98] sm:$0xff]
    %v365 = vld [vmem:[%s1 + $0xaa0] sm:$0xff]
    %v366 = vld [vmem:[%s1 + $0xaa8] sm:$0xff]
    %v367 = vld [vmem:[%s1 + $0xab0] sm:$0xff]
    %v368 = vld [vmem:[%s1 + $0xab8] sm:$0xff]
    %v369 = vld [vmem:[%s1 + $0xac0] sm:$0xff]
    %v370 = vld [vmem:[%s1 + $0xac8] sm:$0xff]
    %v371 = vld [vmem:[%s1 + $0xad0] sm:$0xff]
    %v372 = vld [vmem:[%s1 + $0xad8] sm:$0xff]
    %v373 = vld [vmem:[%s1 + $0xae0] sm:$0xff]
    %v374 = vld [vmem:[%s1 + $0xae8] sm:$0xff]
    %v375 = vld [vmem:[%s1 + $0xaf0] sm:$0xff]
    %v376 = vld [vmem:[%s1 + $0xaf8] sm:$0xff]
    %v377 = vld [vmem:[%s1 + $0xb00] sm:$0xff]
    %v378 = vld [vmem:[%s1 + $0xb08] sm:$0xff]
    %v379 = vld [vmem:[%s1 + $0xb10] sm:$0xff]
    %v380 = vld [vmem:[%s1 + $0xb18] sm:$0xff]
    %v381 = vld [vmem:[%s1 + $0xb20] sm:$0xff]
    %v382 = vld [vmem:[%s1 + $0xb28] sm:$0xff]
    %v383 = vld [vmem:[%s1 + $0xb30] sm:$0xff]
    %v384 = vld [vmem:[%s1 + $0xb38] sm:$0xff]
    %v385 = vld [vmem:[%s1 + $0xb40] sm:$0xff]
    %v386 = vld [vmem:[%s1 + $0xb48] sm:$0xff]
    %v387 = vld [vmem:[%s1 + $0xb50] sm:$0xff]
    %v388 = vld [vmem:[%s1 + $0xb58] sm:$0xff]
    %v389 = vld [vmem:[%s1 + $0xb60] sm:$0xff]
    %v390 = vld [vmem:[%s1 + $0xb68] sm:$0xff]
    %v391 = vld [vmem:[%s1 + $0xb70] sm:$0xff]
    %v392 = vld [vmem:[%s1 + $0xb78] sm:$0xff]
    %v393 = vld [vmem:[%s1 + $0xb80] sm:$0xff]
    %v394 = vld [vmem:[%s1 + $0xb88] sm:$0xff]
    %v395 = vld [vmem:[%s1 + $0xb90] sm:$0xff]
    %v396 = vld [vmem:[%s1 + $0xb98] sm:$0xff]
    %v397 = vld [vmem:[%s1 + $0xba0] sm:$0xff]
    %v398 = vld [vmem:[%s1 + $0xba8] sm:$0xff]
    %v399 = vld [vmem:[%s1 + $0xbb0] sm:$0xff]
    %v400 = vld [vmem:[%s1 + $0xbb8] sm:$0xff]
    %v401 = vld [vmem:[%s1 + $0xbc0] sm:$0xff]
    %v402 = vld [vmem:[%s1 + $0xbc8] sm:$0xff]
    %v403 = vld [vmem:[%s1 + $0xbd0] sm:$0xff]
    %v404 = vld [vmem:[%s1 + $0xbd8] sm:$0xff]
    %v405 = vld [vmem:[%s1 + $0xbe0] sm:$0xff]
    %v406 = vld [vmem:[%s1 + $0xbe8] sm:$0xff]
    %v407 = vld [vmem:[%s1 + $0xbf0] sm:$0xff]
    %v408 = vld [vmem:[%s1 + $0xbf8] sm:$0xff]
    %v409 = vld [vmem:[%s1 + $0xc00] sm:$0xff]
    %v410 = vld [vmem:[%s1 + $0xc08] sm:$0xff]
    %v411 = vld [vmem:[%s1 + $0xc10] sm:$0xff]
    %v412 = vld [vmem:[%s1 + $0xc18] sm:$0xff]
    %v413 = vld [vmem:[%s1 + $0xc20] sm:$0xff]
    %v414 = vld [vmem:[%s1 + $0xc28] sm:$0xff]
    %v415 = vld [vmem:[%s1 + $0xc30] sm:$0xff]
    %v416 = vld [vmem:[%s1 + $0xc38] sm:$0xff]
    %v417 = vld [vmem:[%s1 + $0xc40] sm:$0xff]
    %v418 = vld [vmem:[%s1 + $0xc48] sm:$0xff]
    %v419 = vld [vmem:[%s1 + $0xc50] sm:$0xff]
    %v420 = vld [vmem:[%s1 + $0xc58] sm:$0xff]
    %v421 = vld [vmem:[%s1 + $0xc60] sm:$0xff]
    %v422 = vld [vmem:[%s1 + $0xc68] sm:$0xff]
    %v423 = vld [vmem:[%s1 + $0xc70] sm:$0xff]
    %v424 = vld [vmem:[%s1 + $0xc78] sm:$0xff]
    %v425 = vld [vmem:[%s1 + $0xc80] sm:$0xff]
    %v426 = vld [vmem:[%s1 + $0xc88] sm:$0xff]
    %v427 = vld [vmem:[%s1 + $0xc90] sm:$0xff]
    %v428 = vld [vmem:[%s1 + $0xc98] sm:$0xff]
    %v429 = vld [vmem:[%s1 + $0xca0] sm:$0xff]
    %v430 = vld [vmem:[%s1 + $0xca8] sm:$0xff]
    %v431 = vld [vmem:[%s1 + $0xcb0] sm:$0xff]
    %v432 = vld [vmem:[%s1 + $0xcb8] sm:$0xff]
    %v433 = vld [vmem:[%s1 + $0xcc0] sm:$0xff]
    %v434 = vld [vmem:[%s1 + $0xcc8] sm:$0xff]
    %v435 = vld [vmem:[%s1 + $0xcd0] sm:$0xff]
    %v436 = vld [vmem:[%s1 + $0xcd8] sm:$0xff]
    %v437 = vld [vmem:[%s1 + $0xce0] sm:$0xff]
    %v438 = vld [vmem:[%s1 + $0xce8] sm:$0xff]
    %v439 = vld [vmem:[%s1 + $0xcf0] sm:$0xff]
    %v440 = vld [vmem:[%s1 + $0xcf8] sm:$0xff]
    %v441 = vld [vmem:[%s1 + $0xd00] sm:$0xff]
    %v442 = vld [vmem:[%s1 + $0xd08] sm:$0xff]
    %v443 = vld [vmem:[%s1 + $0xd10] sm:$0xff]
    %v444 = vld [vmem:[%s1 + $0xd18] sm:$0xff]
    %v445 = vld [vmem:[%s1 + $0xd20] sm:$0xff]
    %v446 = vld [vmem:[%s1 + $0xd28] sm:$0xff]
    %v447 = vld [vmem:[%s1 + $0xd30] sm:$0xff]
    %v448 = vld [vmem:[%s1 + $0xd38] sm:$0xff]
    %v449 = vld [vmem:[%s1 + $0xd40] sm:$0xff]
    %v450 = vld [vmem:[%s1 + $0xd48] sm:$0xff]
    %v451 = vld [vmem:[%s1 + $0xd50] sm:$0xff]
    %v452 = vld [vmem:[%s1 + $0xd58] sm:$0xff]
    %v453 = vld [vmem:[%s1 + $0xd60] sm:$0xff]
    %v454 = vld [vmem:[%s1 + $0xd68] sm:$0xff]
    %v455 = vld [vmem:[%s1 + $0xd70] sm:$0xff]
    %v456 = vld [vmem:[%s1 + $0xd78] sm:$0xff]
    %v457 = vld [vmem:[%s1 + $0xd80] sm:$0xff]
    %v458 = vld [vmem:[%s1 + $0xd88] sm:$0xff]
    %v459 = vld [vmem:[%s1 + $0xd90] sm:$0xff]
    %v460 = vld [vmem:[%s1 + $0xd98] sm:$0xff]
    %v461 = vld [vmem:[%s1 + $0xda0] sm:$0xff]
    %v462 = vld [vmem:[%s1 + $0xda8] sm:$0xff]
    %v463 = vld [vmem:[%s1 + $0xdb0] sm:$0xff]
    %v464 = vld [vmem:[%s1 + $0xdb8] sm:$0xff]
    %v465 = vld [vmem:[%s1 + $0xdc0] sm:$0xff]
    %v466 = vld [vmem:[%s1 + $0xdc8] sm:$0xff]
    %v467 = vld [vmem:[%s1 + $0xdd0] sm:$0xff]
    %v468 = vld [vmem:[%s1 + $0xdd8] sm:$0xff]
    %v469 = vld [vmem:[%s1 + $0xde0] sm:$0xff]
    %v470 = vld [vmem:[%s1 + $0xde8] sm:$0xff]
    %v471 = vld [vmem:[%s1 + $0xdf0] sm:$0xff]
    %v472 = vld [vmem:[%s1 + $0xdf8] sm:$0xff]
    %v473 = vld [vmem:[%s1 + $0xe00] sm:$0xff]
    %v474 = vld [vmem:[%s1 + $0xe08] sm:$0xff]
    %v475 = vld [vmem:[%s1 + $0xe10] sm:$0xff]
    %v476 = vld [vmem:[%s1 + $0xe18] sm:$0xff]
    %v477 = vld [vmem:[%s1 + $0xe20] sm:$0xff]
    %v478 = vld [vmem:[%s1 + $0xe28] sm:$0xff]
    %v479 = vld [vmem:[%s1 + $0xe30] sm:$0xff]
    %v480 = vld [vmem:[%s1 + $0xe38] sm:$0xff]
    %v481 = vld [vmem:[%s1 + $0xe40] sm:$0xff]
    %v482 = vld [vmem:[%s1 + $0xe48] sm:$0xff]
    %v483 = vld [vmem:[%s1 + $0xe50] sm:$0xff]
    %v484 = vld [vmem:[%s1 + $0xe58] sm:$0xff]
    %v485 = vld [vmem:[%s1 + $0xe60] sm:$0xff]
    %v486 = vld [vmem:[%s1 + $0xe68] sm:$0xff]
    %v487 = vld [vmem:[%s1 + $0xe70] sm:$0xff]
    %v488 = vld [vmem:[%s1 + $0xe78] sm:$0xff]
    %v489 = vld [vmem:[%s1 + $0xe80] sm:$0xff]
    %v490 = vld [vmem:[%s1 + $0xe88] sm:$0xff]
    %v491 = vld [vmem:[%s1 + $0xe90] sm:$0xff]
    %v492 = vld [vmem:[%s1 + $0xe98] sm:$0xff]
    %v493 = vld [vmem:[%s1 + $0xea0] sm:$0xff]
    %v494 = vld [vmem:[%s1 + $0xea8] sm:$0xff]
    %v495 = vld [vmem:[%s1 + $0xeb0] sm:$0xff]
    %v496 = vld [vmem:[%s1 + $0xeb8] sm:$0xff]
    %v497 = vld [vmem:[%s1 + $0xec0] sm:$0xff]
    %v498 = vld [vmem:[%s1 + $0xec8] sm:$0xff]
    %v499 = vld [vmem:[%s1 + $0xed0] sm:$0xff]
    %v500 = vld [vmem:[%s1 + $0xed8] sm:$0xff]
    %v501 = vld [vmem:[%s1 + $0xee0] sm:$0xff]
    %v502 = vld [vmem:[%s1 + $0xee8] sm:$0xff]
    %v503 = vld [vmem:[%s1 + $0xef0] sm:$0xff]
    %v504 = vld [vmem:[%s1 + $0xef8] sm:$0xff]
    %v505 = vld [vmem:[%s1 + $0xf00] sm:$0xff]
    %v506 = vld [vmem:[%s1 + $0xf08] sm:$0xff]
    %v507 = vld [vmem:[%s1 + $0xf10] sm:$0xff]
    %v508 = vld [vmem:[%s1 + $0xf18] sm:$0xff]
    %v509 = vld [vmem:[%s1 + $0xf20] sm:$0xff]
    %v510 = vld [vmem:[%s1 + $0xf28] sm:$0xff]
    %v511 = vld [vmem:[%s1 + $0xf30] sm:$0xff]
    %v512 = vld [vmem:[%s1 + $0xf38] sm:$0xff]
    %v513 = vld [vmem:[%s1 + $0xf40] sm:$0xff]
    %v514 = vld [vmem:[%s1 + $0xf48] sm:$0xff]
    %v515 = vld [vmem:[%s1 + $0xf50] sm:$0xff]
    %v516 = vld [vmem:[%s1 + $0xf58] sm:$0xff]
    %v517 = vld [vmem:[%s1 + $0xf60] sm:$0xff]
    %v518 = vld [vmem:[%s1 + $0xf68] sm:$0xff]
    %v519 = vld [vmem:[%s1 + $0xf70] sm:$0xff]
    %v520 = vld [vmem:[%s1 + $0xf78] sm:$0xff]
    %v521 = vld [vmem:[%s1 + $0xf80] sm:$0xff]
    %v522 = vld [vmem:[%s1 + $0xf88] sm:$0xff]
    %v523 = vld [vmem:[%s1 + $0xf90] sm:$0xff]
    %v524 = vld [vmem:[%s1 + $0xf98] sm:$0xff]
    %v525 = vld [vmem:[%s1 + $0xfa0] sm:$0xff]
    %v526 = vld [vmem:[%s1 + $0xfa8] sm:$0xff]
    %v527 = vld [vmem:[%s1 + $0xfb0] sm:$0xff]
    %v528 = vld [vmem:[%s1 + $0xfb8] sm:$0xff]
    %v529 = vld [vmem:[%s1 + $0xfc0] sm:$0xff]
    %v530 = vld [vmem:[%s1 + $0xfc8] sm:$0xff]
    %v531 = vld [vmem:[%s1 + $0xfd0] sm:$0xff]
    %v532 = vld [vmem:[%s1 + $0xfd8] sm:$0xff]
    %v533 = vld [vmem:[%s1 + $0xfe0] sm:$0xff]
    %v534 = vld [vmem:[%s1 + $0xfe8] sm:$0xff]
    %v535 = vld [vmem:[%s1 + $0xff0] sm:$0xff]
    %v536 = vld [vmem:[%s1 + $0xff8] sm:$0xff]
    %v537 = vld [vmem:[%s2] sm:$0x3]
    %v539 = vperm.slane %v537, 0
    %v540 = vperm.slane %v537, 1
    %544 = vst [vmem:[#allocation1] ss:$9 sm:$0xff] %v21
    %v545 = vld [vmem:[#allocation1] sm:$0xff]
    %v546 = vld [vmem:[#allocation1 + $0x9] sm:$0xff]
    %v547 = vld [vmem:[#allocation1 + $0x12] sm:$0xff]
    %v548 = vld [vmem:[#allocation1 + $0x1b] sm:$0xff]
    %v549 = vld [vmem:[#allocation1 + $0x24] sm:$0xff]
    %v550 = vld [vmem:[#allocation1 + $0x2d] sm:$0xff]
    %v551 = vld [vmem:[#allocation1 + $0x36] sm:$0xff]
    %v552 = vld [vmem:[#allocation1 + $0x3f] sm:$0xff]
    %554 = vst [vmem:[#allocation1] ss:$9 sm:$0xff] %v22
    %v555 = vld [vmem:[#allocation1] sm:$0xff]
    %v556 = vld [vmem:[#allocation1 + $0x9] sm:$0xff]
    %v557 = vld [vmem:[#allocation1 + $0x12] sm:$0xff]
    %v558 = vld [vmem:[#allocation1 + $0x1b] sm:$0xff]
    %v559 = vld [vmem:[#allocation1 + $0x24] sm:$0xff]
    %v560 = vld [vmem:[#allocation1 + $0x2d] sm:$0xff]
    %v561 = vld [vmem:[#allocation1 + $0x36] sm:$0xff]
    %v562 = vld [vmem:[#allocation1 + $0x3f] sm:$0xff]
    %564 = vst [vmem:[#allocation1] ss:$9 sm:$0xff] %v23
    %v565 = vld [vmem:[#allocation1] sm:$0xff]
    %v566 = vld [vmem:[#allocation1 + $0x9] sm:$0xff]
    %v567 = vld [vmem:[#allocation1 + $0x12] sm:$0xff]
    %v568 = vld [vmem:[#allocation1 + $0x1b] sm:$0xff]
    %v569 = vld [vmem:[#allocation1 + $0x24] sm:$0xff]
    %v570 = vld [vmem:[#allocation1 + $0x2d] sm:$0xff]
    %v571 = vld [vmem:[#allocation1 + $0x36] sm:$0xff]
    %v572 = vld [vmem:[#allocation1 + $0x3f] sm:$0xff]
    %574 = vst [vmem:[#allocation1] ss:$9 sm:$0xff] %v24
    %v575 = vld [vmem:[#allocation1] sm:$0xff]
    %v576 = vld [vmem:[#allocation1 + $0x9] sm:$0xff]
    %v577 = vld [vmem:[#allocation1 + $0x12] sm:$0xff]
    %v578 = vld [vmem:[#allocation1 + $0x1b] sm:$0xff]
    %v579 = vld [vmem:[#allocation1 + $0x24] sm:$0xff]
    %v580 = vld [vmem:[#allocation1 + $0x2d] sm:$0xff]
    %v581 = vld [vmem:[#allocation1 + $0x36] sm:$0xff]
    %v582 = vld [vmem:[#allocation1 + $0x3f] sm:$0xff]
    %v1127 = vunpack.c.l.b16 %v25
    %v1128 = vunpack.c.h.b16 %v25
    %v1129 = vunpack.c.l.b16 %v26
    %v1130 = vunpack.c.h.b16 %v26
    %v1131 = vunpack.c.l.b16 %v27
    %v1132 = vunpack.c.h.b16 %v27
    %v1133 = vunpack.c.l.b16 %v28
    %v1134 = vunpack.c.h.b16 %v28
    %v1135 = vunpack.c.l.b16 %v29
    %v1136 = vunpack.c.h.b16 %v29
    %v1137 = vunpack.c.l.b16 %v30
    %v1138 = vunpack.c.h.b16 %v30
    %v1139 = vunpack.c.l.b16 %v31
    %v1140 = vunpack.c.h.b16 %v31
    %v1141 = vunpack.c.l.b16 %v32
    %v1142 = vunpack.c.h.b16 %v32
    %v1143 = vunpack.c.l.b16 %v33
    %v1144 = vunpack.c.h.b16 %v33
    %v1145 = vunpack.c.l.b16 %v34
    %v1146 = vunpack.c.h.b16 %v34
    %v1147 = vunpack.c.l.b16 %v35
    %v1148 = vunpack.c.h.b16 %v35
    %v1149 = vunpack.c.l.b16 %v36
    %v1150 = vunpack.c.h.b16 %v36
    %v1151 = vunpack.c.l.b16 %v37
    %v1152 = vunpack.c.h.b16 %v37
    %v1153 = vunpack.c.l.b16 %v38
    %v1154 = vunpack.c.h.b16 %v38
    %v1155 = vunpack.c.l.b16 %v39
    %v1156 = vunpack.c.h.b16 %v39
    %v1157 = vunpack.c.l.b16 %v40
    %v1158 = vunpack.c.h.b16 %v40
    %v1159 = vunpack.c.l.b16 %v41
    %v1160 = vunpack.c.h.b16 %v41
    %v1161 = vunpack.c.l.b16 %v42
    %v1162 = vunpack.c.h.b16 %v42
    %v1163 = vunpack.c.l.b16 %v43
    %v1164 = vunpack.c.h.b16 %v43
    %v1165 = vunpack.c.l.b16 %v44
    %v1166 = vunpack.c.h.b16 %v44
    %v1167 = vunpack.c.l.b16 %v45
    %v1168 = vunpack.c.h.b16 %v45
    %v1169 = vunpack.c.l.b16 %v46
    %v1170 = vunpack.c.h.b16 %v46
    %v1171 = vunpack.c.l.b16 %v47
    %v1172 = vunpack.c.h.b16 %v47
    %v1173 = vunpack.c.l.b16 %v48
    %v1174 = vunpack.c.h.b16 %v48
    %v1175 = vunpack.c.l.b16 %v49
    %v1176 = vunpack.c.h.b16 %v49
    %v1177 = vunpack.c.l.b16 %v50
    %v1178 = vunpack.c.h.b16 %v50
    %v1179 = vunpack.c.l.b16 %v51
    %v1180 = vunpack.c.h.b16 %v51
    %v1181 = vunpack.c.l.b16 %v52
    %v1182 = vunpack.c.h.b16 %v52
    %v1183 = vunpack.c.l.b16 %v53
    %v1184 = vunpack.c.h.b16 %v53
    %v1185 = vunpack.c.l.b16 %v54
    %v1186 = vunpack.c.h.b16 %v54
    %v1187 = vunpack.c.l.b16 %v55
    %v1188 = vunpack.c.h.b16 %v55
    %v1189 = vunpack.c.l.b16 %v56
    %v1190 = vunpack.c.h.b16 %v56
    %v1191 = vunpack.c.l.b16 %v57
    %v1192 = vunpack.c.h.b16 %v57
    %v1193 = vunpack.c.l.b16 %v58
    %v1194 = vunpack.c.h.b16 %v58
    %v1195 = vunpack.c.l.b16 %v59
    %v1196 = vunpack.c.h.b16 %v59
    %v1197 = vunpack.c.l.b16 %v60
    %v1198 = vunpack.c.h.b16 %v60
    %v1199 = vunpack.c.l.b16 %v61
    %v1200 = vunpack.c.h.b16 %v61
    %v1201 = vunpack.c.l.b16 %v62
    %v1202 = vunpack.c.h.b16 %v62
    %v1203 = vunpack.c.l.b16 %v63
    %v1204 = vunpack.c.h.b16 %v63
    %v1205 = vunpack.c.l.b16 %v64
    %v1206 = vunpack.c.h.b16 %v64
    %v1207 = vunpack.c.l.b16 %v65
    %v1208 = vunpack.c.h.b16 %v65
    %v1209 = vunpack.c.l.b16 %v66
    %v1210 = vunpack.c.h.b16 %v66
    %v1211 = vunpack.c.l.b16 %v67
    %v1212 = vunpack.c.h.b16 %v67
    %v1213 = vunpack.c.l.b16 %v68
    %v1214 = vunpack.c.h.b16 %v68
    %v1215 = vunpack.c.l.b16 %v69
    %v1216 = vunpack.c.h.b16 %v69
    %v1217 = vunpack.c.l.b16 %v70
    %v1218 = vunpack.c.h.b16 %v70
    %v1219 = vunpack.c.l.b16 %v71
    %v1220 = vunpack.c.h.b16 %v71
    %v1221 = vunpack.c.l.b16 %v72
    %v1222 = vunpack.c.h.b16 %v72
    %v1223 = vunpack.c.l.b16 %v73
    %v1224 = vunpack.c.h.b16 %v73
    %v1225 = vunpack.c.l.b16 %v74
    %v1226 = vunpack.c.h.b16 %v74
    %v1227 = vunpack.c.l.b16 %v75
    %v1228 = vunpack.c.h.b16 %v75
    %v1229 = vunpack.c.l.b16 %v76
    %v1230 = vunpack.c.h.b16 %v76
    %v1231 = vunpack.c.l.b16 %v77
    %v1232 = vunpack.c.h.b16 %v77
    %v1233 = vunpack.c.l.b16 %v78
    %v1234 = vunpack.c.h.b16 %v78
    %v1235 = vunpack.c.l.b16 %v79
    %v1236 = vunpack.c.h.b16 %v79
    %v1237 = vunpack.c.l.b16 %v80
    %v1238 = vunpack.c.h.b16 %v80
    %v1239 = vunpack.c.l.b16 %v81
    %v1240 = vunpack.c.h.b16 %v81
    %v1241 = vunpack.c.l.b16 %v82
    %v1242 = vunpack.c.h.b16 %v82
    %v1243 = vunpack.c.l.b16 %v83
    %v1244 = vunpack.c.h.b16 %v83
    %v1245 = vunpack.c.l.b16 %v84
    %v1246 = vunpack.c.h.b16 %v84
    %v1247 = vunpack.c.l.b16 %v85
    %v1248 = vunpack.c.h.b16 %v85
    %v1249 = vunpack.c.l.b16 %v86
    %v1250 = vunpack.c.h.b16 %v86
    %v1251 = vunpack.c.l.b16 %v87
    %v1252 = vunpack.c.h.b16 %v87
    %v1253 = vunpack.c.l.b16 %v88
    %v1254 = vunpack.c.h.b16 %v88
    %v1255 = vunpack.c.l.b16 %v89
    %v1256 = vunpack.c.h.b16 %v89
    %v1257 = vunpack.c.l.b16 %v90
    %v1258 = vunpack.c.h.b16 %v90
    %v1259 = vunpack.c.l.b16 %v91
    %v1260 = vunpack.c.h.b16 %v91
    %v1261 = vunpack.c.l.b16 %v92
    %v1262 = vunpack.c.h.b16 %v92
    %v1263 = vunpack.c.l.b16 %v93
    %v1264 = vunpack.c.h.b16 %v93
    %v1265 = vunpack.c.l.b16 %v94
    %v1266 = vunpack.c.h.b16 %v94
    %v1267 = vunpack.c.l.b16 %v95
    %v1268 = vunpack.c.h.b16 %v95
    %v1269 = vunpack.c.l.b16 %v96
    %v1270 = vunpack.c.h.b16 %v96
    %v1271 = vunpack.c.l.b16 %v97
    %v1272 = vunpack.c.h.b16 %v97
    %v1273 = vunpack.c.l.b16 %v98
    %v1274 = vunpack.c.h.b16 %v98
    %v1275 = vunpack.c.l.b16 %v99
    %v1276 = vunpack.c.h.b16 %v99
    %v1277 = vunpack.c.l.b16 %v100
    %v1278 = vunpack.c.h.b16 %v100
    %v1279 = vunpack.c.l.b16 %v101
    %v1280 = vunpack.c.h.b16 %v101
    %v1281 = vunpack.c.l.b16 %v102
    %v1282 = vunpack.c.h.b16 %v102
    %v1283 = vunpack.c.l.b16 %v103
    %v1284 = vunpack.c.h.b16 %v103
    %v1285 = vunpack.c.l.b16 %v104
    %v1286 = vunpack.c.h.b16 %v104
    %v1287 = vunpack.c.l.b16 %v105
    %v1288 = vunpack.c.h.b16 %v105
    %v1289 = vunpack.c.l.b16 %v106
    %v1290 = vunpack.c.h.b16 %v106
    %v1291 = vunpack.c.l.b16 %v107
    %v1292 = vunpack.c.h.b16 %v107
    %v1293 = vunpack.c.l.b16 %v108
    %v1294 = vunpack.c.h.b16 %v108
    %v1295 = vunpack.c.l.b16 %v109
    %v1296 = vunpack.c.h.b16 %v109
    %v1297 = vunpack.c.l.b16 %v110
    %v1298 = vunpack.c.h.b16 %v110
    %v1299 = vunpack.c.l.b16 %v111
    %v1300 = vunpack.c.h.b16 %v111
    %v1301 = vunpack.c.l.b16 %v112
    %v1302 = vunpack.c.h.b16 %v112
    %v1303 = vunpack.c.l.b16 %v113
    %v1304 = vunpack.c.h.b16 %v113
    %v1305 = vunpack.c.l.b16 %v114
    %v1306 = vunpack.c.h.b16 %v114
    %v1307 = vunpack.c.l.b16 %v115
    %v1308 = vunpack.c.h.b16 %v115
    %v1309 = vunpack.c.l.b16 %v116
    %v1310 = vunpack.c.h.b16 %v116
    %v1311 = vunpack.c.l.b16 %v117
    %v1312 = vunpack.c.h.b16 %v117
    %v1313 = vunpack.c.l.b16 %v118
    %v1314 = vunpack.c.h.b16 %v118
    %v1315 = vunpack.c.l.b16 %v119
    %v1316 = vunpack.c.h.b16 %v119
    %v1317 = vunpack.c.l.b16 %v120
    %v1318 = vunpack.c.h.b16 %v120
    %v1319 = vunpack.c.l.b16 %v121
    %v1320 = vunpack.c.h.b16 %v121
    %v1321 = vunpack.c.l.b16 %v122
    %v1322 = vunpack.c.h.b16 %v122
    %v1323 = vunpack.c.l.b16 %v123
    %v1324 = vunpack.c.h.b16 %v123
    %v1325 = vunpack.c.l.b16 %v124
    %v1326 = vunpack.c.h.b16 %v124
    %v1327 = vunpack.c.l.b16 %v125
    %v1328 = vunpack.c.h.b16 %v125
    %v1329 = vunpack.c.l.b16 %v126
    %v1330 = vunpack.c.h.b16 %v126
    %v1331 = vunpack.c.l.b16 %v127
    %v1332 = vunpack.c.h.b16 %v127
    %v1333 = vunpack.c.l.b16 %v128
    %v1334 = vunpack.c.h.b16 %v128
    %v1335 = vunpack.c.l.b16 %v129
    %v1336 = vunpack.c.h.b16 %v129
    %v1337 = vunpack.c.l.b16 %v130
    %v1338 = vunpack.c.h.b16 %v130
    %v1339 = vunpack.c.l.b16 %v131
    %v1340 = vunpack.c.h.b16 %v131
    %v1341 = vunpack.c.l.b16 %v132
    %v1342 = vunpack.c.h.b16 %v132
    %v1343 = vunpack.c.l.b16 %v133
    %v1344 = vunpack.c.h.b16 %v133
    %v1345 = vunpack.c.l.b16 %v134
    %v1346 = vunpack.c.h.b16 %v134
    %v1347 = vunpack.c.l.b16 %v135
    %v1348 = vunpack.c.h.b16 %v135
    %v1349 = vunpack.c.l.b16 %v136
    %v1350 = vunpack.c.h.b16 %v136
    %v1351 = vunpack.c.l.b16 %v137
    %v1352 = vunpack.c.h.b16 %v137
    %v1353 = vunpack.c.l.b16 %v138
    %v1354 = vunpack.c.h.b16 %v138
    %v1355 = vunpack.c.l.b16 %v139
    %v1356 = vunpack.c.h.b16 %v139
    %v1357 = vunpack.c.l.b16 %v140
    %v1358 = vunpack.c.h.b16 %v140
    %v1359 = vunpack.c.l.b16 %v141
    %v1360 = vunpack.c.h.b16 %v141
    %v1361 = vunpack.c.l.b16 %v142
    %v1362 = vunpack.c.h.b16 %v142
    %v1363 = vunpack.c.l.b16 %v143
    %v1364 = vunpack.c.h.b16 %v143
    %v1365 = vunpack.c.l.b16 %v144
    %v1366 = vunpack.c.h.b16 %v144
    %v1367 = vunpack.c.l.b16 %v145
    %v1368 = vunpack.c.h.b16 %v145
    %v1369 = vunpack.c.l.b16 %v146
    %v1370 = vunpack.c.h.b16 %v146
    %v1371 = vunpack.c.l.b16 %v147
    %v1372 = vunpack.c.h.b16 %v147
    %v1373 = vunpack.c.l.b16 %v148
    %v1374 = vunpack.c.h.b16 %v148
    %v1375 = vunpack.c.l.b16 %v149
    %v1376 = vunpack.c.h.b16 %v149
    %v1377 = vunpack.c.l.b16 %v150
    %v1378 = vunpack.c.h.b16 %v150
    %v1379 = vunpack.c.l.b16 %v151
    %v1380 = vunpack.c.h.b16 %v151
    %v1381 = vunpack.c.l.b16 %v152
    %v1382 = vunpack.c.h.b16 %v152
    %v1383 = vunpack.c.l.b16 %v153
    %v1384 = vunpack.c.h.b16 %v153
    %v1385 = vunpack.c.l.b16 %v154
    %v1386 = vunpack.c.h.b16 %v154
    %v1387 = vunpack.c.l.b16 %v155
    %v1388 = vunpack.c.h.b16 %v155
    %v1389 = vunpack.c.l.b16 %v156
    %v1390 = vunpack.c.h.b16 %v156
    %v1391 = vunpack.c.l.b16 %v157
    %v1392 = vunpack.c.h.b16 %v157
    %v1393 = vunpack.c.l.b16 %v158
    %v1394 = vunpack.c.h.b16 %v158
    %v1395 = vunpack.c.l.b16 %v159
    %v1396 = vunpack.c.h.b16 %v159
    %v1397 = vunpack.c.l.b16 %v160
    %v1398 = vunpack.c.h.b16 %v160
    %v1399 = vunpack.c.l.b16 %v161
    %v1400 = vunpack.c.h.b16 %v161
    %v1401 = vunpack.c.l.b16 %v162
    %v1402 = vunpack.c.h.b16 %v162
    %v1403 = vunpack.c.l.b16 %v163
    %v1404 = vunpack.c.h.b16 %v163
    %v1405 = vunpack.c.l.b16 %v164
    %v1406 = vunpack.c.h.b16 %v164
    %v1407 = vunpack.c.l.b16 %v165
    %v1408 = vunpack.c.h.b16 %v165
    %v1409 = vunpack.c.l.b16 %v166
    %v1410 = vunpack.c.h.b16 %v166
    %v1411 = vunpack.c.l.b16 %v167
    %v1412 = vunpack.c.h.b16 %v167
    %v1413 = vunpack.c.l.b16 %v168
    %v1414 = vunpack.c.h.b16 %v168
    %v1415 = vunpack.c.l.b16 %v169
    %v1416 = vunpack.c.h.b16 %v169
    %v1417 = vunpack.c.l.b16 %v170
    %v1418 = vunpack.c.h.b16 %v170
    %v1419 = vunpack.c.l.b16 %v171
    %v1420 = vunpack.c.h.b16 %v171
    %v1421 = vunpack.c.l.b16 %v172
    %v1422 = vunpack.c.h.b16 %v172
    %v1423 = vunpack.c.l.b16 %v173
    %v1424 = vunpack.c.h.b16 %v173
    %v1425 = vunpack.c.l.b16 %v174
    %v1426 = vunpack.c.h.b16 %v174
    %v1427 = vunpack.c.l.b16 %v175
    %v1428 = vunpack.c.h.b16 %v175
    %v1429 = vunpack.c.l.b16 %v176
    %v1430 = vunpack.c.h.b16 %v176
    %v1431 = vunpack.c.l.b16 %v177
    %v1432 = vunpack.c.h.b16 %v177
    %v1433 = vunpack.c.l.b16 %v178
    %v1434 = vunpack.c.h.b16 %v178
    %v1435 = vunpack.c.l.b16 %v179
    %v1436 = vunpack.c.h.b16 %v179
    %v1437 = vunpack.c.l.b16 %v180
    %v1438 = vunpack.c.h.b16 %v180
    %v1439 = vunpack.c.l.b16 %v181
    %v1440 = vunpack.c.h.b16 %v181
    %v1441 = vunpack.c.l.b16 %v182
    %v1442 = vunpack.c.h.b16 %v182
    %v1443 = vunpack.c.l.b16 %v183
    %v1444 = vunpack.c.h.b16 %v183
    %v1445 = vunpack.c.l.b16 %v184
    %v1446 = vunpack.c.h.b16 %v184
    %v1447 = vunpack.c.l.b16 %v185
    %v1448 = vunpack.c.h.b16 %v185
    %v1449 = vunpack.c.l.b16 %v186
    %v1450 = vunpack.c.h.b16 %v186
    %v1451 = vunpack.c.l.b16 %v187
    %v1452 = vunpack.c.h.b16 %v187
    %v1453 = vunpack.c.l.b16 %v188
    %v1454 = vunpack.c.h.b16 %v188
    %v1455 = vunpack.c.l.b16 %v189
    %v1456 = vunpack.c.h.b16 %v189
    %v1457 = vunpack.c.l.b16 %v190
    %v1458 = vunpack.c.h.b16 %v190
    %v1459 = vunpack.c.l.b16 %v191
    %v1460 = vunpack.c.h.b16 %v191
    %v1461 = vunpack.c.l.b16 %v192
    %v1462 = vunpack.c.h.b16 %v192
    %v1463 = vunpack.c.l.b16 %v193
    %v1464 = vunpack.c.h.b16 %v193
    %v1465 = vunpack.c.l.b16 %v194
    %v1466 = vunpack.c.h.b16 %v194
    %v1467 = vunpack.c.l.b16 %v195
    %v1468 = vunpack.c.h.b16 %v195
    %v1469 = vunpack.c.l.b16 %v196
    %v1470 = vunpack.c.h.b16 %v196
    %v1471 = vunpack.c.l.b16 %v197
    %v1472 = vunpack.c.h.b16 %v197
    %v1473 = vunpack.c.l.b16 %v198
    %v1474 = vunpack.c.h.b16 %v198
    %v1475 = vunpack.c.l.b16 %v199
    %v1476 = vunpack.c.h.b16 %v199
    %v1477 = vunpack.c.l.b16 %v200
    %v1478 = vunpack.c.h.b16 %v200
    %v1479 = vunpack.c.l.b16 %v201
    %v1480 = vunpack.c.h.b16 %v201
    %v1481 = vunpack.c.l.b16 %v202
    %v1482 = vunpack.c.h.b16 %v202
    %v1483 = vunpack.c.l.b16 %v203
    %v1484 = vunpack.c.h.b16 %v203
    %v1485 = vunpack.c.l.b16 %v204
    %v1486 = vunpack.c.h.b16 %v204
    %v1487 = vunpack.c.l.b16 %v205
    %v1488 = vunpack.c.h.b16 %v205
    %v1489 = vunpack.c.l.b16 %v206
    %v1490 = vunpack.c.h.b16 %v206
    %v1491 = vunpack.c.l.b16 %v207
    %v1492 = vunpack.c.h.b16 %v207
    %v1493 = vunpack.c.l.b16 %v208
    %v1494 = vunpack.c.h.b16 %v208
    %v1495 = vunpack.c.l.b16 %v209
    %v1496 = vunpack.c.h.b16 %v209
    %v1497 = vunpack.c.l.b16 %v210
    %v1498 = vunpack.c.h.b16 %v210
    %v1499 = vunpack.c.l.b16 %v211
    %v1500 = vunpack.c.h.b16 %v211
    %v1501 = vunpack.c.l.b16 %v212
    %v1502 = vunpack.c.h.b16 %v212
    %v1503 = vunpack.c.l.b16 %v213
    %v1504 = vunpack.c.h.b16 %v213
    %v1505 = vunpack.c.l.b16 %v214
    %v1506 = vunpack.c.h.b16 %v214
    %v1507 = vunpack.c.l.b16 %v215
    %v1508 = vunpack.c.h.b16 %v215
    %v1509 = vunpack.c.l.b16 %v216
    %v1510 = vunpack.c.h.b16 %v216
    %v1511 = vunpack.c.l.b16 %v217
    %v1512 = vunpack.c.h.b16 %v217
    %v1513 = vunpack.c.l.b16 %v218
    %v1514 = vunpack.c.h.b16 %v218
    %v1515 = vunpack.c.l.b16 %v219
    %v1516 = vunpack.c.h.b16 %v219
    %v1517 = vunpack.c.l.b16 %v220
    %v1518 = vunpack.c.h.b16 %v220
    %v1519 = vunpack.c.l.b16 %v221
    %v1520 = vunpack.c.h.b16 %v221
    %v1521 = vunpack.c.l.b16 %v222
    %v1522 = vunpack.c.h.b16 %v222
    %v1523 = vunpack.c.l.b16 %v223
    %v1524 = vunpack.c.h.b16 %v223
    %v1525 = vunpack.c.l.b16 %v224
    %v1526 = vunpack.c.h.b16 %v224
    %v1527 = vunpack.c.l.b16 %v225
    %v1528 = vunpack.c.h.b16 %v225
    %v1529 = vunpack.c.l.b16 %v226
    %v1530 = vunpack.c.h.b16 %v226
    %v1531 = vunpack.c.l.b16 %v227
    %v1532 = vunpack.c.h.b16 %v227
    %v1533 = vunpack.c.l.b16 %v228
    %v1534 = vunpack.c.h.b16 %v228
    %v1535 = vunpack.c.l.b16 %v229
    %v1536 = vunpack.c.h.b16 %v229
    %v1537 = vunpack.c.l.b16 %v230
    %v1538 = vunpack.c.h.b16 %v230
    %v1539 = vunpack.c.l.b16 %v231
    %v1540 = vunpack.c.h.b16 %v231
    %v1541 = vunpack.c.l.b16 %v232
    %v1542 = vunpack.c.h.b16 %v232
    %v1543 = vunpack.c.l.b16 %v233
    %v1544 = vunpack.c.h.b16 %v233
    %v1545 = vunpack.c.l.b16 %v234
    %v1546 = vunpack.c.h.b16 %v234
    %v1547 = vunpack.c.l.b16 %v235
    %v1548 = vunpack.c.h.b16 %v235
    %v1549 = vunpack.c.l.b16 %v236
    %v1550 = vunpack.c.h.b16 %v236
    %v1551 = vunpack.c.l.b16 %v237
    %v1552 = vunpack.c.h.b16 %v237
    %v1553 = vunpack.c.l.b16 %v238
    %v1554 = vunpack.c.h.b16 %v238
    %v1555 = vunpack.c.l.b16 %v239
    %v1556 = vunpack.c.h.b16 %v239
    %v1557 = vunpack.c.l.b16 %v240
    %v1558 = vunpack.c.h.b16 %v240
    %v1559 = vunpack.c.l.b16 %v241
    %v1560 = vunpack.c.h.b16 %v241
    %v1561 = vunpack.c.l.b16 %v242
    %v1562 = vunpack.c.h.b16 %v242
    %v1563 = vunpack.c.l.b16 %v243
    %v1564 = vunpack.c.h.b16 %v243
    %v1565 = vunpack.c.l.b16 %v244
    %v1566 = vunpack.c.h.b16 %v244
    %v1567 = vunpack.c.l.b16 %v245
    %v1568 = vunpack.c.h.b16 %v245
    %v1569 = vunpack.c.l.b16 %v246
    %v1570 = vunpack.c.h.b16 %v246
    %v1571 = vunpack.c.l.b16 %v247
    %v1572 = vunpack.c.h.b16 %v247
    %v1573 = vunpack.c.l.b16 %v248
    %v1574 = vunpack.c.h.b16 %v248
    %v1575 = vunpack.c.l.b16 %v249
    %v1576 = vunpack.c.h.b16 %v249
    %v1577 = vunpack.c.l.b16 %v250
    %v1578 = vunpack.c.h.b16 %v250
    %v1579 = vunpack.c.l.b16 %v251
    %v1580 = vunpack.c.h.b16 %v251
    %v1581 = vunpack.c.l.b16 %v252
    %v1582 = vunpack.c.h.b16 %v252
    %v1583 = vunpack.c.l.b16 %v253
    %v1584 = vunpack.c.h.b16 %v253
    %v1585 = vunpack.c.l.b16 %v254
    %v1586 = vunpack.c.h.b16 %v254
    %v1587 = vunpack.c.l.b16 %v255
    %v1588 = vunpack.c.h.b16 %v255
    %v1589 = vunpack.c.l.b16 %v256
    %v1590 = vunpack.c.h.b16 %v256
    %v1591 = vunpack.c.l.b16 %v257
    %v1592 = vunpack.c.h.b16 %v257
    %v1593 = vunpack.c.l.b16 %v258
    %v1594 = vunpack.c.h.b16 %v258
    %v1595 = vunpack.c.l.b16 %v259
    %v1596 = vunpack.c.h.b16 %v259
    %v1597 = vunpack.c.l.b16 %v260
    %v1598 = vunpack.c.h.b16 %v260
    %v1599 = vunpack.c.l.b16 %v261
    %v1600 = vunpack.c.h.b16 %v261
    %v1601 = vunpack.c.l.b16 %v262
    %v1602 = vunpack.c.h.b16 %v262
    %v1603 = vunpack.c.l.b16 %v263
    %v1604 = vunpack.c.h.b16 %v263
    %v1605 = vunpack.c.l.b16 %v264
    %v1606 = vunpack.c.h.b16 %v264
    %v1607 = vunpack.c.l.b16 %v265
    %v1608 = vunpack.c.h.b16 %v265
    %v1609 = vunpack.c.l.b16 %v266
    %v1610 = vunpack.c.h.b16 %v266
    %v1611 = vunpack.c.l.b16 %v267
    %v1612 = vunpack.c.h.b16 %v267
    %v1613 = vunpack.c.l.b16 %v268
    %v1614 = vunpack.c.h.b16 %v268
    %v1615 = vunpack.c.l.b16 %v269
    %v1616 = vunpack.c.h.b16 %v269
    %v1617 = vunpack.c.l.b16 %v270
    %v1618 = vunpack.c.h.b16 %v270
    %v1619 = vunpack.c.l.b16 %v271
    %v1620 = vunpack.c.h.b16 %v271
    %v1621 = vunpack.c.l.b16 %v272
    %v1622 = vunpack.c.h.b16 %v272
    %v1623 = vunpack.c.l.b16 %v273
    %v1624 = vunpack.c.h.b16 %v273
    %v1625 = vunpack.c.l.b16 %v274
    %v1626 = vunpack.c.h.b16 %v274
    %v1627 = vunpack.c.l.b16 %v275
    %v1628 = vunpack.c.h.b16 %v275
    %v1629 = vunpack.c.l.b16 %v276
    %v1630 = vunpack.c.h.b16 %v276
    %v1631 = vunpack.c.l.b16 %v277
    %v1632 = vunpack.c.h.b16 %v277
    %v1633 = vunpack.c.l.b16 %v278
    %v1634 = vunpack.c.h.b16 %v278
    %v1635 = vunpack.c.l.b16 %v279
    %v1636 = vunpack.c.h.b16 %v279
    %v1637 = vunpack.c.l.b16 %v280
    %v1638 = vunpack.c.h.b16 %v280
    %v1639 = vunpack.c.l.b16 %v281
    %v1640 = vunpack.c.h.b16 %v281
    %v1641 = vunpack.c.l.b16 %v282
    %v1642 = vunpack.c.h.b16 %v282
    %v1643 = vunpack.c.l.b16 %v283
    %v1644 = vunpack.c.h.b16 %v283
    %v1645 = vunpack.c.l.b16 %v284
    %v1646 = vunpack.c.h.b16 %v284
    %v1647 = vunpack.c.l.b16 %v285
    %v1648 = vunpack.c.h.b16 %v285
    %v1649 = vunpack.c.l.b16 %v286
    %v1650 = vunpack.c.h.b16 %v286
    %v1651 = vunpack.c.l.b16 %v287
    %v1652 = vunpack.c.h.b16 %v287
    %v1653 = vunpack.c.l.b16 %v288
    %v1654 = vunpack.c.h.b16 %v288
    %v1655 = vunpack.c.l.b16 %v289
    %v1656 = vunpack.c.h.b16 %v289
    %v1657 = vunpack.c.l.b16 %v290
    %v1658 = vunpack.c.h.b16 %v290
    %v1659 = vunpack.c.l.b16 %v291
    %v1660 = vunpack.c.h.b16 %v291
    %v1661 = vunpack.c.l.b16 %v292
    %v1662 = vunpack.c.h.b16 %v292
    %v1663 = vunpack.c.l.b16 %v293
    %v1664 = vunpack.c.h.b16 %v293
    %v1665 = vunpack.c.l.b16 %v294
    %v1666 = vunpack.c.h.b16 %v294
    %v1667 = vunpack.c.l.b16 %v295
    %v1668 = vunpack.c.h.b16 %v295
    %v1669 = vunpack.c.l.b16 %v296
    %v1670 = vunpack.c.h.b16 %v296
    %v1671 = vunpack.c.l.b16 %v297
    %v1672 = vunpack.c.h.b16 %v297
    %v1673 = vunpack.c.l.b16 %v298
    %v1674 = vunpack.c.h.b16 %v298
    %v1675 = vunpack.c.l.b16 %v299
    %v1676 = vunpack.c.h.b16 %v299
    %v1677 = vunpack.c.l.b16 %v300
    %v1678 = vunpack.c.h.b16 %v300
    %v1679 = vunpack.c.l.b16 %v301
    %v1680 = vunpack.c.h.b16 %v301
    %v1681 = vunpack.c.l.b16 %v302
    %v1682 = vunpack.c.h.b16 %v302
    %v1683 = vunpack.c.l.b16 %v303
    %v1684 = vunpack.c.h.b16 %v303
    %v1685 = vunpack.c.l.b16 %v304
    %v1686 = vunpack.c.h.b16 %v304
    %v1687 = vunpack.c.l.b16 %v305
    %v1688 = vunpack.c.h.b16 %v305
    %v1689 = vunpack.c.l.b16 %v306
    %v1690 = vunpack.c.h.b16 %v306
    %v1691 = vunpack.c.l.b16 %v307
    %v1692 = vunpack.c.h.b16 %v307
    %v1693 = vunpack.c.l.b16 %v308
    %v1694 = vunpack.c.h.b16 %v308
    %v1695 = vunpack.c.l.b16 %v309
    %v1696 = vunpack.c.h.b16 %v309
    %v1697 = vunpack.c.l.b16 %v310
    %v1698 = vunpack.c.h.b16 %v310
    %v1699 = vunpack.c.l.b16 %v311
    %v1700 = vunpack.c.h.b16 %v311
    %v1701 = vunpack.c.l.b16 %v312
    %v1702 = vunpack.c.h.b16 %v312
    %v1703 = vunpack.c.l.b16 %v313
    %v1704 = vunpack.c.h.b16 %v313
    %v1705 = vunpack.c.l.b16 %v314
    %v1706 = vunpack.c.h.b16 %v314
    %v1707 = vunpack.c.l.b16 %v315
    %v1708 = vunpack.c.h.b16 %v315
    %v1709 = vunpack.c.l.b16 %v316
    %v1710 = vunpack.c.h.b16 %v316
    %v1711 = vunpack.c.l.b16 %v317
    %v1712 = vunpack.c.h.b16 %v317
    %v1713 = vunpack.c.l.b16 %v318
    %v1714 = vunpack.c.h.b16 %v318
    %v1715 = vunpack.c.l.b16 %v319
    %v1716 = vunpack.c.h.b16 %v319
    %v1717 = vunpack.c.l.b16 %v320
    %v1718 = vunpack.c.h.b16 %v320
    %v1719 = vunpack.c.l.b16 %v321
    %v1720 = vunpack.c.h.b16 %v321
    %v1721 = vunpack.c.l.b16 %v322
    %v1722 = vunpack.c.h.b16 %v322
    %v1723 = vunpack.c.l.b16 %v323
    %v1724 = vunpack.c.h.b16 %v323
    %v1725 = vunpack.c.l.b16 %v324
    %v1726 = vunpack.c.h.b16 %v324
    %v1727 = vunpack.c.l.b16 %v325
    %v1728 = vunpack.c.h.b16 %v325
    %v1729 = vunpack.c.l.b16 %v326
    %v1730 = vunpack.c.h.b16 %v326
    %v1731 = vunpack.c.l.b16 %v327
    %v1732 = vunpack.c.h.b16 %v327
    %v1733 = vunpack.c.l.b16 %v328
    %v1734 = vunpack.c.h.b16 %v328
    %v1735 = vunpack.c.l.b16 %v329
    %v1736 = vunpack.c.h.b16 %v329
    %v1737 = vunpack.c.l.b16 %v330
    %v1738 = vunpack.c.h.b16 %v330
    %v1739 = vunpack.c.l.b16 %v331
    %v1740 = vunpack.c.h.b16 %v331
    %v1741 = vunpack.c.l.b16 %v332
    %v1742 = vunpack.c.h.b16 %v332
    %v1743 = vunpack.c.l.b16 %v333
    %v1744 = vunpack.c.h.b16 %v333
    %v1745 = vunpack.c.l.b16 %v334
    %v1746 = vunpack.c.h.b16 %v334
    %v1747 = vunpack.c.l.b16 %v335
    %v1748 = vunpack.c.h.b16 %v335
    %v1749 = vunpack.c.l.b16 %v336
    %v1750 = vunpack.c.h.b16 %v336
    %v1751 = vunpack.c.l.b16 %v337
    %v1752 = vunpack.c.h.b16 %v337
    %v1753 = vunpack.c.l.b16 %v338
    %v1754 = vunpack.c.h.b16 %v338
    %v1755 = vunpack.c.l.b16 %v339
    %v1756 = vunpack.c.h.b16 %v339
    %v1757 = vunpack.c.l.b16 %v340
    %v1758 = vunpack.c.h.b16 %v340
    %v1759 = vunpack.c.l.b16 %v341
    %v1760 = vunpack.c.h.b16 %v341
    %v1761 = vunpack.c.l.b16 %v342
    %v1762 = vunpack.c.h.b16 %v342
    %v1763 = vunpack.c.l.b16 %v343
    %v1764 = vunpack.c.h.b16 %v343
    %v1765 = vunpack.c.l.b16 %v344
    %v1766 = vunpack.c.h.b16 %v344
    %v1767 = vunpack.c.l.b16 %v345
    %v1768 = vunpack.c.h.b16 %v345
    %v1769 = vunpack.c.l.b16 %v346
    %v1770 = vunpack.c.h.b16 %v346
    %v1771 = vunpack.c.l.b16 %v347
    %v1772 = vunpack.c.h.b16 %v347
    %v1773 = vunpack.c.l.b16 %v348
    %v1774 = vunpack.c.h.b16 %v348
    %v1775 = vunpack.c.l.b16 %v349
    %v1776 = vunpack.c.h.b16 %v349
    %v1777 = vunpack.c.l.b16 %v350
    %v1778 = vunpack.c.h.b16 %v350
    %v1779 = vunpack.c.l.b16 %v351
    %v1780 = vunpack.c.h.b16 %v351
    %v1781 = vunpack.c.l.b16 %v352
    %v1782 = vunpack.c.h.b16 %v352
    %v1783 = vunpack.c.l.b16 %v353
    %v1784 = vunpack.c.h.b16 %v353
    %v1785 = vunpack.c.l.b16 %v354
    %v1786 = vunpack.c.h.b16 %v354
    %v1787 = vunpack.c.l.b16 %v355
    %v1788 = vunpack.c.h.b16 %v355
    %v1789 = vunpack.c.l.b16 %v356
    %v1790 = vunpack.c.h.b16 %v356
    %v1791 = vunpack.c.l.b16 %v357
    %v1792 = vunpack.c.h.b16 %v357
    %v1793 = vunpack.c.l.b16 %v358
    %v1794 = vunpack.c.h.b16 %v358
    %v1795 = vunpack.c.l.b16 %v359
    %v1796 = vunpack.c.h.b16 %v359
    %v1797 = vunpack.c.l.b16 %v360
    %v1798 = vunpack.c.h.b16 %v360
    %v1799 = vunpack.c.l.b16 %v361
    %v1800 = vunpack.c.h.b16 %v361
    %v1801 = vunpack.c.l.b16 %v362
    %v1802 = vunpack.c.h.b16 %v362
    %v1803 = vunpack.c.l.b16 %v363
    %v1804 = vunpack.c.h.b16 %v363
    %v1805 = vunpack.c.l.b16 %v364
    %v1806 = vunpack.c.h.b16 %v364
    %v1807 = vunpack.c.l.b16 %v365
    %v1808 = vunpack.c.h.b16 %v365
    %v1809 = vunpack.c.l.b16 %v366
    %v1810 = vunpack.c.h.b16 %v366
    %v1811 = vunpack.c.l.b16 %v367
    %v1812 = vunpack.c.h.b16 %v367
    %v1813 = vunpack.c.l.b16 %v368
    %v1814 = vunpack.c.h.b16 %v368
    %v1815 = vunpack.c.l.b16 %v369
    %v1816 = vunpack.c.h.b16 %v369
    %v1817 = vunpack.c.l.b16 %v370
    %v1818 = vunpack.c.h.b16 %v370
    %v1819 = vunpack.c.l.b16 %v371
    %v1820 = vunpack.c.h.b16 %v371
    %v1821 = vunpack.c.l.b16 %v372
    %v1822 = vunpack.c.h.b16 %v372
    %v1823 = vunpack.c.l.b16 %v373
    %v1824 = vunpack.c.h.b16 %v373
    %v1825 = vunpack.c.l.b16 %v374
    %v1826 = vunpack.c.h.b16 %v374
    %v1827 = vunpack.c.l.b16 %v375
    %v1828 = vunpack.c.h.b16 %v375
    %v1829 = vunpack.c.l.b16 %v376
    %v1830 = vunpack.c.h.b16 %v376
    %v1831 = vunpack.c.l.b16 %v377
    %v1832 = vunpack.c.h.b16 %v377
    %v1833 = vunpack.c.l.b16 %v378
    %v1834 = vunpack.c.h.b16 %v378
    %v1835 = vunpack.c.l.b16 %v379
    %v1836 = vunpack.c.h.b16 %v379
    %v1837 = vunpack.c.l.b16 %v380
    %v1838 = vunpack.c.h.b16 %v380
    %v1839 = vunpack.c.l.b16 %v381
    %v1840 = vunpack.c.h.b16 %v381
    %v1841 = vunpack.c.l.b16 %v382
    %v1842 = vunpack.c.h.b16 %v382
    %v1843 = vunpack.c.l.b16 %v383
    %v1844 = vunpack.c.h.b16 %v383
    %v1845 = vunpack.c.l.b16 %v384
    %v1846 = vunpack.c.h.b16 %v384
    %v1847 = vunpack.c.l.b16 %v385
    %v1848 = vunpack.c.h.b16 %v385
    %v1849 = vunpack.c.l.b16 %v386
    %v1850 = vunpack.c.h.b16 %v386
    %v1851 = vunpack.c.l.b16 %v387
    %v1852 = vunpack.c.h.b16 %v387
    %v1853 = vunpack.c.l.b16 %v388
    %v1854 = vunpack.c.h.b16 %v388
    %v1855 = vunpack.c.l.b16 %v389
    %v1856 = vunpack.c.h.b16 %v389
    %v1857 = vunpack.c.l.b16 %v390
    %v1858 = vunpack.c.h.b16 %v390
    %v1859 = vunpack.c.l.b16 %v391
    %v1860 = vunpack.c.h.b16 %v391
    %v1861 = vunpack.c.l.b16 %v392
    %v1862 = vunpack.c.h.b16 %v392
    %v1863 = vunpack.c.l.b16 %v393
    %v1864 = vunpack.c.h.b16 %v393
    %v1865 = vunpack.c.l.b16 %v394
    %v1866 = vunpack.c.h.b16 %v394
    %v1867 = vunpack.c.l.b16 %v395
    %v1868 = vunpack.c.h.b16 %v395
    %v1869 = vunpack.c.l.b16 %v396
    %v1870 = vunpack.c.h.b16 %v396
    %v1871 = vunpack.c.l.b16 %v397
    %v1872 = vunpack.c.h.b16 %v397
    %v1873 = vunpack.c.l.b16 %v398
    %v1874 = vunpack.c.h.b16 %v398
    %v1875 = vunpack.c.l.b16 %v399
    %v1876 = vunpack.c.h.b16 %v399
    %v1877 = vunpack.c.l.b16 %v400
    %v1878 = vunpack.c.h.b16 %v400
    %v1879 = vunpack.c.l.b16 %v401
    %v1880 = vunpack.c.h.b16 %v401
    %v1881 = vunpack.c.l.b16 %v402
    %v1882 = vunpack.c.h.b16 %v402
    %v1883 = vunpack.c.l.b16 %v403
    %v1884 = vunpack.c.h.b16 %v403
    %v1885 = vunpack.c.l.b16 %v404
    %v1886 = vunpack.c.h.b16 %v404
    %v1887 = vunpack.c.l.b16 %v405
    %v1888 = vunpack.c.h.b16 %v405
    %v1889 = vunpack.c.l.b16 %v406
    %v1890 = vunpack.c.h.b16 %v406
    %v1891 = vunpack.c.l.b16 %v407
    %v1892 = vunpack.c.h.b16 %v407
    %v1893 = vunpack.c.l.b16 %v408
    %v1894 = vunpack.c.h.b16 %v408
    %v1895 = vunpack.c.l.b16 %v409
    %v1896 = vunpack.c.h.b16 %v409
    %v1897 = vunpack.c.l.b16 %v410
    %v1898 = vunpack.c.h.b16 %v410
    %v1899 = vunpack.c.l.b16 %v411
    %v1900 = vunpack.c.h.b16 %v411
    %v1901 = vunpack.c.l.b16 %v412
    %v1902 = vunpack.c.h.b16 %v412
    %v1903 = vunpack.c.l.b16 %v413
    %v1904 = vunpack.c.h.b16 %v413
    %v1905 = vunpack.c.l.b16 %v414
    %v1906 = vunpack.c.h.b16 %v414
    %v1907 = vunpack.c.l.b16 %v415
    %v1908 = vunpack.c.h.b16 %v415
    %v1909 = vunpack.c.l.b16 %v416
    %v1910 = vunpack.c.h.b16 %v416
    %v1911 = vunpack.c.l.b16 %v417
    %v1912 = vunpack.c.h.b16 %v417
    %v1913 = vunpack.c.l.b16 %v418
    %v1914 = vunpack.c.h.b16 %v418
    %v1915 = vunpack.c.l.b16 %v419
    %v1916 = vunpack.c.h.b16 %v419
    %v1917 = vunpack.c.l.b16 %v420
    %v1918 = vunpack.c.h.b16 %v420
    %v1919 = vunpack.c.l.b16 %v421
    %v1920 = vunpack.c.h.b16 %v421
    %v1921 = vunpack.c.l.b16 %v422
    %v1922 = vunpack.c.h.b16 %v422
    %v1923 = vunpack.c.l.b16 %v423
    %v1924 = vunpack.c.h.b16 %v423
    %v1925 = vunpack.c.l.b16 %v424
    %v1926 = vunpack.c.h.b16 %v424
    %v1927 = vunpack.c.l.b16 %v425
    %v1928 = vunpack.c.h.b16 %v425
    %v1929 = vunpack.c.l.b16 %v426
    %v1930 = vunpack.c.h.b16 %v426
    %v1931 = vunpack.c.l.b16 %v427
    %v1932 = vunpack.c.h.b16 %v427
    %v1933 = vunpack.c.l.b16 %v428
    %v1934 = vunpack.c.h.b16 %v428
    %v1935 = vunpack.c.l.b16 %v429
    %v1936 = vunpack.c.h.b16 %v429
    %v1937 = vunpack.c.l.b16 %v430
    %v1938 = vunpack.c.h.b16 %v430
    %v1939 = vunpack.c.l.b16 %v431
    %v1940 = vunpack.c.h.b16 %v431
    %v1941 = vunpack.c.l.b16 %v432
    %v1942 = vunpack.c.h.b16 %v432
    %v1943 = vunpack.c.l.b16 %v433
    %v1944 = vunpack.c.h.b16 %v433
    %v1945 = vunpack.c.l.b16 %v434
    %v1946 = vunpack.c.h.b16 %v434
    %v1947 = vunpack.c.l.b16 %v435
    %v1948 = vunpack.c.h.b16 %v435
    %v1949 = vunpack.c.l.b16 %v436
    %v1950 = vunpack.c.h.b16 %v436
    %v1951 = vunpack.c.l.b16 %v437
    %v1952 = vunpack.c.h.b16 %v437
    %v1953 = vunpack.c.l.b16 %v438
    %v1954 = vunpack.c.h.b16 %v438
    %v1955 = vunpack.c.l.b16 %v439
    %v1956 = vunpack.c.h.b16 %v439
    %v1957 = vunpack.c.l.b16 %v440
    %v1958 = vunpack.c.h.b16 %v440
    %v1959 = vunpack.c.l.b16 %v441
    %v1960 = vunpack.c.h.b16 %v441
    %v1961 = vunpack.c.l.b16 %v442
    %v1962 = vunpack.c.h.b16 %v442
    %v1963 = vunpack.c.l.b16 %v443
    %v1964 = vunpack.c.h.b16 %v443
    %v1965 = vunpack.c.l.b16 %v444
    %v1966 = vunpack.c.h.b16 %v444
    %v1967 = vunpack.c.l.b16 %v445
    %v1968 = vunpack.c.h.b16 %v445
    %v1969 = vunpack.c.l.b16 %v446
    %v1970 = vunpack.c.h.b16 %v446
    %v1971 = vunpack.c.l.b16 %v447
    %v1972 = vunpack.c.h.b16 %v447
    %v1973 = vunpack.c.l.b16 %v448
    %v1974 = vunpack.c.h.b16 %v448
    %v1975 = vunpack.c.l.b16 %v449
    %v1976 = vunpack.c.h.b16 %v449
    %v1977 = vunpack.c.l.b16 %v450
    %v1978 = vunpack.c.h.b16 %v450
    %v1979 = vunpack.c.l.b16 %v451
    %v1980 = vunpack.c.h.b16 %v451
    %v1981 = vunpack.c.l.b16 %v452
    %v1982 = vunpack.c.h.b16 %v452
    %v1983 = vunpack.c.l.b16 %v453
    %v1984 = vunpack.c.h.b16 %v453
    %v1985 = vunpack.c.l.b16 %v454
    %v1986 = vunpack.c.h.b16 %v454
    %v1987 = vunpack.c.l.b16 %v455
    %v1988 = vunpack.c.h.b16 %v455
    %v1989 = vunpack.c.l.b16 %v456
    %v1990 = vunpack.c.h.b16 %v456
    %v1991 = vunpack.c.l.b16 %v457
    %v1992 = vunpack.c.h.b16 %v457
    %v1993 = vunpack.c.l.b16 %v458
    %v1994 = vunpack.c.h.b16 %v458
    %v1995 = vunpack.c.l.b16 %v459
    %v1996 = vunpack.c.h.b16 %v459
    %v1997 = vunpack.c.l.b16 %v460
    %v1998 = vunpack.c.h.b16 %v460
    %v1999 = vunpack.c.l.b16 %v461
    %v2000 = vunpack.c.h.b16 %v461
    %v2001 = vunpack.c.l.b16 %v462
    %v2002 = vunpack.c.h.b16 %v462
    %v2003 = vunpack.c.l.b16 %v463
    %v2004 = vunpack.c.h.b16 %v463
    %v2005 = vunpack.c.l.b16 %v464
    %v2006 = vunpack.c.h.b16 %v464
    %v2007 = vunpack.c.l.b16 %v465
    %v2008 = vunpack.c.h.b16 %v465
    %v2009 = vunpack.c.l.b16 %v466
    %v2010 = vunpack.c.h.b16 %v466
    %v2011 = vunpack.c.l.b16 %v467
    %v2012 = vunpack.c.h.b16 %v467
    %v2013 = vunpack.c.l.b16 %v468
    %v2014 = vunpack.c.h.b16 %v468
    %v2015 = vunpack.c.l.b16 %v469
    %v2016 = vunpack.c.h.b16 %v469
    %v2017 = vunpack.c.l.b16 %v470
    %v2018 = vunpack.c.h.b16 %v470
    %v2019 = vunpack.c.l.b16 %v471
    %v2020 = vunpack.c.h.b16 %v471
    %v2021 = vunpack.c.l.b16 %v472
    %v2022 = vunpack.c.h.b16 %v472
    %v2023 = vunpack.c.l.b16 %v473
    %v2024 = vunpack.c.h.b16 %v473
    %v2025 = vunpack.c.l.b16 %v474
    %v2026 = vunpack.c.h.b16 %v474
    %v2027 = vunpack.c.l.b16 %v475
    %v2028 = vunpack.c.h.b16 %v475
    %v2029 = vunpack.c.l.b16 %v476
    %v2030 = vunpack.c.h.b16 %v476
    %v2031 = vunpack.c.l.b16 %v477
    %v2032 = vunpack.c.h.b16 %v477
    %v2033 = vunpack.c.l.b16 %v478
    %v2034 = vunpack.c.h.b16 %v478
    %v2035 = vunpack.c.l.b16 %v479
    %v2036 = vunpack.c.h.b16 %v479
    %v2037 = vunpack.c.l.b16 %v480
    %v2038 = vunpack.c.h.b16 %v480
    %v2039 = vunpack.c.l.b16 %v481
    %v2040 = vunpack.c.h.b16 %v481
    %v2041 = vunpack.c.l.b16 %v482
    %v2042 = vunpack.c.h.b16 %v482
    %v2043 = vunpack.c.l.b16 %v483
    %v2044 = vunpack.c.h.b16 %v483
    %v2045 = vunpack.c.l.b16 %v484
    %v2046 = vunpack.c.h.b16 %v484
    %v2047 = vunpack.c.l.b16 %v485
    %v2048 = vunpack.c.h.b16 %v485
    %v2049 = vunpack.c.l.b16 %v486
    %v2050 = vunpack.c.h.b16 %v486
    %v2051 = vunpack.c.l.b16 %v487
    %v2052 = vunpack.c.h.b16 %v487
    %v2053 = vunpack.c.l.b16 %v488
    %v2054 = vunpack.c.h.b16 %v488
    %v2055 = vunpack.c.l.b16 %v489
    %v2056 = vunpack.c.h.b16 %v489
    %v2057 = vunpack.c.l.b16 %v490
    %v2058 = vunpack.c.h.b16 %v490
    %v2059 = vunpack.c.l.b16 %v491
    %v2060 = vunpack.c.h.b16 %v491
    %v2061 = vunpack.c.l.b16 %v492
    %v2062 = vunpack.c.h.b16 %v492
    %v2063 = vunpack.c.l.b16 %v493
    %v2064 = vunpack.c.h.b16 %v493
    %v2065 = vunpack.c.l.b16 %v494
    %v2066 = vunpack.c.h.b16 %v494
    %v2067 = vunpack.c.l.b16 %v495
    %v2068 = vunpack.c.h.b16 %v495
    %v2069 = vunpack.c.l.b16 %v496
    %v2070 = vunpack.c.h.b16 %v496
    %v2071 = vunpack.c.l.b16 %v497
    %v2072 = vunpack.c.h.b16 %v497
    %v2073 = vunpack.c.l.b16 %v498
    %v2074 = vunpack.c.h.b16 %v498
    %v2075 = vunpack.c.l.b16 %v499
    %v2076 = vunpack.c.h.b16 %v499
    %v2077 = vunpack.c.l.b16 %v500
    %v2078 = vunpack.c.h.b16 %v500
    %v2079 = vunpack.c.l.b16 %v501
    %v2080 = vunpack.c.h.b16 %v501
    %v2081 = vunpack.c.l.b16 %v502
    %v2082 = vunpack.c.h.b16 %v502
    %v2083 = vunpack.c.l.b16 %v503
    %v2084 = vunpack.c.h.b16 %v503
    %v2085 = vunpack.c.l.b16 %v504
    %v2086 = vunpack.c.h.b16 %v504
    %v2087 = vunpack.c.l.b16 %v505
    %v2088 = vunpack.c.h.b16 %v505
    %v2089 = vunpack.c.l.b16 %v506
    %v2090 = vunpack.c.h.b16 %v506
    %v2091 = vunpack.c.l.b16 %v507
    %v2092 = vunpack.c.h.b16 %v507
    %v2093 = vunpack.c.l.b16 %v508
    %v2094 = vunpack.c.h.b16 %v508
    %v2095 = vunpack.c.l.b16 %v509
    %v2096 = vunpack.c.h.b16 %v509
    %v2097 = vunpack.c.l.b16 %v510
    %v2098 = vunpack.c.h.b16 %v510
    %v2099 = vunpack.c.l.b16 %v511
    %v2100 = vunpack.c.h.b16 %v511
    %v2101 = vunpack.c.l.b16 %v512
    %v2102 = vunpack.c.h.b16 %v512
    %v2103 = vunpack.c.l.b16 %v513
    %v2104 = vunpack.c.h.b16 %v513
    %v2105 = vunpack.c.l.b16 %v514
    %v2106 = vunpack.c.h.b16 %v514
    %v2107 = vunpack.c.l.b16 %v515
    %v2108 = vunpack.c.h.b16 %v515
    %v2109 = vunpack.c.l.b16 %v516
    %v2110 = vunpack.c.h.b16 %v516
    %v2111 = vunpack.c.l.b16 %v517
    %v2112 = vunpack.c.h.b16 %v517
    %v2113 = vunpack.c.l.b16 %v518
    %v2114 = vunpack.c.h.b16 %v518
    %v2115 = vunpack.c.l.b16 %v519
    %v2116 = vunpack.c.h.b16 %v519
    %v2117 = vunpack.c.l.b16 %v520
    %v2118 = vunpack.c.h.b16 %v520
    %v2119 = vunpack.c.l.b16 %v521
    %v2120 = vunpack.c.h.b16 %v521
    %v2121 = vunpack.c.l.b16 %v522
    %v2122 = vunpack.c.h.b16 %v522
    %v2123 = vunpack.c.l.b16 %v523
    %v2124 = vunpack.c.h.b16 %v523
    %v2125 = vunpack.c.l.b16 %v524
    %v2126 = vunpack.c.h.b16 %v524
    %v2127 = vunpack.c.l.b16 %v525
    %v2128 = vunpack.c.h.b16 %v525
    %v2129 = vunpack.c.l.b16 %v526
    %v2130 = vunpack.c.h.b16 %v526
    %v2131 = vunpack.c.l.b16 %v527
    %v2132 = vunpack.c.h.b16 %v527
    %v2133 = vunpack.c.l.b16 %v528
    %v2134 = vunpack.c.h.b16 %v528
    %v2135 = vunpack.c.l.b16 %v529
    %v2136 = vunpack.c.h.b16 %v529
    %v2137 = vunpack.c.l.b16 %v530
    %v2138 = vunpack.c.h.b16 %v530
    %v2139 = vunpack.c.l.b16 %v531
    %v2140 = vunpack.c.h.b16 %v531
    %v2141 = vunpack.c.l.b16 %v532
    %v2142 = vunpack.c.h.b16 %v532
    %v2143 = vunpack.c.l.b16 %v533
    %v2144 = vunpack.c.h.b16 %v533
    %v2145 = vunpack.c.l.b16 %v534
    %v2146 = vunpack.c.h.b16 %v534
    %v2147 = vunpack.c.l.b16 %v535
    %v2148 = vunpack.c.h.b16 %v535
    %v2149 = vunpack.c.l.b16 %v536
    %v2150 = vunpack.c.h.b16 %v536
    %v2151 = vpack.c.b16 %v1129, %v1127
    %v2152 = vpack.c.b16 %v1130, %v1128
    %v2153 = vpack.c.b16 %v1133, %v1131
    %v2154 = vpack.c.b16 %v1134, %v1132
    %v2155 = vpack.c.b16 %v1137, %v1135
    %v2156 = vpack.c.b16 %v1138, %v1136
    %v2157 = vpack.c.b16 %v1141, %v1139
    %v2158 = vpack.c.b16 %v1142, %v1140
    %v2159 = vpack.c.b16 %v1145, %v1143
    %v2160 = vpack.c.b16 %v1146, %v1144
    %v2161 = vpack.c.b16 %v1149, %v1147
    %v2162 = vpack.c.b16 %v1150, %v1148
    %v2163 = vpack.c.b16 %v1153, %v1151
    %v2164 = vpack.c.b16 %v1154, %v1152
    %v2165 = vpack.c.b16 %v1157, %v1155
    %v2166 = vpack.c.b16 %v1158, %v1156
    %v2167 = vpack.c.b16 %v1161, %v1159
    %v2168 = vpack.c.b16 %v1162, %v1160
    %v2169 = vpack.c.b16 %v1165, %v1163
    %v2170 = vpack.c.b16 %v1166, %v1164
    %v2171 = vpack.c.b16 %v1169, %v1167
    %v2172 = vpack.c.b16 %v1170, %v1168
    %v2173 = vpack.c.b16 %v1173, %v1171
    %v2174 = vpack.c.b16 %v1174, %v1172
    %v2175 = vpack.c.b16 %v1177, %v1175
    %v2176 = vpack.c.b16 %v1178, %v1176
    %v2177 = vpack.c.b16 %v1181, %v1179
    %v2178 = vpack.c.b16 %v1182, %v1180
    %v2179 = vpack.c.b16 %v1185, %v1183
    %v2180 = vpack.c.b16 %v1186, %v1184
    %v2181 = vpack.c.b16 %v1189, %v1187
    %v2182 = vpack.c.b16 %v1190, %v1188
    %v2183 = vpack.c.b16 %v1193, %v1191
    %v2184 = vpack.c.b16 %v1194, %v1192
    %v2185 = vpack.c.b16 %v1197, %v1195
    %v2186 = vpack.c.b16 %v1198, %v1196
    %v2187 = vpack.c.b16 %v1201, %v1199
    %v2188 = vpack.c.b16 %v1202, %v1200
    %v2189 = vpack.c.b16 %v1205, %v1203
    %v2190 = vpack.c.b16 %v1206, %v1204
    %v2191 = vpack.c.b16 %v1209, %v1207
    %v2192 = vpack.c.b16 %v1210, %v1208
    %v2193 = vpack.c.b16 %v1213, %v1211
    %v2194 = vpack.c.b16 %v1214, %v1212
    %v2195 = vpack.c.b16 %v1217, %v1215
    %v2196 = vpack.c.b16 %v1218, %v1216
    %v2197 = vpack.c.b16 %v1221, %v1219
    %v2198 = vpack.c.b16 %v1222, %v1220
    %v2199 = vpack.c.b16 %v1225, %v1223
    %v2200 = vpack.c.b16 %v1226, %v1224
    %v2201 = vpack.c.b16 %v1229, %v1227
    %v2202 = vpack.c.b16 %v1230, %v1228
    %v2203 = vpack.c.b16 %v1233, %v1231
    %v2204 = vpack.c.b16 %v1234, %v1232
    %v2205 = vpack.c.b16 %v1237, %v1235
    %v2206 = vpack.c.b16 %v1238, %v1236
    %v2207 = vpack.c.b16 %v1241, %v1239
    %v2208 = vpack.c.b16 %v1242, %v1240
    %v2209 = vpack.c.b16 %v1245, %v1243
    %v2210 = vpack.c.b16 %v1246, %v1244
    %v2211 = vpack.c.b16 %v1249, %v1247
    %v2212 = vpack.c.b16 %v1250, %v1248
    %v2213 = vpack.c.b16 %v1253, %v1251
    %v2214 = vpack.c.b16 %v1254, %v1252
    %v2215 = vpack.c.b16 %v1257, %v1255
    %v2216 = vpack.c.b16 %v1258, %v1256
    %v2217 = vpack.c.b16 %v1261, %v1259
    %v2218 = vpack.c.b16 %v1262, %v1260
    %v2219 = vpack.c.b16 %v1265, %v1263
    %v2220 = vpack.c.b16 %v1266, %v1264
    %v2221 = vpack.c.b16 %v1269, %v1267
    %v2222 = vpack.c.b16 %v1270, %v1268
    %v2223 = vpack.c.b16 %v1273, %v1271
    %v2224 = vpack.c.b16 %v1274, %v1272
    %v2225 = vpack.c.b16 %v1277, %v1275
    %v2226 = vpack.c.b16 %v1278, %v1276
    %v2227 = vpack.c.b16 %v1281, %v1279
    %v2228 = vpack.c.b16 %v1282, %v1280
    %v2229 = vpack.c.b16 %v1285, %v1283
    %v2230 = vpack.c.b16 %v1286, %v1284
    %v2231 = vpack.c.b16 %v1289, %v1287
    %v2232 = vpack.c.b16 %v1290, %v1288
    %v2233 = vpack.c.b16 %v1293, %v1291
    %v2234 = vpack.c.b16 %v1294, %v1292
    %v2235 = vpack.c.b16 %v1297, %v1295
    %v2236 = vpack.c.b16 %v1298, %v1296
    %v2237 = vpack.c.b16 %v1301, %v1299
    %v2238 = vpack.c.b16 %v1302, %v1300
    %v2239 = vpack.c.b16 %v1305, %v1303
    %v2240 = vpack.c.b16 %v1306, %v1304
    %v2241 = vpack.c.b16 %v1309, %v1307
    %v2242 = vpack.c.b16 %v1310, %v1308
    %v2243 = vpack.c.b16 %v1313, %v1311
    %v2244 = vpack.c.b16 %v1314, %v1312
    %v2245 = vpack.c.b16 %v1317, %v1315
    %v2246 = vpack.c.b16 %v1318, %v1316
    %v2247 = vpack.c.b16 %v1321, %v1319
    %v2248 = vpack.c.b16 %v1322, %v1320
    %v2249 = vpack.c.b16 %v1325, %v1323
    %v2250 = vpack.c.b16 %v1326, %v1324
    %v2251 = vpack.c.b16 %v1329, %v1327
    %v2252 = vpack.c.b16 %v1330, %v1328
    %v2253 = vpack.c.b16 %v1333, %v1331
    %v2254 = vpack.c.b16 %v1334, %v1332
    %v2255 = vpack.c.b16 %v1337, %v1335
    %v2256 = vpack.c.b16 %v1338, %v1336
    %v2257 = vpack.c.b16 %v1341, %v1339
    %v2258 = vpack.c.b16 %v1342, %v1340
    %v2259 = vpack.c.b16 %v1345, %v1343
    %v2260 = vpack.c.b16 %v1346, %v1344
    %v2261 = vpack.c.b16 %v1349, %v1347
    %v2262 = vpack.c.b16 %v1350, %v1348
    %v2263 = vpack.c.b16 %v1353, %v1351
    %v2264 = vpack.c.b16 %v1354, %v1352
    %v2265 = vpack.c.b16 %v1357, %v1355
    %v2266 = vpack.c.b16 %v1358, %v1356
    %v2267 = vpack.c.b16 %v1361, %v1359
    %v2268 = vpack.c.b16 %v1362, %v1360
    %v2269 = vpack.c.b16 %v1365, %v1363
    %v2270 = vpack.c.b16 %v1366, %v1364
    %v2271 = vpack.c.b16 %v1369, %v1367
    %v2272 = vpack.c.b16 %v1370, %v1368
    %v2273 = vpack.c.b16 %v1373, %v1371
    %v2274 = vpack.c.b16 %v1374, %v1372
    %v2275 = vpack.c.b16 %v1377, %v1375
    %v2276 = vpack.c.b16 %v1378, %v1376
    %v2277 = vpack.c.b16 %v1381, %v1379
    %v2278 = vpack.c.b16 %v1382, %v1380
    %v2279 = vpack.c.b16 %v1385, %v1383
    %v2280 = vpack.c.b16 %v1386, %v1384
    %v2281 = vpack.c.b16 %v1389, %v1387
    %v2282 = vpack.c.b16 %v1390, %v1388
    %v2283 = vpack.c.b16 %v1393, %v1391
    %v2284 = vpack.c.b16 %v1394, %v1392
    %v2285 = vpack.c.b16 %v1397, %v1395
    %v2286 = vpack.c.b16 %v1398, %v1396
    %v2287 = vpack.c.b16 %v1401, %v1399
    %v2288 = vpack.c.b16 %v1402, %v1400
    %v2289 = vpack.c.b16 %v1405, %v1403
    %v2290 = vpack.c.b16 %v1406, %v1404
    %v2291 = vpack.c.b16 %v1409, %v1407
    %v2292 = vpack.c.b16 %v1410, %v1408
    %v2293 = vpack.c.b16 %v1413, %v1411
    %v2294 = vpack.c.b16 %v1414, %v1412
    %v2295 = vpack.c.b16 %v1417, %v1415
    %v2296 = vpack.c.b16 %v1418, %v1416
    %v2297 = vpack.c.b16 %v1421, %v1419
    %v2298 = vpack.c.b16 %v1422, %v1420
    %v2299 = vpack.c.b16 %v1425, %v1423
    %v2300 = vpack.c.b16 %v1426, %v1424
    %v2301 = vpack.c.b16 %v1429, %v1427
    %v2302 = vpack.c.b16 %v1430, %v1428
    %v2303 = vpack.c.b16 %v1433, %v1431
    %v2304 = vpack.c.b16 %v1434, %v1432
    %v2305 = vpack.c.b16 %v1437, %v1435
    %v2306 = vpack.c.b16 %v1438, %v1436
    %v2307 = vpack.c.b16 %v1441, %v1439
    %v2308 = vpack.c.b16 %v1442, %v1440
    %v2309 = vpack.c.b16 %v1445, %v1443
    %v2310 = vpack.c.b16 %v1446, %v1444
    %v2311 = vpack.c.b16 %v1449, %v1447
    %v2312 = vpack.c.b16 %v1450, %v1448
    %v2313 = vpack.c.b16 %v1453, %v1451
    %v2314 = vpack.c.b16 %v1454, %v1452
    %v2315 = vpack.c.b16 %v1457, %v1455
    %v2316 = vpack.c.b16 %v1458, %v1456
    %v2317 = vpack.c.b16 %v1461, %v1459
    %v2318 = vpack.c.b16 %v1462, %v1460
    %v2319 = vpack.c.b16 %v1465, %v1463
    %v2320 = vpack.c.b16 %v1466, %v1464
    %v2321 = vpack.c.b16 %v1469, %v1467
    %v2322 = vpack.c.b16 %v1470, %v1468
    %v2323 = vpack.c.b16 %v1473, %v1471
    %v2324 = vpack.c.b16 %v1474, %v1472
    %v2325 = vpack.c.b16 %v1477, %v1475
    %v2326 = vpack.c.b16 %v1478, %v1476
    %v2327 = vpack.c.b16 %v1481, %v1479
    %v2328 = vpack.c.b16 %v1482, %v1480
    %v2329 = vpack.c.b16 %v1485, %v1483
    %v2330 = vpack.c.b16 %v1486, %v1484
    %v2331 = vpack.c.b16 %v1489, %v1487
    %v2332 = vpack.c.b16 %v1490, %v1488
    %v2333 = vpack.c.b16 %v1493, %v1491
    %v2334 = vpack.c.b16 %v1494, %v1492
    %v2335 = vpack.c.b16 %v1497, %v1495
    %v2336 = vpack.c.b16 %v1498, %v1496
    %v2337 = vpack.c.b16 %v1501, %v1499
    %v2338 = vpack.c.b16 %v1502, %v1500
    %v2339 = vpack.c.b16 %v1505, %v1503
    %v2340 = vpack.c.b16 %v1506, %v1504
    %v2341 = vpack.c.b16 %v1509, %v1507
    %v2342 = vpack.c.b16 %v1510, %v1508
    %v2343 = vpack.c.b16 %v1513, %v1511
    %v2344 = vpack.c.b16 %v1514, %v1512
    %v2345 = vpack.c.b16 %v1517, %v1515
    %v2346 = vpack.c.b16 %v1518, %v1516
    %v2347 = vpack.c.b16 %v1521, %v1519
    %v2348 = vpack.c.b16 %v1522, %v1520
    %v2349 = vpack.c.b16 %v1525, %v1523
    %v2350 = vpack.c.b16 %v1526, %v1524
    %v2351 = vpack.c.b16 %v1529, %v1527
    %v2352 = vpack.c.b16 %v1530, %v1528
    %v2353 = vpack.c.b16 %v1533, %v1531
    %v2354 = vpack.c.b16 %v1534, %v1532
    %v2355 = vpack.c.b16 %v1537, %v1535
    %v2356 = vpack.c.b16 %v1538, %v1536
    %v2357 = vpack.c.b16 %v1541, %v1539
    %v2358 = vpack.c.b16 %v1542, %v1540
    %v2359 = vpack.c.b16 %v1545, %v1543
    %v2360 = vpack.c.b16 %v1546, %v1544
    %v2361 = vpack.c.b16 %v1549, %v1547
    %v2362 = vpack.c.b16 %v1550, %v1548
    %v2363 = vpack.c.b16 %v1553, %v1551
    %v2364 = vpack.c.b16 %v1554, %v1552
    %v2365 = vpack.c.b16 %v1557, %v1555
    %v2366 = vpack.c.b16 %v1558, %v1556
    %v2367 = vpack.c.b16 %v1561, %v1559
    %v2368 = vpack.c.b16 %v1562, %v1560
    %v2369 = vpack.c.b16 %v1565, %v1563
    %v2370 = vpack.c.b16 %v1566, %v1564
    %v2371 = vpack.c.b16 %v1569, %v1567
    %v2372 = vpack.c.b16 %v1570, %v1568
    %v2373 = vpack.c.b16 %v1573, %v1571
    %v2374 = vpack.c.b16 %v1574, %v1572
    %v2375 = vpack.c.b16 %v1577, %v1575
    %v2376 = vpack.c.b16 %v1578, %v1576
    %v2377 = vpack.c.b16 %v1581, %v1579
    %v2378 = vpack.c.b16 %v1582, %v1580
    %v2379 = vpack.c.b16 %v1585, %v1583
    %v2380 = vpack.c.b16 %v1586, %v1584
    %v2381 = vpack.c.b16 %v1589, %v1587
    %v2382 = vpack.c.b16 %v1590, %v1588
    %v2383 = vpack.c.b16 %v1593, %v1591
    %v2384 = vpack.c.b16 %v1594, %v1592
    %v2385 = vpack.c.b16 %v1597, %v1595
    %v2386 = vpack.c.b16 %v1598, %v1596
    %v2387 = vpack.c.b16 %v1601, %v1599
    %v2388 = vpack.c.b16 %v1602, %v1600
    %v2389 = vpack.c.b16 %v1605, %v1603
    %v2390 = vpack.c.b16 %v1606, %v1604
    %v2391 = vpack.c.b16 %v1609, %v1607
    %v2392 = vpack.c.b16 %v1610, %v1608
    %v2393 = vpack.c.b16 %v1613, %v1611
    %v2394 = vpack.c.b16 %v1614, %v1612
    %v2395 = vpack.c.b16 %v1617, %v1615
    %v2396 = vpack.c.b16 %v1618, %v1616
    %v2397 = vpack.c.b16 %v1621, %v1619
    %v2398 = vpack.c.b16 %v1622, %v1620
    %v2399 = vpack.c.b16 %v1625, %v1623
    %v2400 = vpack.c.b16 %v1626, %v1624
    %v2401 = vpack.c.b16 %v1629, %v1627
    %v2402 = vpack.c.b16 %v1630, %v1628
    %v2403 = vpack.c.b16 %v1633, %v1631
    %v2404 = vpack.c.b16 %v1634, %v1632
    %v2405 = vpack.c.b16 %v1637, %v1635
    %v2406 = vpack.c.b16 %v1638, %v1636
    %v2407 = vpack.c.b16 %v1641, %v1639
    %v2408 = vpack.c.b16 %v1642, %v1640
    %v2409 = vpack.c.b16 %v1645, %v1643
    %v2410 = vpack.c.b16 %v1646, %v1644
    %v2411 = vpack.c.b16 %v1649, %v1647
    %v2412 = vpack.c.b16 %v1650, %v1648
    %v2413 = vpack.c.b16 %v1653, %v1651
    %v2414 = vpack.c.b16 %v1654, %v1652
    %v2415 = vpack.c.b16 %v1657, %v1655
    %v2416 = vpack.c.b16 %v1658, %v1656
    %v2417 = vpack.c.b16 %v1661, %v1659
    %v2418 = vpack.c.b16 %v1662, %v1660
    %v2419 = vpack.c.b16 %v1665, %v1663
    %v2420 = vpack.c.b16 %v1666, %v1664
    %v2421 = vpack.c.b16 %v1669, %v1667
    %v2422 = vpack.c.b16 %v1670, %v1668
    %v2423 = vpack.c.b16 %v1673, %v1671
    %v2424 = vpack.c.b16 %v1674, %v1672
    %v2425 = vpack.c.b16 %v1677, %v1675
    %v2426 = vpack.c.b16 %v1678, %v1676
    %v2427 = vpack.c.b16 %v1681, %v1679
    %v2428 = vpack.c.b16 %v1682, %v1680
    %v2429 = vpack.c.b16 %v1685, %v1683
    %v2430 = vpack.c.b16 %v1686, %v1684
    %v2431 = vpack.c.b16 %v1689, %v1687
    %v2432 = vpack.c.b16 %v1690, %v1688
    %v2433 = vpack.c.b16 %v1693, %v1691
    %v2434 = vpack.c.b16 %v1694, %v1692
    %v2435 = vpack.c.b16 %v1697, %v1695
    %v2436 = vpack.c.b16 %v1698, %v1696
    %v2437 = vpack.c.b16 %v1701, %v1699
    %v2438 = vpack.c.b16 %v1702, %v1700
    %v2439 = vpack.c.b16 %v1705, %v1703
    %v2440 = vpack.c.b16 %v1706, %v1704
    %v2441 = vpack.c.b16 %v1709, %v1707
    %v2442 = vpack.c.b16 %v1710, %v1708
    %v2443 = vpack.c.b16 %v1713, %v1711
    %v2444 = vpack.c.b16 %v1714, %v1712
    %v2445 = vpack.c.b16 %v1717, %v1715
    %v2446 = vpack.c.b16 %v1718, %v1716
    %v2447 = vpack.c.b16 %v1721, %v1719
    %v2448 = vpack.c.b16 %v1722, %v1720
    %v2449 = vpack.c.b16 %v1725, %v1723
    %v2450 = vpack.c.b16 %v1726, %v1724
    %v2451 = vpack.c.b16 %v1729, %v1727
    %v2452 = vpack.c.b16 %v1730, %v1728
    %v2453 = vpack.c.b16 %v1733, %v1731
    %v2454 = vpack.c.b16 %v1734, %v1732
    %v2455 = vpack.c.b16 %v1737, %v1735
    %v2456 = vpack.c.b16 %v1738, %v1736
    %v2457 = vpack.c.b16 %v1741, %v1739
    %v2458 = vpack.c.b16 %v1742, %v1740
    %v2459 = vpack.c.b16 %v1745, %v1743
    %v2460 = vpack.c.b16 %v1746, %v1744
    %v2461 = vpack.c.b16 %v1749, %v1747
    %v2462 = vpack.c.b16 %v1750, %v1748
    %v2463 = vpack.c.b16 %v1753, %v1751
    %v2464 = vpack.c.b16 %v1754, %v1752
    %v2465 = vpack.c.b16 %v1757, %v1755
    %v2466 = vpack.c.b16 %v1758, %v1756
    %v2467 = vpack.c.b16 %v1761, %v1759
    %v2468 = vpack.c.b16 %v1762, %v1760
    %v2469 = vpack.c.b16 %v1765, %v1763
    %v2470 = vpack.c.b16 %v1766, %v1764
    %v2471 = vpack.c.b16 %v1769, %v1767
    %v2472 = vpack.c.b16 %v1770, %v1768
    %v2473 = vpack.c.b16 %v1773, %v1771
    %v2474 = vpack.c.b16 %v1774, %v1772
    %v2475 = vpack.c.b16 %v1777, %v1775
    %v2476 = vpack.c.b16 %v1778, %v1776
    %v2477 = vpack.c.b16 %v1781, %v1779
    %v2478 = vpack.c.b16 %v1782, %v1780
    %v2479 = vpack.c.b16 %v1785, %v1783
    %v2480 = vpack.c.b16 %v1786, %v1784
    %v2481 = vpack.c.b16 %v1789, %v1787
    %v2482 = vpack.c.b16 %v1790, %v1788
    %v2483 = vpack.c.b16 %v1793, %v1791
    %v2484 = vpack.c.b16 %v1794, %v1792
    %v2485 = vpack.c.b16 %v1797, %v1795
    %v2486 = vpack.c.b16 %v1798, %v1796
    %v2487 = vpack.c.b16 %v1801, %v1799
    %v2488 = vpack.c.b16 %v1802, %v1800
    %v2489 = vpack.c.b16 %v1805, %v1803
    %v2490 = vpack.c.b16 %v1806, %v1804
    %v2491 = vpack.c.b16 %v1809, %v1807
    %v2492 = vpack.c.b16 %v1810, %v1808
    %v2493 = vpack.c.b16 %v1813, %v1811
    %v2494 = vpack.c.b16 %v1814, %v1812
    %v2495 = vpack.c.b16 %v1817, %v1815
    %v2496 = vpack.c.b16 %v1818, %v1816
    %v2497 = vpack.c.b16 %v1821, %v1819
    %v2498 = vpack.c.b16 %v1822, %v1820
    %v2499 = vpack.c.b16 %v1825, %v1823
    %v2500 = vpack.c.b16 %v1826, %v1824
    %v2501 = vpack.c.b16 %v1829, %v1827
    %v2502 = vpack.c.b16 %v1830, %v1828
    %v2503 = vpack.c.b16 %v1833, %v1831
    %v2504 = vpack.c.b16 %v1834, %v1832
    %v2505 = vpack.c.b16 %v1837, %v1835
    %v2506 = vpack.c.b16 %v1838, %v1836
    %v2507 = vpack.c.b16 %v1841, %v1839
    %v2508 = vpack.c.b16 %v1842, %v1840
    %v2509 = vpack.c.b16 %v1845, %v1843
    %v2510 = vpack.c.b16 %v1846, %v1844
    %v2511 = vpack.c.b16 %v1849, %v1847
    %v2512 = vpack.c.b16 %v1850, %v1848
    %v2513 = vpack.c.b16 %v1853, %v1851
    %v2514 = vpack.c.b16 %v1854, %v1852
    %v2515 = vpack.c.b16 %v1857, %v1855
    %v2516 = vpack.c.b16 %v1858, %v1856
    %v2517 = vpack.c.b16 %v1861, %v1859
    %v2518 = vpack.c.b16 %v1862, %v1860
    %v2519 = vpack.c.b16 %v1865, %v1863
    %v2520 = vpack.c.b16 %v1866, %v1864
    %v2521 = vpack.c.b16 %v1869, %v1867
    %v2522 = vpack.c.b16 %v1870, %v1868
    %v2523 = vpack.c.b16 %v1873, %v1871
    %v2524 = vpack.c.b16 %v1874, %v1872
    %v2525 = vpack.c.b16 %v1877, %v1875
    %v2526 = vpack.c.b16 %v1878, %v1876
    %v2527 = vpack.c.b16 %v1881, %v1879
    %v2528 = vpack.c.b16 %v1882, %v1880
    %v2529 = vpack.c.b16 %v1885, %v1883
    %v2530 = vpack.c.b16 %v1886, %v1884
    %v2531 = vpack.c.b16 %v1889, %v1887
    %v2532 = vpack.c.b16 %v1890, %v1888
    %v2533 = vpack.c.b16 %v1893, %v1891
    %v2534 = vpack.c.b16 %v1894, %v1892
    %v2535 = vpack.c.b16 %v1897, %v1895
    %v2536 = vpack.c.b16 %v1898, %v1896
    %v2537 = vpack.c.b16 %v1901, %v1899
    %v2538 = vpack.c.b16 %v1902, %v1900
    %v2539 = vpack.c.b16 %v1905, %v1903
    %v2540 = vpack.c.b16 %v1906, %v1904
    %v2541 = vpack.c.b16 %v1909, %v1907
    %v2542 = vpack.c.b16 %v1910, %v1908
    %v2543 = vpack.c.b16 %v1913, %v1911
    %v2544 = vpack.c.b16 %v1914, %v1912
    %v2545 = vpack.c.b16 %v1917, %v1915
    %v2546 = vpack.c.b16 %v1918, %v1916
    %v2547 = vpack.c.b16 %v1921, %v1919
    %v2548 = vpack.c.b16 %v1922, %v1920
    %v2549 = vpack.c.b16 %v1925, %v1923
    %v2550 = vpack.c.b16 %v1926, %v1924
    %v2551 = vpack.c.b16 %v1929, %v1927
    %v2552 = vpack.c.b16 %v1930, %v1928
    %v2553 = vpack.c.b16 %v1933, %v1931
    %v2554 = vpack.c.b16 %v1934, %v1932
    %v2555 = vpack.c.b16 %v1937, %v1935
    %v2556 = vpack.c.b16 %v1938, %v1936
    %v2557 = vpack.c.b16 %v1941, %v1939
    %v2558 = vpack.c.b16 %v1942, %v1940
    %v2559 = vpack.c.b16 %v1945, %v1943
    %v2560 = vpack.c.b16 %v1946, %v1944
    %v2561 = vpack.c.b16 %v1949, %v1947
    %v2562 = vpack.c.b16 %v1950, %v1948
    %v2563 = vpack.c.b16 %v1953, %v1951
    %v2564 = vpack.c.b16 %v1954, %v1952
    %v2565 = vpack.c.b16 %v1957, %v1955
    %v2566 = vpack.c.b16 %v1958, %v1956
    %v2567 = vpack.c.b16 %v1961, %v1959
    %v2568 = vpack.c.b16 %v1962, %v1960
    %v2569 = vpack.c.b16 %v1965, %v1963
    %v2570 = vpack.c.b16 %v1966, %v1964
    %v2571 = vpack.c.b16 %v1969, %v1967
    %v2572 = vpack.c.b16 %v1970, %v1968
    %v2573 = vpack.c.b16 %v1973, %v1971
    %v2574 = vpack.c.b16 %v1974, %v1972
    %v2575 = vpack.c.b16 %v1977, %v1975
    %v2576 = vpack.c.b16 %v1978, %v1976
    %v2577 = vpack.c.b16 %v1981, %v1979
    %v2578 = vpack.c.b16 %v1982, %v1980
    %v2579 = vpack.c.b16 %v1985, %v1983
    %v2580 = vpack.c.b16 %v1986, %v1984
    %v2581 = vpack.c.b16 %v1989, %v1987
    %v2582 = vpack.c.b16 %v1990, %v1988
    %v2583 = vpack.c.b16 %v1993, %v1991
    %v2584 = vpack.c.b16 %v1994, %v1992
    %v2585 = vpack.c.b16 %v1997, %v1995
    %v2586 = vpack.c.b16 %v1998, %v1996
    %v2587 = vpack.c.b16 %v2001, %v1999
    %v2588 = vpack.c.b16 %v2002, %v2000
    %v2589 = vpack.c.b16 %v2005, %v2003
    %v2590 = vpack.c.b16 %v2006, %v2004
    %v2591 = vpack.c.b16 %v2009, %v2007
    %v2592 = vpack.c.b16 %v2010, %v2008
    %v2593 = vpack.c.b16 %v2013, %v2011
    %v2594 = vpack.c.b16 %v2014, %v2012
    %v2595 = vpack.c.b16 %v2017, %v2015
    %v2596 = vpack.c.b16 %v2018, %v2016
    %v2597 = vpack.c.b16 %v2021, %v2019
    %v2598 = vpack.c.b16 %v2022, %v2020
    %v2599 = vpack.c.b16 %v2025, %v2023
    %v2600 = vpack.c.b16 %v2026, %v2024
    %v2601 = vpack.c.b16 %v2029, %v2027
    %v2602 = vpack.c.b16 %v2030, %v2028
    %v2603 = vpack.c.b16 %v2033, %v2031
    %v2604 = vpack.c.b16 %v2034, %v2032
    %v2605 = vpack.c.b16 %v2037, %v2035
    %v2606 = vpack.c.b16 %v2038, %v2036
    %v2607 = vpack.c.b16 %v2041, %v2039
    %v2608 = vpack.c.b16 %v2042, %v2040
    %v2609 = vpack.c.b16 %v2045, %v2043
    %v2610 = vpack.c.b16 %v2046, %v2044
    %v2611 = vpack.c.b16 %v2049, %v2047
    %v2612 = vpack.c.b16 %v2050, %v2048
    %v2613 = vpack.c.b16 %v2053, %v2051
    %v2614 = vpack.c.b16 %v2054, %v2052
    %v2615 = vpack.c.b16 %v2057, %v2055
    %v2616 = vpack.c.b16 %v2058, %v2056
    %v2617 = vpack.c.b16 %v2061, %v2059
    %v2618 = vpack.c.b16 %v2062, %v2060
    %v2619 = vpack.c.b16 %v2065, %v2063
    %v2620 = vpack.c.b16 %v2066, %v2064
    %v2621 = vpack.c.b16 %v2069, %v2067
    %v2622 = vpack.c.b16 %v2070, %v2068
    %v2623 = vpack.c.b16 %v2073, %v2071
    %v2624 = vpack.c.b16 %v2074, %v2072
    %v2625 = vpack.c.b16 %v2077, %v2075
    %v2626 = vpack.c.b16 %v2078, %v2076
    %v2627 = vpack.c.b16 %v2081, %v2079
    %v2628 = vpack.c.b16 %v2082, %v2080
    %v2629 = vpack.c.b16 %v2085, %v2083
    %v2630 = vpack.c.b16 %v2086, %v2084
    %v2631 = vpack.c.b16 %v2089, %v2087
    %v2632 = vpack.c.b16 %v2090, %v2088
    %v2633 = vpack.c.b16 %v2093, %v2091
    %v2634 = vpack.c.b16 %v2094, %v2092
    %v2635 = vpack.c.b16 %v2097, %v2095
    %v2636 = vpack.c.b16 %v2098, %v2096
    %v2637 = vpack.c.b16 %v2101, %v2099
    %v2638 = vpack.c.b16 %v2102, %v2100
    %v2639 = vpack.c.b16 %v2105, %v2103
    %v2640 = vpack.c.b16 %v2106, %v2104
    %v2641 = vpack.c.b16 %v2109, %v2107
    %v2642 = vpack.c.b16 %v2110, %v2108
    %v2643 = vpack.c.b16 %v2113, %v2111
    %v2644 = vpack.c.b16 %v2114, %v2112
    %v2645 = vpack.c.b16 %v2117, %v2115
    %v2646 = vpack.c.b16 %v2118, %v2116
    %v2647 = vpack.c.b16 %v2121, %v2119
    %v2648 = vpack.c.b16 %v2122, %v2120
    %v2649 = vpack.c.b16 %v2125, %v2123
    %v2650 = vpack.c.b16 %v2126, %v2124
    %v2651 = vpack.c.b16 %v2129, %v2127
    %v2652 = vpack.c.b16 %v2130, %v2128
    %v2653 = vpack.c.b16 %v2133, %v2131
    %v2654 = vpack.c.b16 %v2134, %v2132
    %v2655 = vpack.c.b16 %v2137, %v2135
    %v2656 = vpack.c.b16 %v2138, %v2136
    %v2657 = vpack.c.b16 %v2141, %v2139
    %v2658 = vpack.c.b16 %v2142, %v2140
    %v2659 = vpack.c.b16 %v2145, %v2143
    %v2660 = vpack.c.b16 %v2146, %v2144
    %v2661 = vpack.c.b16 %v2149, %v2147
    %v2662 = vpack.c.b16 %v2150, %v2148
    %3175 = vmatpush.bf16.msra.mxu0 %v2165
    %3176 = vmatpush.bf16.msra.mxu0 %v2163
    %3177 = vmatpush.bf16.msra.mxu0 %v2161
    %3178 = vmatpush.bf16.msra.mxu0 %v2159
    %3179 = vmatpush.bf16.msra.mxu0 %v2157
    %3180 = vmatpush.bf16.msra.mxu0 %v2155
    %3181 = vmatpush.bf16.msra.mxu0 %v2153
    %3182 = vmatpush.bf16.msra.mxu0 %v2151
    %3183 = vmatmul.bf16.gmra.mxu0 %v545
    %v3184 = vpop.f32.mrf.mxu0
    %v3185 = vadd.f32 %v539, %v3184
    %v3186 = vpop.f32.mrf.mxu0
    %3187 = vdwg.mxu0
    %3188 = vmatpush.bf16.msra.mxu0 %v2181
    %3189 = vmatpush.bf16.msra.mxu0 %v2179
    %3190 = vmatpush.bf16.msra.mxu0 %v2177
    %3191 = vmatpush.bf16.msra.mxu0 %v2175
    %3192 = vmatpush.bf16.msra.mxu0 %v2173
    %3193 = vmatpush.bf16.msra.mxu0 %v2171
    %3194 = vmatpush.bf16.msra.mxu0 %v2169
    %3195 = vmatpush.bf16.msra.mxu0 %v2167
    %3196 = vmatmul.bf16.gmra.mxu0 %v546
    %v3197 = vpop.f32.mrf.mxu0
    %v3198 = vadd.f32 %v3185, %v3197
    %v3199 = vpop.f32.mrf.mxu0
    %3200 = vdwg.mxu0
    %3201 = vmatpush.bf16.msra.mxu0 %v2197
    %3202 = vmatpush.bf16.msra.mxu0 %v2195
    %3203 = vmatpush.bf16.msra.mxu0 %v2193
    %3204 = vmatpush.bf16.msra.mxu0 %v2191
    %3205 = vmatpush.bf16.msra.mxu0 %v2189
    %3206 = vmatpush.bf16.msra.mxu0 %v2187
    %3207 = vmatpush.bf16.msra.mxu0 %v2185
    %3208 = vmatpush.bf16.msra.mxu0 %v2183
    %3209 = vmatmul.bf16.gmra.mxu0 %v547
    %v3210 = vpop.f32.mrf.mxu0
    %v3211 = vadd.f32 %v3198, %v3210
    %v3212 = vpop.f32.mrf.mxu0
    %3213 = vdwg.mxu0
    %3214 = vmatpush.bf16.msra.mxu0 %v2213
    %3215 = vmatpush.bf16.msra.mxu0 %v2211
    %3216 = vmatpush.bf16.msra.mxu0 %v2209
    %3217 = vmatpush.bf16.msra.mxu0 %v2207
    %3218 = vmatpush.bf16.msra.mxu0 %v2205
    %3219 = vmatpush.bf16.msra.mxu0 %v2203
    %3220 = vmatpush.bf16.msra.mxu0 %v2201
    %3221 = vmatpush.bf16.msra.mxu0 %v2199
    %3222 = vmatmul.bf16.gmra.mxu0 %v548
    %v3223 = vpop.f32.mrf.mxu0
    %v3224 = vadd.f32 %v3211, %v3223
    %v3225 = vpop.f32.mrf.mxu0
    %3226 = vdwg.mxu0
    %3227 = vmatpush.bf16.msra.mxu0 %v2229
    %3228 = vmatpush.bf16.msra.mxu0 %v2227
    %3229 = vmatpush.bf16.msra.mxu0 %v2225
    %3230 = vmatpush.bf16.msra.mxu0 %v2223
    %3231 = vmatpush.bf16.msra.mxu0 %v2221
    %3232 = vmatpush.bf16.msra.mxu0 %v2219
    %3233 = vmatpush.bf16.msra.mxu0 %v2217
    %3234 = vmatpush.bf16.msra.mxu0 %v2215
    %3235 = vmatmul.bf16.gmra.mxu0 %v549
    %v3236 = vpop.f32.mrf.mxu0
    %v3237 = vadd.f32 %v3224, %v3236
    %v3238 = vpop.f32.mrf.mxu0
    %3239 = vdwg.mxu0
    %3240 = vmatpush.bf16.msra.mxu0 %v2245
    %3241 = vmatpush.bf16.msra.mxu0 %v2243
    %3242 = vmatpush.bf16.msra.mxu0 %v2241
    %3243 = vmatpush.bf16.msra.mxu0 %v2239
    %3244 = vmatpush.bf16.msra.mxu0 %v2237
    %3245 = vmatpush.bf16.msra.mxu0 %v2235
    %3246 = vmatpush.bf16.msra.mxu0 %v2233
    %3247 = vmatpush.bf16.msra.mxu0 %v2231
    %3248 = vmatmul.bf16.gmra.mxu0 %v550
    %v3249 = vpop.f32.mrf.mxu0
    %v3250 = vadd.f32 %v3237, %v3249
    %v3251 = vpop.f32.mrf.mxu0
    %3252 = vdwg.mxu0
    %3253 = vmatpush.bf16.msra.mxu0 %v2261
    %3254 = vmatpush.bf16.msra.mxu0 %v2259
    %3255 = vmatpush.bf16.msra.mxu0 %v2257
    %3256 = vmatpush.bf16.msra.mxu0 %v2255
    %3257 = vmatpush.bf16.msra.mxu0 %v2253
    %3258 = vmatpush.bf16.msra.mxu0 %v2251
    %3259 = vmatpush.bf16.msra.mxu0 %v2249
    %3260 = vmatpush.bf16.msra.mxu0 %v2247
    %3261 = vmatmul.bf16.gmra.mxu0 %v551
    %v3262 = vpop.f32.mrf.mxu0
    %v3263 = vadd.f32 %v3250, %v3262
    %v3264 = vpop.f32.mrf.mxu0
    %3265 = vdwg.mxu0
    %3266 = vmatpush.bf16.msra.mxu0 %v2277
    %3267 = vmatpush.bf16.msra.mxu0 %v2275
    %3268 = vmatpush.bf16.msra.mxu0 %v2273
    %3269 = vmatpush.bf16.msra.mxu0 %v2271
    %3270 = vmatpush.bf16.msra.mxu0 %v2269
    %3271 = vmatpush.bf16.msra.mxu0 %v2267
    %3272 = vmatpush.bf16.msra.mxu0 %v2265
    %3273 = vmatpush.bf16.msra.mxu0 %v2263
    %3274 = vmatmul.bf16.gmra.mxu0 %v552
    %v3275 = vpop.f32.mrf.mxu0
    %v3276 = vadd.f32 %v3263, %v3275
    %v3277 = vpop.f32.mrf.mxu0
    %3278 = vdwg.mxu0
    %3279 = vmatpush.bf16.msra.mxu0 %v2293
    %3280 = vmatpush.bf16.msra.mxu0 %v2291
    %3281 = vmatpush.bf16.msra.mxu0 %v2289
    %3282 = vmatpush.bf16.msra.mxu0 %v2287
    %3283 = vmatpush.bf16.msra.mxu0 %v2285
    %3284 = vmatpush.bf16.msra.mxu0 %v2283
    %3285 = vmatpush.bf16.msra.mxu0 %v2281
    %3286 = vmatpush.bf16.msra.mxu0 %v2279
    %3287 = vmatmul.bf16.gmra.mxu0 %v555
    %v3288 = vpop.f32.mrf.mxu0
    %v3289 = vadd.f32 %v3276, %v3288
    %v3290 = vpop.f32.mrf.mxu0
    %3291 = vdwg.mxu0
    %3292 = vmatpush.bf16.msra.mxu0 %v2309
    %3293 = vmatpush.bf16.msra.mxu0 %v2307
    %3294 = vmatpush.bf16.msra.mxu0 %v2305
    %3295 = vmatpush.bf16.msra.mxu0 %v2303
    %3296 = vmatpush.bf16.msra.mxu0 %v2301
    %3297 = vmatpush.bf16.msra.mxu0 %v2299
    %3298 = vmatpush.bf16.msra.mxu0 %v2297
    %3299 = vmatpush.bf16.msra.mxu0 %v2295
    %3300 = vmatmul.bf16.gmra.mxu0 %v556
    %v3301 = vpop.f32.mrf.mxu0
    %v3302 = vadd.f32 %v3289, %v3301
    %v3303 = vpop.f32.mrf.mxu0
    %3304 = vdwg.mxu0
    %3305 = vmatpush.bf16.msra.mxu0 %v2325
    %3306 = vmatpush.bf16.msra.mxu0 %v2323
    %3307 = vmatpush.bf16.msra.mxu0 %v2321
    %3308 = vmatpush.bf16.msra.mxu0 %v2319
    %3309 = vmatpush.bf16.msra.mxu0 %v2317
    %3310 = vmatpush.bf16.msra.mxu0 %v2315
    %3311 = vmatpush.bf16.msra.mxu0 %v2313
    %3312 = vmatpush.bf16.msra.mxu0 %v2311
    %3313 = vmatmul.bf16.gmra.mxu0 %v557
    %v3314 = vpop.f32.mrf.mxu0
    %v3315 = vadd.f32 %v3302, %v3314
    %v3316 = vpop.f32.mrf.mxu0
    %3317 = vdwg.mxu0
    %3318 = vmatpush.bf16.msra.mxu0 %v2341
    %3319 = vmatpush.bf16.msra.mxu0 %v2339
    %3320 = vmatpush.bf16.msra.mxu0 %v2337
    %3321 = vmatpush.bf16.msra.mxu0 %v2335
    %3322 = vmatpush.bf16.msra.mxu0 %v2333
    %3323 = vmatpush.bf16.msra.mxu0 %v2331
    %3324 = vmatpush.bf16.msra.mxu0 %v2329
    %3325 = vmatpush.bf16.msra.mxu0 %v2327
    %3326 = vmatmul.bf16.gmra.mxu0 %v558
    %v3327 = vpop.f32.mrf.mxu0
    %v3328 = vadd.f32 %v3315, %v3327
    %v3329 = vpop.f32.mrf.mxu0
    %3330 = vdwg.mxu0
    %3331 = vmatpush.bf16.msra.mxu0 %v2357
    %3332 = vmatpush.bf16.msra.mxu0 %v2355
    %3333 = vmatpush.bf16.msra.mxu0 %v2353
    %3334 = vmatpush.bf16.msra.mxu0 %v2351
    %3335 = vmatpush.bf16.msra.mxu0 %v2349
    %3336 = vmatpush.bf16.msra.mxu0 %v2347
    %3337 = vmatpush.bf16.msra.mxu0 %v2345
    %3338 = vmatpush.bf16.msra.mxu0 %v2343
    %3339 = vmatmul.bf16.gmra.mxu0 %v559
    %v3340 = vpop.f32.mrf.mxu0
    %v3341 = vadd.f32 %v3328, %v3340
    %v3342 = vpop.f32.mrf.mxu0
    %3343 = vdwg.mxu0
    %3344 = vmatpush.bf16.msra.mxu0 %v2373
    %3345 = vmatpush.bf16.msra.mxu0 %v2371
    %3346 = vmatpush.bf16.msra.mxu0 %v2369
    %3347 = vmatpush.bf16.msra.mxu0 %v2367
    %3348 = vmatpush.bf16.msra.mxu0 %v2365
    %3349 = vmatpush.bf16.msra.mxu0 %v2363
    %3350 = vmatpush.bf16.msra.mxu0 %v2361
    %3351 = vmatpush.bf16.msra.mxu0 %v2359
    %3352 = vmatmul.bf16.gmra.mxu0 %v560
    %v3353 = vpop.f32.mrf.mxu0
    %v3354 = vadd.f32 %v3341, %v3353
    %v3355 = vpop.f32.mrf.mxu0
    %3356 = vdwg.mxu0
    %3357 = vmatpush.bf16.msra.mxu0 %v2389
    %3358 = vmatpush.bf16.msra.mxu0 %v2387
    %3359 = vmatpush.bf16.msra.mxu0 %v2385
    %3360 = vmatpush.bf16.msra.mxu0 %v2383
    %3361 = vmatpush.bf16.msra.mxu0 %v2381
    %3362 = vmatpush.bf16.msra.mxu0 %v2379
    %3363 = vmatpush.bf16.msra.mxu0 %v2377
    %3364 = vmatpush.bf16.msra.mxu0 %v2375
    %3365 = vmatmul.bf16.gmra.mxu0 %v561
    %v3366 = vpop.f32.mrf.mxu0
    %v3367 = vadd.f32 %v3354, %v3366
    %v3368 = vpop.f32.mrf.mxu0
    %3369 = vdwg.mxu0
    %3370 = vmatpush.bf16.msra.mxu0 %v2405
    %3371 = vmatpush.bf16.msra.mxu0 %v2403
    %3372 = vmatpush.bf16.msra.mxu0 %v2401
    %3373 = vmatpush.bf16.msra.mxu0 %v2399
    %3374 = vmatpush.bf16.msra.mxu0 %v2397
    %3375 = vmatpush.bf16.msra.mxu0 %v2395
    %3376 = vmatpush.bf16.msra.mxu0 %v2393
    %3377 = vmatpush.bf16.msra.mxu0 %v2391
    %3378 = vmatmul.bf16.gmra.mxu0 %v562
    %v3379 = vpop.f32.mrf.mxu0
    %v3380 = vadd.f32 %v3367, %v3379
    %v3381 = vpop.f32.mrf.mxu0
    %3382 = vdwg.mxu0
    %3383 = vmatpush.bf16.msra.mxu0 %v2421
    %3384 = vmatpush.bf16.msra.mxu0 %v2419
    %3385 = vmatpush.bf16.msra.mxu0 %v2417
    %3386 = vmatpush.bf16.msra.mxu0 %v2415
    %3387 = vmatpush.bf16.msra.mxu0 %v2413
    %3388 = vmatpush.bf16.msra.mxu0 %v2411
    %3389 = vmatpush.bf16.msra.mxu0 %v2409
    %3390 = vmatpush.bf16.msra.mxu0 %v2407
    %3391 = vmatmul.bf16.gmra.mxu0 %v565
    %v3392 = vpop.f32.mrf.mxu0
    %v3393 = vadd.f32 %v3380, %v3392
    %v3394 = vpop.f32.mrf.mxu0
    %3395 = vdwg.mxu0
    %3396 = vmatpush.bf16.msra.mxu0 %v2437
    %3397 = vmatpush.bf16.msra.mxu0 %v2435
    %3398 = vmatpush.bf16.msra.mxu0 %v2433
    %3399 = vmatpush.bf16.msra.mxu0 %v2431
    %3400 = vmatpush.bf16.msra.mxu0 %v2429
    %3401 = vmatpush.bf16.msra.mxu0 %v2427
    %3402 = vmatpush.bf16.msra.mxu0 %v2425
    %3403 = vmatpush.bf16.msra.mxu0 %v2423
    %3404 = vmatmul.bf16.gmra.mxu0 %v566
    %v3405 = vpop.f32.mrf.mxu0
    %v3406 = vadd.f32 %v3393, %v3405
    %v3407 = vpop.f32.mrf.mxu0
    %3408 = vdwg.mxu0
    %3409 = vmatpush.bf16.msra.mxu0 %v2453
    %3410 = vmatpush.bf16.msra.mxu0 %v2451
    %3411 = vmatpush.bf16.msra.mxu0 %v2449
    %3412 = vmatpush.bf16.msra.mxu0 %v2447
    %3413 = vmatpush.bf16.msra.mxu0 %v2445
    %3414 = vmatpush.bf16.msra.mxu0 %v2443
    %3415 = vmatpush.bf16.msra.mxu0 %v2441
    %3416 = vmatpush.bf16.msra.mxu0 %v2439
    %3417 = vmatmul.bf16.gmra.mxu0 %v567
    %v3418 = vpop.f32.mrf.mxu0
    %v3419 = vadd.f32 %v3406, %v3418
    %v3420 = vpop.f32.mrf.mxu0
    %3421 = vdwg.mxu0
    %3422 = vmatpush.bf16.msra.mxu0 %v2469
    %3423 = vmatpush.bf16.msra.mxu0 %v2467
    %3424 = vmatpush.bf16.msra.mxu0 %v2465
    %3425 = vmatpush.bf16.msra.mxu0 %v2463
    %3426 = vmatpush.bf16.msra.mxu0 %v2461
    %3427 = vmatpush.bf16.msra.mxu0 %v2459
    %3428 = vmatpush.bf16.msra.mxu0 %v2457
    %3429 = vmatpush.bf16.msra.mxu0 %v2455
    %3430 = vmatmul.bf16.gmra.mxu0 %v568
    %v3431 = vpop.f32.mrf.mxu0
    %v3432 = vadd.f32 %v3419, %v3431
    %v3433 = vpop.f32.mrf.mxu0
    %3434 = vdwg.mxu0
    %3435 = vmatpush.bf16.msra.mxu0 %v2485
    %3436 = vmatpush.bf16.msra.mxu0 %v2483
    %3437 = vmatpush.bf16.msra.mxu0 %v2481
    %3438 = vmatpush.bf16.msra.mxu0 %v2479
    %3439 = vmatpush.bf16.msra.mxu0 %v2477
    %3440 = vmatpush.bf16.msra.mxu0 %v2475
    %3441 = vmatpush.bf16.msra.mxu0 %v2473
    %3442 = vmatpush.bf16.msra.mxu0 %v2471
    %3443 = vmatmul.bf16.gmra.mxu0 %v569
    %v3444 = vpop.f32.mrf.mxu0
    %v3445 = vadd.f32 %v3432, %v3444
    %v3446 = vpop.f32.mrf.mxu0
    %3447 = vdwg.mxu0
    %3448 = vmatpush.bf16.msra.mxu0 %v2501
    %3449 = vmatpush.bf16.msra.mxu0 %v2499
    %3450 = vmatpush.bf16.msra.mxu0 %v2497
    %3451 = vmatpush.bf16.msra.mxu0 %v2495
    %3452 = vmatpush.bf16.msra.mxu0 %v2493
    %3453 = vmatpush.bf16.msra.mxu0 %v2491
    %3454 = vmatpush.bf16.msra.mxu0 %v2489
    %3455 = vmatpush.bf16.msra.mxu0 %v2487
    %3456 = vmatmul.bf16.gmra.mxu0 %v570
    %v3457 = vpop.f32.mrf.mxu0
    %v3458 = vadd.f32 %v3445, %v3457
    %v3459 = vpop.f32.mrf.mxu0
    %3460 = vdwg.mxu0
    %3461 = vmatpush.bf16.msra.mxu0 %v2517
    %3462 = vmatpush.bf16.msra.mxu0 %v2515
    %3463 = vmatpush.bf16.msra.mxu0 %v2513
    %3464 = vmatpush.bf16.msra.mxu0 %v2511
    %3465 = vmatpush.bf16.msra.mxu0 %v2509
    %3466 = vmatpush.bf16.msra.mxu0 %v2507
    %3467 = vmatpush.bf16.msra.mxu0 %v2505
    %3468 = vmatpush.bf16.msra.mxu0 %v2503
    %3469 = vmatmul.bf16.gmra.mxu0 %v571
    %v3470 = vpop.f32.mrf.mxu0
    %v3471 = vadd.f32 %v3458, %v3470
    %v3472 = vpop.f32.mrf.mxu0
    %3473 = vdwg.mxu0
    %3474 = vmatpush.bf16.msra.mxu0 %v2533
    %3475 = vmatpush.bf16.msra.mxu0 %v2531
    %3476 = vmatpush.bf16.msra.mxu0 %v2529
    %3477 = vmatpush.bf16.msra.mxu0 %v2527
    %3478 = vmatpush.bf16.msra.mxu0 %v2525
    %3479 = vmatpush.bf16.msra.mxu0 %v2523
    %3480 = vmatpush.bf16.msra.mxu0 %v2521
    %3481 = vmatpush.bf16.msra.mxu0 %v2519
    %3482 = vmatmul.bf16.gmra.mxu0 %v572
    %v3483 = vpop.f32.mrf.mxu0
    %v3484 = vadd.f32 %v3471, %v3483
    %v3485 = vpop.f32.mrf.mxu0
    %3486 = vdwg.mxu0
    %3487 = vmatpush.bf16.msra.mxu0 %v2549
    %3488 = vmatpush.bf16.msra.mxu0 %v2547
    %3489 = vmatpush.bf16.msra.mxu0 %v2545
    %3490 = vmatpush.bf16.msra.mxu0 %v2543
    %3491 = vmatpush.bf16.msra.mxu0 %v2541
    %3492 = vmatpush.bf16.msra.mxu0 %v2539
    %3493 = vmatpush.bf16.msra.mxu0 %v2537
    %3494 = vmatpush.bf16.msra.mxu0 %v2535
    %3495 = vmatmul.bf16.gmra.mxu0 %v575
    %v3496 = vpop.f32.mrf.mxu0
    %v3497 = vadd.f32 %v3484, %v3496
    %v3498 = vpop.f32.mrf.mxu0
    %3499 = vdwg.mxu0
    %3500 = vmatpush.bf16.msra.mxu0 %v2565
    %3501 = vmatpush.bf16.msra.mxu0 %v2563
    %3502 = vmatpush.bf16.msra.mxu0 %v2561
    %3503 = vmatpush.bf16.msra.mxu0 %v2559
    %3504 = vmatpush.bf16.msra.mxu0 %v2557
    %3505 = vmatpush.bf16.msra.mxu0 %v2555
    %3506 = vmatpush.bf16.msra.mxu0 %v2553
    %3507 = vmatpush.bf16.msra.mxu0 %v2551
    %3508 = vmatmul.bf16.gmra.mxu0 %v576
    %v3509 = vpop.f32.mrf.mxu0
    %v3510 = vadd.f32 %v3497, %v3509
    %v3511 = vpop.f32.mrf.mxu0
    %3512 = vdwg.mxu0
    %3513 = vmatpush.bf16.msra.mxu0 %v2581
    %3514 = vmatpush.bf16.msra.mxu0 %v2579
    %3515 = vmatpush.bf16.msra.mxu0 %v2577
    %3516 = vmatpush.bf16.msra.mxu0 %v2575
    %3517 = vmatpush.bf16.msra.mxu0 %v2573
    %3518 = vmatpush.bf16.msra.mxu0 %v2571
    %3519 = vmatpush.bf16.msra.mxu0 %v2569
    %3520 = vmatpush.bf16.msra.mxu0 %v2567
    %3521 = vmatmul.bf16.gmra.mxu0 %v577
    %v3522 = vpop.f32.mrf.mxu0
    %v3523 = vadd.f32 %v3510, %v3522
    %v3524 = vpop.f32.mrf.mxu0
    %3525 = vdwg.mxu0
    %3526 = vmatpush.bf16.msra.mxu0 %v2597
    %3527 = vmatpush.bf16.msra.mxu0 %v2595
    %3528 = vmatpush.bf16.msra.mxu0 %v2593
    %3529 = vmatpush.bf16.msra.mxu0 %v2591
    %3530 = vmatpush.bf16.msra.mxu0 %v2589
    %3531 = vmatpush.bf16.msra.mxu0 %v2587
    %3532 = vmatpush.bf16.msra.mxu0 %v2585
    %3533 = vmatpush.bf16.msra.mxu0 %v2583
    %3534 = vmatmul.bf16.gmra.mxu0 %v578
    %v3535 = vpop.f32.mrf.mxu0
    %v3536 = vadd.f32 %v3523, %v3535
    %v3537 = vpop.f32.mrf.mxu0
    %3538 = vdwg.mxu0
    %3539 = vmatpush.bf16.msra.mxu0 %v2613
    %3540 = vmatpush.bf16.msra.mxu0 %v2611
    %3541 = vmatpush.bf16.msra.mxu0 %v2609
    %3542 = vmatpush.bf16.msra.mxu0 %v2607
    %3543 = vmatpush.bf16.msra.mxu0 %v2605
    %3544 = vmatpush.bf16.msra.mxu0 %v2603
    %3545 = vmatpush.bf16.msra.mxu0 %v2601
    %3546 = vmatpush.bf16.msra.mxu0 %v2599
    %3547 = vmatmul.bf16.gmra.mxu0 %v579
    %v3548 = vpop.f32.mrf.mxu0
    %v3549 = vadd.f32 %v3536, %v3548
    %v3550 = vpop.f32.mrf.mxu0
    %3551 = vdwg.mxu0
    %3552 = vmatpush.bf16.msra.mxu0 %v2629
    %3553 = vmatpush.bf16.msra.mxu0 %v2627
    %3554 = vmatpush.bf16.msra.mxu0 %v2625
    %3555 = vmatpush.bf16.msra.mxu0 %v2623
    %3556 = vmatpush.bf16.msra.mxu0 %v2621
    %3557 = vmatpush.bf16.msra.mxu0 %v2619
    %3558 = vmatpush.bf16.msra.mxu0 %v2617
    %3559 = vmatpush.bf16.msra.mxu0 %v2615
    %3560 = vmatmul.bf16.gmra.mxu0 %v580
    %v3561 = vpop.f32.mrf.mxu0
    %v3562 = vadd.f32 %v3549, %v3561
    %v3563 = vpop.f32.mrf.mxu0
    %3564 = vdwg.mxu0
    %3565 = vmatpush.bf16.msra.mxu0 %v2645
    %3566 = vmatpush.bf16.msra.mxu0 %v2643
    %3567 = vmatpush.bf16.msra.mxu0 %v2641
    %3568 = vmatpush.bf16.msra.mxu0 %v2639
    %3569 = vmatpush.bf16.msra.mxu0 %v2637
    %3570 = vmatpush.bf16.msra.mxu0 %v2635
    %3571 = vmatpush.bf16.msra.mxu0 %v2633
    %3572 = vmatpush.bf16.msra.mxu0 %v2631
    %3573 = vmatmul.bf16.gmra.mxu0 %v581
    %v3574 = vpop.f32.mrf.mxu0
    %v3575 = vadd.f32 %v3562, %v3574
    %v3576 = vpop.f32.mrf.mxu0
    %3577 = vdwg.mxu0
    %3578 = vmatpush.bf16.msra.mxu0 %v2661
    %3579 = vmatpush.bf16.msra.mxu0 %v2659
    %3580 = vmatpush.bf16.msra.mxu0 %v2657
    %3581 = vmatpush.bf16.msra.mxu0 %v2655
    %3582 = vmatpush.bf16.msra.mxu0 %v2653
    %3583 = vmatpush.bf16.msra.mxu0 %v2651
    %3584 = vmatpush.bf16.msra.mxu0 %v2649
    %3585 = vmatpush.bf16.msra.mxu0 %v2647
    %3586 = vmatmul.bf16.gmra.mxu0 %v582
    %v3587 = vpop.f32.mrf.mxu0
    %v3588 = vadd.f32 %v3575, %v3587
    %v3589 = vpop.f32.mrf.mxu0
    %3590 = vdwg.mxu0
    %3591 = vmatpush.bf16.msra.mxu0 %v2166
    %3592 = vmatpush.bf16.msra.mxu0 %v2164
    %3593 = vmatpush.bf16.msra.mxu0 %v2162
    %3594 = vmatpush.bf16.msra.mxu0 %v2160
    %3595 = vmatpush.bf16.msra.mxu0 %v2158
    %3596 = vmatpush.bf16.msra.mxu0 %v2156
    %3597 = vmatpush.bf16.msra.mxu0 %v2154
    %3598 = vmatpush.bf16.msra.mxu0 %v2152
    %3599 = vmatmul.bf16.gmra.mxu0 %v545
    %v3600 = vpop.f32.mrf.mxu0
    %v3601 = vadd.f32 %v540, %v3600
    %v3602 = vpop.f32.mrf.mxu0
    %3603 = vdwg.mxu0
    %3604 = vmatpush.bf16.msra.mxu0 %v2182
    %3605 = vmatpush.bf16.msra.mxu0 %v2180
    %3606 = vmatpush.bf16.msra.mxu0 %v2178
    %3607 = vmatpush.bf16.msra.mxu0 %v2176
    %3608 = vmatpush.bf16.msra.mxu0 %v2174
    %3609 = vmatpush.bf16.msra.mxu0 %v2172
    %3610 = vmatpush.bf16.msra.mxu0 %v2170
    %3611 = vmatpush.bf16.msra.mxu0 %v2168
    %3612 = vmatmul.bf16.gmra.mxu0 %v546
    %v3613 = vpop.f32.mrf.mxu0
    %v3614 = vadd.f32 %v3601, %v3613
    %v3615 = vpop.f32.mrf.mxu0
    %3616 = vdwg.mxu0
    %3617 = vmatpush.bf16.msra.mxu0 %v2198
    %3618 = vmatpush.bf16.msra.mxu0 %v2196
    %3619 = vmatpush.bf16.msra.mxu0 %v2194
    %3620 = vmatpush.bf16.msra.mxu0 %v2192
    %3621 = vmatpush.bf16.msra.mxu0 %v2190
    %3622 = vmatpush.bf16.msra.mxu0 %v2188
    %3623 = vmatpush.bf16.msra.mxu0 %v2186
    %3624 = vmatpush.bf16.msra.mxu0 %v2184
    %3625 = vmatmul.bf16.gmra.mxu0 %v547
    %v3626 = vpop.f32.mrf.mxu0
    %v3627 = vadd.f32 %v3614, %v3626
    %v3628 = vpop.f32.mrf.mxu0
    %3629 = vdwg.mxu0
    %3630 = vmatpush.bf16.msra.mxu0 %v2214
    %3631 = vmatpush.bf16.msra.mxu0 %v2212
    %3632 = vmatpush.bf16.msra.mxu0 %v2210
    %3633 = vmatpush.bf16.msra.mxu0 %v2208
    %3634 = vmatpush.bf16.msra.mxu0 %v2206
    %3635 = vmatpush.bf16.msra.mxu0 %v2204
    %3636 = vmatpush.bf16.msra.mxu0 %v2202
    %3637 = vmatpush.bf16.msra.mxu0 %v2200
    %3638 = vmatmul.bf16.gmra.mxu0 %v548
    %v3639 = vpop.f32.mrf.mxu0
    %v3640 = vadd.f32 %v3627, %v3639
    %v3641 = vpop.f32.mrf.mxu0
    %3642 = vdwg.mxu0
    %3643 = vmatpush.bf16.msra.mxu0 %v2230
    %3644 = vmatpush.bf16.msra.mxu0 %v2228
    %3645 = vmatpush.bf16.msra.mxu0 %v2226
    %3646 = vmatpush.bf16.msra.mxu0 %v2224
    %3647 = vmatpush.bf16.msra.mxu0 %v2222
    %3648 = vmatpush.bf16.msra.mxu0 %v2220
    %3649 = vmatpush.bf16.msra.mxu0 %v2218
    %3650 = vmatpush.bf16.msra.mxu0 %v2216
    %3651 = vmatmul.bf16.gmra.mxu0 %v549
    %v3652 = vpop.f32.mrf.mxu0
    %v3653 = vadd.f32 %v3640, %v3652
    %v3654 = vpop.f32.mrf.mxu0
    %3655 = vdwg.mxu0
    %3656 = vmatpush.bf16.msra.mxu0 %v2246
    %3657 = vmatpush.bf16.msra.mxu0 %v2244
    %3658 = vmatpush.bf16.msra.mxu0 %v2242
    %3659 = vmatpush.bf16.msra.mxu0 %v2240
    %3660 = vmatpush.bf16.msra.mxu0 %v2238
    %3661 = vmatpush.bf16.msra.mxu0 %v2236
    %3662 = vmatpush.bf16.msra.mxu0 %v2234
    %3663 = vmatpush.bf16.msra.mxu0 %v2232
    %3664 = vmatmul.bf16.gmra.mxu0 %v550
    %v3665 = vpop.f32.mrf.mxu0
    %v3666 = vadd.f32 %v3653, %v3665
    %v3667 = vpop.f32.mrf.mxu0
    %3668 = vdwg.mxu0
    %3669 = vmatpush.bf16.msra.mxu0 %v2262
    %3670 = vmatpush.bf16.msra.mxu0 %v2260
    %3671 = vmatpush.bf16.msra.mxu0 %v2258
    %3672 = vmatpush.bf16.msra.mxu0 %v2256
    %3673 = vmatpush.bf16.msra.mxu0 %v2254
    %3674 = vmatpush.bf16.msra.mxu0 %v2252
    %3675 = vmatpush.bf16.msra.mxu0 %v2250
    %3676 = vmatpush.bf16.msra.mxu0 %v2248
    %3677 = vmatmul.bf16.gmra.mxu0 %v551
    %v3678 = vpop.f32.mrf.mxu0
    %v3679 = vadd.f32 %v3666, %v3678
    %v3680 = vpop.f32.mrf.mxu0
    %3681 = vdwg.mxu0
    %3682 = vmatpush.bf16.msra.mxu0 %v2278
    %3683 = vmatpush.bf16.msra.mxu0 %v2276
    %3684 = vmatpush.bf16.msra.mxu0 %v2274
    %3685 = vmatpush.bf16.msra.mxu0 %v2272
    %3686 = vmatpush.bf16.msra.mxu0 %v2270
    %3687 = vmatpush.bf16.msra.mxu0 %v2268
    %3688 = vmatpush.bf16.msra.mxu0 %v2266
    %3689 = vmatpush.bf16.msra.mxu0 %v2264
    %3690 = vmatmul.bf16.gmra.mxu0 %v552
    %v3691 = vpop.f32.mrf.mxu0
    %v3692 = vadd.f32 %v3679, %v3691
    %v3693 = vpop.f32.mrf.mxu0
    %3694 = vdwg.mxu0
    %3695 = vmatpush.bf16.msra.mxu0 %v2294
    %3696 = vmatpush.bf16.msra.mxu0 %v2292
    %3697 = vmatpush.bf16.msra.mxu0 %v2290
    %3698 = vmatpush.bf16.msra.mxu0 %v2288
    %3699 = vmatpush.bf16.msra.mxu0 %v2286
    %3700 = vmatpush.bf16.msra.mxu0 %v2284
    %3701 = vmatpush.bf16.msra.mxu0 %v2282
    %3702 = vmatpush.bf16.msra.mxu0 %v2280
    %3703 = vmatmul.bf16.gmra.mxu0 %v555
    %v3704 = vpop.f32.mrf.mxu0
    %v3705 = vadd.f32 %v3692, %v3704
    %v3706 = vpop.f32.mrf.mxu0
    %3707 = vdwg.mxu0
    %3708 = vmatpush.bf16.msra.mxu0 %v2310
    %3709 = vmatpush.bf16.msra.mxu0 %v2308
    %3710 = vmatpush.bf16.msra.mxu0 %v2306
    %3711 = vmatpush.bf16.msra.mxu0 %v2304
    %3712 = vmatpush.bf16.msra.mxu0 %v2302
    %3713 = vmatpush.bf16.msra.mxu0 %v2300
    %3714 = vmatpush.bf16.msra.mxu0 %v2298
    %3715 = vmatpush.bf16.msra.mxu0 %v2296
    %3716 = vmatmul.bf16.gmra.mxu0 %v556
    %v3717 = vpop.f32.mrf.mxu0
    %v3718 = vadd.f32 %v3705, %v3717
    %v3719 = vpop.f32.mrf.mxu0
    %3720 = vdwg.mxu0
    %3721 = vmatpush.bf16.msra.mxu0 %v2326
    %3722 = vmatpush.bf16.msra.mxu0 %v2324
    %3723 = vmatpush.bf16.msra.mxu0 %v2322
    %3724 = vmatpush.bf16.msra.mxu0 %v2320
    %3725 = vmatpush.bf16.msra.mxu0 %v2318
    %3726 = vmatpush.bf16.msra.mxu0 %v2316
    %3727 = vmatpush.bf16.msra.mxu0 %v2314
    %3728 = vmatpush.bf16.msra.mxu0 %v2312
    %3729 = vmatmul.bf16.gmra.mxu0 %v557
    %v3730 = vpop.f32.mrf.mxu0
    %v3731 = vadd.f32 %v3718, %v3730
    %v3732 = vpop.f32.mrf.mxu0
    %3733 = vdwg.mxu0
    %3734 = vmatpush.bf16.msra.mxu0 %v2342
    %3735 = vmatpush.bf16.msra.mxu0 %v2340
    %3736 = vmatpush.bf16.msra.mxu0 %v2338
    %3737 = vmatpush.bf16.msra.mxu0 %v2336
    %3738 = vmatpush.bf16.msra.mxu0 %v2334
    %3739 = vmatpush.bf16.msra.mxu0 %v2332
    %3740 = vmatpush.bf16.msra.mxu0 %v2330
    %3741 = vmatpush.bf16.msra.mxu0 %v2328
    %3742 = vmatmul.bf16.gmra.mxu0 %v558
    %v3743 = vpop.f32.mrf.mxu0
    %v3744 = vadd.f32 %v3731, %v3743
    %v3745 = vpop.f32.mrf.mxu0
    %3746 = vdwg.mxu0
    %3747 = vmatpush.bf16.msra.mxu0 %v2358
    %3748 = vmatpush.bf16.msra.mxu0 %v2356
    %3749 = vmatpush.bf16.msra.mxu0 %v2354
    %3750 = vmatpush.bf16.msra.mxu0 %v2352
    %3751 = vmatpush.bf16.msra.mxu0 %v2350
    %3752 = vmatpush.bf16.msra.mxu0 %v2348
    %3753 = vmatpush.bf16.msra.mxu0 %v2346
    %3754 = vmatpush.bf16.msra.mxu0 %v2344
    %3755 = vmatmul.bf16.gmra.mxu0 %v559
    %v3756 = vpop.f32.mrf.mxu0
    %v3757 = vadd.f32 %v3744, %v3756
    %v3758 = vpop.f32.mrf.mxu0
    %3759 = vdwg.mxu0
    %3760 = vmatpush.bf16.msra.mxu0 %v2374
    %3761 = vmatpush.bf16.msra.mxu0 %v2372
    %3762 = vmatpush.bf16.msra.mxu0 %v2370
    %3763 = vmatpush.bf16.msra.mxu0 %v2368
    %3764 = vmatpush.bf16.msra.mxu0 %v2366
    %3765 = vmatpush.bf16.msra.mxu0 %v2364
    %3766 = vmatpush.bf16.msra.mxu0 %v2362
    %3767 = vmatpush.bf16.msra.mxu0 %v2360
    %3768 = vmatmul.bf16.gmra.mxu0 %v560
    %v3769 = vpop.f32.mrf.mxu0
    %v3770 = vadd.f32 %v3757, %v3769
    %v3771 = vpop.f32.mrf.mxu0
    %3772 = vdwg.mxu0
    %3773 = vmatpush.bf16.msra.mxu0 %v2390
    %3774 = vmatpush.bf16.msra.mxu0 %v2388
    %3775 = vmatpush.bf16.msra.mxu0 %v2386
    %3776 = vmatpush.bf16.msra.mxu0 %v2384
    %3777 = vmatpush.bf16.msra.mxu0 %v2382
    %3778 = vmatpush.bf16.msra.mxu0 %v2380
    %3779 = vmatpush.bf16.msra.mxu0 %v2378
    %3780 = vmatpush.bf16.msra.mxu0 %v2376
    %3781 = vmatmul.bf16.gmra.mxu0 %v561
    %v3782 = vpop.f32.mrf.mxu0
    %v3783 = vadd.f32 %v3770, %v3782
    %v3784 = vpop.f32.mrf.mxu0
    %3785 = vdwg.mxu0
    %3786 = vmatpush.bf16.msra.mxu0 %v2406
    %3787 = vmatpush.bf16.msra.mxu0 %v2404
    %3788 = vmatpush.bf16.msra.mxu0 %v2402
    %3789 = vmatpush.bf16.msra.mxu0 %v2400
    %3790 = vmatpush.bf16.msra.mxu0 %v2398
    %3791 = vmatpush.bf16.msra.mxu0 %v2396
    %3792 = vmatpush.bf16.msra.mxu0 %v2394
    %3793 = vmatpush.bf16.msra.mxu0 %v2392
    %3794 = vmatmul.bf16.gmra.mxu0 %v562
    %v3795 = vpop.f32.mrf.mxu0
    %v3796 = vadd.f32 %v3783, %v3795
    %v3797 = vpop.f32.mrf.mxu0
    %3798 = vdwg.mxu0
    %3799 = vmatpush.bf16.msra.mxu0 %v2422
    %3800 = vmatpush.bf16.msra.mxu0 %v2420
    %3801 = vmatpush.bf16.msra.mxu0 %v2418
    %3802 = vmatpush.bf16.msra.mxu0 %v2416
    %3803 = vmatpush.bf16.msra.mxu0 %v2414
    %3804 = vmatpush.bf16.msra.mxu0 %v2412
    %3805 = vmatpush.bf16.msra.mxu0 %v2410
    %3806 = vmatpush.bf16.msra.mxu0 %v2408
    %3807 = vmatmul.bf16.gmra.mxu0 %v565
    %v3808 = vpop.f32.mrf.mxu0
    %v3809 = vadd.f32 %v3796, %v3808
    %v3810 = vpop.f32.mrf.mxu0
    %3811 = vdwg.mxu0
    %3812 = vmatpush.bf16.msra.mxu0 %v2438
    %3813 = vmatpush.bf16.msra.mxu0 %v2436
    %3814 = vmatpush.bf16.msra.mxu0 %v2434
    %3815 = vmatpush.bf16.msra.mxu0 %v2432
    %3816 = vmatpush.bf16.msra.mxu0 %v2430
    %3817 = vmatpush.bf16.msra.mxu0 %v2428
    %3818 = vmatpush.bf16.msra.mxu0 %v2426
    %3819 = vmatpush.bf16.msra.mxu0 %v2424
    %3820 = vmatmul.bf16.gmra.mxu0 %v566
    %v3821 = vpop.f32.mrf.mxu0
    %v3822 = vadd.f32 %v3809, %v3821
    %v3823 = vpop.f32.mrf.mxu0
    %3824 = vdwg.mxu0
    %3825 = vmatpush.bf16.msra.mxu0 %v2454
    %3826 = vmatpush.bf16.msra.mxu0 %v2452
    %3827 = vmatpush.bf16.msra.mxu0 %v2450
    %3828 = vmatpush.bf16.msra.mxu0 %v2448
    %3829 = vmatpush.bf16.msra.mxu0 %v2446
    %3830 = vmatpush.bf16.msra.mxu0 %v2444
    %3831 = vmatpush.bf16.msra.mxu0 %v2442
    %3832 = vmatpush.bf16.msra.mxu0 %v2440
    %3833 = vmatmul.bf16.gmra.mxu0 %v567
    %v3834 = vpop.f32.mrf.mxu0
    %v3835 = vadd.f32 %v3822, %v3834
    %v3836 = vpop.f32.mrf.mxu0
    %3837 = vdwg.mxu0
    %3838 = vmatpush.bf16.msra.mxu0 %v2470
    %3839 = vmatpush.bf16.msra.mxu0 %v2468
    %3840 = vmatpush.bf16.msra.mxu0 %v2466
    %3841 = vmatpush.bf16.msra.mxu0 %v2464
    %3842 = vmatpush.bf16.msra.mxu0 %v2462
    %3843 = vmatpush.bf16.msra.mxu0 %v2460
    %3844 = vmatpush.bf16.msra.mxu0 %v2458
    %3845 = vmatpush.bf16.msra.mxu0 %v2456
    %3846 = vmatmul.bf16.gmra.mxu0 %v568
    %v3847 = vpop.f32.mrf.mxu0
    %v3848 = vadd.f32 %v3835, %v3847
    %v3849 = vpop.f32.mrf.mxu0
    %3850 = vdwg.mxu0
    %3851 = vmatpush.bf16.msra.mxu0 %v2486
    %3852 = vmatpush.bf16.msra.mxu0 %v2484
    %3853 = vmatpush.bf16.msra.mxu0 %v2482
    %3854 = vmatpush.bf16.msra.mxu0 %v2480
    %3855 = vmatpush.bf16.msra.mxu0 %v2478
    %3856 = vmatpush.bf16.msra.mxu0 %v2476
    %3857 = vmatpush.bf16.msra.mxu0 %v2474
    %3858 = vmatpush.bf16.msra.mxu0 %v2472
    %3859 = vmatmul.bf16.gmra.mxu0 %v569
    %v3860 = vpop.f32.mrf.mxu0
    %v3861 = vadd.f32 %v3848, %v3860
    %v3862 = vpop.f32.mrf.mxu0
    %3863 = vdwg.mxu0
    %3864 = vmatpush.bf16.msra.mxu0 %v2502
    %3865 = vmatpush.bf16.msra.mxu0 %v2500
    %3866 = vmatpush.bf16.msra.mxu0 %v2498
    %3867 = vmatpush.bf16.msra.mxu0 %v2496
    %3868 = vmatpush.bf16.msra.mxu0 %v2494
    %3869 = vmatpush.bf16.msra.mxu0 %v2492
    %3870 = vmatpush.bf16.msra.mxu0 %v2490
    %3871 = vmatpush.bf16.msra.mxu0 %v2488
    %3872 = vmatmul.bf16.gmra.mxu0 %v570
    %v3873 = vpop.f32.mrf.mxu0
    %v3874 = vadd.f32 %v3861, %v3873
    %v3875 = vpop.f32.mrf.mxu0
    %3876 = vdwg.mxu0
    %3877 = vmatpush.bf16.msra.mxu0 %v2518
    %3878 = vmatpush.bf16.msra.mxu0 %v2516
    %3879 = vmatpush.bf16.msra.mxu0 %v2514
    %3880 = vmatpush.bf16.msra.mxu0 %v2512
    %3881 = vmatpush.bf16.msra.mxu0 %v2510
    %3882 = vmatpush.bf16.msra.mxu0 %v2508
    %3883 = vmatpush.bf16.msra.mxu0 %v2506
    %3884 = vmatpush.bf16.msra.mxu0 %v2504
    %3885 = vmatmul.bf16.gmra.mxu0 %v571
    %v3886 = vpop.f32.mrf.mxu0
    %v3887 = vadd.f32 %v3874, %v3886
    %v3888 = vpop.f32.mrf.mxu0
    %3889 = vdwg.mxu0
    %3890 = vmatpush.bf16.msra.mxu0 %v2534
    %3891 = vmatpush.bf16.msra.mxu0 %v2532
    %3892 = vmatpush.bf16.msra.mxu0 %v2530
    %3893 = vmatpush.bf16.msra.mxu0 %v2528
    %3894 = vmatpush.bf16.msra.mxu0 %v2526
    %3895 = vmatpush.bf16.msra.mxu0 %v2524
    %3896 = vmatpush.bf16.msra.mxu0 %v2522
    %3897 = vmatpush.bf16.msra.mxu0 %v2520
    %3898 = vmatmul.bf16.gmra.mxu0 %v572
    %v3899 = vpop.f32.mrf.mxu0
    %v3900 = vadd.f32 %v3887, %v3899
    %v3901 = vpop.f32.mrf.mxu0
    %3902 = vdwg.mxu0
    %3903 = vmatpush.bf16.msra.mxu0 %v2550
    %3904 = vmatpush.bf16.msra.mxu0 %v2548
    %3905 = vmatpush.bf16.msra.mxu0 %v2546
    %3906 = vmatpush.bf16.msra.mxu0 %v2544
    %3907 = vmatpush.bf16.msra.mxu0 %v2542
    %3908 = vmatpush.bf16.msra.mxu0 %v2540
    %3909 = vmatpush.bf16.msra.mxu0 %v2538
    %3910 = vmatpush.bf16.msra.mxu0 %v2536
    %3911 = vmatmul.bf16.gmra.mxu0 %v575
    %v3912 = vpop.f32.mrf.mxu0
    %v3913 = vadd.f32 %v3900, %v3912
    %v3914 = vpop.f32.mrf.mxu0
    %3915 = vdwg.mxu0
    %3916 = vmatpush.bf16.msra.mxu0 %v2566
    %3917 = vmatpush.bf16.msra.mxu0 %v2564
    %3918 = vmatpush.bf16.msra.mxu0 %v2562
    %3919 = vmatpush.bf16.msra.mxu0 %v2560
    %3920 = vmatpush.bf16.msra.mxu0 %v2558
    %3921 = vmatpush.bf16.msra.mxu0 %v2556
    %3922 = vmatpush.bf16.msra.mxu0 %v2554
    %3923 = vmatpush.bf16.msra.mxu0 %v2552
    %3924 = vmatmul.bf16.gmra.mxu0 %v576
    %v3925 = vpop.f32.mrf.mxu0
    %v3926 = vadd.f32 %v3913, %v3925
    %v3927 = vpop.f32.mrf.mxu0
    %3928 = vdwg.mxu0
    %3929 = vmatpush.bf16.msra.mxu0 %v2582
    %3930 = vmatpush.bf16.msra.mxu0 %v2580
    %3931 = vmatpush.bf16.msra.mxu0 %v2578
    %3932 = vmatpush.bf16.msra.mxu0 %v2576
    %3933 = vmatpush.bf16.msra.mxu0 %v2574
    %3934 = vmatpush.bf16.msra.mxu0 %v2572
    %3935 = vmatpush.bf16.msra.mxu0 %v2570
    %3936 = vmatpush.bf16.msra.mxu0 %v2568
    %3937 = vmatmul.bf16.gmra.mxu0 %v577
    %v3938 = vpop.f32.mrf.mxu0
    %v3939 = vadd.f32 %v3926, %v3938
    %v3940 = vpop.f32.mrf.mxu0
    %3941 = vdwg.mxu0
    %3942 = vmatpush.bf16.msra.mxu0 %v2598
    %3943 = vmatpush.bf16.msra.mxu0 %v2596
    %3944 = vmatpush.bf16.msra.mxu0 %v2594
    %3945 = vmatpush.bf16.msra.mxu0 %v2592
    %3946 = vmatpush.bf16.msra.mxu0 %v2590
    %3947 = vmatpush.bf16.msra.mxu0 %v2588
    %3948 = vmatpush.bf16.msra.mxu0 %v2586
    %3949 = vmatpush.bf16.msra.mxu0 %v2584
    %3950 = vmatmul.bf16.gmra.mxu0 %v578
    %v3951 = vpop.f32.mrf.mxu0
    %v3952 = vadd.f32 %v3939, %v3951
    %v3953 = vpop.f32.mrf.mxu0
    %3954 = vdwg.mxu0
    %3955 = vmatpush.bf16.msra.mxu0 %v2614
    %3956 = vmatpush.bf16.msra.mxu0 %v2612
    %3957 = vmatpush.bf16.msra.mxu0 %v2610
    %3958 = vmatpush.bf16.msra.mxu0 %v2608
    %3959 = vmatpush.bf16.msra.mxu0 %v2606
    %3960 = vmatpush.bf16.msra.mxu0 %v2604
    %3961 = vmatpush.bf16.msra.mxu0 %v2602
    %3962 = vmatpush.bf16.msra.mxu0 %v2600
    %3963 = vmatmul.bf16.gmra.mxu0 %v579
    %v3964 = vpop.f32.mrf.mxu0
    %v3965 = vadd.f32 %v3952, %v3964
    %v3966 = vpop.f32.mrf.mxu0
    %3967 = vdwg.mxu0
    %3968 = vmatpush.bf16.msra.mxu0 %v2630
    %3969 = vmatpush.bf16.msra.mxu0 %v2628
    %3970 = vmatpush.bf16.msra.mxu0 %v2626
    %3971 = vmatpush.bf16.msra.mxu0 %v2624
    %3972 = vmatpush.bf16.msra.mxu0 %v2622
    %3973 = vmatpush.bf16.msra.mxu0 %v2620
    %3974 = vmatpush.bf16.msra.mxu0 %v2618
    %3975 = vmatpush.bf16.msra.mxu0 %v2616
    %3976 = vmatmul.bf16.gmra.mxu0 %v580
    %v3977 = vpop.f32.mrf.mxu0
    %v3978 = vadd.f32 %v3965, %v3977
    %v3979 = vpop.f32.mrf.mxu0
    %3980 = vdwg.mxu0
    %3981 = vmatpush.bf16.msra.mxu0 %v2646
    %3982 = vmatpush.bf16.msra.mxu0 %v2644
    %3983 = vmatpush.bf16.msra.mxu0 %v2642
    %3984 = vmatpush.bf16.msra.mxu0 %v2640
    %3985 = vmatpush.bf16.msra.mxu0 %v2638
    %3986 = vmatpush.bf16.msra.mxu0 %v2636
    %3987 = vmatpush.bf16.msra.mxu0 %v2634
    %3988 = vmatpush.bf16.msra.mxu0 %v2632
    %3989 = vmatmul.bf16.gmra.mxu0 %v581
    %v3990 = vpop.f32.mrf.mxu0
    %v3991 = vadd.f32 %v3978, %v3990
    %v3992 = vpop.f32.mrf.mxu0
    %3993 = vdwg.mxu0
    %3994 = vmatpush.bf16.msra.mxu0 %v2662
    %3995 = vmatpush.bf16.msra.mxu0 %v2660
    %3996 = vmatpush.bf16.msra.mxu0 %v2658
    %3997 = vmatpush.bf16.msra.mxu0 %v2656
    %3998 = vmatpush.bf16.msra.mxu0 %v2654
    %3999 = vmatpush.bf16.msra.mxu0 %v2652
    %4000 = vmatpush.bf16.msra.mxu0 %v2650
    %4001 = vmatpush.bf16.msra.mxu0 %v2648
    %4002 = vmatmul.bf16.gmra.mxu0 %v582
    %v4003 = vpop.f32.mrf.mxu0
    %v4004 = vadd.f32 %v3991, %v4003
    %v4005 = vpop.f32.mrf.mxu0
    %4006 = vdwg.mxu0
    %v4007 = vmax.f32 %v3588, 0.0
    %v4008 = vmax.f32 %v4004, 0.0
    %v4009 = vpack.c.bf16 %v4007, %v4007
    %v4010 = vpack.c.bf16 %v4008, %v4008
    %v4011 = vld [vmem:[%s3] sm:$0xf]
    %v4012 = vld [vmem:[%s3 + $0x4] sm:$0xf]
    %v4013 = vld [vmem:[%s3 + $0x8] sm:$0xf]
    %v4014 = vld [vmem:[%s3 + $0xc] sm:$0xf]
    %v4015 = vld [vmem:[%s3 + $0x10] sm:$0xf]
    %v4016 = vld [vmem:[%s3 + $0x14] sm:$0xf]
    %v4017 = vld [vmem:[%s3 + $0x18] sm:$0xf]
    %v4018 = vld [vmem:[%s3 + $0x1c] sm:$0xf]
    %v4019 = vld [vmem:[%s3 + $0x20] sm:$0xf]
    %v4020 = vld [vmem:[%s3 + $0x24] sm:$0xf]
    %v4021 = vld [vmem:[%s3 + $0x28] sm:$0xf]
    %v4022 = vld [vmem:[%s3 + $0x2c] sm:$0xf]
    %v4023 = vld [vmem:[%s3 + $0x30] sm:$0xf]
    %v4024 = vld [vmem:[%s3 + $0x34] sm:$0xf]
    %v4025 = vld [vmem:[%s3 + $0x38] sm:$0xf]
    %v4026 = vld [vmem:[%s3 + $0x3c] sm:$0xf]
    %v4027 = vld [vmem:[%s3 + $0x40] sm:$0xf]
    %v4028 = vld [vmem:[%s3 + $0x44] sm:$0xf]
    %v4029 = vld [vmem:[%s3 + $0x48] sm:$0xf]
    %v4030 = vld [vmem:[%s3 + $0x4c] sm:$0xf]
    %v4031 = vld [vmem:[%s3 + $0x50] sm:$0xf]
    %v4032 = vld [vmem:[%s3 + $0x54] sm:$0xf]
    %v4033 = vld [vmem:[%s3 + $0x58] sm:$0xf]
    %v4034 = vld [vmem:[%s3 + $0x5c] sm:$0xf]
    %v4035 = vld [vmem:[%s3 + $0x60] sm:$0xf]
    %v4036 = vld [vmem:[%s3 + $0x64] sm:$0xf]
    %v4037 = vld [vmem:[%s3 + $0x68] sm:$0xf]
    %v4038 = vld [vmem:[%s3 + $0x6c] sm:$0xf]
    %v4039 = vld [vmem:[%s3 + $0x70] sm:$0xf]
    %v4040 = vld [vmem:[%s3 + $0x74] sm:$0xf]
    %v4041 = vld [vmem:[%s3 + $0x78] sm:$0xf]
    %v4042 = vld [vmem:[%s3 + $0x7c] sm:$0xf]
    %v4043 = vld [vmem:[%s4] sm:$0x1]
    %v4045 = vperm.slane %v4043, 0
    %v4079 = vunpack.c.l.b16 %v4011
    %v4080 = vunpack.c.l.b16 %v4012
    %v4081 = vunpack.c.l.b16 %v4013
    %v4082 = vunpack.c.l.b16 %v4014
    %v4083 = vunpack.c.l.b16 %v4015
    %v4084 = vunpack.c.l.b16 %v4016
    %v4085 = vunpack.c.l.b16 %v4017
    %v4086 = vunpack.c.l.b16 %v4018
    %v4087 = vunpack.c.l.b16 %v4019
    %v4088 = vunpack.c.l.b16 %v4020
    %v4089 = vunpack.c.l.b16 %v4021
    %v4090 = vunpack.c.l.b16 %v4022
    %v4091 = vunpack.c.l.b16 %v4023
    %v4092 = vunpack.c.l.b16 %v4024
    %v4093 = vunpack.c.l.b16 %v4025
    %v4094 = vunpack.c.l.b16 %v4026
    %v4095 = vunpack.c.l.b16 %v4027
    %v4096 = vunpack.c.l.b16 %v4028
    %v4097 = vunpack.c.l.b16 %v4029
    %v4098 = vunpack.c.l.b16 %v4030
    %v4099 = vunpack.c.l.b16 %v4031
    %v4100 = vunpack.c.l.b16 %v4032
    %v4101 = vunpack.c.l.b16 %v4033
    %v4102 = vunpack.c.l.b16 %v4034
    %v4103 = vunpack.c.l.b16 %v4035
    %v4104 = vunpack.c.l.b16 %v4036
    %v4105 = vunpack.c.l.b16 %v4037
    %v4106 = vunpack.c.l.b16 %v4038
    %v4107 = vunpack.c.l.b16 %v4039
    %v4108 = vunpack.c.l.b16 %v4040
    %v4109 = vunpack.c.l.b16 %v4041
    %v4110 = vunpack.c.l.b16 %v4042
    %v4111 = vpack.c.b16 %v4080, %v4079
    %v4112 = vpack.c.b16 %v4082, %v4081
    %v4113 = vpack.c.b16 %v4084, %v4083
    %v4114 = vpack.c.b16 %v4086, %v4085
    %v4115 = vpack.c.b16 %v4088, %v4087
    %v4116 = vpack.c.b16 %v4090, %v4089
    %v4117 = vpack.c.b16 %v4092, %v4091
    %v4118 = vpack.c.b16 %v4094, %v4093
    %v4119 = vpack.c.b16 %v4096, %v4095
    %v4120 = vpack.c.b16 %v4098, %v4097
    %v4121 = vpack.c.b16 %v4100, %v4099
    %v4122 = vpack.c.b16 %v4102, %v4101
    %v4123 = vpack.c.b16 %v4104, %v4103
    %v4124 = vpack.c.b16 %v4106, %v4105
    %v4125 = vpack.c.b16 %v4108, %v4107
    %v4126 = vpack.c.b16 %v4110, %v4109
    %4143 = vmatpush.bf16.msra.mxu0 %v4118
    %4144 = vmatpush.bf16.msra.mxu0 %v4117
    %4145 = vmatpush.bf16.msra.mxu0 %v4116
    %4146 = vmatpush.bf16.msra.mxu0 %v4115
    %4147 = vmatpush.bf16.msra.mxu0 %v4114
    %4148 = vmatpush.bf16.msra.mxu0 %v4113
    %4149 = vmatpush.bf16.msra.mxu0 %v4112
    %4150 = vmatpush.bf16.msra.mxu0 %v4111
    %4151 = vmatmul.bf16.gmra.mxu0 %v4009
    %v4152 = vpop.f32.mrf.mxu0
    %v4153 = vadd.f32 %v4045, %v4152
    %v4154 = vpop.f32.mrf.mxu0
    %4155 = vdwg.mxu0
    %4156 = vmatpush.bf16.msra.mxu0 %v4126
    %4157 = vmatpush.bf16.msra.mxu0 %v4125
    %4158 = vmatpush.bf16.msra.mxu0 %v4124
    %4159 = vmatpush.bf16.msra.mxu0 %v4123
    %4160 = vmatpush.bf16.msra.mxu0 %v4122
    %4161 = vmatpush.bf16.msra.mxu0 %v4121
    %4162 = vmatpush.bf16.msra.mxu0 %v4120
    %4163 = vmatpush.bf16.msra.mxu0 %v4119
    %4164 = vmatmul.bf16.gmra.mxu0 %v4010
    %v4165 = vpop.f32.mrf.mxu0
    %v4166 = vadd.f32 %v4153, %v4165
    %v4167 = vpop.f32.mrf.mxu0
    %4168 = vdwg.mxu0
    %vm4169 = vcmask 74752
    %4170 = vst.msk [vmem:[#allocation2] sm:$0x3] %vm4169, %v4166
    // Predicated region
    $region22: #{hkcnn_forward.7} parent=1 // pred_check
      _
    $region23: #{hkcnn_forward.7} parent=1 // pred_check_branch
      %4172 = sbr.rel (0) target = $region25
    $region24: #{hkcnn_forward.7} parent=1 // pred_region
      %4174 = vsyncadd [#allocation3], 0
      %s4176 = sshll.u32 [#allocation2], 4
      %s4177 = int_to_ptr.vmem [resolvable:$true] %s4176
      %s4178 = sshll.u32 %s5, 4
      %s4179 = int_to_ptr.hbm [resolvable:$true] %s4178
      %4181 = dma.vmem_to_hbm [thread:$0]  %s4177, 32, %s4179, [#allocation3]
    $region25: #{hkcnn_forward.7} parent=1 // pred_fallthru
      _
    // Predicated region
    $region26: #{hkcnn_forward.7} parent=1 // pred_check
      _
    $region27: #{hkcnn_forward.7} parent=1 // pred_check_branch
      %4183 = sbr.rel (0) target = $region29
    $region28: #{hkcnn_forward.7} parent=1 // pred_region
      %4185 = dma.done [#allocation3], 32
    $region29: #{hkcnn_forward.7} parent=1 // pred_fallthru
      _
    %4186 = vsyncpa [#allocation3], 1

</llo_original>
